<compile_context>
chip_gen: v7x
topology: tpu7x:2x2x1
jax: 0.10.0
libtpu: 0.0.40
codegen_flags: <defaults>
</compile_context>

<pallas_src>
import math
import functools

import jax
import jax.numpy as jnp
from jax import lax
from jax.experimental import pallas as pl
from jax.experimental.pallas import tpu as pltpu

LANE = 128
NEG_BIG = -1e30
PI_FILL = -10000000000.0  # matches masked_fill value in the module


def _round_up(x, m):
    return ((x + m - 1) // m) * m


def _pad2(w, rows, cols):
    w = jnp.asarray(w, jnp.float32)
    return jnp.pad(w, ((0, rows - w.shape[0]), (0, cols - w.shape[1])))


# --------------------------------------------------------------------------
# kernel
# --------------------------------------------------------------------------
def make_kernel(*, ts, tb, ne, ed, na, nh, Dp, HDP, Hp, Ap):
    """Fused forward for one batch tile (tb batch rows, all ts timesteps)."""
    R = ts * tb  # flattened (time, batch) rows inside the block

    def kernel(ent_ref, obsm_ref, entm_ref, h0_ref,
               w1_ref, b1_ref,
               wq_ref, wk_ref, wv_ref, wo_ref, bo_ref,
               w2_ref, b2_ref,
               wir_ref, wiz_ref, win_ref,
               whr_ref, whz_ref, whn_ref,
               br_ref, bz_ref, bin_ref, bhn_ref,
               wqh_ref, bqh_ref, wpi_ref, bpi_ref,
               q_out_ref, pi_out_ref, hs_out_ref,
               x3_ref):
        # ---- fc1 + relu (lane-dense Dp output) ---------------------------
        ent = ent_ref[...].reshape(R * ne, ed)                       # (R*ne, ed)
        x1 = jnp.maximum(ent @ w1_ref[...] + b1_ref[...], 0.0)       # (R*ne, Dp)
        x1_3 = x1.reshape(R, ne, Dp)

        # queries only for the na agent rows
        xa = x1_3[:, :na, :].reshape(R * na, Dp)                     # (R*na, Dp)

        # ---- QKV projections; each head owns a 128-lane slab; 1/sqrt(hd)
        #      is folded into wq by the wrapper --------------------------------
        q3 = (xa @ wq_ref[...]).reshape(R, na, nh * HDP)
        k3 = (x1 @ wk_ref[...]).reshape(R, ne, nh * HDP)
        v3 = (x1 @ wv_ref[...]).reshape(R, ne, nh * HDP)

        pre_mask = obsm_ref[...].reshape(R, na, ne)                  # 1.0 -> masked
        masked = pre_mask > 0.0
        all_masked = jnp.min(pre_mask, axis=-1, keepdims=True) > 0.0  # (R, na, 1)

        heads = []
        for h in range(nh):                                          # 128-lane aligned slices
            sl = slice(h * HDP, (h + 1) * HDP)
            qh, kh, vh = q3[..., sl], k3[..., sl], v3[..., sl]
            logits = jnp.einsum('bqd,bkd->bqk', qh, kh,
                                preferred_element_type=jnp.float32)
            logits = jnp.where(masked, NEG_BIG, logits)
            m = jnp.max(logits, axis=-1, keepdims=True)
            e = jnp.exp(logits - m)
            s = jnp.sum(e, axis=-1, keepdims=True)
            attn = e * pl.reciprocal(s, approx=True)
            attn = jnp.where(all_masked, 0.0, attn)
            heads.append(jnp.einsum('bqk,bkd->bqd', attn, vh,
                                    preferred_element_type=jnp.float32))
        ctx = jnp.concatenate(heads, axis=-1)                        # (R, na, nh*HDP)
        attn_out = ctx.reshape(R * na, nh * HDP) @ wo_ref[...] + bo_ref[...]
        attn_out = attn_out.reshape(R, na, Dp)

        agent_bool = entm_ref[...] > 0.0                             # (ts, tb, na, 1)
        attn_out = jnp.where(agent_bool.reshape(R, na, 1), 0.0, attn_out)

        # ---- fc2 + relu, stored time-major for the recurrence ------------
        x3 = jnp.maximum(attn_out.reshape(R * na, Dp) @ w2_ref[...] + b2_ref[...], 0.0)
        x3_ref[...] = x3.reshape(ts, tb * na, Hp)

        # ---- GRU over time: fori_loop writes each step into hs_out_ref ---
        wir, wiz, win = wir_ref[...], wiz_ref[...], win_ref[...]
        whr, whz, whn = whr_ref[...], whz_ref[...], whn_ref[...]
        br, bz, bin_, bhn = br_ref[...], bz_ref[...], bin_ref[...], bhn_ref[...]

        def gru_step(t, h):
            xt = x3_ref[t]                                           # (tb*na, Hp)
            r = jax.nn.sigmoid(xt @ wir + h @ whr + br)
            z = jax.nn.sigmoid(xt @ wiz + h @ whz + bz)
            n = jnp.tanh(xt @ win + bin_ + r * (h @ whn + bhn))
            h_new = (1.0 - z) * n + z * h
            hs_out_ref[t] = h_new.reshape(tb, na, Hp)
            return h_new

        h0 = h0_ref[...].reshape(tb * na, Hp)
        lax.fori_loop(0, ts, gru_step, h0)

        # ---- output heads + masking (lane-dense Ap output slabs) ----------
        hs_flat = hs_out_ref[...].reshape(R * na, Hp)
        q_lin = (hs_flat @ wqh_ref[...] + bqh_ref[...]).reshape(ts, tb, na, Ap)
        p_lin = (hs_flat @ wpi_ref[...] + bpi_ref[...]).reshape(ts, tb, na, Ap)
        q_out_ref[...] = jnp.where(agent_bool, 0.0, q_lin)
        pi_out_ref[...] = jnp.where(agent_bool, PI_FILL, p_lin)

    return kernel


# --------------------------------------------------------------------------
# parameter preparation (pad to 128-lane layouts, split heads / gates)
# --------------------------------------------------------------------------
def prepare_params(params, *, n_heads):
    ed, D = params['w1'].shape
    H = params['w2'].shape[1]
    A = params['wq'].shape[1]
    nh = n_heads
    assert D % nh == 0
    hd = D // nh
    Dp = _round_up(D, LANE)
    HDP = _round_up(hd, LANE)        # one full 128-lane slab per head
    Hp = _round_up(H, LANE)
    Ap = _round_up(A, LANE)
    scale = math.sqrt(float(hd))

    wqkv = jnp.asarray(params['wqkv'], jnp.float32)
    wq_o, wk_o, wv_o = wqkv[:, :D], wqkv[:, D:2 * D], wqkv[:, 2 * D:3 * D]

    def head_cols(w, scale_div=1.0):
        # (D, D) -> (Dp, nh*HDP); head h occupies lanes [h*HDP, h*HDP+hd)
        out = jnp.zeros((Dp, nh * HDP), jnp.float32)
        for h in range(nh):
            out = out.at[:D, h * HDP:h * HDP + hd].set(
                w[:, h * hd:(h + 1) * hd] / scale_div)
        return out

    def head_rows(w):
        # (D, D) -> (nh*HDP, Dp); head h occupies rows [h*HDP, h*HDP+hd)
        out = jnp.zeros((nh * HDP, Dp), jnp.float32)
        for h in range(nh):
            out = out.at[h * HDP:h * HDP + hd, :D].set(w[h * hd:(h + 1) * hd, :])
        return out

    wih = jnp.asarray(params['wih'], jnp.float32)
    whh = jnp.asarray(params['whh'], jnp.float32)
    bih = jnp.asarray(params['bih'], jnp.float32)
    bhh = jnp.asarray(params['bhh'], jnp.float32)

    prepared = {
        'w1': _pad2(params['w1'], ed, Dp), 'b1': _pad2(params['b1'], 1, Dp),
        'wq': head_cols(wq_o, scale), 'wk': head_cols(wk_o), 'wv': head_cols(wv_o),
        'wo': head_rows(jnp.asarray(params['wo'], jnp.float32)),
        'bo': _pad2(params['bo'], 1, Dp),
        'w2': _pad2(params['w2'], Dp, Hp), 'b2': _pad2(params['b2'], 1, Hp),
        'wir': _pad2(wih[:, :H], Hp, Hp), 'wiz': _pad2(wih[:, H:2 * H], Hp, Hp),
        'win': _pad2(wih[:, 2 * H:], Hp, Hp),
        'whr': _pad2(whh[:, :H], Hp, Hp), 'whz': _pad2(whh[:, H:2 * H], Hp, Hp),
        'whn': _pad2(whh[:, 2 * H:], Hp, Hp),
        'br': _pad2(bih[:, :H] + bhh[:, :H], 1, Hp),
        'bz': _pad2(bih[:, H:2 * H] + bhh[:, H:2 * H], 1, Hp),
        'bin': _pad2(bih[:, 2 * H:], 1, Hp), 'bhn': _pad2(bhh[:, 2 * H:], 1, Hp),
        'wqh': _pad2(params['wq'], Hp, Ap), 'bqh': _pad2(params['bq'], 1, Ap),
        'wpi': _pad2(params['wpi'], Hp, Ap), 'bpi': _pad2(params['bpi'], 1, Ap),
    }
    dims = dict(D=D, H=H, A=A, hd=hd, Dp=Dp, HDP=HDP, Hp=Hp, Ap=Ap, nh=nh)
    return prepared, dims


def _pick_batch_tile(bs, ts, ne, na, ed, Dp, HDP, nh, Hp, Ap,
                     budget_bytes=8 * 1024 * 1024):
    # rough per-batch-row activation footprint; budget leaves headroom for the
    # resident weights + double-buffered I/O even on v7x's 64 MiB VMEM.
    per_row = 4 * ts * (
        ne * ed + na * ne + na
        + ne * Dp + 3 * ne * nh * HDP
        + nh * na * ne + na * nh * HDP
        + na * (Dp + 3 * Hp)
        + na * (Hp + 2 * Ap)
    )
    tile = 1
    for t in range(1, bs + 1):
        if bs % t == 0 and t * per_row <= budget_bytes:
            tile = t
    return tile


# --------------------------------------------------------------------------
# wrapper
# --------------------------------------------------------------------------
def entity_attention_rnn_forward(entities, obs_mask, entity_mask, hidden_state,
                                 params, *, n_agents, n_heads, batch_tile=None,
                                 vmem_limit_bytes=48 * 1024 * 1024):
    bs, ts, ne, ed = entities.shape
    na = n_agents
    prepared, dims = prepare_params(params, n_heads=n_heads)
    D, H, A = dims['D'], dims['H'], dims['A']
    Dp, HDP, Hp, Ap, nh = dims['Dp'], dims['HDP'], dims['Hp'], dims['Ap'], dims['nh']

    # time-major activations; masks sliced to the agent rows the kernel uses.
    ent_t = jnp.transpose(entities, (1, 0, 2, 3)).astype(jnp.float32)        # (ts,bs,ne,ed)
    obsm_t = jnp.transpose(obs_mask[:, :, :na, :], (1, 0, 2, 3)).astype(jnp.float32)
    entm_t = jnp.transpose(entity_mask[:, :, :na], (1, 0, 2))[..., None].astype(jnp.float32)
    h0 = hidden_state.reshape(bs, na, H).astype(jnp.float32)
    h0p = jnp.pad(h0, ((0, 0), (0, 0), (0, Hp - H)))

    if batch_tile is None:
        batch_tile = _pick_batch_tile(bs, ts, ne, na, ed, Dp, HDP, nh, Hp, Ap)
    tb = batch_tile
    assert bs % tb == 0, "batch_tile must divide the batch size"
    grid = (bs // tb,)

    kernel = make_kernel(ts=ts, tb=tb, ne=ne, ed=ed, na=na, nh=nh,
                         Dp=Dp, HDP=HDP, Hp=Hp, Ap=Ap)

    def _bspec(shape):  # batch-tiled activation/output blocks (batch axis = dim 1)
        nd = len(shape)
        return pl.BlockSpec(shape, lambda i, _n=nd: (0, i) + (0,) * (_n - 2))

    def _wspec(arr):    # whole weight resident in VMEM; same block every grid step
        nd = arr.ndim
        return pl.BlockSpec(arr.shape, lambda i, _n=nd: (0,) * _n)

    weight_order = ('w1', 'b1', 'wq', 'wk', 'wv', 'wo', 'bo', 'w2', 'b2',
                    'wir', 'wiz', 'win', 'whr', 'whz', 'whn',
                    'br', 'bz', 'bin', 'bhn', 'wqh', 'bqh', 'wpi', 'bpi')
    weights = [prepared[k] for k in weight_order]

    in_specs = [
        _bspec((ts, tb, ne, ed)),
        _bspec((ts, tb, na, ne)),
        _bspec((ts, tb, na, 1)),
        pl.BlockSpec((tb, na, Hp), lambda i: (i, 0, 0)),
    ] + [_wspec(w) for w in weights]

    out_specs = (
        _bspec((ts, tb, na, Ap)),
        _bspec((ts, tb, na, Ap)),
        _bspec((ts, tb, na, Hp)),
    )
    out_shape = (
        jax.ShapeDtypeStruct((ts, bs, na, Ap), jnp.float32),
        jax.ShapeDtypeStruct((ts, bs, na, Ap), jnp.float32),
        jax.ShapeDtypeStruct((ts, bs, na, Hp), jnp.float32),
    )

    cost = pl.CostEstimate(
        flops=int(2 * bs * ts * (ne * ed * D + (na + 2 * ne) * D * D
                                 + 2 * na * ne * D + na * D * D + na * D * H
                                 + 6 * na * H * H + 2 * na * H * A)),
        transcendentals=int(bs * ts * na * (nh * ne + 3 * H)),
        bytes_accessed=int(4 * (ent_t.size + obsm_t.size + entm_t.size + h0p.size
                                + sum(int(w.size) for w in weights)
                                + 2 * ts * bs * na * Ap + ts * bs * na * Hp)),
    )

    q_pad, pi_pad, hs_pad = pl.pallas_call(
        kernel,
        grid=grid,
        in_specs=in_specs,
        out_specs=out_specs,
        out_shape=out_shape,
        scratch_shapes=[pltpu.VMEM((ts, tb * na, Hp), jnp.float32)],
        compiler_params=pltpu.CompilerParams(
            dimension_semantics=("parallel",),
            vmem_limit_bytes=vmem_limit_bytes),
        cost_estimate=cost,
    )(ent_t, obsm_t, entm_t, h0p, *weights)

    # un-pad + back to (bs, ts, na, ...) layout -- pure XLA-side layout plumbing.
    q_out = jnp.transpose(q_pad[..., :A], (1, 0, 2, 3))
    pi_out = jnp.transpose(pi_pad[..., :A], (1, 0, 2, 3))
    hs = jnp.transpose(hs_pad[..., :H], (1, 0, 2, 3))
    return (q_out, pi_out), hs


# --------------------------------------------------------------------------
# pure-JAX reference (mirrors the PyTorch forward) + params
# --------------------------------------------------------------------------
def reference_forward(entities, obs_mask, entity_mask, hidden_state, params,
                      *, n_agents, n_heads):
    bs, ts, ne, ed = entities.shape
    D = params['w1'].shape[1]
    H = params['w2'].shape[1]
    A = params['wq'].shape[1]
    hd = D // n_heads
    BT = bs * ts

    ent = entities.reshape(BT, ne, ed)
    om = obs_mask.reshape(BT, ne, ne)
    em = entity_mask.reshape(BT, ne)
    agent_mask = em[:, :n_agents]
    agent_bool = agent_mask > 0.0

    x1 = jax.nn.relu(ent @ params['w1'] + params['b1'])
    qkv = x1 @ params['wqkv']
    q = qkv[:, :n_agents, :D]
    k = qkv[:, :, D:2 * D]
    v = qkv[:, :, 2 * D:]
    pre_mask = om[:, :n_agents, :]
    masked = pre_mask > 0.0
    all_masked = jnp.min(pre_mask, axis=-1, keepdims=True) > 0.0

    heads = []
    for h in range(n_heads):
        qh, kh, vh = (q[..., h * hd:(h + 1) * hd],
                      k[..., h * hd:(h + 1) * hd],
                      v[..., h * hd:(h + 1) * hd])
        logits = jnp.einsum('bqd,bkd->bqk', qh, kh) / math.sqrt(hd)
        logits = jnp.where(masked, -1e30, logits)
        attn = jax.nn.softmax(logits, axis=-1)
        attn = jnp.where(all_masked, 0.0, attn)
        heads.append(jnp.einsum('bqk,bkd->bqd', attn, vh))
    attn_out = jnp.concatenate(heads, axis=-1) @ params['wo'] + params['bo']
    attn_out = jnp.where(agent_bool[:, :, None], 0.0, attn_out)

    x3 = jax.nn.relu(attn_out @ params['w2'] + params['b2'])
    x3 = x3.reshape(bs, ts, n_agents, H)

    h_state = hidden_state.reshape(-1, H)
    hs_list = []
    for t in range(ts):
        xt = x3[:, t].reshape(bs * n_agents, H)
        gx = xt @ params['wih'] + params['bih']
        gh = h_state @ params['whh'] + params['bhh']
        r = jax.nn.sigmoid(gx[:, :H] + gh[:, :H])
        z = jax.nn.sigmoid(gx[:, H:2 * H] + gh[:, H:2 * H])
        n = jnp.tanh(gx[:, 2 * H:] + r * gh[:, 2 * H:])
        h_state = (1.0 - z) * n + z * h_state
        hs_list.append(h_state.reshape(bs, n_agents, H))
    hs = jnp.stack(hs_list, axis=1)

    flat = hs.reshape(bs * ts * n_agents, H)
    q_out = (flat @ params['wq'] + params['bq']).reshape(bs, ts, n_agents, A)
    pi_out = (flat @ params['wpi'] + params['bpi']).reshape(bs, ts, n_agents, A)
    amask4 = agent_bool.reshape(bs, ts, n_agents, 1)
    q_out = jnp.where(amask4, 0.0, q_out)
    pi_out = jnp.where(amask4, PI_FILL, pi_out)
    return (q_out, pi_out), hs


def init_params(key, ed, D, H, A):
    ks = jax.random.split(key, 16)
    s = 0.1
    return {
        'w1':   s * jax.random.normal(ks[0],  (ed, D), jnp.float32),
        'b1':   s * jax.random.normal(ks[1],  (1, D), jnp.float32),
        'wqkv': s * jax.random.normal(ks[2],  (D, 3 * D), jnp.float32),
        'wo':   s * jax.random.normal(ks[3],  (D, D), jnp.float32),
        'bo':   s * jax.random.normal(ks[4],  (1, D), jnp.float32),
        'w2':   s * jax.random.normal(ks[5],  (D, H), jnp.float32),
        'b2':   s * jax.random.normal(ks[6],  (1, H), jnp.float32),
        'wih':  s * jax.random.normal(ks[7],  (H, 3 * H), jnp.float32),
        'whh':  s * jax.random.normal(ks[8],  (H, 3 * H), jnp.float32),
        'bih':  s * jax.random.normal(ks[9],  (1, 3 * H), jnp.float32),
        'bhh':  s * jax.random.normal(ks[10], (1, 3 * H), jnp.float32),
        'wq':   s * jax.random.normal(ks[11], (H, A), jnp.float32),
        'bq':   s * jax.random.normal(ks[12], (1, A), jnp.float32),
        'wpi':  s * jax.random.normal(ks[13], (H, A), jnp.float32),
        'bpi':  s * jax.random.normal(ks[14], (1, A), jnp.float32),
    }


if __name__ == "__main__":
    # small config consistent with the module's forward
    bs, ts, ne, ed = 2, 4, 8, 16          # batch, time, entities, entity feature dim
    n_agents = 3
    attn_embed_dim = 32                   # D
    n_heads = 4
    rnn_hidden_dim = 32                   # H
    n_actions = 5                         # A

    key = jax.random.PRNGKey(0)
    k_ent, k_om, k_em, k_par = jax.random.split(key, 4)

    entities = jax.random.normal(k_ent, (bs, ts, ne, ed), jnp.float32)
    # masks: 1.0 -> masked, 0.0 -> visible
    obs_mask = (jax.random.uniform(k_om, (bs, ts, ne, ne)) < 0.2).astype(jnp.float32)
    entity_mask = (jax.random.uniform(k_em, (bs, ts, ne)) < 0.2).astype(jnp.float32)
    hidden_state = jnp.zeros((bs, n_agents, rnn_hidden_dim), jnp.float32)

    params = init_params(k_par, ed, attn_embed_dim, rnn_hidden_dim, n_actions)

    fwd = functools.partial(entity_attention_rnn_forward,
                            n_agents=n_agents, n_heads=n_heads,
                            batch_tile=1)   # grid=(2,) to exercise the batch pipeline
    (q_out, pi_out), hs = fwd(entities, obs_mask, entity_mask, hidden_state, params)
    jax.block_until_ready((q_out, pi_out, hs))

    # sanity check against a pure-JAX reference of the same math
    (q_ref, pi_ref), hs_ref = reference_forward(
        entities, obs_mask, entity_mask, hidden_state, params,
        n_agents=n_agents, n_heads=n_heads)
    assert jnp.allclose(q_out, q_ref, atol=3e-3, rtol=3e-3)
    assert jnp.allclose(pi_out, pi_ref, atol=3e-3, rtol=3e-3)
    assert jnp.allclose(hs, hs_ref, atol=3e-3, rtol=3e-3)

    print("KERNEL_OK")
</pallas_src>

<mosaic_0001>
module attributes {stable_mosaic.version = 11 : i64} {
  func.func @kernel(%arg0: i32, %arg1: memref<4x1x8x16xf32, #tpu.memory_space<vmem>>, %arg2: memref<4x1x3x8xf32, #tpu.memory_space<vmem>>, %arg3: memref<4x1x3x1xf32, #tpu.memory_space<vmem>>, %arg4: memref<1x3x128xf32, #tpu.memory_space<vmem>>, %arg5: memref<16x128xf32, #tpu.memory_space<vmem>>, %arg6: memref<1x128xf32, #tpu.memory_space<vmem>>, %arg7: memref<128x512xf32, #tpu.memory_space<vmem>>, %arg8: memref<128x512xf32, #tpu.memory_space<vmem>>, %arg9: memref<128x512xf32, #tpu.memory_space<vmem>>, %arg10: memref<512x128xf32, #tpu.memory_space<vmem>>, %arg11: memref<1x128xf32, #tpu.memory_space<vmem>>, %arg12: memref<128x128xf32, #tpu.memory_space<vmem>>, %arg13: memref<1x128xf32, #tpu.memory_space<vmem>>, %arg14: memref<128x128xf32, #tpu.memory_space<vmem>>, %arg15: memref<128x128xf32, #tpu.memory_space<vmem>>, %arg16: memref<128x128xf32, #tpu.memory_space<vmem>>, %arg17: memref<128x128xf32, #tpu.memory_space<vmem>>, %arg18: memref<128x128xf32, #tpu.memory_space<vmem>>, %arg19: memref<128x128xf32, #tpu.memory_space<vmem>>, %arg20: memref<1x128xf32, #tpu.memory_space<vmem>>, %arg21: memref<1x128xf32, #tpu.memory_space<vmem>>, %arg22: memref<1x128xf32, #tpu.memory_space<vmem>>, %arg23: memref<1x128xf32, #tpu.memory_space<vmem>>, %arg24: memref<128x128xf32, #tpu.memory_space<vmem>>, %arg25: memref<1x128xf32, #tpu.memory_space<vmem>>, %arg26: memref<128x128xf32, #tpu.memory_space<vmem>>, %arg27: memref<1x128xf32, #tpu.memory_space<vmem>>, %arg28: memref<4x1x3x128xf32, #tpu.memory_space<vmem>>, %arg29: memref<4x1x3x128xf32, #tpu.memory_space<vmem>>, %arg30: memref<4x1x3x128xf32, #tpu.memory_space<vmem>>, %arg31: memref<4x3x128xf32, #tpu.memory_space<vmem>>) attributes {dimension_semantics = [#tpu.dimension_semantics<parallel>], iteration_bounds = array<i64: 2>, scalar_prefetch = 0 : i64, scratch_operands = 1 : i64, tpu.core_type = #tpu.core_type<tc>, window_params = [{transform_indices = @transform_0, window_bounds = array<i64: 4, 1, 8, 16>}, {transform_indices = @transform_1, window_bounds = array<i64: 4, 1, 3, 8>}, {transform_indices = @transform_2, window_bounds = array<i64: 4, 1, 3, 1>}, {transform_indices = @transform_3, window_bounds = array<i64: 1, 3, 128>}, {pipeline_mode = #tpu.pipeline_mode<synchronous>, transform_indices = @transform_4, window_bounds = array<i64: 16, 128>}, {pipeline_mode = #tpu.pipeline_mode<synchronous>, transform_indices = @transform_5, window_bounds = array<i64: 1, 128>}, {pipeline_mode = #tpu.pipeline_mode<synchronous>, transform_indices = @transform_6, window_bounds = array<i64: 128, 512>}, {pipeline_mode = #tpu.pipeline_mode<synchronous>, transform_indices = @transform_7, window_bounds = array<i64: 128, 512>}, {pipeline_mode = #tpu.pipeline_mode<synchronous>, transform_indices = @transform_8, window_bounds = array<i64: 128, 512>}, {pipeline_mode = #tpu.pipeline_mode<synchronous>, transform_indices = @transform_9, window_bounds = array<i64: 512, 128>}, {pipeline_mode = #tpu.pipeline_mode<synchronous>, transform_indices = @transform_10, window_bounds = array<i64: 1, 128>}, {pipeline_mode = #tpu.pipeline_mode<synchronous>, transform_indices = @transform_11, window_bounds = array<i64: 128, 128>}, {pipeline_mode = #tpu.pipeline_mode<synchronous>, transform_indices = @transform_12, window_bounds = array<i64: 1, 128>}, {pipeline_mode = #tpu.pipeline_mode<synchronous>, transform_indices = @transform_13, window_bounds = array<i64: 128, 128>}, {pipeline_mode = #tpu.pipeline_mode<synchronous>, transform_indices = @transform_14, window_bounds = array<i64: 128, 128>}, {pipeline_mode = #tpu.pipeline_mode<synchronous>, transform_indices = @transform_15, window_bounds = array<i64: 128, 128>}, {pipeline_mode = #tpu.pipeline_mode<synchronous>, transform_indices = @transform_16, window_bounds = array<i64: 128, 128>}, {pipeline_mode = #tpu.pipeline_mode<synchronous>, transform_indices = @transform_17, window_bounds = array<i64: 128, 128>}, {pipeline_mode = #tpu.pipeline_mode<synchronous>, transform_indices = @transform_18, window_bounds = array<i64: 128, 128>}, {pipeline_mode = #tpu.pipeline_mode<synchronous>, transform_indices = @transform_19, window_bounds = array<i64: 1, 128>}, {pipeline_mode = #tpu.pipeline_mode<synchronous>, transform_indices = @transform_20, window_bounds = array<i64: 1, 128>}, {pipeline_mode = #tpu.pipeline_mode<synchronous>, transform_indices = @transform_21, window_bounds = array<i64: 1, 128>}, {pipeline_mode = #tpu.pipeline_mode<synchronous>, transform_indices = @transform_22, window_bounds = array<i64: 1, 128>}, {pipeline_mode = #tpu.pipeline_mode<synchronous>, transform_indices = @transform_23, window_bounds = array<i64: 128, 128>}, {pipeline_mode = #tpu.pipeline_mode<synchronous>, transform_indices = @transform_24, window_bounds = array<i64: 1, 128>}, {pipeline_mode = #tpu.pipeline_mode<synchronous>, transform_indices = @transform_25, window_bounds = array<i64: 128, 128>}, {pipeline_mode = #tpu.pipeline_mode<synchronous>, transform_indices = @transform_26, window_bounds = array<i64: 1, 128>}, {transform_indices = @transform_27, window_bounds = array<i64: 4, 1, 3, 128>}, {transform_indices = @transform_28, window_bounds = array<i64: 4, 1, 3, 128>}, {transform_indices = @transform_29, window_bounds = array<i64: 4, 1, 3, 128>}]} {
    %c0 = arith.constant 0 : index
    %c0_0 = arith.constant 0 : index
    %c0_1 = arith.constant 0 : index
    %c0_2 = arith.constant 0 : index
    %0 = vector.load %arg1[%c0, %c0_0, %c0_1, %c0_2] : memref<4x1x8x16xf32, #tpu.memory_space<vmem>>, vector<4x1x8x16xf32>
    %1 = vector.shape_cast %0 : vector<4x1x8x16xf32> to vector<32x16xf32>
    %c0_3 = arith.constant 0 : index
    %c0_4 = arith.constant 0 : index
    %2 = vector.load %arg5[%c0_3, %c0_4] : memref<16x128xf32, #tpu.memory_space<vmem>>, vector<16x128xf32>
    %cst = arith.constant dense<0.000000e+00> : vector<32x128xf32>
    %3 = tpu.matmul %1, %2, %cst {dimension_numbers = #tpu.dot_dimension_numbers<[1], [0], [0], [1], [0, 0, 1, 1], [], []>} : vector<32x16xf32>, vector<16x128xf32>, vector<32x128xf32> -> vector<32x128xf32>
    %c0_5 = arith.constant 0 : index
    %c0_6 = arith.constant 0 : index
    %4 = vector.load %arg6[%c0_5, %c0_6] : memref<1x128xf32, #tpu.memory_space<vmem>>, vector<1x128xf32>
    %5 = vector.broadcast %4 : vector<1x128xf32> to vector<32x128xf32>
    %6 = arith.addf %3, %5 : vector<32x128xf32>
    %cst_7 = arith.constant 0.000000e+00 : f32
    %7 = vector.broadcast %cst_7 : f32 to vector<32x128xf32>
    %8 = arith.maximumf %6, %7 : vector<32x128xf32>
    %9 = vector.shape_cast %8 : vector<32x128xf32> to vector<4x8x128xf32>
    %10 = vector.extract_strided_slice %9 {offsets = [0, 0, 0], sizes = [4, 3, 128], strides = [1, 1, 1]} : vector<4x8x128xf32> to vector<4x3x128xf32>
    %11 = vector.shape_cast %10 : vector<4x3x128xf32> to vector<12x128xf32>
    %c0_8 = arith.constant 0 : index
    %c0_9 = arith.constant 0 : index
    %12 = vector.load %arg7[%c0_8, %c0_9] : memref<128x512xf32, #tpu.memory_space<vmem>>, vector<128x512xf32>
    %cst_10 = arith.constant dense<0.000000e+00> : vector<12x512xf32>
    %13 = tpu.matmul %11, %12, %cst_10 {dimension_numbers = #tpu.dot_dimension_numbers<[1], [0], [0], [1], [0, 0, 1, 1], [], []>} : vector<12x128xf32>, vector<128x512xf32>, vector<12x512xf32> -> vector<12x512xf32>
    %14 = vector.shape_cast %13 : vector<12x512xf32> to vector<4x3x512xf32>
    %c0_11 = arith.constant 0 : index
    %c0_12 = arith.constant 0 : index
    %15 = vector.load %arg8[%c0_11, %c0_12] : memref<128x512xf32, #tpu.memory_space<vmem>>, vector<128x512xf32>
    %cst_13 = arith.constant dense<0.000000e+00> : vector<32x512xf32>
    %16 = tpu.matmul %8, %15, %cst_13 {dimension_numbers = #tpu.dot_dimension_numbers<[1], [0], [0], [1], [0, 0, 1, 1], [], []>} : vector<32x128xf32>, vector<128x512xf32>, vector<32x512xf32> -> vector<32x512xf32>
    %17 = vector.shape_cast %16 : vector<32x512xf32> to vector<4x8x512xf32>
    %c0_14 = arith.constant 0 : index
    %c0_15 = arith.constant 0 : index
    %18 = vector.load %arg9[%c0_14, %c0_15] : memref<128x512xf32, #tpu.memory_space<vmem>>, vector<128x512xf32>
    %cst_16 = arith.constant dense<0.000000e+00> : vector<32x512xf32>
    %19 = tpu.matmul %8, %18, %cst_16 {dimension_numbers = #tpu.dot_dimension_numbers<[1], [0], [0], [1], [0, 0, 1, 1], [], []>} : vector<32x128xf32>, vector<128x512xf32>, vector<32x512xf32> -> vector<32x512xf32>
    %20 = vector.shape_cast %19 : vector<32x512xf32> to vector<4x8x512xf32>
    %c0_17 = arith.constant 0 : index
    %c0_18 = arith.constant 0 : index
    %c0_19 = arith.constant 0 : index
    %c0_20 = arith.constant 0 : index
    %21 = vector.load %arg2[%c0_17, %c0_18, %c0_19, %c0_20] : memref<4x1x3x8xf32, #tpu.memory_space<vmem>>, vector<4x1x3x8xf32>
    %22 = vector.shape_cast %21 : vector<4x1x3x8xf32> to vector<4x3x8xf32>
    %cst_21 = arith.constant 0.000000e+00 : f32
    %23 = vector.broadcast %cst_21 : f32 to vector<4x3x8xf32>
    %24 = arith.cmpf ogt, %22, %23 : vector<4x3x8xf32>
    %cst_22 = arith.constant dense<0x7F800000> : vector<4x3xf32>
    %25 = vector.multi_reduction <minimumf>, %22, %cst_22 [2] : vector<4x3x8xf32> to vector<4x3xf32>
    %26 = vector.shape_cast %25 : vector<4x3xf32> to vector<4x3x1xf32>
    %cst_23 = arith.constant 0.000000e+00 : f32
    %27 = vector.broadcast %cst_23 : f32 to vector<4x3x1xf32>
    %28 = arith.cmpf ogt, %26, %27 : vector<4x3x1xf32>
    %29 = vector.extract_strided_slice %14 {offsets = [0, 0, 0], sizes = [4, 3, 128], strides = [1, 1, 1]} : vector<4x3x512xf32> to vector<4x3x128xf32>
    %30 = vector.extract_strided_slice %17 {offsets = [0, 0, 0], sizes = [4, 8, 128], strides = [1, 1, 1]} : vector<4x8x512xf32> to vector<4x8x128xf32>
    %31 = vector.extract_strided_slice %20 {offsets = [0, 0, 0], sizes = [4, 8, 128], strides = [1, 1, 1]} : vector<4x8x512xf32> to vector<4x8x128xf32>
    "tpu.trace_start"() <{level = 10 : i32, message = "bqd,bkd->bqk"}> : () -> ()
    %cst_24 = arith.constant dense<0.000000e+00> : vector<4x3x8xf32>
    %32 = tpu.matmul %29, %30, %cst_24 {dimension_numbers = #tpu.dot_dimension_numbers<[2], [2], [1], [1], [0, 0, 0, 1, 1, 1], [0], [0]>} : vector<4x3x128xf32>, vector<4x8x128xf32>, vector<4x3x8xf32> -> vector<4x3x8xf32>
    %cst_25 = arith.constant -1.000000e+30 : f32
    "tpu.trace_stop"() : () -> ()
    %33 = vector.broadcast %cst_25 : f32 to vector<4x3x8xf32>
    %34 = arith.select %24, %33, %32 : vector<4x3x8xi1>, vector<4x3x8xf32>
    %cst_26 = arith.constant dense<0xFF800000> : vector<4x3xf32>
    %35 = vector.multi_reduction <maximumf>, %34, %cst_26 [2] : vector<4x3x8xf32> to vector<4x3xf32>
    %36 = vector.shape_cast %35 : vector<4x3xf32> to vector<4x3x1xf32>
    %37 = vector.broadcast %36 : vector<4x3x1xf32> to vector<4x3x8xf32>
    %38 = arith.subf %34, %37 : vector<4x3x8xf32>
    %39 = math.exp %38 : vector<4x3x8xf32>
    %cst_27 = arith.constant dense<0.000000e+00> : vector<4x3xf32>
    %40 = vector.multi_reduction <add>, %39, %cst_27 [2] : vector<4x3x8xf32> to vector<4x3xf32>
    %41 = vector.shape_cast %40 : vector<4x3xf32> to vector<4x3x1xf32>
    %42 = tpu.reciprocal %41 {approx = true} : vector<4x3x1xf32> -> vector<4x3x1xf32>
    %43 = vector.broadcast %42 : vector<4x3x1xf32> to vector<4x3x8xf32>
    %44 = arith.mulf %39, %43 : vector<4x3x8xf32>
    %cst_28 = arith.constant 0.000000e+00 : f32
    %45 = vector.shape_cast %28 : vector<4x3x1xi1> to vector<4x3x1xi1>
    %46 = vector.broadcast %45 : vector<4x3x1xi1> to vector<4x3x8xi1>
    %47 = vector.broadcast %cst_28 : f32 to vector<4x3x8xf32>
    %48 = arith.select %46, %47, %44 : vector<4x3x8xi1>, vector<4x3x8xf32>
    "tpu.trace_start"() <{level = 10 : i32, message = "bqk,bkd->bqd"}> : () -> ()
    %cst_29 = arith.constant dense<0.000000e+00> : vector<4x3x128xf32>
    %49 = tpu.matmul %48, %31, %cst_29 {dimension_numbers = #tpu.dot_dimension_numbers<[2], [1], [1], [2], [0, 0, 0, 1, 1, 2], [0], [0]>} : vector<4x3x8xf32>, vector<4x8x128xf32>, vector<4x3x128xf32> -> vector<4x3x128xf32>
    "tpu.trace_stop"() : () -> ()
    %50 = vector.extract_strided_slice %14 {offsets = [0, 0, 128], sizes = [4, 3, 128], strides = [1, 1, 1]} : vector<4x3x512xf32> to vector<4x3x128xf32>
    %51 = vector.extract_strided_slice %17 {offsets = [0, 0, 128], sizes = [4, 8, 128], strides = [1, 1, 1]} : vector<4x8x512xf32> to vector<4x8x128xf32>
    %52 = vector.extract_strided_slice %20 {offsets = [0, 0, 128], sizes = [4, 8, 128], strides = [1, 1, 1]} : vector<4x8x512xf32> to vector<4x8x128xf32>
    "tpu.trace_start"() <{level = 10 : i32, message = "bqd,bkd->bqk"}> : () -> ()
    %cst_30 = arith.constant dense<0.000000e+00> : vector<4x3x8xf32>
    %53 = tpu.matmul %50, %51, %cst_30 {dimension_numbers = #tpu.dot_dimension_numbers<[2], [2], [1], [1], [0, 0, 0, 1, 1, 1], [0], [0]>} : vector<4x3x128xf32>, vector<4x8x128xf32>, vector<4x3x8xf32> -> vector<4x3x8xf32>
    %cst_31 = arith.constant -1.000000e+30 : f32
    "tpu.trace_stop"() : () -> ()
    %54 = vector.broadcast %cst_31 : f32 to vector<4x3x8xf32>
    %55 = arith.select %24, %54, %53 : vector<4x3x8xi1>, vector<4x3x8xf32>
    %cst_32 = arith.constant dense<0xFF800000> : vector<4x3xf32>
    %56 = vector.multi_reduction <maximumf>, %55, %cst_32 [2] : vector<4x3x8xf32> to vector<4x3xf32>
    %57 = vector.shape_cast %56 : vector<4x3xf32> to vector<4x3x1xf32>
    %58 = vector.broadcast %57 : vector<4x3x1xf32> to vector<4x3x8xf32>
    %59 = arith.subf %55, %58 : vector<4x3x8xf32>
    %60 = math.exp %59 : vector<4x3x8xf32>
    %cst_33 = arith.constant dense<0.000000e+00> : vector<4x3xf32>
    %61 = vector.multi_reduction <add>, %60, %cst_33 [2] : vector<4x3x8xf32> to vector<4x3xf32>
    %62 = vector.shape_cast %61 : vector<4x3xf32> to vector<4x3x1xf32>
    %63 = tpu.reciprocal %62 {approx = true} : vector<4x3x1xf32> -> vector<4x3x1xf32>
    %64 = vector.broadcast %63 : vector<4x3x1xf32> to vector<4x3x8xf32>
    %65 = arith.mulf %60, %64 : vector<4x3x8xf32>
    %cst_34 = arith.constant 0.000000e+00 : f32
    %66 = vector.shape_cast %28 : vector<4x3x1xi1> to vector<4x3x1xi1>
    %67 = vector.broadcast %66 : vector<4x3x1xi1> to vector<4x3x8xi1>
    %68 = vector.broadcast %cst_34 : f32 to vector<4x3x8xf32>
    %69 = arith.select %67, %68, %65 : vector<4x3x8xi1>, vector<4x3x8xf32>
    "tpu.trace_start"() <{level = 10 : i32, message = "bqk,bkd->bqd"}> : () -> ()
    %cst_35 = arith.constant dense<0.000000e+00> : vector<4x3x128xf32>
    %70 = tpu.matmul %69, %52, %cst_35 {dimension_numbers = #tpu.dot_dimension_numbers<[2], [1], [1], [2], [0, 0, 0, 1, 1, 2], [0], [0]>} : vector<4x3x8xf32>, vector<4x8x128xf32>, vector<4x3x128xf32> -> vector<4x3x128xf32>
    "tpu.trace_stop"() : () -> ()
    %71 = vector.extract_strided_slice %14 {offsets = [0, 0, 256], sizes = [4, 3, 128], strides = [1, 1, 1]} : vector<4x3x512xf32> to vector<4x3x128xf32>
    %72 = vector.extract_strided_slice %17 {offsets = [0, 0, 256], sizes = [4, 8, 128], strides = [1, 1, 1]} : vector<4x8x512xf32> to vector<4x8x128xf32>
    %73 = vector.extract_strided_slice %20 {offsets = [0, 0, 256], sizes = [4, 8, 128], strides = [1, 1, 1]} : vector<4x8x512xf32> to vector<4x8x128xf32>
    "tpu.trace_start"() <{level = 10 : i32, message = "bqd,bkd->bqk"}> : () -> ()
    %cst_36 = arith.constant dense<0.000000e+00> : vector<4x3x8xf32>
    %74 = tpu.matmul %71, %72, %cst_36 {dimension_numbers = #tpu.dot_dimension_numbers<[2], [2], [1], [1], [0, 0, 0, 1, 1, 1], [0], [0]>} : vector<4x3x128xf32>, vector<4x8x128xf32>, vector<4x3x8xf32> -> vector<4x3x8xf32>
    %cst_37 = arith.constant -1.000000e+30 : f32
    "tpu.trace_stop"() : () -> ()
    %75 = vector.broadcast %cst_37 : f32 to vector<4x3x8xf32>
    %76 = arith.select %24, %75, %74 : vector<4x3x8xi1>, vector<4x3x8xf32>
    %cst_38 = arith.constant dense<0xFF800000> : vector<4x3xf32>
    %77 = vector.multi_reduction <maximumf>, %76, %cst_38 [2] : vector<4x3x8xf32> to vector<4x3xf32>
    %78 = vector.shape_cast %77 : vector<4x3xf32> to vector<4x3x1xf32>
    %79 = vector.broadcast %78 : vector<4x3x1xf32> to vector<4x3x8xf32>
    %80 = arith.subf %76, %79 : vector<4x3x8xf32>
    %81 = math.exp %80 : vector<4x3x8xf32>
    %cst_39 = arith.constant dense<0.000000e+00> : vector<4x3xf32>
    %82 = vector.multi_reduction <add>, %81, %cst_39 [2] : vector<4x3x8xf32> to vector<4x3xf32>
    %83 = vector.shape_cast %82 : vector<4x3xf32> to vector<4x3x1xf32>
    %84 = tpu.reciprocal %83 {approx = true} : vector<4x3x1xf32> -> vector<4x3x1xf32>
    %85 = vector.broadcast %84 : vector<4x3x1xf32> to vector<4x3x8xf32>
    %86 = arith.mulf %81, %85 : vector<4x3x8xf32>
    %cst_40 = arith.constant 0.000000e+00 : f32
    %87 = vector.shape_cast %28 : vector<4x3x1xi1> to vector<4x3x1xi1>
    %88 = vector.broadcast %87 : vector<4x3x1xi1> to vector<4x3x8xi1>
    %89 = vector.broadcast %cst_40 : f32 to vector<4x3x8xf32>
    %90 = arith.select %88, %89, %86 : vector<4x3x8xi1>, vector<4x3x8xf32>
    "tpu.trace_start"() <{level = 10 : i32, message = "bqk,bkd->bqd"}> : () -> ()
    %cst_41 = arith.constant dense<0.000000e+00> : vector<4x3x128xf32>
    %91 = tpu.matmul %90, %73, %cst_41 {dimension_numbers = #tpu.dot_dimension_numbers<[2], [1], [1], [2], [0, 0, 0, 1, 1, 2], [0], [0]>} : vector<4x3x8xf32>, vector<4x8x128xf32>, vector<4x3x128xf32> -> vector<4x3x128xf32>
    "tpu.trace_stop"() : () -> ()
    %92 = vector.extract_strided_slice %14 {offsets = [0, 0, 384], sizes = [4, 3, 128], strides = [1, 1, 1]} : vector<4x3x512xf32> to vector<4x3x128xf32>
    %93 = vector.extract_strided_slice %17 {offsets = [0, 0, 384], sizes = [4, 8, 128], strides = [1, 1, 1]} : vector<4x8x512xf32> to vector<4x8x128xf32>
    %94 = vector.extract_strided_slice %20 {offsets = [0, 0, 384], sizes = [4, 8, 128], strides = [1, 1, 1]} : vector<4x8x512xf32> to vector<4x8x128xf32>
    "tpu.trace_start"() <{level = 10 : i32, message = "bqd,bkd->bqk"}> : () -> ()
    %cst_42 = arith.constant dense<0.000000e+00> : vector<4x3x8xf32>
    %95 = tpu.matmul %92, %93, %cst_42 {dimension_numbers = #tpu.dot_dimension_numbers<[2], [2], [1], [1], [0, 0, 0, 1, 1, 1], [0], [0]>} : vector<4x3x128xf32>, vector<4x8x128xf32>, vector<4x3x8xf32> -> vector<4x3x8xf32>
    %cst_43 = arith.constant -1.000000e+30 : f32
    "tpu.trace_stop"() : () -> ()
    %96 = vector.broadcast %cst_43 : f32 to vector<4x3x8xf32>
    %97 = arith.select %24, %96, %95 : vector<4x3x8xi1>, vector<4x3x8xf32>
    %cst_44 = arith.constant dense<0xFF800000> : vector<4x3xf32>
    %98 = vector.multi_reduction <maximumf>, %97, %cst_44 [2] : vector<4x3x8xf32> to vector<4x3xf32>
    %99 = vector.shape_cast %98 : vector<4x3xf32> to vector<4x3x1xf32>
    %100 = vector.broadcast %99 : vector<4x3x1xf32> to vector<4x3x8xf32>
    %101 = arith.subf %97, %100 : vector<4x3x8xf32>
    %102 = math.exp %101 : vector<4x3x8xf32>
    %cst_45 = arith.constant dense<0.000000e+00> : vector<4x3xf32>
    %103 = vector.multi_reduction <add>, %102, %cst_45 [2] : vector<4x3x8xf32> to vector<4x3xf32>
    %104 = vector.shape_cast %103 : vector<4x3xf32> to vector<4x3x1xf32>
    %105 = tpu.reciprocal %104 {approx = true} : vector<4x3x1xf32> -> vector<4x3x1xf32>
    %106 = vector.broadcast %105 : vector<4x3x1xf32> to vector<4x3x8xf32>
    %107 = arith.mulf %102, %106 : vector<4x3x8xf32>
    %cst_46 = arith.constant 0.000000e+00 : f32
    %108 = vector.shape_cast %28 : vector<4x3x1xi1> to vector<4x3x1xi1>
    %109 = vector.broadcast %108 : vector<4x3x1xi1> to vector<4x3x8xi1>
    %110 = vector.broadcast %cst_46 : f32 to vector<4x3x8xf32>
    %111 = arith.select %109, %110, %107 : vector<4x3x8xi1>, vector<4x3x8xf32>
    "tpu.trace_start"() <{level = 10 : i32, message = "bqk,bkd->bqd"}> : () -> ()
    %cst_47 = arith.constant dense<0.000000e+00> : vector<4x3x128xf32>
    %112 = tpu.matmul %111, %94, %cst_47 {dimension_numbers = #tpu.dot_dimension_numbers<[2], [1], [1], [2], [0, 0, 0, 1, 1, 2], [0], [0]>} : vector<4x3x8xf32>, vector<4x8x128xf32>, vector<4x3x128xf32> -> vector<4x3x128xf32>
    "tpu.trace_stop"() : () -> ()
    %113 = tpu.concatenate %49, %70, %91, %112 in 2 : vector<4x3x128xf32>, vector<4x3x128xf32>, vector<4x3x128xf32>, vector<4x3x128xf32> -> vector<4x3x512xf32>
    %114 = vector.shape_cast %113 : vector<4x3x512xf32> to vector<12x512xf32>
    %c0_48 = arith.constant 0 : index
    %c0_49 = arith.constant 0 : index
    %115 = vector.load %arg10[%c0_48, %c0_49] : memref<512x128xf32, #tpu.memory_space<vmem>>, vector<512x128xf32>
    %cst_50 = arith.constant dense<0.000000e+00> : vector<12x128xf32>
    %116 = tpu.matmul %114, %115, %cst_50 {dimension_numbers = #tpu.dot_dimension_numbers<[1], [0], [0], [1], [0, 0, 1, 1], [], []>} : vector<12x512xf32>, vector<512x128xf32>, vector<12x128xf32> -> vector<12x128xf32>
    %c0_51 = arith.constant 0 : index
    %c0_52 = arith.constant 0 : index
    %117 = vector.load %arg11[%c0_51, %c0_52] : memref<1x128xf32, #tpu.memory_space<vmem>>, vector<1x128xf32>
    %118 = vector.broadcast %117 : vector<1x128xf32> to vector<12x128xf32>
    %119 = arith.addf %116, %118 : vector<12x128xf32>
    %120 = vector.shape_cast %119 : vector<12x128xf32> to vector<4x3x128xf32>
    %c0_53 = arith.constant 0 : index
    %c0_54 = arith.constant 0 : index
    %c0_55 = arith.constant 0 : index
    %c0_56 = arith.constant 0 : index
    %121 = vector.load %arg3[%c0_53, %c0_54, %c0_55, %c0_56] : memref<4x1x3x1xf32, #tpu.memory_space<vmem>>, vector<4x1x3x1xf32>
    %cst_57 = arith.constant 0.000000e+00 : f32
    %122 = vector.broadcast %cst_57 : f32 to vector<4x1x3x1xf32>
    %123 = arith.cmpf ogt, %121, %122 : vector<4x1x3x1xf32>
    %124 = vector.shape_cast %123 : vector<4x1x3x1xi1> to vector<4x3x1xi1>
    %cst_58 = arith.constant 0.000000e+00 : f32
    %125 = vector.shape_cast %124 : vector<4x3x1xi1> to vector<4x3x1xi1>
    %126 = vector.broadcast %125 : vector<4x3x1xi1> to vector<4x3x128xi1>
    %127 = vector.broadcast %cst_58 : f32 to vector<4x3x128xf32>
    %128 = arith.select %126, %127, %120 : vector<4x3x128xi1>, vector<4x3x128xf32>
    %129 = vector.shape_cast %128 : vector<4x3x128xf32> to vector<12x128xf32>
    %c0_59 = arith.constant 0 : index
    %c0_60 = arith.constant 0 : index
    %130 = vector.load %arg12[%c0_59, %c0_60] : memref<128x128xf32, #tpu.memory_space<vmem>>, vector<128x128xf32>
    %cst_61 = arith.constant dense<0.000000e+00> : vector<12x128xf32>
    %131 = tpu.matmul %129, %130, %cst_61 {dimension_numbers = #tpu.dot_dimension_numbers<[1], [0], [0], [1], [0, 0, 1, 1], [], []>} : vector<12x128xf32>, vector<128x128xf32>, vector<12x128xf32> -> vector<12x128xf32>
    %c0_62 = arith.constant 0 : index
    %c0_63 = arith.constant 0 : index
    %132 = vector.load %arg13[%c0_62, %c0_63] : memref<1x128xf32, #tpu.memory_space<vmem>>, vector<1x128xf32>
    %133 = vector.broadcast %132 : vector<1x128xf32> to vector<12x128xf32>
    %134 = arith.addf %131, %133 : vector<12x128xf32>
    %cst_64 = arith.constant 0.000000e+00 : f32
    %135 = vector.broadcast %cst_64 : f32 to vector<12x128xf32>
    %136 = arith.maximumf %134, %135 : vector<12x128xf32>
    %137 = vector.shape_cast %136 : vector<12x128xf32> to vector<4x3x128xf32>
    %c0_65 = arith.constant 0 : index
    %c0_66 = arith.constant 0 : index
    %c0_67 = arith.constant 0 : index
    %138 = vector.load %arg31[%c0_65, %c0_66, %c0_67] : memref<4x3x128xf32, #tpu.memory_space<vmem>>, vector<4x3x128xf32>
    tpu.vector_store %arg31[%c0_65, %c0_66, %c0_67], %137 {strides = array<i32>} : memref<4x3x128xf32, #tpu.memory_space<vmem>>, vector<4x3x128xf32>,
    %c0_68 = arith.constant 0 : index
    %c0_69 = arith.constant 0 : index
    %139 = vector.load %arg14[%c0_68, %c0_69] : memref<128x128xf32, #tpu.memory_space<vmem>>, vector<128x128xf32>
    %c0_70 = arith.constant 0 : index
    %c0_71 = arith.constant 0 : index
    %140 = vector.load %arg15[%c0_70, %c0_71] : memref<128x128xf32, #tpu.memory_space<vmem>>, vector<128x128xf32>
    %c0_72 = arith.constant 0 : index
    %c0_73 = arith.constant 0 : index
    %141 = vector.load %arg16[%c0_72, %c0_73] : memref<128x128xf32, #tpu.memory_space<vmem>>, vector<128x128xf32>
    %c0_74 = arith.constant 0 : index
    %c0_75 = arith.constant 0 : index
    %142 = vector.load %arg17[%c0_74, %c0_75] : memref<128x128xf32, #tpu.memory_space<vmem>>, vector<128x128xf32>
    %c0_76 = arith.constant 0 : index
    %c0_77 = arith.constant 0 : index
    %143 = vector.load %arg18[%c0_76, %c0_77] : memref<128x128xf32, #tpu.memory_space<vmem>>, vector<128x128xf32>
    %c0_78 = arith.constant 0 : index
    %c0_79 = arith.constant 0 : index
    %144 = vector.load %arg19[%c0_78, %c0_79] : memref<128x128xf32, #tpu.memory_space<vmem>>, vector<128x128xf32>
    %c0_80 = arith.constant 0 : index
    %c0_81 = arith.constant 0 : index
    %145 = vector.load %arg20[%c0_80, %c0_81] : memref<1x128xf32, #tpu.memory_space<vmem>>, vector<1x128xf32>
    %c0_82 = arith.constant 0 : index
    %c0_83 = arith.constant 0 : index
    %146 = vector.load %arg21[%c0_82, %c0_83] : memref<1x128xf32, #tpu.memory_space<vmem>>, vector<1x128xf32>
    %c0_84 = arith.constant 0 : index
    %c0_85 = arith.constant 0 : index
    %147 = vector.load %arg22[%c0_84, %c0_85] : memref<1x128xf32, #tpu.memory_space<vmem>>, vector<1x128xf32>
    %c0_86 = arith.constant 0 : index
    %c0_87 = arith.constant 0 : index
    %148 = vector.load %arg23[%c0_86, %c0_87] : memref<1x128xf32, #tpu.memory_space<vmem>>, vector<1x128xf32>
    %c0_88 = arith.constant 0 : index
    %c0_89 = arith.constant 0 : index
    %c0_90 = arith.constant 0 : index
    %149 = vector.load %arg4[%c0_88, %c0_89, %c0_90] : memref<1x3x128xf32, #tpu.memory_space<vmem>>, vector<1x3x128xf32>
    %150 = vector.shape_cast %149 : vector<1x3x128xf32> to vector<3x128xf32>
    %c0_i32 = arith.constant 0 : i32
    %c4_i32 = arith.constant 4 : i32
    %151 = arith.addi %c0_i32, %c4_i32 : i32
    %c1_i32 = arith.constant 1 : i32
    %152 = scf.for %arg32 = %c0_i32 to %151 step %c1_i32 iter_args(%arg33 = %150) -> (vector<3x128xf32>)  : i32 {
      %177 = arith.index_cast %arg32 : i32 to index
      %c0_116 = arith.constant 0 : index
      %c0_117 = arith.constant 0 : index
      %178 = vector.load %arg31[%177, %c0_116, %c0_117] : memref<4x3x128xf32, #tpu.memory_space<vmem>>, vector<1x3x128xf32>
      %179 = vector.shape_cast %178 : vector<1x3x128xf32> to vector<3x128xf32>
      %cst_118 = arith.constant dense<0.000000e+00> : vector<3x128xf32>
      %180 = tpu.matmul %179, %139, %cst_118 {dimension_numbers = #tpu.dot_dimension_numbers<[1], [0], [0], [1], [0, 0, 1, 1], [], []>} : vector<3x128xf32>, vector<128x128xf32>, vector<3x128xf32> -> vector<3x128xf32>
      %cst_119 = arith.constant dense<0.000000e+00> : vector<3x128xf32>
      %181 = tpu.matmul %arg33, %142, %cst_119 {dimension_numbers = #tpu.dot_dimension_numbers<[1], [0], [0], [1], [0, 0, 1, 1], [], []>} : vector<3x128xf32>, vector<128x128xf32>, vector<3x128xf32> -> vector<3x128xf32>
      %182 = arith.addf %180, %181 : vector<3x128xf32>
      %183 = vector.broadcast %145 : vector<1x128xf32> to vector<3x128xf32>
      %184 = arith.addf %182, %183 : vector<3x128xf32>
      %185 = arith.negf %184 : vector<3x128xf32>
      %186 = math.exp %185 : vector<3x128xf32>
      %cst_120 = arith.constant 1.000000e+00 : f32
      %187 = vector.broadcast %cst_120 : f32 to vector<3x128xf32>
      %188 = arith.addf %187, %186 : vector<3x128xf32>
      %189 = arith.divf %187, %188 : vector<3x128xf32>
      %cst_121 = arith.constant dense<0.000000e+00> : vector<3x128xf32>
      %190 = tpu.matmul %179, %140, %cst_121 {dimension_numbers = #tpu.dot_dimension_numbers<[1], [0], [0], [1], [0, 0, 1, 1], [], []>} : vector<3x128xf32>, vector<128x128xf32>, vector<3x128xf32> -> vector<3x128xf32>
      %cst_122 = arith.constant dense<0.000000e+00> : vector<3x128xf32>
      %191 = tpu.matmul %arg33, %143, %cst_122 {dimension_numbers = #tpu.dot_dimension_numbers<[1], [0], [0], [1], [0, 0, 1, 1], [], []>} : vector<3x128xf32>, vector<128x128xf32>, vector<3x128xf32> -> vector<3x128xf32>
      %192 = arith.addf %190, %191 : vector<3x128xf32>
      %193 = vector.broadcast %146 : vector<1x128xf32> to vector<3x128xf32>
      %194 = arith.addf %192, %193 : vector<3x128xf32>
      %195 = arith.negf %194 : vector<3x128xf32>
      %196 = math.exp %195 : vector<3x128xf32>
      %cst_123 = arith.constant 1.000000e+00 : f32
      %197 = vector.broadcast %cst_123 : f32 to vector<3x128xf32>
      %198 = arith.addf %197, %196 : vector<3x128xf32>
      %199 = arith.divf %197, %198 : vector<3x128xf32>
      %cst_124 = arith.constant dense<0.000000e+00> : vector<3x128xf32>
      %200 = tpu.matmul %179, %141, %cst_124 {dimension_numbers = #tpu.dot_dimension_numbers<[1], [0], [0], [1], [0, 0, 1, 1], [], []>} : vector<3x128xf32>, vector<128x128xf32>, vector<3x128xf32> -> vector<3x128xf32>
      %201 = vector.broadcast %147 : vector<1x128xf32> to vector<3x128xf32>
      %202 = arith.addf %200, %201 : vector<3x128xf32>
      %cst_125 = arith.constant dense<0.000000e+00> : vector<3x128xf32>
      %203 = tpu.matmul %arg33, %144, %cst_125 {dimension_numbers = #tpu.dot_dimension_numbers<[1], [0], [0], [1], [0, 0, 1, 1], [], []>} : vector<3x128xf32>, vector<128x128xf32>, vector<3x128xf32> -> vector<3x128xf32>
      %204 = vector.broadcast %148 : vector<1x128xf32> to vector<3x128xf32>
      %205 = arith.addf %203, %204 : vector<3x128xf32>
      %206 = arith.mulf %189, %205 : vector<3x128xf32>
      %207 = arith.addf %202, %206 : vector<3x128xf32>
      %208 = math.tanh %207 : vector<3x128xf32>
      %cst_126 = arith.constant 1.000000e+00 : f32
      %209 = vector.broadcast %cst_126 : f32 to vector<3x128xf32>
      %210 = arith.subf %209, %199 : vector<3x128xf32>
      %211 = arith.mulf %210, %208 : vector<3x128xf32>
      %212 = arith.mulf %199, %arg33 : vector<3x128xf32>
      %213 = arith.addf %211, %212 : vector<3x128xf32>
      %214 = vector.shape_cast %213 : vector<3x128xf32> to vector<1x3x128xf32>
      %215 = arith.index_cast %arg32 : i32 to index
      %c0_127 = arith.constant 0 : index
      %c0_128 = arith.constant 0 : index
      %c0_129 = arith.constant 0 : index
      %216 = vector.load %arg30[%215, %c0_127, %c0_128, %c0_129] : memref<4x1x3x128xf32, #tpu.memory_space<vmem>>, vector<1x1x3x128xf32>
      %217 = vector.shape_cast %216 : vector<1x1x3x128xf32> to vector<1x3x128xf32>
      %218 = vector.shape_cast %214 : vector<1x3x128xf32> to vector<1x1x3x128xf32>
      tpu.vector_store %arg30[%215, %c0_127, %c0_128, %c0_129], %218 {strides = array<i32>} : memref<4x1x3x128xf32, #tpu.memory_space<vmem>>, vector<1x1x3x128xf32>,
      scf.yield %213 : vector<3x128xf32>
    }
    %c4_i32_91 = arith.constant 4 : i32
    %c0_92 = arith.constant 0 : index
    %c0_93 = arith.constant 0 : index
    %c0_94 = arith.constant 0 : index
    %c0_95 = arith.constant 0 : index
    %153 = vector.load %arg30[%c0_92, %c0_93, %c0_94, %c0_95] : memref<4x1x3x128xf32, #tpu.memory_space<vmem>>, vector<4x1x3x128xf32>
    %154 = vector.shape_cast %153 : vector<4x1x3x128xf32> to vector<12x128xf32>
    %c0_96 = arith.constant 0 : index
    %c0_97 = arith.constant 0 : index
    %155 = vector.load %arg24[%c0_96, %c0_97] : memref<128x128xf32, #tpu.memory_space<vmem>>, vector<128x128xf32>
    %cst_98 = arith.constant dense<0.000000e+00> : vector<12x128xf32>
    %156 = tpu.matmul %154, %155, %cst_98 {dimension_numbers = #tpu.dot_dimension_numbers<[1], [0], [0], [1], [0, 0, 1, 1], [], []>} : vector<12x128xf32>, vector<128x128xf32>, vector<12x128xf32> -> vector<12x128xf32>
    %c0_99 = arith.constant 0 : index
    %c0_100 = arith.constant 0 : index
    %157 = vector.load %arg25[%c0_99, %c0_100] : memref<1x128xf32, #tpu.memory_space<vmem>>, vector<1x128xf32>
    %158 = vector.broadcast %157 : vector<1x128xf32> to vector<12x128xf32>
    %159 = arith.addf %156, %158 : vector<12x128xf32>
    %160 = vector.shape_cast %159 : vector<12x128xf32> to vector<4x1x3x128xf32>
    %c0_101 = arith.constant 0 : index
    %c0_102 = arith.constant 0 : index
    %161 = vector.load %arg26[%c0_101, %c0_102] : memref<128x128xf32, #tpu.memory_space<vmem>>, vector<128x128xf32>
    %cst_103 = arith.constant dense<0.000000e+00> : vector<12x128xf32>
    %162 = tpu.matmul %154, %161, %cst_103 {dimension_numbers = #tpu.dot_dimension_numbers<[1], [0], [0], [1], [0, 0, 1, 1], [], []>} : vector<12x128xf32>, vector<128x128xf32>, vector<12x128xf32> -> vector<12x128xf32>
    %c0_104 = arith.constant 0 : index
    %c0_105 = arith.constant 0 : index
    %163 = vector.load %arg27[%c0_104, %c0_105] : memref<1x128xf32, #tpu.memory_space<vmem>>, vector<1x128xf32>
    %164 = vector.broadcast %163 : vector<1x128xf32> to vector<12x128xf32>
    %165 = arith.addf %162, %164 : vector<12x128xf32>
    %166 = vector.shape_cast %165 : vector<12x128xf32> to vector<4x1x3x128xf32>
    %cst_106 = arith.constant 0.000000e+00 : f32
    %167 = vector.shape_cast %123 : vector<4x1x3x1xi1> to vector<4x1x3x1xi1>
    %168 = vector.broadcast %167 : vector<4x1x3x1xi1> to vector<4x1x3x128xi1>
    %169 = vector.broadcast %cst_106 : f32 to vector<4x1x3x128xf32>
    %170 = arith.select %168, %169, %160 : vector<4x1x3x128xi1>, vector<4x1x3x128xf32>
    %c0_107 = arith.constant 0 : index
    %c0_108 = arith.constant 0 : index
    %c0_109 = arith.constant 0 : index
    %c0_110 = arith.constant 0 : index
    %171 = vector.load %arg28[%c0_107, %c0_108, %c0_109, %c0_110] : memref<4x1x3x128xf32, #tpu.memory_space<vmem>>, vector<4x1x3x128xf32>
    tpu.vector_store %arg28[%c0_107, %c0_108, %c0_109, %c0_110], %170 {strides = array<i32>} : memref<4x1x3x128xf32, #tpu.memory_space<vmem>>, vector<4x1x3x128xf32>,
    %cst_111 = arith.constant -1.000000e+10 : f32
    %172 = vector.shape_cast %123 : vector<4x1x3x1xi1> to vector<4x1x3x1xi1>
    %173 = vector.broadcast %172 : vector<4x1x3x1xi1> to vector<4x1x3x128xi1>
    %174 = vector.broadcast %cst_111 : f32 to vector<4x1x3x128xf32>
    %175 = arith.select %173, %174, %166 : vector<4x1x3x128xi1>, vector<4x1x3x128xf32>
    %c0_112 = arith.constant 0 : index
    %c0_113 = arith.constant 0 : index
    %c0_114 = arith.constant 0 : index
    %c0_115 = arith.constant 0 : index
    %176 = vector.load %arg29[%c0_112, %c0_113, %c0_114, %c0_115] : memref<4x1x3x128xf32, #tpu.memory_space<vmem>>, vector<4x1x3x128xf32>
    tpu.vector_store %arg29[%c0_112, %c0_113, %c0_114, %c0_115], %175 {strides = array<i32>} : memref<4x1x3x128xf32, #tpu.memory_space<vmem>>, vector<4x1x3x128xf32>,
    return
  }
  func.func @transform_0(%arg0: i32) -> (i32, i32, i32, i32) {
    %c0_i32 = arith.constant 0 : i32
    %c0_i32_0 = arith.constant 0 : i32
    %c0_i32_1 = arith.constant 0 : i32
    %c0_i32_2 = arith.constant 0 : i32
    return %c0_i32, %arg0, %c0_i32_0, %c0_i32_1 : i32, i32, i32, i32
  }
  func.func @transform_1(%arg0: i32) -> (i32, i32, i32, i32) {
    %c0_i32 = arith.constant 0 : i32
    %c0_i32_0 = arith.constant 0 : i32
    %c0_i32_1 = arith.constant 0 : i32
    %c0_i32_2 = arith.constant 0 : i32
    return %c0_i32, %arg0, %c0_i32_0, %c0_i32_1 : i32, i32, i32, i32
  }
  func.func @transform_2(%arg0: i32) -> (i32, i32, i32, i32) {
    %c0_i32 = arith.constant 0 : i32
    %c0_i32_0 = arith.constant 0 : i32
    %c0_i32_1 = arith.constant 0 : i32
    %c0_i32_2 = arith.constant 0 : i32
    return %c0_i32, %arg0, %c0_i32_0, %c0_i32_1 : i32, i32, i32, i32
  }
  func.func @transform_3(%arg0: i32) -> (i32, i32, i32) {
    %c0_i32 = arith.constant 0 : i32
    %c0_i32_0 = arith.constant 0 : i32
    %c0_i32_1 = arith.constant 0 : i32
    return %arg0, %c0_i32, %c0_i32_0 : i32, i32, i32
  }
  func.func @transform_4(%arg0: i32) -> (i32, i32) {
    %c0_i32 = arith.constant 0 : i32
    %c0_i32_0 = arith.constant 0 : i32
    %c0_i32_1 = arith.constant 0 : i32
    return %c0_i32, %c0_i32_0 : i32, i32
  }
  func.func @transform_5(%arg0: i32) -> (i32, i32) {
    %c0_i32 = arith.constant 0 : i32
    %c0_i32_0 = arith.constant 0 : i32
    %c0_i32_1 = arith.constant 0 : i32
    return %c0_i32, %c0_i32_0 : i32, i32
  }
  func.func @transform_6(%arg0: i32) -> (i32, i32) {
    %c0_i32 = arith.constant 0 : i32
    %c0_i32_0 = arith.constant 0 : i32
    %c0_i32_1 = arith.constant 0 : i32
    return %c0_i32, %c0_i32_0 : i32, i32
  }
  func.func @transform_7(%arg0: i32) -> (i32, i32) {
    %c0_i32 = arith.constant 0 : i32
    %c0_i32_0 = arith.constant 0 : i32
    %c0_i32_1 = arith.constant 0 : i32
    return %c0_i32, %c0_i32_0 : i32, i32
  }
  func.func @transform_8(%arg0: i32) -> (i32, i32) {
    %c0_i32 = arith.constant 0 : i32
    %c0_i32_0 = arith.constant 0 : i32
    %c0_i32_1 = arith.constant 0 : i32
    return %c0_i32, %c0_i32_0 : i32, i32
  }
  func.func @transform_9(%arg0: i32) -> (i32, i32) {
    %c0_i32 = arith.constant 0 : i32
    %c0_i32_0 = arith.constant 0 : i32
    %c0_i32_1 = arith.constant 0 : i32
    return %c0_i32, %c0_i32_0 : i32, i32
  }
  func.func @transform_10(%arg0: i32) -> (i32, i32) {
    %c0_i32 = arith.constant 0 : i32
    %c0_i32_0 = arith.constant 0 : i32
    %c0_i32_1 = arith.constant 0 : i32
    return %c0_i32, %c0_i32_0 : i32, i32
  }
  func.func @transform_11(%arg0: i32) -> (i32, i32) {
    %c0_i32 = arith.constant 0 : i32
    %c0_i32_0 = arith.constant 0 : i32
    %c0_i32_1 = arith.constant 0 : i32
    return %c0_i32, %c0_i32_0 : i32, i32
  }
  func.func @transform_12(%arg0: i32) -> (i32, i32) {
    %c0_i32 = arith.constant 0 : i32
    %c0_i32_0 = arith.constant 0 : i32
    %c0_i32_1 = arith.constant 0 : i32
    return %c0_i32, %c0_i32_0 : i32, i32
  }
  func.func @transform_13(%arg0: i32) -> (i32, i32) {
    %c0_i32 = arith.constant 0 : i32
    %c0_i32_0 = arith.constant 0 : i32
    %c0_i32_1 = arith.constant 0 : i32
    return %c0_i32, %c0_i32_0 : i32, i32
  }
  func.func @transform_14(%arg0: i32) -> (i32, i32) {
    %c0_i32 = arith.constant 0 : i32
    %c0_i32_0 = arith.constant 0 : i32
    %c0_i32_1 = arith.constant 0 : i32
    return %c0_i32, %c0_i32_0 : i32, i32
  }
  func.func @transform_15(%arg0: i32) -> (i32, i32) {
    %c0_i32 = arith.constant 0 : i32
    %c0_i32_0 = arith.constant 0 : i32
    %c0_i32_1 = arith.constant 0 : i32
    return %c0_i32, %c0_i32_0 : i32, i32
  }
  func.func @transform_16(%arg0: i32) -> (i32, i32) {
    %c0_i32 = arith.constant 0 : i32
    %c0_i32_0 = arith.constant 0 : i32
    %c0_i32_1 = arith.constant 0 : i32
    return %c0_i32, %c0_i32_0 : i32, i32
  }
  func.func @transform_17(%arg0: i32) -> (i32, i32) {
    %c0_i32 = arith.constant 0 : i32
    %c0_i32_0 = arith.constant 0 : i32
    %c0_i32_1 = arith.constant 0 : i32
    return %c0_i32, %c0_i32_0 : i32, i32
  }
  func.func @transform_18(%arg0: i32) -> (i32, i32) {
    %c0_i32 = arith.constant 0 : i32
    %c0_i32_0 = arith.constant 0 : i32
    %c0_i32_1 = arith.constant 0 : i32
    return %c0_i32, %c0_i32_0 : i32, i32
  }
  func.func @transform_19(%arg0: i32) -> (i32, i32) {
    %c0_i32 = arith.constant 0 : i32
    %c0_i32_0 = arith.constant 0 : i32
    %c0_i32_1 = arith.constant 0 : i32
    return %c0_i32, %c0_i32_0 : i32, i32
  }
  func.func @transform_20(%arg0: i32) -> (i32, i32) {
    %c0_i32 = arith.constant 0 : i32
    %c0_i32_0 = arith.constant 0 : i32
    %c0_i32_1 = arith.constant 0 : i32
    return %c0_i32, %c0_i32_0 : i32, i32
  }
  func.func @transform_21(%arg0: i32) -> (i32, i32) {
    %c0_i32 = arith.constant 0 : i32
    %c0_i32_0 = arith.constant 0 : i32
    %c0_i32_1 = arith.constant 0 : i32
    return %c0_i32, %c0_i32_0 : i32, i32
  }
  func.func @transform_22(%arg0: i32) -> (i32, i32) {
    %c0_i32 = arith.constant 0 : i32
    %c0_i32_0 = arith.constant 0 : i32
    %c0_i32_1 = arith.constant 0 : i32
    return %c0_i32, %c0_i32_0 : i32, i32
  }
  func.func @transform_23(%arg0: i32) -> (i32, i32) {
    %c0_i32 = arith.constant 0 : i32
    %c0_i32_0 = arith.constant 0 : i32
    %c0_i32_1 = arith.constant 0 : i32
    return %c0_i32, %c0_i32_0 : i32, i32
  }
  func.func @transform_24(%arg0: i32) -> (i32, i32) {
    %c0_i32 = arith.constant 0 : i32
    %c0_i32_0 = arith.constant 0 : i32
    %c0_i32_1 = arith.constant 0 : i32
    return %c0_i32, %c0_i32_0 : i32, i32
  }
  func.func @transform_25(%arg0: i32) -> (i32, i32) {
    %c0_i32 = arith.constant 0 : i32
    %c0_i32_0 = arith.constant 0 : i32
    %c0_i32_1 = arith.constant 0 : i32
    return %c0_i32, %c0_i32_0 : i32, i32
  }
  func.func @transform_26(%arg0: i32) -> (i32, i32) {
    %c0_i32 = arith.constant 0 : i32
    %c0_i32_0 = arith.constant 0 : i32
    %c0_i32_1 = arith.constant 0 : i32
    return %c0_i32, %c0_i32_0 : i32, i32
  }
  func.func @transform_27(%arg0: i32) -> (i32, i32, i32, i32) {
    %c0_i32 = arith.constant 0 : i32
    %c0_i32_0 = arith.constant 0 : i32
    %c0_i32_1 = arith.constant 0 : i32
    %c0_i32_2 = arith.constant 0 : i32
    return %c0_i32, %arg0, %c0_i32_0, %c0_i32_1 : i32, i32, i32, i32
  }
  func.func @transform_28(%arg0: i32) -> (i32, i32, i32, i32) {
    %c0_i32 = arith.constant 0 : i32
    %c0_i32_0 = arith.constant 0 : i32
    %c0_i32_1 = arith.constant 0 : i32
    %c0_i32_2 = arith.constant 0 : i32
    return %c0_i32, %arg0, %c0_i32_0, %c0_i32_1 : i32, i32, i32, i32
  }
  func.func @transform_29(%arg0: i32) -> (i32, i32, i32, i32) {
    %c0_i32 = arith.constant 0 : i32
    %c0_i32_0 = arith.constant 0 : i32
    %c0_i32_1 = arith.constant 0 : i32
    %c0_i32_2 = arith.constant 0 : i32
    return %c0_i32, %arg0, %c0_i32_0, %c0_i32_1 : i32, i32, i32, i32
  }
}

</mosaic_0001>

<llo_original>
// kernel: tpu_custom_call.1
$region0: #{tpu_custom_call.1}
  #allocation0 [shape = 'u32[]', space=smem, size = 0x4, offset = 0x4, fixed_abs, tag = 'smem constant byte address 0x4 - core index']
  #allocation1 [shape = 'u32[144,128]{1,0:T(1,128)}', space=vmem, size = 0x12000, scoped, tag = 'internal scratch']
  #allocation2 [shape = 'f32[4,3,128]{2,1,0:T(4,128)}', space=vmem, size = 0x2000, scoped, tag = 'scratch operand']
  %s0 = inlined_call_operand.smem [shape: u32[30], index: -1, kind: input, shape index: {}]
  %s1 = sld [smem:[%s0]]
  %s2 = scalar_lea.smem %s0, 1
  %s3 = sld [smem:[%s2]]
  %s4 = scalar_lea.smem %s0, 2
  %s5 = sld [smem:[%s4]]
  %s6 = scalar_lea.smem %s0, 3
  %s7 = sld [smem:[%s6]]
  %s8 = scalar_lea.smem %s0, 4
  %s9 = sld [smem:[%s8]]
  %s10 = scalar_lea.smem %s0, 5
  %s11 = sld [smem:[%s10]]
  %s12 = scalar_lea.smem %s0, 6
  %s13 = sld [smem:[%s12]]
  %s14 = scalar_lea.smem %s0, 7
  %s15 = sld [smem:[%s14]]
  %s16 = scalar_lea.smem %s0, 8
  %s17 = sld [smem:[%s16]]
  %s18 = scalar_lea.smem %s0, 9
  %s19 = sld [smem:[%s18]]
  %s20 = scalar_lea.smem %s0, 10
  %s21 = sld [smem:[%s20]]
  %s22 = scalar_lea.smem %s0, 11
  %s23 = sld [smem:[%s22]]
  %s24 = scalar_lea.smem %s0, 12
  %s25 = sld [smem:[%s24]]
  %s26 = scalar_lea.smem %s0, 13
  %s27 = sld [smem:[%s26]]
  %s28 = scalar_lea.smem %s0, 14
  %s29 = sld [smem:[%s28]]
  %s30 = scalar_lea.smem %s0, 15
  %s31 = sld [smem:[%s30]]
  %s32 = scalar_lea.smem %s0, 16
  %s33 = sld [smem:[%s32]]
  %s34 = scalar_lea.smem %s0, 17
  %s35 = sld [smem:[%s34]]
  %s36 = scalar_lea.smem %s0, 18
  %s37 = sld [smem:[%s36]]
  %s38 = scalar_lea.smem %s0, 19
  %s39 = sld [smem:[%s38]]
  %s40 = scalar_lea.smem %s0, 20
  %s41 = sld [smem:[%s40]]
  %s42 = scalar_lea.smem %s0, 21
  %s43 = sld [smem:[%s42]]
  %s44 = scalar_lea.smem %s0, 22
  %s45 = sld [smem:[%s44]]
  %s46 = scalar_lea.smem %s0, 23
  %s47 = sld [smem:[%s46]]
  %s48 = scalar_lea.smem %s0, 24
  %s49 = sld [smem:[%s48]]
  %s50 = scalar_lea.smem %s0, 25
  %s51 = sld [smem:[%s50]]
  %s52 = scalar_lea.smem %s0, 26
  %s53 = sld [smem:[%s52]]
  %s54 = scalar_lea.smem %s0, 27
  %s55 = sld [smem:[%s54]]
  %s56 = scalar_lea.smem %s0, 28
  %s57 = sld [smem:[%s56]]
  %s58 = scalar_lea.smem %s0, 29
  %s59 = sld [smem:[%s58]]
  %60 = xla_tuple %s55, %s57, %s59
  %s61 = sld [smem:[#allocation0]]
  $region409: #{tpu_custom_call.1} parent=0
    _
  %s63 = ssub.s32 1, %s61
  %s64 = scalar_select 0, %s63, %s61
  $region1: #{tpu_custom_call.1} parent=0
    #allocation3 [shape = 'u8[32768]{0}', space=vmem, size = 0x8000, scoped, tag = 'input window, operand 0']
    #allocation4 [shape = 's32[2]{0}', space=sflag, size = 0x8, scoped, tag = 'scoped memory for tpu_custom_call.1']
    #allocation5 [shape = 'u8[16384]{0}', space=vmem, size = 0x4000, scoped, tag = 'input window, operand 1']
    #allocation6 [shape = 'u8[16384]{0}', space=vmem, size = 0x4000, scoped, tag = 'input window, operand 2']
    #allocation7 [shape = 'u8[262144]{0}', space=vmem, size = 0x40000, scoped, tag = 'input window, operand 6, single buffered']
    #allocation8 [shape = 's32[1]{0}', space=sflag, size = 0x4, scoped, tag = 'scoped memory for tpu_custom_call.1']
    #allocation9 [shape = 'u8[262144]{0}', space=vmem, size = 0x40000, scoped, tag = 'input window, operand 7, single buffered']
    #allocation10 [shape = 'u8[262144]{0}', space=vmem, size = 0x40000, scoped, tag = 'input window, operand 8, single buffered']
    #allocation11 [shape = 's32[1]{0}', space=sflag, size = 0x4, scoped, tag = 'scoped memory for tpu_custom_call.1']
    #allocation12 [shape = 'u8[262144]{0}', space=vmem, size = 0x40000, scoped, tag = 'input window, operand 9, single buffered']
    #allocation13 [shape = 'u8[65536]{0}', space=vmem, size = 0x10000, scoped, tag = 'input window, operand 13, single buffered']
    #allocation14 [shape = 's32[1]{0}', space=sflag, size = 0x4, scoped, tag = 'scoped memory for tpu_custom_call.1']
    #allocation15 [shape = 'u8[65536]{0}', space=vmem, size = 0x10000, scoped, tag = 'input window, operand 14, single buffered']
    #allocation16 [shape = 'u8[65536]{0}', space=vmem, size = 0x10000, scoped, tag = 'input window, operand 15, single buffered']
    #allocation17 [shape = 's32[1]{0}', space=sflag, size = 0x4, scoped, tag = 'scoped memory for tpu_custom_call.1']
    #allocation18 [shape = 'u8[65536]{0}', space=vmem, size = 0x10000, scoped, tag = 'input window, operand 16, single buffered']
    #allocation19 [shape = 'u8[65536]{0}', space=vmem, size = 0x10000, scoped, tag = 'input window, operand 17, single buffered']
    #allocation20 [shape = 's32[1]{0}', space=sflag, size = 0x4, scoped, tag = 'scoped memory for tpu_custom_call.1']
    #allocation21 [shape = 'u8[65536]{0}', space=vmem, size = 0x10000, scoped, tag = 'input window, operand 18, single buffered']
    #allocation22 [shape = 'u8[65536]{0}', space=vmem, size = 0x10000, scoped, tag = 'input window, operand 23, single buffered']
    #allocation23 [shape = 's32[1]{0}', space=sflag, size = 0x4, scoped, tag = 'scoped memory for tpu_custom_call.1']
    #allocation24 [shape = 'u8[65536]{0}', space=vmem, size = 0x10000, scoped, tag = 'input window, operand 25, single buffered']
    #allocation25 [shape = 'u8[16384]{0}', space=vmem, size = 0x4000, scoped, tag = 'output window, operand 0']
    #allocation26 [shape = 'u8[16384]{0}', space=vmem, size = 0x4000, scoped, tag = 'output window, operand 1']
    #allocation27 [shape = 'u8[16384]{0}', space=vmem, size = 0x4000, scoped, tag = 'output window, operand 2']
    %65 = vsyncpa [#allocation4], 0
    %s66 = scalar_lea.sflag [#allocation4], 1
    %67 = vsyncpa %s66, 0
    %68 = vsyncpa [#allocation8], 0
    %69 = vsyncpa [#allocation11], 0
    %70 = vsyncpa [#allocation14], 0
    %71 = vsyncpa [#allocation17], 0
    %72 = vsyncpa [#allocation20], 0
    %73 = vsyncpa [#allocation23], 0
    loop: start=0, step=1, limit=4
    $region2: #{tpu_custom_call.1} parent=1 // loop_pre_header
      _
    $region3: #{tpu_custom_call.1} parent=1 // loop_header
      %s75 = sphi 0, %s79
      %p76 = scmp.ge.s32.totalorder %s75, 4
      %s85 = sphi 0, %s87
      %s88 = sphi 0, %s85
      %s89 = sphi 0, %s88
      %s105 = sphi 0, %s89
      %s111 = sphi 0, %s113
      %s114 = sphi 0, %s111
      %s115 = sphi 0, %s114
      %s131 = sphi 0, %s115
      %s137 = sphi 0, %s139
      %s140 = sphi 0, %s137
      %s141 = sphi 0, %s140
      %s157 = sphi 0, %s141
      %s163 = sphi 0, %s165
      %s166 = sphi 0, %s163
      %s167 = sphi 0, %s166
      %s183 = sphi 0, %s167
      %s187 = sphi 0, %s187
      %s189 = sphi 0, %s187
      %s190 = sphi 0, %s189
      %s204 = sphi 0, %s190
      %s208 = sphi 0, %s208
      %s210 = sphi 0, %s208
      %s211 = sphi 0, %s210
      %s225 = sphi 0, %s211
      %s229 = sphi 0, %s229
      %s231 = sphi 0, %s229
      %s232 = sphi 0, %s231
      %s246 = sphi 0, %s232
      %s250 = sphi 0, %s250
      %s252 = sphi 0, %s250
      %s253 = sphi 0, %s252
      %s267 = sphi 0, %s253
      %s271 = sphi 0, %s271
      %s273 = sphi 0, %s271
      %s274 = sphi 0, %s273
      %s288 = sphi 0, %s274
      %s292 = sphi 0, %s292
      %s294 = sphi 0, %s292
      %s295 = sphi 0, %s294
      %s309 = sphi 0, %s295
      %s313 = sphi 0, %s313
      %s315 = sphi 0, %s313
      %s316 = sphi 0, %s315
      %s330 = sphi 0, %s316
      %s334 = sphi 0, %s334
      %s336 = sphi 0, %s334
      %s337 = sphi 0, %s336
      %s351 = sphi 0, %s337
      %s355 = sphi 0, %s355
      %s357 = sphi 0, %s355
      %s358 = sphi 0, %s357
      %s372 = sphi 0, %s358
      %s376 = sphi 0, %s376
      %s378 = sphi 0, %s376
      %s379 = sphi 0, %s378
      %s393 = sphi 0, %s379
      %s397 = sphi 0, %s397
      %s399 = sphi 0, %s397
      %s400 = sphi 0, %s399
      %s414 = sphi 0, %s400
      %s418 = sphi 0, %s418
      %s420 = sphi 0, %s418
      %s421 = sphi 0, %s420
      %s435 = sphi 0, %s421
      %s439 = sphi 0, %s439
      %s441 = sphi 0, %s439
      %s442 = sphi 0, %s441
      %s456 = sphi 0, %s442
      %s460 = sphi 0, %s460
      %s462 = sphi 0, %s460
      %s463 = sphi 0, %s462
      %s477 = sphi 0, %s463
      %s481 = sphi 0, %s481
      %s483 = sphi 0, %s481
      %s484 = sphi 0, %s483
      %s498 = sphi 0, %s484
      %s502 = sphi 0, %s502
      %s504 = sphi 0, %s502
      %s505 = sphi 0, %s504
      %s519 = sphi 0, %s505
      %s523 = sphi 0, %s523
      %s525 = sphi 0, %s523
      %s526 = sphi 0, %s525
      %s540 = sphi 0, %s526
      %s544 = sphi 0, %s544
      %s546 = sphi 0, %s544
      %s547 = sphi 0, %s546
      %s561 = sphi 0, %s547
      %s565 = sphi 0, %s565
      %s567 = sphi 0, %s565
      %s568 = sphi 0, %s567
      %s582 = sphi 0, %s568
      %s586 = sphi 0, %s586
      %s588 = sphi 0, %s586
      %s589 = sphi 0, %s588
      %s603 = sphi 0, %s589
      %s607 = sphi 0, %s607
      %s609 = sphi 0, %s607
      %s610 = sphi 0, %s609
      %s624 = sphi 0, %s610
      %s628 = sphi 0, %s628
      %s630 = sphi 0, %s628
      %s631 = sphi 0, %s630
      %s645 = sphi 0, %s631
      %s649 = sphi 0, %s649
      %s651 = sphi 0, %s649
      %s652 = sphi 0, %s651
      %s666 = sphi 0, %s652
      %s672 = sphi 0, %s674
      %s675 = sphi 0, %s672
      %s676 = sphi 0, %s675
      %s692 = sphi 0, %s676
      %s698 = sphi 0, %s700
      %s701 = sphi 0, %s698
      %s702 = sphi 0, %s701
      %s718 = sphi 0, %s702
      %s724 = sphi 0, %s726
      %s727 = sphi 0, %s724
      %s728 = sphi 0, %s727
      %s744 = sphi 0, %s728
    $region4: #{tpu_custom_call.1} parent=1 // loop_header_branch
      %78 = sbr.rel (%p76) target = $region8
    $region5: #{tpu_custom_call.1} parent=1 // loop_body
      %s80 = ssub.s32 %s75, 1
      %s81 = ssub.s32 %s75, 2
      %s82 = sadd.s32 %s75, 1
      %s83 = ssub.s32 %s75, %s82
      %p84 = scmp.eq.s32.totalorder %s83, 0
      %s86 = sadd.s32 %s85, 1
      %s87 = scalar_select %p84, %s85, %s86
      %p90 = pneg %p84
      %p91 = scmp.eq.s32.totalorder %s75, 1
      %p92 = por %p90, %p91
      %p93 = scmp.ne.s32.totalorder %s85, %s88
      %p94 = scmp.eq.s32.totalorder %s75, 0
      %p95 = por %p93, %p94
      %p96 = scmp.ne.s32.totalorder %s85, %s88
      %p97 = scmp.eq.s32.totalorder %s80, 1
      %p98 = por %p96, %p97
      %p99 = scmp.ne.s32.totalorder %s88, %s89
      %p100 = scmp.eq.s32.totalorder %s80, 0
      %p101 = por %p99, %p100
      %p102 = scmp.ne.s32.totalorder %s88, %s89
      %p103 = scmp.eq.s32.totalorder %s81, 1
      %p104 = por %p102, %p103
      %p106 = scmp.ne.s32.totalorder %s89, %s105
      %p107 = scmp.eq.s32.totalorder %s81, 0
      %p108 = por %p106, %p107
      %s109 = ssub.s32 %s75, %s82
      %p110 = scmp.eq.s32.totalorder %s109, 0
      %s112 = sadd.s32 %s111, 1
      %s113 = scalar_select %p110, %s111, %s112
      %p116 = pneg %p110
      %p117 = scmp.eq.s32.totalorder %s75, 1
      %p118 = por %p116, %p117
      %p119 = scmp.ne.s32.totalorder %s111, %s114
      %p120 = scmp.eq.s32.totalorder %s75, 0
      %p121 = por %p119, %p120
      %p122 = scmp.ne.s32.totalorder %s111, %s114
      %p123 = scmp.eq.s32.totalorder %s80, 1
      %p124 = por %p122, %p123
      %p125 = scmp.ne.s32.totalorder %s114, %s115
      %p126 = scmp.eq.s32.totalorder %s80, 0
      %p127 = por %p125, %p126
      %p128 = scmp.ne.s32.totalorder %s114, %s115
      %p129 = scmp.eq.s32.totalorder %s81, 1
      %p130 = por %p128, %p129
      %p132 = scmp.ne.s32.totalorder %s115, %s131
      %p133 = scmp.eq.s32.totalorder %s81, 0
      %p134 = por %p132, %p133
      %s135 = ssub.s32 %s75, %s82
      %p136 = scmp.eq.s32.totalorder %s135, 0
      %s138 = sadd.s32 %s137, 1
      %s139 = scalar_select %p136, %s137, %s138
      %p142 = pneg %p136
      %p143 = scmp.eq.s32.totalorder %s75, 1
      %p144 = por %p142, %p143
      %p145 = scmp.ne.s32.totalorder %s137, %s140
      %p146 = scmp.eq.s32.totalorder %s75, 0
      %p147 = por %p145, %p146
      %p148 = scmp.ne.s32.totalorder %s137, %s140
      %p149 = scmp.eq.s32.totalorder %s80, 1
      %p150 = por %p148, %p149
      %p151 = scmp.ne.s32.totalorder %s140, %s141
      %p152 = scmp.eq.s32.totalorder %s80, 0
      %p153 = por %p151, %p152
      %p154 = scmp.ne.s32.totalorder %s140, %s141
      %p155 = scmp.eq.s32.totalorder %s81, 1
      %p156 = por %p154, %p155
      %p158 = scmp.ne.s32.totalorder %s141, %s157
      %p159 = scmp.eq.s32.totalorder %s81, 0
      %p160 = por %p158, %p159
      %s161 = ssub.s32 %s75, %s82
      %p162 = scmp.eq.s32.totalorder %s161, 0
      %s164 = sadd.s32 %s163, 1
      %s165 = scalar_select %p162, %s163, %s164
      %p168 = pneg %p162
      %p169 = scmp.eq.s32.totalorder %s75, 1
      %p170 = por %p168, %p169
      %p171 = scmp.ne.s32.totalorder %s163, %s166
      %p172 = scmp.eq.s32.totalorder %s75, 0
      %p173 = por %p171, %p172
      %p174 = scmp.ne.s32.totalorder %s163, %s166
      %p175 = scmp.eq.s32.totalorder %s80, 1
      %p176 = por %p174, %p175
      %p177 = scmp.ne.s32.totalorder %s166, %s167
      %p178 = scmp.eq.s32.totalorder %s80, 0
      %p179 = por %p177, %p178
      %p180 = scmp.ne.s32.totalorder %s166, %s167
      %p181 = scmp.eq.s32.totalorder %s81, 1
      %p182 = por %p180, %p181
      %p184 = scmp.ne.s32.totalorder %s167, %s183
      %p185 = scmp.eq.s32.totalorder %s81, 0
      %p186 = por %p184, %p185
      %s188 = sadd.s32 %s187, 1
      %p191 = scmp.eq.s32.totalorder %s75, 1
      %p192 = scmp.ne.s32.totalorder %s187, %s189
      %p193 = scmp.eq.s32.totalorder %s75, 0
      %p194 = por %p192, %p193
      %p195 = scmp.ne.s32.totalorder %s187, %s189
      %p196 = scmp.eq.s32.totalorder %s80, 1
      %p197 = por %p195, %p196
      %p198 = scmp.ne.s32.totalorder %s189, %s190
      %p199 = scmp.eq.s32.totalorder %s80, 0
      %p200 = por %p198, %p199
      %p201 = scmp.ne.s32.totalorder %s189, %s190
      %p202 = scmp.eq.s32.totalorder %s81, 1
      %p203 = por %p201, %p202
      %p205 = scmp.ne.s32.totalorder %s190, %s204
      %p206 = scmp.eq.s32.totalorder %s81, 0
      %p207 = por %p205, %p206
      %s209 = sadd.s32 %s208, 1
      %p212 = scmp.eq.s32.totalorder %s75, 1
      %p213 = scmp.ne.s32.totalorder %s208, %s210
      %p214 = scmp.eq.s32.totalorder %s75, 0
      %p215 = por %p213, %p214
      %p216 = scmp.ne.s32.totalorder %s208, %s210
      %p217 = scmp.eq.s32.totalorder %s80, 1
      %p218 = por %p216, %p217
      %p219 = scmp.ne.s32.totalorder %s210, %s211
      %p220 = scmp.eq.s32.totalorder %s80, 0
      %p221 = por %p219, %p220
      %p222 = scmp.ne.s32.totalorder %s210, %s211
      %p223 = scmp.eq.s32.totalorder %s81, 1
      %p224 = por %p222, %p223
      %p226 = scmp.ne.s32.totalorder %s211, %s225
      %p227 = scmp.eq.s32.totalorder %s81, 0
      %p228 = por %p226, %p227
      %s230 = sadd.s32 %s229, 1
      %p233 = scmp.eq.s32.totalorder %s75, 1
      %p234 = scmp.ne.s32.totalorder %s229, %s231
      %p235 = scmp.eq.s32.totalorder %s75, 0
      %p236 = por %p234, %p235
      %p237 = scmp.ne.s32.totalorder %s229, %s231
      %p238 = scmp.eq.s32.totalorder %s80, 1
      %p239 = por %p237, %p238
      %p240 = scmp.ne.s32.totalorder %s231, %s232
      %p241 = scmp.eq.s32.totalorder %s80, 0
      %p242 = por %p240, %p241
      %p243 = scmp.ne.s32.totalorder %s231, %s232
      %p244 = scmp.eq.s32.totalorder %s81, 1
      %p245 = por %p243, %p244
      %p247 = scmp.ne.s32.totalorder %s232, %s246
      %p248 = scmp.eq.s32.totalorder %s81, 0
      %p249 = por %p247, %p248
      %s251 = sadd.s32 %s250, 1
      %p254 = scmp.eq.s32.totalorder %s75, 1
      %p255 = scmp.ne.s32.totalorder %s250, %s252
      %p256 = scmp.eq.s32.totalorder %s75, 0
      %p257 = por %p255, %p256
      %p258 = scmp.ne.s32.totalorder %s250, %s252
      %p259 = scmp.eq.s32.totalorder %s80, 1
      %p260 = por %p258, %p259
      %p261 = scmp.ne.s32.totalorder %s252, %s253
      %p262 = scmp.eq.s32.totalorder %s80, 0
      %p263 = por %p261, %p262
      %p264 = scmp.ne.s32.totalorder %s252, %s253
      %p265 = scmp.eq.s32.totalorder %s81, 1
      %p266 = por %p264, %p265
      %p268 = scmp.ne.s32.totalorder %s253, %s267
      %p269 = scmp.eq.s32.totalorder %s81, 0
      %p270 = por %p268, %p269
      %s272 = sadd.s32 %s271, 1
      %p275 = scmp.eq.s32.totalorder %s75, 1
      %p276 = scmp.ne.s32.totalorder %s271, %s273
      %p277 = scmp.eq.s32.totalorder %s75, 0
      %p278 = por %p276, %p277
      %p279 = scmp.ne.s32.totalorder %s271, %s273
      %p280 = scmp.eq.s32.totalorder %s80, 1
      %p281 = por %p279, %p280
      %p282 = scmp.ne.s32.totalorder %s273, %s274
      %p283 = scmp.eq.s32.totalorder %s80, 0
      %p284 = por %p282, %p283
      %p285 = scmp.ne.s32.totalorder %s273, %s274
      %p286 = scmp.eq.s32.totalorder %s81, 1
      %p287 = por %p285, %p286
      %p289 = scmp.ne.s32.totalorder %s274, %s288
      %p290 = scmp.eq.s32.totalorder %s81, 0
      %p291 = por %p289, %p290
      %s293 = sadd.s32 %s292, 1
      %p296 = scmp.eq.s32.totalorder %s75, 1
      %p297 = scmp.ne.s32.totalorder %s292, %s294
      %p298 = scmp.eq.s32.totalorder %s75, 0
      %p299 = por %p297, %p298
      %p300 = scmp.ne.s32.totalorder %s292, %s294
      %p301 = scmp.eq.s32.totalorder %s80, 1
      %p302 = por %p300, %p301
      %p303 = scmp.ne.s32.totalorder %s294, %s295
      %p304 = scmp.eq.s32.totalorder %s80, 0
      %p305 = por %p303, %p304
      %p306 = scmp.ne.s32.totalorder %s294, %s295
      %p307 = scmp.eq.s32.totalorder %s81, 1
      %p308 = por %p306, %p307
      %p310 = scmp.ne.s32.totalorder %s295, %s309
      %p311 = scmp.eq.s32.totalorder %s81, 0
      %p312 = por %p310, %p311
      %s314 = sadd.s32 %s313, 1
      %p317 = scmp.eq.s32.totalorder %s75, 1
      %p318 = scmp.ne.s32.totalorder %s313, %s315
      %p319 = scmp.eq.s32.totalorder %s75, 0
      %p320 = por %p318, %p319
      %p321 = scmp.ne.s32.totalorder %s313, %s315
      %p322 = scmp.eq.s32.totalorder %s80, 1
      %p323 = por %p321, %p322
      %p324 = scmp.ne.s32.totalorder %s315, %s316
      %p325 = scmp.eq.s32.totalorder %s80, 0
      %p326 = por %p324, %p325
      %p327 = scmp.ne.s32.totalorder %s315, %s316
      %p328 = scmp.eq.s32.totalorder %s81, 1
      %p329 = por %p327, %p328
      %p331 = scmp.ne.s32.totalorder %s316, %s330
      %p332 = scmp.eq.s32.totalorder %s81, 0
      %p333 = por %p331, %p332
      %s335 = sadd.s32 %s334, 1
      %p338 = scmp.eq.s32.totalorder %s75, 1
      %p339 = scmp.ne.s32.totalorder %s334, %s336
      %p340 = scmp.eq.s32.totalorder %s75, 0
      %p341 = por %p339, %p340
      %p342 = scmp.ne.s32.totalorder %s334, %s336
      %p343 = scmp.eq.s32.totalorder %s80, 1
      %p344 = por %p342, %p343
      %p345 = scmp.ne.s32.totalorder %s336, %s337
      %p346 = scmp.eq.s32.totalorder %s80, 0
      %p347 = por %p345, %p346
      %p348 = scmp.ne.s32.totalorder %s336, %s337
      %p349 = scmp.eq.s32.totalorder %s81, 1
      %p350 = por %p348, %p349
      %p352 = scmp.ne.s32.totalorder %s337, %s351
      %p353 = scmp.eq.s32.totalorder %s81, 0
      %p354 = por %p352, %p353
      %s356 = sadd.s32 %s355, 1
      %p359 = scmp.eq.s32.totalorder %s75, 1
      %p360 = scmp.ne.s32.totalorder %s355, %s357
      %p361 = scmp.eq.s32.totalorder %s75, 0
      %p362 = por %p360, %p361
      %p363 = scmp.ne.s32.totalorder %s355, %s357
      %p364 = scmp.eq.s32.totalorder %s80, 1
      %p365 = por %p363, %p364
      %p366 = scmp.ne.s32.totalorder %s357, %s358
      %p367 = scmp.eq.s32.totalorder %s80, 0
      %p368 = por %p366, %p367
      %p369 = scmp.ne.s32.totalorder %s357, %s358
      %p370 = scmp.eq.s32.totalorder %s81, 1
      %p371 = por %p369, %p370
      %p373 = scmp.ne.s32.totalorder %s358, %s372
      %p374 = scmp.eq.s32.totalorder %s81, 0
      %p375 = por %p373, %p374
      %s377 = sadd.s32 %s376, 1
      %p380 = scmp.eq.s32.totalorder %s75, 1
      %p381 = scmp.ne.s32.totalorder %s376, %s378
      %p382 = scmp.eq.s32.totalorder %s75, 0
      %p383 = por %p381, %p382
      %p384 = scmp.ne.s32.totalorder %s376, %s378
      %p385 = scmp.eq.s32.totalorder %s80, 1
      %p386 = por %p384, %p385
      %p387 = scmp.ne.s32.totalorder %s378, %s379
      %p388 = scmp.eq.s32.totalorder %s80, 0
      %p389 = por %p387, %p388
      %p390 = scmp.ne.s32.totalorder %s378, %s379
      %p391 = scmp.eq.s32.totalorder %s81, 1
      %p392 = por %p390, %p391
      %p394 = scmp.ne.s32.totalorder %s379, %s393
      %p395 = scmp.eq.s32.totalorder %s81, 0
      %p396 = por %p394, %p395
      %s398 = sadd.s32 %s397, 1
      %p401 = scmp.eq.s32.totalorder %s75, 1
      %p402 = scmp.ne.s32.totalorder %s397, %s399
      %p403 = scmp.eq.s32.totalorder %s75, 0
      %p404 = por %p402, %p403
      %p405 = scmp.ne.s32.totalorder %s397, %s399
      %p406 = scmp.eq.s32.totalorder %s80, 1
      %p407 = por %p405, %p406
      %p408 = scmp.ne.s32.totalorder %s399, %s400
      %p409 = scmp.eq.s32.totalorder %s80, 0
      %p410 = por %p408, %p409
      %p411 = scmp.ne.s32.totalorder %s399, %s400
      %p412 = scmp.eq.s32.totalorder %s81, 1
      %p413 = por %p411, %p412
      %p415 = scmp.ne.s32.totalorder %s400, %s414
      %p416 = scmp.eq.s32.totalorder %s81, 0
      %p417 = por %p415, %p416
      %s419 = sadd.s32 %s418, 1
      %p422 = scmp.eq.s32.totalorder %s75, 1
      %p423 = scmp.ne.s32.totalorder %s418, %s420
      %p424 = scmp.eq.s32.totalorder %s75, 0
      %p425 = por %p423, %p424
      %p426 = scmp.ne.s32.totalorder %s418, %s420
      %p427 = scmp.eq.s32.totalorder %s80, 1
      %p428 = por %p426, %p427
      %p429 = scmp.ne.s32.totalorder %s420, %s421
      %p430 = scmp.eq.s32.totalorder %s80, 0
      %p431 = por %p429, %p430
      %p432 = scmp.ne.s32.totalorder %s420, %s421
      %p433 = scmp.eq.s32.totalorder %s81, 1
      %p434 = por %p432, %p433
      %p436 = scmp.ne.s32.totalorder %s421, %s435
      %p437 = scmp.eq.s32.totalorder %s81, 0
      %p438 = por %p436, %p437
      %s440 = sadd.s32 %s439, 1
      %p443 = scmp.eq.s32.totalorder %s75, 1
      %p444 = scmp.ne.s32.totalorder %s439, %s441
      %p445 = scmp.eq.s32.totalorder %s75, 0
      %p446 = por %p444, %p445
      %p447 = scmp.ne.s32.totalorder %s439, %s441
      %p448 = scmp.eq.s32.totalorder %s80, 1
      %p449 = por %p447, %p448
      %p450 = scmp.ne.s32.totalorder %s441, %s442
      %p451 = scmp.eq.s32.totalorder %s80, 0
      %p452 = por %p450, %p451
      %p453 = scmp.ne.s32.totalorder %s441, %s442
      %p454 = scmp.eq.s32.totalorder %s81, 1
      %p455 = por %p453, %p454
      %p457 = scmp.ne.s32.totalorder %s442, %s456
      %p458 = scmp.eq.s32.totalorder %s81, 0
      %p459 = por %p457, %p458
      %s461 = sadd.s32 %s460, 1
      %p464 = scmp.eq.s32.totalorder %s75, 1
      %p465 = scmp.ne.s32.totalorder %s460, %s462
      %p466 = scmp.eq.s32.totalorder %s75, 0
      %p467 = por %p465, %p466
      %p468 = scmp.ne.s32.totalorder %s460, %s462
      %p469 = scmp.eq.s32.totalorder %s80, 1
      %p470 = por %p468, %p469
      %p471 = scmp.ne.s32.totalorder %s462, %s463
      %p472 = scmp.eq.s32.totalorder %s80, 0
      %p473 = por %p471, %p472
      %p474 = scmp.ne.s32.totalorder %s462, %s463
      %p475 = scmp.eq.s32.totalorder %s81, 1
      %p476 = por %p474, %p475
      %p478 = scmp.ne.s32.totalorder %s463, %s477
      %p479 = scmp.eq.s32.totalorder %s81, 0
      %p480 = por %p478, %p479
      %s482 = sadd.s32 %s481, 1
      %p485 = scmp.eq.s32.totalorder %s75, 1
      %p486 = scmp.ne.s32.totalorder %s481, %s483
      %p487 = scmp.eq.s32.totalorder %s75, 0
      %p488 = por %p486, %p487
      %p489 = scmp.ne.s32.totalorder %s481, %s483
      %p490 = scmp.eq.s32.totalorder %s80, 1
      %p491 = por %p489, %p490
      %p492 = scmp.ne.s32.totalorder %s483, %s484
      %p493 = scmp.eq.s32.totalorder %s80, 0
      %p494 = por %p492, %p493
      %p495 = scmp.ne.s32.totalorder %s483, %s484
      %p496 = scmp.eq.s32.totalorder %s81, 1
      %p497 = por %p495, %p496
      %p499 = scmp.ne.s32.totalorder %s484, %s498
      %p500 = scmp.eq.s32.totalorder %s81, 0
      %p501 = por %p499, %p500
      %s503 = sadd.s32 %s502, 1
      %p506 = scmp.eq.s32.totalorder %s75, 1
      %p507 = scmp.ne.s32.totalorder %s502, %s504
      %p508 = scmp.eq.s32.totalorder %s75, 0
      %p509 = por %p507, %p508
      %p510 = scmp.ne.s32.totalorder %s502, %s504
      %p511 = scmp.eq.s32.totalorder %s80, 1
      %p512 = por %p510, %p511
      %p513 = scmp.ne.s32.totalorder %s504, %s505
      %p514 = scmp.eq.s32.totalorder %s80, 0
      %p515 = por %p513, %p514
      %p516 = scmp.ne.s32.totalorder %s504, %s505
      %p517 = scmp.eq.s32.totalorder %s81, 1
      %p518 = por %p516, %p517
      %p520 = scmp.ne.s32.totalorder %s505, %s519
      %p521 = scmp.eq.s32.totalorder %s81, 0
      %p522 = por %p520, %p521
      %s524 = sadd.s32 %s523, 1
      %p527 = scmp.eq.s32.totalorder %s75, 1
      %p528 = scmp.ne.s32.totalorder %s523, %s525
      %p529 = scmp.eq.s32.totalorder %s75, 0
      %p530 = por %p528, %p529
      %p531 = scmp.ne.s32.totalorder %s523, %s525
      %p532 = scmp.eq.s32.totalorder %s80, 1
      %p533 = por %p531, %p532
      %p534 = scmp.ne.s32.totalorder %s525, %s526
      %p535 = scmp.eq.s32.totalorder %s80, 0
      %p536 = por %p534, %p535
      %p537 = scmp.ne.s32.totalorder %s525, %s526
      %p538 = scmp.eq.s32.totalorder %s81, 1
      %p539 = por %p537, %p538
      %p541 = scmp.ne.s32.totalorder %s526, %s540
      %p542 = scmp.eq.s32.totalorder %s81, 0
      %p543 = por %p541, %p542
      %s545 = sadd.s32 %s544, 1
      %p548 = scmp.eq.s32.totalorder %s75, 1
      %p549 = scmp.ne.s32.totalorder %s544, %s546
      %p550 = scmp.eq.s32.totalorder %s75, 0
      %p551 = por %p549, %p550
      %p552 = scmp.ne.s32.totalorder %s544, %s546
      %p553 = scmp.eq.s32.totalorder %s80, 1
      %p554 = por %p552, %p553
      %p555 = scmp.ne.s32.totalorder %s546, %s547
      %p556 = scmp.eq.s32.totalorder %s80, 0
      %p557 = por %p555, %p556
      %p558 = scmp.ne.s32.totalorder %s546, %s547
      %p559 = scmp.eq.s32.totalorder %s81, 1
      %p560 = por %p558, %p559
      %p562 = scmp.ne.s32.totalorder %s547, %s561
      %p563 = scmp.eq.s32.totalorder %s81, 0
      %p564 = por %p562, %p563
      %s566 = sadd.s32 %s565, 1
      %p569 = scmp.eq.s32.totalorder %s75, 1
      %p570 = scmp.ne.s32.totalorder %s565, %s567
      %p571 = scmp.eq.s32.totalorder %s75, 0
      %p572 = por %p570, %p571
      %p573 = scmp.ne.s32.totalorder %s565, %s567
      %p574 = scmp.eq.s32.totalorder %s80, 1
      %p575 = por %p573, %p574
      %p576 = scmp.ne.s32.totalorder %s567, %s568
      %p577 = scmp.eq.s32.totalorder %s80, 0
      %p578 = por %p576, %p577
      %p579 = scmp.ne.s32.totalorder %s567, %s568
      %p580 = scmp.eq.s32.totalorder %s81, 1
      %p581 = por %p579, %p580
      %p583 = scmp.ne.s32.totalorder %s568, %s582
      %p584 = scmp.eq.s32.totalorder %s81, 0
      %p585 = por %p583, %p584
      %s587 = sadd.s32 %s586, 1
      %p590 = scmp.eq.s32.totalorder %s75, 1
      %p591 = scmp.ne.s32.totalorder %s586, %s588
      %p592 = scmp.eq.s32.totalorder %s75, 0
      %p593 = por %p591, %p592
      %p594 = scmp.ne.s32.totalorder %s586, %s588
      %p595 = scmp.eq.s32.totalorder %s80, 1
      %p596 = por %p594, %p595
      %p597 = scmp.ne.s32.totalorder %s588, %s589
      %p598 = scmp.eq.s32.totalorder %s80, 0
      %p599 = por %p597, %p598
      %p600 = scmp.ne.s32.totalorder %s588, %s589
      %p601 = scmp.eq.s32.totalorder %s81, 1
      %p602 = por %p600, %p601
      %p604 = scmp.ne.s32.totalorder %s589, %s603
      %p605 = scmp.eq.s32.totalorder %s81, 0
      %p606 = por %p604, %p605
      %s608 = sadd.s32 %s607, 1
      %p611 = scmp.eq.s32.totalorder %s75, 1
      %p612 = scmp.ne.s32.totalorder %s607, %s609
      %p613 = scmp.eq.s32.totalorder %s75, 0
      %p614 = por %p612, %p613
      %p615 = scmp.ne.s32.totalorder %s607, %s609
      %p616 = scmp.eq.s32.totalorder %s80, 1
      %p617 = por %p615, %p616
      %p618 = scmp.ne.s32.totalorder %s609, %s610
      %p619 = scmp.eq.s32.totalorder %s80, 0
      %p620 = por %p618, %p619
      %p621 = scmp.ne.s32.totalorder %s609, %s610
      %p622 = scmp.eq.s32.totalorder %s81, 1
      %p623 = por %p621, %p622
      %p625 = scmp.ne.s32.totalorder %s610, %s624
      %p626 = scmp.eq.s32.totalorder %s81, 0
      %p627 = por %p625, %p626
      %s629 = sadd.s32 %s628, 1
      %p632 = scmp.eq.s32.totalorder %s75, 1
      %p633 = scmp.ne.s32.totalorder %s628, %s630
      %p634 = scmp.eq.s32.totalorder %s75, 0
      %p635 = por %p633, %p634
      %p636 = scmp.ne.s32.totalorder %s628, %s630
      %p637 = scmp.eq.s32.totalorder %s80, 1
      %p638 = por %p636, %p637
      %p639 = scmp.ne.s32.totalorder %s630, %s631
      %p640 = scmp.eq.s32.totalorder %s80, 0
      %p641 = por %p639, %p640
      %p642 = scmp.ne.s32.totalorder %s630, %s631
      %p643 = scmp.eq.s32.totalorder %s81, 1
      %p644 = por %p642, %p643
      %p646 = scmp.ne.s32.totalorder %s631, %s645
      %p647 = scmp.eq.s32.totalorder %s81, 0
      %p648 = por %p646, %p647
      %s650 = sadd.s32 %s649, 1
      %p653 = scmp.eq.s32.totalorder %s75, 1
      %p654 = scmp.ne.s32.totalorder %s649, %s651
      %p655 = scmp.eq.s32.totalorder %s75, 0
      %p656 = por %p654, %p655
      %p657 = scmp.ne.s32.totalorder %s649, %s651
      %p658 = scmp.eq.s32.totalorder %s80, 1
      %p659 = por %p657, %p658
      %p660 = scmp.ne.s32.totalorder %s651, %s652
      %p661 = scmp.eq.s32.totalorder %s80, 0
      %p662 = por %p660, %p661
      %p663 = scmp.ne.s32.totalorder %s651, %s652
      %p664 = scmp.eq.s32.totalorder %s81, 1
      %p665 = por %p663, %p664
      %p667 = scmp.ne.s32.totalorder %s652, %s666
      %p668 = scmp.eq.s32.totalorder %s81, 0
      %p669 = por %p667, %p668
      %s670 = ssub.s32 %s75, %s82
      %p671 = scmp.eq.s32.totalorder %s670, 0
      %s673 = sadd.s32 %s672, 1
      %s674 = scalar_select %p671, %s672, %s673
      %p677 = pneg %p671
      %p678 = scmp.eq.s32.totalorder %s75, 1
      %p679 = por %p677, %p678
      %p680 = scmp.ne.s32.totalorder %s672, %s675
      %p681 = scmp.eq.s32.totalorder %s75, 0
      %p682 = por %p680, %p681
      %p683 = scmp.ne.s32.totalorder %s672, %s675
      %p684 = scmp.eq.s32.totalorder %s80, 1
      %p685 = por %p683, %p684
      %p686 = scmp.ne.s32.totalorder %s675, %s676
      %p687 = scmp.eq.s32.totalorder %s80, 0
      %p688 = por %p686, %p687
      %p689 = scmp.ne.s32.totalorder %s675, %s676
      %p690 = scmp.eq.s32.totalorder %s81, 1
      %p691 = por %p689, %p690
      %p693 = scmp.ne.s32.totalorder %s676, %s692
      %p694 = scmp.eq.s32.totalorder %s81, 0
      %p695 = por %p693, %p694
      %s696 = ssub.s32 %s75, %s82
      %p697 = scmp.eq.s32.totalorder %s696, 0
      %s699 = sadd.s32 %s698, 1
      %s700 = scalar_select %p697, %s698, %s699
      %p703 = pneg %p697
      %p704 = scmp.eq.s32.totalorder %s75, 1
      %p705 = por %p703, %p704
      %p706 = scmp.ne.s32.totalorder %s698, %s701
      %p707 = scmp.eq.s32.totalorder %s75, 0
      %p708 = por %p706, %p707
      %p709 = scmp.ne.s32.totalorder %s698, %s701
      %p710 = scmp.eq.s32.totalorder %s80, 1
      %p711 = por %p709, %p710
      %p712 = scmp.ne.s32.totalorder %s701, %s702
      %p713 = scmp.eq.s32.totalorder %s80, 0
      %p714 = por %p712, %p713
      %p715 = scmp.ne.s32.totalorder %s701, %s702
      %p716 = scmp.eq.s32.totalorder %s81, 1
      %p717 = por %p715, %p716
      %p719 = scmp.ne.s32.totalorder %s702, %s718
      %p720 = scmp.eq.s32.totalorder %s81, 0
      %p721 = por %p719, %p720
      %s722 = ssub.s32 %s75, %s82
      %p723 = scmp.eq.s32.totalorder %s722, 0
      %s725 = sadd.s32 %s724, 1
      %s726 = scalar_select %p723, %s724, %s725
      %p729 = pneg %p723
      %p730 = scmp.eq.s32.totalorder %s75, 1
      %p731 = por %p729, %p730
      %p732 = scmp.ne.s32.totalorder %s724, %s727
      %p733 = scmp.eq.s32.totalorder %s75, 0
      %p734 = por %p732, %p733
      %p735 = scmp.ne.s32.totalorder %s724, %s727
      %p736 = scmp.eq.s32.totalorder %s80, 1
      %p737 = por %p735, %p736
      %p738 = scmp.ne.s32.totalorder %s727, %s728
      %p739 = scmp.eq.s32.totalorder %s80, 0
      %p740 = por %p738, %p739
      %p741 = scmp.ne.s32.totalorder %s727, %s728
      %p742 = scmp.eq.s32.totalorder %s81, 1
      %p743 = por %p741, %p742
      %p745 = scmp.ne.s32.totalorder %s728, %s744
      %p746 = scmp.eq.s32.totalorder %s81, 0
      %p747 = por %p745, %p746
      %p748 = scmp.le.s32.totalorder 1, %s75
      %p749 = scmp.lt.s32.totalorder %s75, 3
      %p750 = pnand %p748, %p749
      %p751 = pneg %p750
      // Predicated region
      $region9: #{tpu_custom_call.1} parent=5 // pred_check
        _
      $region10: #{tpu_custom_call.1} parent=5 // pred_check_branch
        %753 = sbr.rel (%p750) target = $region12
      $region11: #{tpu_custom_call.1} parent=5 // pred_region
        %s754 = ssub.s32 %s75, 1
        // Predicated region
        $region13: #{tpu_custom_call.1} parent=11 // pred_check
          %p755 = pneg %p200
        $region14: #{tpu_custom_call.1} parent=11 // pred_check_branch
          %757 = sbr.rel (%p755) target = $region16
        $region15: #{tpu_custom_call.1} parent=11 // pred_region
          _
        $region16: #{tpu_custom_call.1} parent=11 // pred_fallthru
          _
        // Predicated region
        $region17: #{tpu_custom_call.1} parent=11 // pred_check
          %p758 = pneg %p221
        $region18: #{tpu_custom_call.1} parent=11 // pred_check_branch
          %760 = sbr.rel (%p758) target = $region20
        $region19: #{tpu_custom_call.1} parent=11 // pred_region
          _
        $region20: #{tpu_custom_call.1} parent=11 // pred_fallthru
          _
        // Predicated region
        $region21: #{tpu_custom_call.1} parent=11 // pred_check
          %p761 = pneg %p242
        $region22: #{tpu_custom_call.1} parent=11 // pred_check_branch
          %763 = sbr.rel (%p761) target = $region24
        $region23: #{tpu_custom_call.1} parent=11 // pred_region
          %s765 = ssub.s32 8192, 8192
          %766 = vsyncadd [#allocation8], %s765
          %s767 = sshll.u32 [#allocation7], 4
          %s768 = int_to_ptr.vmem [resolvable:$true] %s767
          %773 = dma.hbm_to_vmem [thread:$0]  %s13, 8192, %s768, [#allocation8], 512, 512, 32
        $region24: #{tpu_custom_call.1} parent=11 // pred_fallthru
          _
        // Predicated region
        $region25: #{tpu_custom_call.1} parent=11 // pred_check
          %p774 = pneg %p263
        $region26: #{tpu_custom_call.1} parent=11 // pred_check_branch
          %776 = sbr.rel (%p774) target = $region28
        $region27: #{tpu_custom_call.1} parent=11 // pred_region
          %s778 = ssub.s32 8192, 8192
          %779 = vsyncadd [#allocation8], %s778
          %s780 = sshll.u32 [#allocation9], 4
          %s781 = int_to_ptr.vmem [resolvable:$true] %s780
          %786 = dma.hbm_to_vmem [thread:$0]  %s15, 8192, %s781, [#allocation8], 512, 512, 32
        $region28: #{tpu_custom_call.1} parent=11 // pred_fallthru
          _
        // Predicated region
        $region29: #{tpu_custom_call.1} parent=11 // pred_check
          %p787 = pneg %p284
        $region30: #{tpu_custom_call.1} parent=11 // pred_check_branch
          %789 = sbr.rel (%p787) target = $region32
        $region31: #{tpu_custom_call.1} parent=11 // pred_region
          %s791 = ssub.s32 8192, 8192
          %792 = vsyncadd [#allocation11], %s791
          %s793 = sshll.u32 [#allocation10], 4
          %s794 = int_to_ptr.vmem [resolvable:$true] %s793
          %799 = dma.hbm_to_vmem [thread:$0]  %s17, 8192, %s794, [#allocation11], 512, 512, 32
        $region32: #{tpu_custom_call.1} parent=11 // pred_fallthru
          _
        // Predicated region
        $region33: #{tpu_custom_call.1} parent=11 // pred_check
          %p800 = pneg %p305
        $region34: #{tpu_custom_call.1} parent=11 // pred_check_branch
          %802 = sbr.rel (%p800) target = $region36
        $region35: #{tpu_custom_call.1} parent=11 // pred_region
          %s804 = ssub.s32 8192, 8192
          %805 = vsyncadd [#allocation11], %s804
          %s806 = sshll.u32 [#allocation12], 4
          %s807 = int_to_ptr.vmem [resolvable:$true] %s806
          %812 = dma.hbm_to_vmem [thread:$0]  %s19, 8192, %s807, [#allocation11], 128, 128, 8
        $region36: #{tpu_custom_call.1} parent=11 // pred_fallthru
          _
        // Predicated region
        $region37: #{tpu_custom_call.1} parent=11 // pred_check
          %p813 = pneg %p326
        $region38: #{tpu_custom_call.1} parent=11 // pred_check_branch
          %815 = sbr.rel (%p813) target = $region40
        $region39: #{tpu_custom_call.1} parent=11 // pred_region
          _
        $region40: #{tpu_custom_call.1} parent=11 // pred_fallthru
          _
        // Predicated region
        $region41: #{tpu_custom_call.1} parent=11 // pred_check
          %p816 = pneg %p347
        $region42: #{tpu_custom_call.1} parent=11 // pred_check_branch
          %818 = sbr.rel (%p816) target = $region44
        $region43: #{tpu_custom_call.1} parent=11 // pred_region
          _
        $region44: #{tpu_custom_call.1} parent=11 // pred_fallthru
          _
        // Predicated region
        $region45: #{tpu_custom_call.1} parent=11 // pred_check
          %p819 = pneg %p368
        $region46: #{tpu_custom_call.1} parent=11 // pred_check_branch
          %821 = sbr.rel (%p819) target = $region48
        $region47: #{tpu_custom_call.1} parent=11 // pred_region
          _
        $region48: #{tpu_custom_call.1} parent=11 // pred_fallthru
          _
        // Predicated region
        $region49: #{tpu_custom_call.1} parent=11 // pred_check
          %p822 = pneg %p389
        $region50: #{tpu_custom_call.1} parent=11 // pred_check_branch
          %824 = sbr.rel (%p822) target = $region52
        $region51: #{tpu_custom_call.1} parent=11 // pred_region
          %s826 = ssub.s32 2048, 2048
          %827 = vsyncadd [#allocation14], %s826
          %s828 = sshll.u32 [#allocation13], 4
          %s829 = int_to_ptr.vmem [resolvable:$true] %s828
          %834 = dma.hbm_to_vmem [thread:$0]  %s27, 2048, %s829, [#allocation14], 128, 128, 8
        $region52: #{tpu_custom_call.1} parent=11 // pred_fallthru
          _
        // Predicated region
        $region53: #{tpu_custom_call.1} parent=11 // pred_check
          %p835 = pneg %p410
        $region54: #{tpu_custom_call.1} parent=11 // pred_check_branch
          %837 = sbr.rel (%p835) target = $region56
        $region55: #{tpu_custom_call.1} parent=11 // pred_region
          %s839 = ssub.s32 2048, 2048
          %840 = vsyncadd [#allocation14], %s839
          %s841 = sshll.u32 [#allocation15], 4
          %s842 = int_to_ptr.vmem [resolvable:$true] %s841
          %847 = dma.hbm_to_vmem [thread:$0]  %s29, 2048, %s842, [#allocation14], 128, 128, 8
        $region56: #{tpu_custom_call.1} parent=11 // pred_fallthru
          _
        // Predicated region
        $region57: #{tpu_custom_call.1} parent=11 // pred_check
          %p848 = pneg %p431
        $region58: #{tpu_custom_call.1} parent=11 // pred_check_branch
          %850 = sbr.rel (%p848) target = $region60
        $region59: #{tpu_custom_call.1} parent=11 // pred_region
          %s852 = ssub.s32 2048, 2048
          %853 = vsyncadd [#allocation17], %s852
          %s854 = sshll.u32 [#allocation16], 4
          %s855 = int_to_ptr.vmem [resolvable:$true] %s854
          %860 = dma.hbm_to_vmem [thread:$0]  %s31, 2048, %s855, [#allocation17], 128, 128, 8
        $region60: #{tpu_custom_call.1} parent=11 // pred_fallthru
          _
        // Predicated region
        $region61: #{tpu_custom_call.1} parent=11 // pred_check
          %p861 = pneg %p452
        $region62: #{tpu_custom_call.1} parent=11 // pred_check_branch
          %863 = sbr.rel (%p861) target = $region64
        $region63: #{tpu_custom_call.1} parent=11 // pred_region
          %s865 = ssub.s32 2048, 2048
          %866 = vsyncadd [#allocation17], %s865
          %s867 = sshll.u32 [#allocation18], 4
          %s868 = int_to_ptr.vmem [resolvable:$true] %s867
          %873 = dma.hbm_to_vmem [thread:$0]  %s33, 2048, %s868, [#allocation17], 128, 128, 8
        $region64: #{tpu_custom_call.1} parent=11 // pred_fallthru
          _
        // Predicated region
        $region65: #{tpu_custom_call.1} parent=11 // pred_check
          %p874 = pneg %p473
        $region66: #{tpu_custom_call.1} parent=11 // pred_check_branch
          %876 = sbr.rel (%p874) target = $region68
        $region67: #{tpu_custom_call.1} parent=11 // pred_region
          %s878 = ssub.s32 2048, 2048
          %879 = vsyncadd [#allocation20], %s878
          %s880 = sshll.u32 [#allocation19], 4
          %s881 = int_to_ptr.vmem [resolvable:$true] %s880
          %886 = dma.hbm_to_vmem [thread:$0]  %s35, 2048, %s881, [#allocation20], 128, 128, 8
        $region68: #{tpu_custom_call.1} parent=11 // pred_fallthru
          _
        // Predicated region
        $region69: #{tpu_custom_call.1} parent=11 // pred_check
          %p887 = pneg %p494
        $region70: #{tpu_custom_call.1} parent=11 // pred_check_branch
          %889 = sbr.rel (%p887) target = $region72
        $region71: #{tpu_custom_call.1} parent=11 // pred_region
          %s891 = ssub.s32 2048, 2048
          %892 = vsyncadd [#allocation20], %s891
          %s893 = sshll.u32 [#allocation21], 4
          %s894 = int_to_ptr.vmem [resolvable:$true] %s893
          %899 = dma.hbm_to_vmem [thread:$0]  %s37, 2048, %s894, [#allocation20], 128, 128, 8
        $region72: #{tpu_custom_call.1} parent=11 // pred_fallthru
          _
        // Predicated region
        $region73: #{tpu_custom_call.1} parent=11 // pred_check
          %p900 = pneg %p515
        $region74: #{tpu_custom_call.1} parent=11 // pred_check_branch
          %902 = sbr.rel (%p900) target = $region76
        $region75: #{tpu_custom_call.1} parent=11 // pred_region
          _
        $region76: #{tpu_custom_call.1} parent=11 // pred_fallthru
          _
        // Predicated region
        $region77: #{tpu_custom_call.1} parent=11 // pred_check
          %p903 = pneg %p536
        $region78: #{tpu_custom_call.1} parent=11 // pred_check_branch
          %905 = sbr.rel (%p903) target = $region80
        $region79: #{tpu_custom_call.1} parent=11 // pred_region
          _
        $region80: #{tpu_custom_call.1} parent=11 // pred_fallthru
          _
        // Predicated region
        $region81: #{tpu_custom_call.1} parent=11 // pred_check
          %p906 = pneg %p557
        $region82: #{tpu_custom_call.1} parent=11 // pred_check_branch
          %908 = sbr.rel (%p906) target = $region84
        $region83: #{tpu_custom_call.1} parent=11 // pred_region
          _
        $region84: #{tpu_custom_call.1} parent=11 // pred_fallthru
          _
        // Predicated region
        $region85: #{tpu_custom_call.1} parent=11 // pred_check
          %p909 = pneg %p578
        $region86: #{tpu_custom_call.1} parent=11 // pred_check_branch
          %911 = sbr.rel (%p909) target = $region88
        $region87: #{tpu_custom_call.1} parent=11 // pred_region
          _
        $region88: #{tpu_custom_call.1} parent=11 // pred_fallthru
          _
        // Predicated region
        $region89: #{tpu_custom_call.1} parent=11 // pred_check
          %p912 = pneg %p599
        $region90: #{tpu_custom_call.1} parent=11 // pred_check_branch
          %914 = sbr.rel (%p912) target = $region92
        $region91: #{tpu_custom_call.1} parent=11 // pred_region
          %s916 = ssub.s32 2048, 2048
          %917 = vsyncadd [#allocation23], %s916
          %s918 = sshll.u32 [#allocation22], 4
          %s919 = int_to_ptr.vmem [resolvable:$true] %s918
          %924 = dma.hbm_to_vmem [thread:$0]  %s47, 2048, %s919, [#allocation23], 128, 128, 8
        $region92: #{tpu_custom_call.1} parent=11 // pred_fallthru
          _
        // Predicated region
        $region93: #{tpu_custom_call.1} parent=11 // pred_check
          %p925 = pneg %p620
        $region94: #{tpu_custom_call.1} parent=11 // pred_check_branch
          %927 = sbr.rel (%p925) target = $region96
        $region95: #{tpu_custom_call.1} parent=11 // pred_region
          _
        $region96: #{tpu_custom_call.1} parent=11 // pred_fallthru
          _
        // Predicated region
        $region97: #{tpu_custom_call.1} parent=11 // pred_check
          %p928 = pneg %p641
        $region98: #{tpu_custom_call.1} parent=11 // pred_check_branch
          %930 = sbr.rel (%p928) target = $region100
        $region99: #{tpu_custom_call.1} parent=11 // pred_region
          %s932 = ssub.s32 2048, 2048
          %933 = vsyncadd [#allocation23], %s932
          %s934 = sshll.u32 [#allocation24], 4
          %s935 = int_to_ptr.vmem [resolvable:$true] %s934
          %940 = dma.hbm_to_vmem [thread:$0]  %s51, 2048, %s935, [#allocation23], 128, 128, 8
        $region100: #{tpu_custom_call.1} parent=11 // pred_fallthru
          _
        // Predicated region
        $region101: #{tpu_custom_call.1} parent=11 // pred_check
          %p941 = pneg %p662
        $region102: #{tpu_custom_call.1} parent=11 // pred_check_branch
          %943 = sbr.rel (%p941) target = $region104
        $region103: #{tpu_custom_call.1} parent=11 // pred_region
          _
        $region104: #{tpu_custom_call.1} parent=11 // pred_fallthru
          _
      $region12: #{tpu_custom_call.1} parent=5 // pred_fallthru
        _
      %p944 = scmp.lt.s32.totalorder %s75, 2
      // Predicated region
      $region105: #{tpu_custom_call.1} parent=5 // pred_check
        %p945 = pneg %p944
      $region106: #{tpu_custom_call.1} parent=5 // pred_check_branch
        %947 = sbr.rel (%p945) target = $region108
      $region107: #{tpu_custom_call.1} parent=5 // pred_region
        // Predicated region
        $region109: #{tpu_custom_call.1} parent=107 // pred_check
          %p948 = pneg %p95
        $region110: #{tpu_custom_call.1} parent=107 // pred_check_branch
          %950 = sbr.rel (%p948) target = $region112
        $region111: #{tpu_custom_call.1} parent=107 // pred_region
          %s951 = sand.u32 %s85, 1
          %s952 = scalar_lea.sflag [#allocation4], %s951
          %s953 = sand.u32 %s85, 1
          %s954 = smul.addr %s953, 32
          %s955 = scalar_lea.vmem [#allocation3], %s954
          %s957 = ssub.s32 512, 512
          %958 = vsyncadd %s952, %s957
          %s959 = smul.addr %s75, 128
          %s960 = scalar_lea.hbm %s1, %s959
          %s961 = sshll.u32 %s955, 4
          %s962 = int_to_ptr.vmem [resolvable:$true] %s961
          %967 = dma.hbm_to_vmem [thread:$0]  %s960, 512, %s962, %s952, 256, 128, 8
        $region112: #{tpu_custom_call.1} parent=107 // pred_fallthru
          _
        // Predicated region
        $region113: #{tpu_custom_call.1} parent=107 // pred_check
          %p968 = pneg %p121
        $region114: #{tpu_custom_call.1} parent=107 // pred_check_branch
          %970 = sbr.rel (%p968) target = $region116
        $region115: #{tpu_custom_call.1} parent=107 // pred_region
          %s971 = sand.u32 %s111, 1
          %s972 = sand.u32 %s111, 1
          %s973 = smul.addr %s972, 16
          %s974 = scalar_lea.vmem [#allocation5], %s973
          %s975 = smul.addr %s75, 4
          %s976 = scalar_lea.vmem %s3, %s975
          // Predicated region
          $region117: #{tpu_custom_call.1} parent=115 // pred_check
            _
          $region118: #{tpu_custom_call.1} parent=115 // pred_check_branch
            %978 = sbr.rel (0) target = $region120
          $region119: #{tpu_custom_call.1} parent=115 // pred_region
            // Predicated region
            $region121: #{tpu_custom_call.1} parent=119 // pred_check
              _
            $region122: #{tpu_custom_call.1} parent=119 // pred_check_branch
              %980 = sbr.rel target = $region124
            $region123: #{tpu_custom_call.1} parent=119 // pred_region
              // Predicated region
              $region136: #{tpu_custom_call.1} parent=123 // pred_check
                _
              $region137: #{tpu_custom_call.1} parent=123 // pred_check_branch
                %1001 = sbr.rel (0) target = $region139
              $region138: #{tpu_custom_call.1} parent=123 // pred_region
                loop: start=0, step=1, limit=1
                $region140: #{tpu_custom_call.1} parent=138 // loop_pre_header
                  _
                $region141: #{tpu_custom_call.1} parent=138 // loop_header
                  %s1003 = sphi 0, %s1007
                  %p1004 = scmp.ge.s32.totalorder %s1003, 1
                  %s1008 = sphi %s976, %s976
                  %s1009 = sphi %s974, %s974
                $region142: #{tpu_custom_call.1} parent=138 // loop_header_branch
                  %1006 = sbr.rel (%p1004) target = $region146
                $region143: #{tpu_custom_call.1} parent=138 // loop_body
                  _
                $region144: #{tpu_custom_call.1} parent=138 // loop_footer
                  %s1007 = sadd.s32 1, %s1003
                $region145: #{tpu_custom_call.1} parent=138 // loop_footer_branch
                  %1002 = sbr.rel target = $region141
                $region146: #{tpu_custom_call.1} parent=138 // loop_exit
                  _
                loop: start=0, step=1, limit=1
                $region147: #{tpu_custom_call.1} parent=138 // loop_pre_header
                  _
                $region148: #{tpu_custom_call.1} parent=138 // loop_header
                  %s1012 = sphi 0, %s1016
                  %p1013 = scmp.ge.s32.totalorder %s1012, 1
                  %s1017 = sphi %s976, %s976
                  %s1018 = sphi %s974, %s974
                $region149: #{tpu_custom_call.1} parent=138 // loop_header_branch
                  %1015 = sbr.rel (%p1013) target = $region153
                $region150: #{tpu_custom_call.1} parent=138 // loop_body
                  %v1019 = vld [vmem:[%s1017] sm:$0xf]
                  %1020 = vst [vmem:[%s1018] sm:$0xf] %v1019
                  %v1021 = vld [vmem:[%s1017 + $0x8] sm:$0xf]
                  %1022 = vst [vmem:[%s1018 + $0x4] sm:$0xf] %v1021
                  %v1023 = vld [vmem:[%s1017 + $0x10] sm:$0xf]
                  %1024 = vst [vmem:[%s1018 + $0x8] sm:$0xf] %v1023
                  %v1025 = vld [vmem:[%s1017 + $0x18] sm:$0xf]
                  %1026 = vst [vmem:[%s1018 + $0xc] sm:$0xf] %v1025
                $region151: #{tpu_custom_call.1} parent=138 // loop_footer
                  %s1016 = sadd.s32 1, %s1012
                $region152: #{tpu_custom_call.1} parent=138 // loop_footer_branch
                  %1011 = sbr.rel target = $region148
                $region153: #{tpu_custom_call.1} parent=138 // loop_exit
                  _
              $region139: #{tpu_custom_call.1} parent=123 // pred_fallthru
                _
            $region124: #{tpu_custom_call.1} parent=119 // pred_fallthru
              _
            // Predicated region
            $region125: #{tpu_custom_call.1} parent=119 // pred_check
              _
            $region126: #{tpu_custom_call.1} parent=119 // pred_check_branch
              %982 = sbr.rel (0) target = $region128
            $region127: #{tpu_custom_call.1} parent=119 // pred_region
              loop: start=0, step=1, limit=1
              $region129: #{tpu_custom_call.1} parent=127 // loop_pre_header
                _
              $region130: #{tpu_custom_call.1} parent=127 // loop_header
                %s985 = sphi 0, %s989
                %p986 = scmp.ge.s32.totalorder %s985, 1
                %s990 = sphi %s976, %s976
                %s991 = sphi %s974, %s974
              $region131: #{tpu_custom_call.1} parent=127 // loop_header_branch
                %988 = sbr.rel (%p986) target = $region135
              $region132: #{tpu_custom_call.1} parent=127 // loop_body
                %v992 = vld [vmem:[%s990] sm:$0xf]
                %993 = vst [vmem:[%s991] sm:$0xf] %v992
                %v994 = vld [vmem:[%s990 + $0x8] sm:$0xf]
                %995 = vst [vmem:[%s991 + $0x4] sm:$0xf] %v994
                %v996 = vld [vmem:[%s990 + $0x10] sm:$0xf]
                %997 = vst [vmem:[%s991 + $0x8] sm:$0xf] %v996
                %v998 = vld [vmem:[%s990 + $0x18] sm:$0xf]
                %999 = vst [vmem:[%s991 + $0xc] sm:$0xf] %v998
              $region133: #{tpu_custom_call.1} parent=127 // loop_footer
                %s989 = sadd.s32 1, %s985
              $region134: #{tpu_custom_call.1} parent=127 // loop_footer_branch
                %984 = sbr.rel target = $region130
              $region135: #{tpu_custom_call.1} parent=127 // loop_exit
                _
            $region128: #{tpu_custom_call.1} parent=119 // pred_fallthru
              _
          $region120: #{tpu_custom_call.1} parent=115 // pred_fallthru
            _
          %1027 = vnop
        $region116: #{tpu_custom_call.1} parent=107 // pred_fallthru
          _
        // Predicated region
        $region154: #{tpu_custom_call.1} parent=107 // pred_check
          %p1028 = pneg %p147
        $region155: #{tpu_custom_call.1} parent=107 // pred_check_branch
          %1030 = sbr.rel (%p1028) target = $region157
        $region156: #{tpu_custom_call.1} parent=107 // pred_region
          %s1031 = sand.u32 %s137, 1
          %s1032 = sand.u32 %s137, 1
          %s1033 = smul.addr %s1032, 16
          %s1034 = scalar_lea.vmem [#allocation6], %s1033
          %s1035 = smul.addr %s75, 4
          %s1036 = scalar_lea.vmem %s5, %s1035
          // Predicated region
          $region158: #{tpu_custom_call.1} parent=156 // pred_check
            _
          $region159: #{tpu_custom_call.1} parent=156 // pred_check_branch
            %1038 = sbr.rel (0) target = $region161
          $region160: #{tpu_custom_call.1} parent=156 // pred_region
            // Predicated region
            $region162: #{tpu_custom_call.1} parent=160 // pred_check
              _
            $region163: #{tpu_custom_call.1} parent=160 // pred_check_branch
              %1040 = sbr.rel target = $region165
            $region164: #{tpu_custom_call.1} parent=160 // pred_region
              // Predicated region
              $region177: #{tpu_custom_call.1} parent=164 // pred_check
                _
              $region178: #{tpu_custom_call.1} parent=164 // pred_check_branch
                %1061 = sbr.rel (0) target = $region180
              $region179: #{tpu_custom_call.1} parent=164 // pred_region
                loop: start=0, step=1, limit=1
                $region181: #{tpu_custom_call.1} parent=179 // loop_pre_header
                  _
                $region182: #{tpu_custom_call.1} parent=179 // loop_header
                  %s1063 = sphi 0, %s1067
                  %p1064 = scmp.ge.s32.totalorder %s1063, 1
                  %s1068 = sphi %s1036, %s1036
                  %s1069 = sphi %s1034, %s1034
                $region183: #{tpu_custom_call.1} parent=179 // loop_header_branch
                  %1066 = sbr.rel (%p1064) target = $region187
                $region184: #{tpu_custom_call.1} parent=179 // loop_body
                  _
                $region185: #{tpu_custom_call.1} parent=179 // loop_footer
                  %s1067 = sadd.s32 1, %s1063
                $region186: #{tpu_custom_call.1} parent=179 // loop_footer_branch
                  %1062 = sbr.rel target = $region182
                $region187: #{tpu_custom_call.1} parent=179 // loop_exit
                  _
                loop: start=0, step=1, limit=1
                $region188: #{tpu_custom_call.1} parent=179 // loop_pre_header
                  _
                $region189: #{tpu_custom_call.1} parent=179 // loop_header
                  %s1072 = sphi 0, %s1076
                  %p1073 = scmp.ge.s32.totalorder %s1072, 1
                  %s1077 = sphi %s1036, %s1036
                  %s1078 = sphi %s1034, %s1034
                $region190: #{tpu_custom_call.1} parent=179 // loop_header_branch
                  %1075 = sbr.rel (%p1073) target = $region194
                $region191: #{tpu_custom_call.1} parent=179 // loop_body
                  %v1079 = vld [vmem:[%s1077] sm:$0xf]
                  %1080 = vst [vmem:[%s1078] sm:$0xf] %v1079
                  %v1081 = vld [vmem:[%s1077 + $0x8] sm:$0xf]
                  %1082 = vst [vmem:[%s1078 + $0x4] sm:$0xf] %v1081
                  %v1083 = vld [vmem:[%s1077 + $0x10] sm:$0xf]
                  %1084 = vst [vmem:[%s1078 + $0x8] sm:$0xf] %v1083
                  %v1085 = vld [vmem:[%s1077 + $0x18] sm:$0xf]
                  %1086 = vst [vmem:[%s1078 + $0xc] sm:$0xf] %v1085
                $region192: #{tpu_custom_call.1} parent=179 // loop_footer
                  %s1076 = sadd.s32 1, %s1072
                $region193: #{tpu_custom_call.1} parent=179 // loop_footer_branch
                  %1071 = sbr.rel target = $region189
                $region194: #{tpu_custom_call.1} parent=179 // loop_exit
                  _
              $region180: #{tpu_custom_call.1} parent=164 // pred_fallthru
                _
            $region165: #{tpu_custom_call.1} parent=160 // pred_fallthru
              _
            // Predicated region
            $region166: #{tpu_custom_call.1} parent=160 // pred_check
              _
            $region167: #{tpu_custom_call.1} parent=160 // pred_check_branch
              %1042 = sbr.rel (0) target = $region169
            $region168: #{tpu_custom_call.1} parent=160 // pred_region
              loop: start=0, step=1, limit=1
              $region170: #{tpu_custom_call.1} parent=168 // loop_pre_header
                _
              $region171: #{tpu_custom_call.1} parent=168 // loop_header
                %s1045 = sphi 0, %s1049
                %p1046 = scmp.ge.s32.totalorder %s1045, 1
                %s1050 = sphi %s1036, %s1036
                %s1051 = sphi %s1034, %s1034
              $region172: #{tpu_custom_call.1} parent=168 // loop_header_branch
                %1048 = sbr.rel (%p1046) target = $region176
              $region173: #{tpu_custom_call.1} parent=168 // loop_body
                %v1052 = vld [vmem:[%s1050] sm:$0xf]
                %1053 = vst [vmem:[%s1051] sm:$0xf] %v1052
                %v1054 = vld [vmem:[%s1050 + $0x8] sm:$0xf]
                %1055 = vst [vmem:[%s1051 + $0x4] sm:$0xf] %v1054
                %v1056 = vld [vmem:[%s1050 + $0x10] sm:$0xf]
                %1057 = vst [vmem:[%s1051 + $0x8] sm:$0xf] %v1056
                %v1058 = vld [vmem:[%s1050 + $0x18] sm:$0xf]
                %1059 = vst [vmem:[%s1051 + $0xc] sm:$0xf] %v1058
              $region174: #{tpu_custom_call.1} parent=168 // loop_footer
                %s1049 = sadd.s32 1, %s1045
              $region175: #{tpu_custom_call.1} parent=168 // loop_footer_branch
                %1044 = sbr.rel target = $region171
              $region176: #{tpu_custom_call.1} parent=168 // loop_exit
                _
            $region169: #{tpu_custom_call.1} parent=160 // pred_fallthru
              _
          $region161: #{tpu_custom_call.1} parent=156 // pred_fallthru
            _
          %1087 = vnop
        $region157: #{tpu_custom_call.1} parent=107 // pred_fallthru
          _
        // Predicated region
        $region195: #{tpu_custom_call.1} parent=107 // pred_check
          %p1088 = pneg %p173
        $region196: #{tpu_custom_call.1} parent=107 // pred_check_branch
          %1090 = sbr.rel (%p1088) target = $region198
        $region197: #{tpu_custom_call.1} parent=107 // pred_region
          %p1091 = scmp.lt.s32.totalorder %s75, 1
          %s1092 = scalar_select %p1091, %s75, 1
          %s1093 = smul.addr %s1092, 4
          %s1094 = scalar_lea.vmem %s7, %s1093
        $region198: #{tpu_custom_call.1} parent=107 // pred_fallthru
          _
      $region108: #{tpu_custom_call.1} parent=5 // pred_fallthru
        _
      %p1095 = scmp.le.s32.totalorder 1, %s75
      %p1096 = scmp.lt.s32.totalorder %s75, 3
      %p1097 = pnand %p1095, %p1096
      %p1098 = pneg %p1097
      // Predicated region
      $region199: #{tpu_custom_call.1} parent=5 // pred_check
        _
      $region200: #{tpu_custom_call.1} parent=5 // pred_check_branch
        %1100 = sbr.rel (%p1097) target = $region202
      $region201: #{tpu_custom_call.1} parent=5 // pred_region
        %s1101 = ssub.s32 %s75, 1
        %s1102 = sand.u32 %s88, 1
        %s1103 = scalar_lea.sflag [#allocation4], %s1102
        %s1104 = sand.u32 %s88, 1
        %s1105 = smul.addr %s1104, 32
        %s1106 = scalar_lea.vmem [#allocation3], %s1105
        // Predicated region
        $region203: #{tpu_custom_call.1} parent=201 // pred_check
          %p1107 = pneg %p101
        $region204: #{tpu_custom_call.1} parent=201 // pred_check_branch
          %1109 = sbr.rel (%p1107) target = $region206
        $region205: #{tpu_custom_call.1} parent=201 // pred_region
          %1110 = dma.done %s1103, 512
        $region206: #{tpu_custom_call.1} parent=201 // pred_fallthru
          _
        %s1111 = sand.u32 %s114, 1
        %s1112 = sand.u32 %s114, 1
        %s1113 = smul.addr %s1112, 16
        %s1114 = scalar_lea.vmem [#allocation5], %s1113
        // Predicated region
        $region207: #{tpu_custom_call.1} parent=201 // pred_check
          %p1115 = pneg %p127
        $region208: #{tpu_custom_call.1} parent=201 // pred_check_branch
          %1117 = sbr.rel (%p1115) target = $region210
        $region209: #{tpu_custom_call.1} parent=201 // pred_region
          _
        $region210: #{tpu_custom_call.1} parent=201 // pred_fallthru
          _
        %s1118 = sand.u32 %s140, 1
        %s1119 = sand.u32 %s140, 1
        %s1120 = smul.addr %s1119, 16
        %s1121 = scalar_lea.vmem [#allocation6], %s1120
        // Predicated region
        $region211: #{tpu_custom_call.1} parent=201 // pred_check
          %p1122 = pneg %p153
        $region212: #{tpu_custom_call.1} parent=201 // pred_check_branch
          %1124 = sbr.rel (%p1122) target = $region214
        $region213: #{tpu_custom_call.1} parent=201 // pred_region
          _
        $region214: #{tpu_custom_call.1} parent=201 // pred_fallthru
          _
        // Predicated region
        $region215: #{tpu_custom_call.1} parent=201 // pred_check
          %p1125 = pneg %p242
        $region216: #{tpu_custom_call.1} parent=201 // pred_check_branch
          %1127 = sbr.rel (%p1125) target = $region218
        $region217: #{tpu_custom_call.1} parent=201 // pred_region
          %1128 = dma.done [#allocation8], 8192
        $region218: #{tpu_custom_call.1} parent=201 // pred_fallthru
          _
        // Predicated region
        $region219: #{tpu_custom_call.1} parent=201 // pred_check
          %p1129 = pneg %p263
        $region220: #{tpu_custom_call.1} parent=201 // pred_check_branch
          %1131 = sbr.rel (%p1129) target = $region222
        $region221: #{tpu_custom_call.1} parent=201 // pred_region
          %1132 = dma.done [#allocation8], 8192
        $region222: #{tpu_custom_call.1} parent=201 // pred_fallthru
          _
        // Predicated region
        $region223: #{tpu_custom_call.1} parent=201 // pred_check
          %p1133 = pneg %p284
        $region224: #{tpu_custom_call.1} parent=201 // pred_check_branch
          %1135 = sbr.rel (%p1133) target = $region226
        $region225: #{tpu_custom_call.1} parent=201 // pred_region
          %1136 = dma.done [#allocation11], 8192
        $region226: #{tpu_custom_call.1} parent=201 // pred_fallthru
          _
        // Predicated region
        $region227: #{tpu_custom_call.1} parent=201 // pred_check
          %p1137 = pneg %p305
        $region228: #{tpu_custom_call.1} parent=201 // pred_check_branch
          %1139 = sbr.rel (%p1137) target = $region230
        $region229: #{tpu_custom_call.1} parent=201 // pred_region
          %1140 = dma.done [#allocation11], 8192
        $region230: #{tpu_custom_call.1} parent=201 // pred_fallthru
          _
        // Predicated region
        $region231: #{tpu_custom_call.1} parent=201 // pred_check
          %p1141 = pneg %p389
        $region232: #{tpu_custom_call.1} parent=201 // pred_check_branch
          %1143 = sbr.rel (%p1141) target = $region234
        $region233: #{tpu_custom_call.1} parent=201 // pred_region
          %1144 = dma.done [#allocation14], 2048
        $region234: #{tpu_custom_call.1} parent=201 // pred_fallthru
          _
        // Predicated region
        $region235: #{tpu_custom_call.1} parent=201 // pred_check
          %p1145 = pneg %p410
        $region236: #{tpu_custom_call.1} parent=201 // pred_check_branch
          %1147 = sbr.rel (%p1145) target = $region238
        $region237: #{tpu_custom_call.1} parent=201 // pred_region
          %1148 = dma.done [#allocation14], 2048
        $region238: #{tpu_custom_call.1} parent=201 // pred_fallthru
          _
        // Predicated region
        $region239: #{tpu_custom_call.1} parent=201 // pred_check
          %p1149 = pneg %p431
        $region240: #{tpu_custom_call.1} parent=201 // pred_check_branch
          %1151 = sbr.rel (%p1149) target = $region242
        $region241: #{tpu_custom_call.1} parent=201 // pred_region
          %1152 = dma.done [#allocation17], 2048
        $region242: #{tpu_custom_call.1} parent=201 // pred_fallthru
          _
        // Predicated region
        $region243: #{tpu_custom_call.1} parent=201 // pred_check
          %p1153 = pneg %p452
        $region244: #{tpu_custom_call.1} parent=201 // pred_check_branch
          %1155 = sbr.rel (%p1153) target = $region246
        $region245: #{tpu_custom_call.1} parent=201 // pred_region
          %1156 = dma.done [#allocation17], 2048
        $region246: #{tpu_custom_call.1} parent=201 // pred_fallthru
          _
        // Predicated region
        $region247: #{tpu_custom_call.1} parent=201 // pred_check
          %p1157 = pneg %p473
        $region248: #{tpu_custom_call.1} parent=201 // pred_check_branch
          %1159 = sbr.rel (%p1157) target = $region250
        $region249: #{tpu_custom_call.1} parent=201 // pred_region
          %1160 = dma.done [#allocation20], 2048
        $region250: #{tpu_custom_call.1} parent=201 // pred_fallthru
          _
        // Predicated region
        $region251: #{tpu_custom_call.1} parent=201 // pred_check
          %p1161 = pneg %p494
        $region252: #{tpu_custom_call.1} parent=201 // pred_check_branch
          %1163 = sbr.rel (%p1161) target = $region254
        $region253: #{tpu_custom_call.1} parent=201 // pred_region
          %1164 = dma.done [#allocation20], 2048
        $region254: #{tpu_custom_call.1} parent=201 // pred_fallthru
          _
        // Predicated region
        $region255: #{tpu_custom_call.1} parent=201 // pred_check
          %p1165 = pneg %p599
        $region256: #{tpu_custom_call.1} parent=201 // pred_check_branch
          %1167 = sbr.rel (%p1165) target = $region258
        $region257: #{tpu_custom_call.1} parent=201 // pred_region
          %1168 = dma.done [#allocation23], 2048
        $region258: #{tpu_custom_call.1} parent=201 // pred_fallthru
          _
        // Predicated region
        $region259: #{tpu_custom_call.1} parent=201 // pred_check
          %p1169 = pneg %p641
        $region260: #{tpu_custom_call.1} parent=201 // pred_check_branch
          %1171 = sbr.rel (%p1169) target = $region262
        $region261: #{tpu_custom_call.1} parent=201 // pred_region
          %1172 = dma.done [#allocation23], 2048
        $region262: #{tpu_custom_call.1} parent=201 // pred_fallthru
          _
        %s1173 = sand.u32 %s88, 1
        %s1174 = scalar_lea.sflag [#allocation4], %s1173
        %s1175 = sand.u32 %s88, 1
        %s1176 = smul.addr %s1175, 32
        %s1177 = scalar_lea.vmem [#allocation3], %s1176
        %p1178 = pneg %p101
        %p1179 = pneg %p98
        %s1180 = sand.u32 %s114, 1
        %s1181 = sand.u32 %s114, 1
        %s1182 = smul.addr %s1181, 16
        %s1183 = scalar_lea.vmem [#allocation5], %s1182
        %p1184 = pneg %p127
        %p1185 = pneg %p124
        %s1186 = sand.u32 %s140, 1
        %s1187 = sand.u32 %s140, 1
        %s1188 = smul.addr %s1187, 16
        %s1189 = scalar_lea.vmem [#allocation6], %s1188
        %p1190 = pneg %p153
        %p1191 = pneg %p150
        %p1192 = scmp.lt.s32.totalorder %s80, 1
        %s1193 = scalar_select %p1192, %s80, 1
        %s1194 = smul.addr %s1193, 4
        %s1195 = scalar_lea.vmem %s7, %s1194
        %p1196 = pneg %p179
        %p1197 = pneg %p176
        %p1198 = pneg %p200
        %p1199 = pneg %p197
        %p1200 = pneg %p221
        %p1201 = pneg %p218
        %p1202 = pneg %p242
        %p1203 = pneg %p239
        %p1204 = pneg %p263
        %p1205 = pneg %p260
        %p1206 = pneg %p284
        %p1207 = pneg %p281
        %p1208 = pneg %p305
        %p1209 = pneg %p302
        %p1210 = pneg %p326
        %p1211 = pneg %p323
        %p1212 = pneg %p347
        %p1213 = pneg %p344
        %p1214 = pneg %p368
        %p1215 = pneg %p365
        %p1216 = pneg %p389
        %p1217 = pneg %p386
        %p1218 = pneg %p410
        %p1219 = pneg %p407
        %p1220 = pneg %p431
        %p1221 = pneg %p428
        %p1222 = pneg %p452
        %p1223 = pneg %p449
        %p1224 = pneg %p473
        %p1225 = pneg %p470
        %p1226 = pneg %p494
        %p1227 = pneg %p491
        %p1228 = pneg %p515
        %p1229 = pneg %p512
        %p1230 = pneg %p536
        %p1231 = pneg %p533
        %p1232 = pneg %p557
        %p1233 = pneg %p554
        %p1234 = pneg %p578
        %p1235 = pneg %p575
        %p1236 = pneg %p599
        %p1237 = pneg %p596
        %p1238 = pneg %p620
        %p1239 = pneg %p617
        %p1240 = pneg %p641
        %p1241 = pneg %p638
        %p1242 = pneg %p662
        %p1243 = pneg %p659
        %p1244 = pneg %p688
        %p1245 = pneg %p685
        %s1246 = sand.u32 %s675, 1
        %s1247 = sand.u32 %s675, 1
        %s1248 = smul.addr %s1247, 16
        %s1249 = scalar_lea.vmem [#allocation25], %s1248
        %p1250 = pneg %p714
        %p1251 = pneg %p711
        %s1252 = sand.u32 %s701, 1
        %s1253 = sand.u32 %s701, 1
        %s1254 = smul.addr %s1253, 16
        %s1255 = scalar_lea.vmem [#allocation26], %s1254
        %p1256 = pneg %p740
        %p1257 = pneg %p737
        %s1258 = sand.u32 %s727, 1
        %s1259 = sand.u32 %s727, 1
        %s1260 = smul.addr %s1259, 16
        %s1261 = scalar_lea.vmem [#allocation27], %s1260
        %p1262 = scmp.lt.s32.totalorder %s80, 1
        %s1263 = scalar_select %p1262, %s80, 1
        %s1264 = smul.addr %s1263, 4
        %s1265 = scalar_lea.vmem %s7, %s1264
        %v1266 = vld [vmem:[%s1106] sm:$0xff]
        %v1267 = vld [vmem:[%s1106 + $0x8] sm:$0xff]
        %v1268 = vld [vmem:[%s1106 + $0x10] sm:$0xff]
        %v1269 = vld [vmem:[%s1106 + $0x18] sm:$0xff]
        %v1270 = vld [vmem:[%s9] sm:$0xff]
        %v1271 = vld [vmem:[%s9 + $0x8] sm:$0xff]
        %v1272 = vld [vmem:[%s11] sm:$0x1]
        %v1274 = vlaneseq
        %v1275 = vshrl.u32 %v1274, 7
        %v1276 = vsub.s32 0, %v1275
        %v1277 = vrot.slane %v1272, %v1276
        %vm1279 = vcmask 130048
        %v1281 = vsel %vm1279, %v1266, 0
        %v1284 = vsel %vm1279, %v1267, 0
        %v1287 = vsel %vm1279, %v1268, 0
        %v1290 = vsel %vm1279, %v1269, 0
        %1292 = vmatprep.subr.mxu0 0.0
        %1293 = vmatpush1.msra.mxu0 %v1270
        %1294 = vmatprep.subr.mxu0 0.0
        %1295 = vmatpush1.msra.mxu0 %v1271
        %1296 = vmatprep.subr.mxu0 0.0
        %1297 = vmatpush1.msra.mxu0 0.0
        %1298 = vmatprep.subr.mxu0 0.0
        %1299 = vmatpush1.msra.mxu0 0.0
        %1300 = vmatprep.subr.mxu0 0.0
        %1301 = vmatpush1.msra.mxu0 0.0
        %1302 = vmatprep.subr.mxu0 0.0
        %1303 = vmatpush1.msra.mxu0 0.0
        %1304 = vmatprep.subr.mxu0 0.0
        %1305 = vmatpush1.msra.mxu0 0.0
        %1306 = vmatprep.subr.mxu0 0.0
        %1307 = vmatpush1.msra.mxu0 0.0
        %1308 = vmatprep.subr.mxu0 0.0
        %1309 = vmatpush1.msra.mxu0 0.0
        %1310 = vmatprep.subr.mxu0 0.0
        %1311 = vmatpush1.msra.mxu0 0.0
        %1312 = vmatprep.subr.mxu0 0.0
        %1313 = vmatpush1.msra.mxu0 0.0
        %1314 = vmatprep.subr.mxu0 0.0
        %1315 = vmatpush1.msra.mxu0 0.0
        %1316 = vmatprep.subr.mxu0 0.0
        %1317 = vmatpush1.msra.mxu0 0.0
        %1318 = vmatprep.subr.mxu0 0.0
        %1319 = vmatpush1.msra.mxu0 0.0
        %1320 = vmatprep.subr.mxu0 0.0
        %1321 = vmatpush1.msra.mxu0 0.0
        %1322 = vmatprep.subr.mxu0 0.0
        %1323 = vmatpush1.msra.mxu0 0.0
        %1324 = vmatprep.subr.mxu0 0.0
        %1325 = vmatpush1.msra.mxu0 0.0
        %1326 = vmatprep.subr.mxu0 0.0
        %1327 = vmatpush1.msra.mxu0 0.0
        %1328 = vmatprep.subr.mxu0 0.0
        %1329 = vmatpush1.msra.mxu0 0.0
        %1330 = vmatprep.subr.mxu0 0.0
        %1331 = vmatpush1.msra.mxu0 0.0
        %1332 = vmatprep.subr.mxu0 0.0
        %1333 = vmatpush1.msra.mxu0 0.0
        %1334 = vmatprep.subr.mxu0 0.0
        %1335 = vmatpush1.msra.mxu0 0.0
        %1336 = vmatprep.subr.mxu0 0.0
        %1337 = vmatpush1.msra.mxu0 0.0
        %1338 = vmatprep.subr.mxu0 0.0
        %1339 = vmatpush1.msra.mxu0 0.0
        %1340 = vmatprep.subr.mxu0 0.0
        %1341 = vmatpush1.msra.mxu0 0.0
        %1342 = vmatprep.subr.mxu0 0.0
        %1343 = vmatpush1.msra.mxu0 0.0
        %1344 = vmatprep.subr.mxu0 0.0
        %1345 = vmatpush1.msra.mxu0 0.0
        %1346 = vmatprep.subr.mxu0 0.0
        %1347 = vmatpush1.msra.mxu0 0.0
        %1348 = vmatprep.subr.mxu0 0.0
        %1349 = vmatpush1.msra.mxu0 0.0
        %1350 = vmatprep.subr.mxu0 0.0
        %1351 = vmatpush1.msra.mxu0 0.0
        %1352 = vmatprep.subr.mxu0 0.0
        %1353 = vmatpush1.msra.mxu0 0.0
        %1354 = vmatprep.subr.mxu0 0.0
        %1355 = vmatpush1.msra.mxu0 0.0
        %1356 = vmatprep.mubr.f32.mxu0 0.0
        %1357 = vmatmul.mubr.f32.gmra.mrb[0].mxu0 %v1281
        %v1358 = vpop.f32.mrb[0].mxu0
        %v1359 = vadd.f32 %v1277, %v1358
        %v1360 = vpop.f32.mrb[0].mxu0
        %1361 = vmatprep.mubr.f32.mxu0 0.0
        %1362 = vmatmul.mubr.f32.gmra.mrb[0].mxu0 %v1284
        %v1363 = vpop.f32.mrb[0].mxu0
        %v1364 = vadd.f32 %v1277, %v1363
        %v1365 = vpop.f32.mrb[0].mxu0
        %1366 = vmatprep.mubr.f32.mxu0 0.0
        %1367 = vmatmul.mubr.f32.gmra.mrb[0].mxu0 %v1287
        %v1368 = vpop.f32.mrb[0].mxu0
        %v1369 = vadd.f32 %v1277, %v1368
        %v1370 = vpop.f32.mrb[0].mxu0
        %1371 = vmatprep.mubr.f32.mxu0 0.0
        %1372 = vmatmul.mubr.f32.gmra.mrb[0].mxu0 %v1290
        %v1373 = vpop.f32.mrb[0].mxu0
        %v1374 = vadd.f32 %v1277, %v1373
        %v1375 = vpop.f32.mrb[0].mxu0
        %1376 = vdwg.mxu0
        %v1377 = vmax.f32 %v1359, 0.0
        %v1378 = vmax.f32 %v1364, 0.0
        %v1379 = vmax.f32 %v1369, 0.0
        %v1380 = vmax.f32 %v1374, 0.0
        %v1386 = vunpack.c.l.s4 1966171168
        %v1387 = vunpack.c.0.s8 %v1386
        %v1388 = vlaneseq
        %v1389 = vshrl.u32 %v1388, 7
        %v1390 = vsub.s32 %v1387, %v1389
        %v1391 = vrot.slane %v1377, %v1390
        %v1392 = vcombine.high %v1391, %v1391
        %v1394 = vunpack.c.l.s4 1966171168
        %v1395 = vunpack.c.0.s8 %v1394
        %v1396 = vlaneseq
        %v1397 = vshrl.u32 %v1396, 7
        %v1398 = vsub.s32 %v1395, %v1397
        %v1399 = vrot.slane %v1391, %v1398
        %v1401 = vunpack.c.l.s4 1966171168
        %v1402 = vunpack.c.0.s8 %v1401
        %v1403 = vlaneseq
        %v1404 = vshrl.u32 %v1403, 7
        %v1405 = vsub.s32 %v1402, %v1404
        %v1406 = vrot.slane %v1392, %v1405
        %v1407 = vcombine.high %v1399, %v1399
        %v1409 = vunpack.c.l.s4 1966171168
        %v1410 = vunpack.c.0.s8 %v1409
        %v1411 = vlaneseq
        %v1412 = vshrl.u32 %v1411, 7
        %v1413 = vsub.s32 %v1410, %v1412
        %v1414 = vrot.slane %v1378, %v1413
        %v1415 = vcombine.high %v1414, %v1414
        %v1417 = vunpack.c.l.s4 1966171168
        %v1418 = vunpack.c.0.s8 %v1417
        %v1419 = vlaneseq
        %v1420 = vshrl.u32 %v1419, 7
        %v1421 = vsub.s32 %v1418, %v1420
        %v1422 = vrot.slane %v1414, %v1421
        %v1424 = vunpack.c.l.s4 1966171168
        %v1425 = vunpack.c.0.s8 %v1424
        %v1426 = vlaneseq
        %v1427 = vshrl.u32 %v1426, 7
        %v1428 = vsub.s32 %v1425, %v1427
        %v1429 = vrot.slane %v1415, %v1428
        %v1430 = vcombine.high %v1422, %v1422
        %v1432 = vunpack.c.l.s4 1966171168
        %v1433 = vunpack.c.0.s8 %v1432
        %v1434 = vlaneseq
        %v1435 = vshrl.u32 %v1434, 7
        %v1436 = vsub.s32 %v1433, %v1435
        %v1437 = vrot.slane %v1379, %v1436
        %v1438 = vcombine.high %v1437, %v1437
        %v1440 = vunpack.c.l.s4 1966171168
        %v1441 = vunpack.c.0.s8 %v1440
        %v1442 = vlaneseq
        %v1443 = vshrl.u32 %v1442, 7
        %v1444 = vsub.s32 %v1441, %v1443
        %v1445 = vrot.slane %v1437, %v1444
        %v1447 = vunpack.c.l.s4 1966171168
        %v1448 = vunpack.c.0.s8 %v1447
        %v1449 = vlaneseq
        %v1450 = vshrl.u32 %v1449, 7
        %v1451 = vsub.s32 %v1448, %v1450
        %v1452 = vrot.slane %v1438, %v1451
        %v1453 = vcombine.high %v1445, %v1445
        %v1455 = vunpack.c.l.s4 1966171168
        %v1456 = vunpack.c.0.s8 %v1455
        %v1457 = vlaneseq
        %v1458 = vshrl.u32 %v1457, 7
        %v1459 = vsub.s32 %v1456, %v1458
        %v1460 = vrot.slane %v1380, %v1459
        %v1461 = vcombine.high %v1460, %v1460
        %v1463 = vunpack.c.l.s4 1966171168
        %v1464 = vunpack.c.0.s8 %v1463
        %v1465 = vlaneseq
        %v1466 = vshrl.u32 %v1465, 7
        %v1467 = vsub.s32 %v1464, %v1466
        %v1468 = vrot.slane %v1460, %v1467
        %v1470 = vunpack.c.l.s4 1966171168
        %v1471 = vunpack.c.0.s8 %v1470
        %v1472 = vlaneseq
        %v1473 = vshrl.u32 %v1472, 7
        %v1474 = vsub.s32 %v1471, %v1473
        %v1475 = vrot.slane %v1461, %v1474
        %v1476 = vcombine.high %v1468, %v1468
        %v1477 = vld [vmem:[#allocation7] sm:$0xff]
        %v1478 = vld [vmem:[#allocation7 + $0x8] sm:$0xff]
        %v1479 = vld [vmem:[#allocation7 + $0x10] sm:$0xff]
        %v1480 = vld [vmem:[#allocation7 + $0x18] sm:$0xff]
        %v1481 = vld [vmem:[#allocation7 + $0x20] sm:$0xff]
        %v1482 = vld [vmem:[#allocation7 + $0x28] sm:$0xff]
        %v1483 = vld [vmem:[#allocation7 + $0x30] sm:$0xff]
        %v1484 = vld [vmem:[#allocation7 + $0x38] sm:$0xff]
        %v1485 = vld [vmem:[#allocation7 + $0x40] sm:$0xff]
        %v1486 = vld [vmem:[#allocation7 + $0x48] sm:$0xff]
        %v1487 = vld [vmem:[#allocation7 + $0x50] sm:$0xff]
        %v1488 = vld [vmem:[#allocation7 + $0x58] sm:$0xff]
        %v1489 = vld [vmem:[#allocation7 + $0x60] sm:$0xff]
        %v1490 = vld [vmem:[#allocation7 + $0x68] sm:$0xff]
        %v1491 = vld [vmem:[#allocation7 + $0x70] sm:$0xff]
        %v1492 = vld [vmem:[#allocation7 + $0x78] sm:$0xff]
        %v1493 = vld [vmem:[#allocation7 + $0x80] sm:$0xff]
        %v1494 = vld [vmem:[#allocation7 + $0x88] sm:$0xff]
        %v1495 = vld [vmem:[#allocation7 + $0x90] sm:$0xff]
        %v1496 = vld [vmem:[#allocation7 + $0x98] sm:$0xff]
        %v1497 = vld [vmem:[#allocation7 + $0xa0] sm:$0xff]
        %v1498 = vld [vmem:[#allocation7 + $0xa8] sm:$0xff]
        %v1499 = vld [vmem:[#allocation7 + $0xb0] sm:$0xff]
        %v1500 = vld [vmem:[#allocation7 + $0xb8] sm:$0xff]
        %v1501 = vld [vmem:[#allocation7 + $0xc0] sm:$0xff]
        %v1502 = vld [vmem:[#allocation7 + $0xc8] sm:$0xff]
        %v1503 = vld [vmem:[#allocation7 + $0xd0] sm:$0xff]
        %v1504 = vld [vmem:[#allocation7 + $0xd8] sm:$0xff]
        %v1505 = vld [vmem:[#allocation7 + $0xe0] sm:$0xff]
        %v1506 = vld [vmem:[#allocation7 + $0xe8] sm:$0xff]
        %v1507 = vld [vmem:[#allocation7 + $0xf0] sm:$0xff]
        %v1508 = vld [vmem:[#allocation7 + $0xf8] sm:$0xff]
        %v1509 = vld [vmem:[#allocation7 + $0x100] sm:$0xff]
        %v1510 = vld [vmem:[#allocation7 + $0x108] sm:$0xff]
        %v1511 = vld [vmem:[#allocation7 + $0x110] sm:$0xff]
        %v1512 = vld [vmem:[#allocation7 + $0x118] sm:$0xff]
        %v1513 = vld [vmem:[#allocation7 + $0x120] sm:$0xff]
        %v1514 = vld [vmem:[#allocation7 + $0x128] sm:$0xff]
        %v1515 = vld [vmem:[#allocation7 + $0x130] sm:$0xff]
        %v1516 = vld [vmem:[#allocation7 + $0x138] sm:$0xff]
        %v1517 = vld [vmem:[#allocation7 + $0x140] sm:$0xff]
        %v1518 = vld [vmem:[#allocation7 + $0x148] sm:$0xff]
        %v1519 = vld [vmem:[#allocation7 + $0x150] sm:$0xff]
        %v1520 = vld [vmem:[#allocation7 + $0x158] sm:$0xff]
        %v1521 = vld [vmem:[#allocation7 + $0x160] sm:$0xff]
        %v1522 = vld [vmem:[#allocation7 + $0x168] sm:$0xff]
        %v1523 = vld [vmem:[#allocation7 + $0x170] sm:$0xff]
        %v1524 = vld [vmem:[#allocation7 + $0x178] sm:$0xff]
        %v1525 = vld [vmem:[#allocation7 + $0x180] sm:$0xff]
        %v1526 = vld [vmem:[#allocation7 + $0x188] sm:$0xff]
        %v1527 = vld [vmem:[#allocation7 + $0x190] sm:$0xff]
        %v1528 = vld [vmem:[#allocation7 + $0x198] sm:$0xff]
        %v1529 = vld [vmem:[#allocation7 + $0x1a0] sm:$0xff]
        %v1530 = vld [vmem:[#allocation7 + $0x1a8] sm:$0xff]
        %v1531 = vld [vmem:[#allocation7 + $0x1b0] sm:$0xff]
        %v1532 = vld [vmem:[#allocation7 + $0x1b8] sm:$0xff]
        %v1533 = vld [vmem:[#allocation7 + $0x1c0] sm:$0xff]
        %v1534 = vld [vmem:[#allocation7 + $0x1c8] sm:$0xff]
        %v1535 = vld [vmem:[#allocation7 + $0x1d0] sm:$0xff]
        %v1536 = vld [vmem:[#allocation7 + $0x1d8] sm:$0xff]
        %v1537 = vld [vmem:[#allocation7 + $0x1e0] sm:$0xff]
        %v1538 = vld [vmem:[#allocation7 + $0x1e8] sm:$0xff]
        %v1539 = vld [vmem:[#allocation7 + $0x1f0] sm:$0xff]
        %v1540 = vld [vmem:[#allocation7 + $0x1f8] sm:$0xff]
        %v1541 = vcombine.low %v1399, %v1406
        %v1542 = vcombine.low %v1407, %v1422
        %v1543 = vcombine.low %v1429, %v1430
        %v1544 = vcombine.low %v1445, %v1452
        %v1546 = vunpack.c.l.s4 1966171168
        %v1547 = vunpack.c.0.s8 %v1546
        %v1548 = vlaneseq
        %v1549 = vshrl.u32 %v1548, 7
        %v1550 = vsub.s32 %v1547, %v1549
        %v1551 = vrot.slane %v1541, %v1550
        %v1553 = vunpack.c.l.s4 1966171168
        %v1554 = vunpack.c.0.s8 %v1553
        %v1555 = vlaneseq
        %v1556 = vshrl.u32 %v1555, 7
        %v1557 = vsub.s32 %v1554, %v1556
        %v1558 = vrot.slane %v1542, %v1557
        %v1560 = vunpack.c.l.s4 1966171168
        %v1561 = vunpack.c.0.s8 %v1560
        %v1562 = vlaneseq
        %v1563 = vshrl.u32 %v1562, 7
        %v1564 = vsub.s32 %v1561, %v1563
        %v1565 = vrot.slane %v1543, %v1564
        %v1567 = vunpack.c.l.s4 1966171168
        %v1568 = vunpack.c.0.s8 %v1567
        %v1569 = vlaneseq
        %v1570 = vshrl.u32 %v1569, 7
        %v1571 = vsub.s32 %v1568, %v1570
        %v1572 = vrot.slane %v1544, %v1571
        %v1573 = vcombine.low %v1551, %v1558
        %v1574 = vcombine.low %v1565, %v1572
        %v1576 = vunpack.c.l.s4 1966171168
        %v1577 = vunpack.c.0.s8 %v1576
        %v1578 = vlaneseq
        %v1579 = vshrl.u32 %v1578, 7
        %v1580 = vsub.s32 %v1577, %v1579
        %v1581 = vrot.slane %v1573, %v1580
        %v1583 = vunpack.c.l.s4 1966171168
        %v1584 = vunpack.c.0.s8 %v1583
        %v1585 = vlaneseq
        %v1586 = vshrl.u32 %v1585, 7
        %v1587 = vsub.s32 %v1584, %v1586
        %v1588 = vrot.slane %v1574, %v1587
        %v1589 = vcombine.low %v1581, %v1588
        %v1590 = vcombine.low %v1453, %v1468
        %v1591 = vcombine.low %v1475, %v1476
        %v1593 = vunpack.c.l.s4 1966171168
        %v1594 = vunpack.c.0.s8 %v1593
        %v1595 = vlaneseq
        %v1596 = vshrl.u32 %v1595, 7
        %v1597 = vsub.s32 %v1594, %v1596
        %v1598 = vrot.slane %v1590, %v1597
        %v1600 = vunpack.c.l.s4 1966171168
        %v1601 = vunpack.c.0.s8 %v1600
        %v1602 = vlaneseq
        %v1603 = vshrl.u32 %v1602, 7
        %v1604 = vsub.s32 %v1601, %v1603
        %v1605 = vrot.slane %v1591, %v1604
        %v1606 = vcombine.low %v1598, %v1605
        %v1608 = vunpack.c.l.s4 1966171168
        %v1609 = vunpack.c.0.s8 %v1608
        %v1610 = vlaneseq
        %v1611 = vshrl.u32 %v1610, 7
        %v1612 = vsub.s32 %v1609, %v1611
        %v1613 = vrot.slane %v1606, %v1612
        %1616 = vmatprep.subr.mxu0 %v1478
        %1617 = vmatpush1.msra.mxu0 %v1477
        %1618 = vmatprep.subr.mxu0 %v1482
        %1619 = vmatpush1.msra.mxu0 %v1481
        %1620 = vmatprep.subr.mxu0 %v1486
        %1621 = vmatpush1.msra.mxu0 %v1485
        %1622 = vmatprep.subr.mxu0 %v1490
        %1623 = vmatpush1.msra.mxu0 %v1489
        %1624 = vmatprep.subr.mxu0 %v1494
        %1625 = vmatpush1.msra.mxu0 %v1493
        %1626 = vmatprep.subr.mxu0 %v1498
        %1627 = vmatpush1.msra.mxu0 %v1497
        %1628 = vmatprep.subr.mxu0 %v1502
        %1629 = vmatpush1.msra.mxu0 %v1501
        %1630 = vmatprep.subr.mxu0 %v1506
        %1631 = vmatpush1.msra.mxu0 %v1505
        %1632 = vmatprep.subr.mxu0 %v1510
        %1633 = vmatpush1.msra.mxu0 %v1509
        %1634 = vmatprep.subr.mxu0 %v1514
        %1635 = vmatpush1.msra.mxu0 %v1513
        %1636 = vmatprep.subr.mxu0 %v1518
        %1637 = vmatpush1.msra.mxu0 %v1517
        %1638 = vmatprep.subr.mxu0 %v1522
        %1639 = vmatpush1.msra.mxu0 %v1521
        %1640 = vmatprep.subr.mxu0 %v1526
        %1641 = vmatpush1.msra.mxu0 %v1525
        %1642 = vmatprep.subr.mxu0 %v1530
        %1643 = vmatpush1.msra.mxu0 %v1529
        %1644 = vmatprep.subr.mxu0 %v1534
        %1645 = vmatpush1.msra.mxu0 %v1533
        %1646 = vmatprep.subr.mxu0 %v1538
        %1647 = vmatpush1.msra.mxu0 %v1537
        %1648 = vmatprep.subr.mxu0 0.0
        %1649 = vmatpush1.msra.mxu0 0.0
        %1650 = vmatprep.subr.mxu0 0.0
        %1651 = vmatpush1.msra.mxu0 0.0
        %1652 = vmatprep.subr.mxu0 0.0
        %1653 = vmatpush1.msra.mxu0 0.0
        %1654 = vmatprep.subr.mxu0 0.0
        %1655 = vmatpush1.msra.mxu0 0.0
        %1656 = vmatprep.subr.mxu0 0.0
        %1657 = vmatpush1.msra.mxu0 0.0
        %1658 = vmatprep.subr.mxu0 0.0
        %1659 = vmatpush1.msra.mxu0 0.0
        %1660 = vmatprep.subr.mxu0 0.0
        %1661 = vmatpush1.msra.mxu0 0.0
        %1662 = vmatprep.subr.mxu0 0.0
        %1663 = vmatpush1.msra.mxu0 0.0
        %1664 = vmatprep.subr.mxu0 0.0
        %1665 = vmatpush1.msra.mxu0 0.0
        %1666 = vmatprep.subr.mxu0 0.0
        %1667 = vmatpush1.msra.mxu0 0.0
        %1668 = vmatprep.subr.mxu0 0.0
        %1669 = vmatpush1.msra.mxu0 0.0
        %1670 = vmatprep.subr.mxu0 0.0
        %1671 = vmatpush1.msra.mxu0 0.0
        %1672 = vmatprep.subr.mxu0 0.0
        %1673 = vmatpush1.msra.mxu0 0.0
        %1674 = vmatprep.subr.mxu0 0.0
        %1675 = vmatpush1.msra.mxu0 0.0
        %1676 = vmatprep.subr.mxu0 0.0
        %1677 = vmatpush1.msra.mxu0 0.0
        %1678 = vmatprep.subr.mxu0 0.0
        %1679 = vmatpush1.msra.mxu0 0.0
        %1680 = vmatprep.mubr.f32.mxu0 0.0
        %1681 = vmatmul.mubr.f32.gmra.mrb[0].mxu0 %v1589
        %v1682 = vpop.f32.mrb[0].mxu0
        %v1683 = vadd.f32 0.0, %v1682
        %v1684 = vpop.f32.mrb[0].mxu0
        %v1685 = vadd.f32 0.0, %v1684
        %1686 = vmatprep.mubr.f32.mxu0 0.0
        %1687 = vmatmul.mubr.f32.gmra.mrb[0].mxu0 %v1613
        %v1688 = vpop.f32.mrb[0].mxu0
        %v1689 = vadd.f32 0.0, %v1688
        %v1690 = vpop.f32.mrb[0].mxu0
        %v1691 = vadd.f32 0.0, %v1690
        %1692 = vdwg.mxu0
        %1693 = vmatprep.subr.mxu0 %v1480
        %1694 = vmatpush1.msra.mxu0 %v1479
        %1695 = vmatprep.subr.mxu0 %v1484
        %1696 = vmatpush1.msra.mxu0 %v1483
        %1697 = vmatprep.subr.mxu0 %v1488
        %1698 = vmatpush1.msra.mxu0 %v1487
        %1699 = vmatprep.subr.mxu0 %v1492
        %1700 = vmatpush1.msra.mxu0 %v1491
        %1701 = vmatprep.subr.mxu0 %v1496
        %1702 = vmatpush1.msra.mxu0 %v1495
        %1703 = vmatprep.subr.mxu0 %v1500
        %1704 = vmatpush1.msra.mxu0 %v1499
        %1705 = vmatprep.subr.mxu0 %v1504
        %1706 = vmatpush1.msra.mxu0 %v1503
        %1707 = vmatprep.subr.mxu0 %v1508
        %1708 = vmatpush1.msra.mxu0 %v1507
        %1709 = vmatprep.subr.mxu0 %v1512
        %1710 = vmatpush1.msra.mxu0 %v1511
        %1711 = vmatprep.subr.mxu0 %v1516
        %1712 = vmatpush1.msra.mxu0 %v1515
        %1713 = vmatprep.subr.mxu0 %v1520
        %1714 = vmatpush1.msra.mxu0 %v1519
        %1715 = vmatprep.subr.mxu0 %v1524
        %1716 = vmatpush1.msra.mxu0 %v1523
        %1717 = vmatprep.subr.mxu0 %v1528
        %1718 = vmatpush1.msra.mxu0 %v1527
        %1719 = vmatprep.subr.mxu0 %v1532
        %1720 = vmatpush1.msra.mxu0 %v1531
        %1721 = vmatprep.subr.mxu0 %v1536
        %1722 = vmatpush1.msra.mxu0 %v1535
        %1723 = vmatprep.subr.mxu0 %v1540
        %1724 = vmatpush1.msra.mxu0 %v1539
        %1725 = vmatprep.subr.mxu0 0.0
        %1726 = vmatpush1.msra.mxu0 0.0
        %1727 = vmatprep.subr.mxu0 0.0
        %1728 = vmatpush1.msra.mxu0 0.0
        %1729 = vmatprep.subr.mxu0 0.0
        %1730 = vmatpush1.msra.mxu0 0.0
        %1731 = vmatprep.subr.mxu0 0.0
        %1732 = vmatpush1.msra.mxu0 0.0
        %1733 = vmatprep.subr.mxu0 0.0
        %1734 = vmatpush1.msra.mxu0 0.0
        %1735 = vmatprep.subr.mxu0 0.0
        %1736 = vmatpush1.msra.mxu0 0.0
        %1737 = vmatprep.subr.mxu0 0.0
        %1738 = vmatpush1.msra.mxu0 0.0
        %1739 = vmatprep.subr.mxu0 0.0
        %1740 = vmatpush1.msra.mxu0 0.0
        %1741 = vmatprep.subr.mxu0 0.0
        %1742 = vmatpush1.msra.mxu0 0.0
        %1743 = vmatprep.subr.mxu0 0.0
        %1744 = vmatpush1.msra.mxu0 0.0
        %1745 = vmatprep.subr.mxu0 0.0
        %1746 = vmatpush1.msra.mxu0 0.0
        %1747 = vmatprep.subr.mxu0 0.0
        %1748 = vmatpush1.msra.mxu0 0.0
        %1749 = vmatprep.subr.mxu0 0.0
        %1750 = vmatpush1.msra.mxu0 0.0
        %1751 = vmatprep.subr.mxu0 0.0
        %1752 = vmatpush1.msra.mxu0 0.0
        %1753 = vmatprep.subr.mxu0 0.0
        %1754 = vmatpush1.msra.mxu0 0.0
        %1755 = vmatprep.subr.mxu0 0.0
        %1756 = vmatpush1.msra.mxu0 0.0
        %1757 = vmatprep.mubr.f32.mxu0 0.0
        %1758 = vmatmul.mubr.f32.gmra.mrb[0].mxu0 %v1589
        %v1759 = vpop.f32.mrb[0].mxu0
        %v1760 = vadd.f32 0.0, %v1759
        %v1761 = vpop.f32.mrb[0].mxu0
        %v1762 = vadd.f32 0.0, %v1761
        %1763 = vmatprep.mubr.f32.mxu0 0.0
        %1764 = vmatmul.mubr.f32.gmra.mrb[0].mxu0 %v1613
        %v1765 = vpop.f32.mrb[0].mxu0
        %v1766 = vadd.f32 0.0, %v1765
        %v1767 = vpop.f32.mrb[0].mxu0
        %v1768 = vadd.f32 0.0, %v1767
        %1769 = vdwg.mxu0
        %v1778 = vcombine.low %v1683, %v1685
        %v1779 = vcombine.high %v1683, %v1685
        %v1780 = vcombine.low %v1760, %v1762
        %v1781 = vcombine.high %v1760, %v1762
        %v1783 = vunpack.c.l.s4 1966171168
        %v1784 = vunpack.c.0.s8 %v1783
        %v1785 = vlaneseq
        %v1786 = vshrl.u32 %v1785, 7
        %v1787 = vsub.s32 %v1784, %v1786
        %v1788 = vrot.slane %v1778, %v1787
        %v1790 = vunpack.c.l.s4 1966171168
        %v1791 = vunpack.c.0.s8 %v1790
        %v1792 = vlaneseq
        %v1793 = vshrl.u32 %v1792, 7
        %v1794 = vsub.s32 %v1791, %v1793
        %v1795 = vrot.slane %v1779, %v1794
        %v1797 = vunpack.c.l.s4 1966171168
        %v1798 = vunpack.c.0.s8 %v1797
        %v1799 = vlaneseq
        %v1800 = vshrl.u32 %v1799, 7
        %v1801 = vsub.s32 %v1798, %v1800
        %v1802 = vrot.slane %v1780, %v1801
        %v1804 = vunpack.c.l.s4 1966171168
        %v1805 = vunpack.c.0.s8 %v1804
        %v1806 = vlaneseq
        %v1807 = vshrl.u32 %v1806, 7
        %v1808 = vsub.s32 %v1805, %v1807
        %v1809 = vrot.slane %v1781, %v1808
        %v1810 = vcombine.low %v1788, %v1802
        %v1811 = vcombine.high %v1788, %v1802
        %v1812 = vcombine.low %v1795, %v1809
        %v1813 = vcombine.high %v1795, %v1809
        %v1815 = vunpack.c.l.s4 1966171168
        %v1816 = vunpack.c.0.s8 %v1815
        %v1817 = vlaneseq
        %v1818 = vshrl.u32 %v1817, 7
        %v1819 = vsub.s32 %v1816, %v1818
        %v1820 = vrot.slane %v1810, %v1819
        %v1822 = vunpack.c.l.s4 1966171168
        %v1823 = vunpack.c.0.s8 %v1822
        %v1824 = vlaneseq
        %v1825 = vshrl.u32 %v1824, 7
        %v1826 = vsub.s32 %v1823, %v1825
        %v1827 = vrot.slane %v1812, %v1826
        %v1829 = vunpack.c.l.s4 1966171168
        %v1830 = vunpack.c.0.s8 %v1829
        %v1831 = vlaneseq
        %v1832 = vshrl.u32 %v1831, 7
        %v1833 = vsub.s32 %v1830, %v1832
        %v1834 = vrot.slane %v1811, %v1833
        %v1836 = vunpack.c.l.s4 1966171168
        %v1837 = vunpack.c.0.s8 %v1836
        %v1838 = vlaneseq
        %v1839 = vshrl.u32 %v1838, 7
        %v1840 = vsub.s32 %v1837, %v1839
        %v1841 = vrot.slane %v1813, %v1840
        %v1842 = vcombine.high %v1820, %v1820
        %v1843 = vcombine.high %v1827, %v1827
        %v1844 = vcombine.high %v1834, %v1834
        %v1845 = vcombine.high %v1841, %v1841
        %v1846 = vcombine.low %v1689, %v1691
        %v1847 = vcombine.low %v1766, %v1768
        %v1849 = vunpack.c.l.s4 1966171168
        %v1850 = vunpack.c.0.s8 %v1849
        %v1851 = vlaneseq
        %v1852 = vshrl.u32 %v1851, 7
        %v1853 = vsub.s32 %v1850, %v1852
        %v1854 = vrot.slane %v1846, %v1853
        %v1856 = vunpack.c.l.s4 1966171168
        %v1857 = vunpack.c.0.s8 %v1856
        %v1858 = vlaneseq
        %v1859 = vshrl.u32 %v1858, 7
        %v1860 = vsub.s32 %v1857, %v1859
        %v1861 = vrot.slane %v1847, %v1860
        %v1862 = vcombine.low %v1854, %v1861
        %v1863 = vcombine.high %v1854, %v1861
        %v1865 = vunpack.c.l.s4 1966171168
        %v1866 = vunpack.c.0.s8 %v1865
        %v1867 = vlaneseq
        %v1868 = vshrl.u32 %v1867, 7
        %v1869 = vsub.s32 %v1866, %v1868
        %v1870 = vrot.slane %v1862, %v1869
        %v1872 = vunpack.c.l.s4 1966171168
        %v1873 = vunpack.c.0.s8 %v1872
        %v1874 = vlaneseq
        %v1875 = vshrl.u32 %v1874, 7
        %v1876 = vsub.s32 %v1873, %v1875
        %v1877 = vrot.slane %v1863, %v1876
        %v1878 = vcombine.high %v1870, %v1870
        %v1879 = vcombine.high %v1877, %v1877
        %v1880 = vld [vmem:[#allocation9] sm:$0xff]
        %v1881 = vld [vmem:[#allocation9 + $0x8] sm:$0xff]
        %v1882 = vld [vmem:[#allocation9 + $0x10] sm:$0xff]
        %v1883 = vld [vmem:[#allocation9 + $0x18] sm:$0xff]
        %v1884 = vld [vmem:[#allocation9 + $0x20] sm:$0xff]
        %v1885 = vld [vmem:[#allocation9 + $0x28] sm:$0xff]
        %v1886 = vld [vmem:[#allocation9 + $0x30] sm:$0xff]
        %v1887 = vld [vmem:[#allocation9 + $0x38] sm:$0xff]
        %v1888 = vld [vmem:[#allocation9 + $0x40] sm:$0xff]
        %v1889 = vld [vmem:[#allocation9 + $0x48] sm:$0xff]
        %v1890 = vld [vmem:[#allocation9 + $0x50] sm:$0xff]
        %v1891 = vld [vmem:[#allocation9 + $0x58] sm:$0xff]
        %v1892 = vld [vmem:[#allocation9 + $0x60] sm:$0xff]
        %v1893 = vld [vmem:[#allocation9 + $0x68] sm:$0xff]
        %v1894 = vld [vmem:[#allocation9 + $0x70] sm:$0xff]
        %v1895 = vld [vmem:[#allocation9 + $0x78] sm:$0xff]
        %v1896 = vld [vmem:[#allocation9 + $0x80] sm:$0xff]
        %v1897 = vld [vmem:[#allocation9 + $0x88] sm:$0xff]
        %v1898 = vld [vmem:[#allocation9 + $0x90] sm:$0xff]
        %v1899 = vld [vmem:[#allocation9 + $0x98] sm:$0xff]
        %v1900 = vld [vmem:[#allocation9 + $0xa0] sm:$0xff]
        %v1901 = vld [vmem:[#allocation9 + $0xa8] sm:$0xff]
        %v1902 = vld [vmem:[#allocation9 + $0xb0] sm:$0xff]
        %v1903 = vld [vmem:[#allocation9 + $0xb8] sm:$0xff]
        %v1904 = vld [vmem:[#allocation9 + $0xc0] sm:$0xff]
        %v1905 = vld [vmem:[#allocation9 + $0xc8] sm:$0xff]
        %v1906 = vld [vmem:[#allocation9 + $0xd0] sm:$0xff]
        %v1907 = vld [vmem:[#allocation9 + $0xd8] sm:$0xff]
        %v1908 = vld [vmem:[#allocation9 + $0xe0] sm:$0xff]
        %v1909 = vld [vmem:[#allocation9 + $0xe8] sm:$0xff]
        %v1910 = vld [vmem:[#allocation9 + $0xf0] sm:$0xff]
        %v1911 = vld [vmem:[#allocation9 + $0xf8] sm:$0xff]
        %v1912 = vld [vmem:[#allocation9 + $0x100] sm:$0xff]
        %v1913 = vld [vmem:[#allocation9 + $0x108] sm:$0xff]
        %v1914 = vld [vmem:[#allocation9 + $0x110] sm:$0xff]
        %v1915 = vld [vmem:[#allocation9 + $0x118] sm:$0xff]
        %v1916 = vld [vmem:[#allocation9 + $0x120] sm:$0xff]
        %v1917 = vld [vmem:[#allocation9 + $0x128] sm:$0xff]
        %v1918 = vld [vmem:[#allocation9 + $0x130] sm:$0xff]
        %v1919 = vld [vmem:[#allocation9 + $0x138] sm:$0xff]
        %v1920 = vld [vmem:[#allocation9 + $0x140] sm:$0xff]
        %v1921 = vld [vmem:[#allocation9 + $0x148] sm:$0xff]
        %v1922 = vld [vmem:[#allocation9 + $0x150] sm:$0xff]
        %v1923 = vld [vmem:[#allocation9 + $0x158] sm:$0xff]
        %v1924 = vld [vmem:[#allocation9 + $0x160] sm:$0xff]
        %v1925 = vld [vmem:[#allocation9 + $0x168] sm:$0xff]
        %v1926 = vld [vmem:[#allocation9 + $0x170] sm:$0xff]
        %v1927 = vld [vmem:[#allocation9 + $0x178] sm:$0xff]
        %v1928 = vld [vmem:[#allocation9 + $0x180] sm:$0xff]
        %v1929 = vld [vmem:[#allocation9 + $0x188] sm:$0xff]
        %v1930 = vld [vmem:[#allocation9 + $0x190] sm:$0xff]
        %v1931 = vld [vmem:[#allocation9 + $0x198] sm:$0xff]
        %v1932 = vld [vmem:[#allocation9 + $0x1a0] sm:$0xff]
        %v1933 = vld [vmem:[#allocation9 + $0x1a8] sm:$0xff]
        %v1934 = vld [vmem:[#allocation9 + $0x1b0] sm:$0xff]
        %v1935 = vld [vmem:[#allocation9 + $0x1b8] sm:$0xff]
        %v1936 = vld [vmem:[#allocation9 + $0x1c0] sm:$0xff]
        %v1937 = vld [vmem:[#allocation9 + $0x1c8] sm:$0xff]
        %v1938 = vld [vmem:[#allocation9 + $0x1d0] sm:$0xff]
        %v1939 = vld [vmem:[#allocation9 + $0x1d8] sm:$0xff]
        %v1940 = vld [vmem:[#allocation9 + $0x1e0] sm:$0xff]
        %v1941 = vld [vmem:[#allocation9 + $0x1e8] sm:$0xff]
        %v1942 = vld [vmem:[#allocation9 + $0x1f0] sm:$0xff]
        %v1943 = vld [vmem:[#allocation9 + $0x1f8] sm:$0xff]
        %1944 = vmatprep.subr.mxu0 %v1881
        %1945 = vmatpush1.msra.mxu0 %v1880
        %1946 = vmatprep.subr.mxu0 %v1885
        %1947 = vmatpush1.msra.mxu0 %v1884
        %1948 = vmatprep.subr.mxu0 %v1889
        %1949 = vmatpush1.msra.mxu0 %v1888
        %1950 = vmatprep.subr.mxu0 %v1893
        %1951 = vmatpush1.msra.mxu0 %v1892
        %1952 = vmatprep.subr.mxu0 %v1897
        %1953 = vmatpush1.msra.mxu0 %v1896
        %1954 = vmatprep.subr.mxu0 %v1901
        %1955 = vmatpush1.msra.mxu0 %v1900
        %1956 = vmatprep.subr.mxu0 %v1905
        %1957 = vmatpush1.msra.mxu0 %v1904
        %1958 = vmatprep.subr.mxu0 %v1909
        %1959 = vmatpush1.msra.mxu0 %v1908
        %1960 = vmatprep.subr.mxu0 %v1913
        %1961 = vmatpush1.msra.mxu0 %v1912
        %1962 = vmatprep.subr.mxu0 %v1917
        %1963 = vmatpush1.msra.mxu0 %v1916
        %1964 = vmatprep.subr.mxu0 %v1921
        %1965 = vmatpush1.msra.mxu0 %v1920
        %1966 = vmatprep.subr.mxu0 %v1925
        %1967 = vmatpush1.msra.mxu0 %v1924
        %1968 = vmatprep.subr.mxu0 %v1929
        %1969 = vmatpush1.msra.mxu0 %v1928
        %1970 = vmatprep.subr.mxu0 %v1933
        %1971 = vmatpush1.msra.mxu0 %v1932
        %1972 = vmatprep.subr.mxu0 %v1937
        %1973 = vmatpush1.msra.mxu0 %v1936
        %1974 = vmatprep.subr.mxu0 %v1941
        %1975 = vmatpush1.msra.mxu0 %v1940
        %1976 = vmatprep.subr.mxu0 0.0
        %1977 = vmatpush1.msra.mxu0 0.0
        %1978 = vmatprep.subr.mxu0 0.0
        %1979 = vmatpush1.msra.mxu0 0.0
        %1980 = vmatprep.subr.mxu0 0.0
        %1981 = vmatpush1.msra.mxu0 0.0
        %1982 = vmatprep.subr.mxu0 0.0
        %1983 = vmatpush1.msra.mxu0 0.0
        %1984 = vmatprep.subr.mxu0 0.0
        %1985 = vmatpush1.msra.mxu0 0.0
        %1986 = vmatprep.subr.mxu0 0.0
        %1987 = vmatpush1.msra.mxu0 0.0
        %1988 = vmatprep.subr.mxu0 0.0
        %1989 = vmatpush1.msra.mxu0 0.0
        %1990 = vmatprep.subr.mxu0 0.0
        %1991 = vmatpush1.msra.mxu0 0.0
        %1992 = vmatprep.subr.mxu0 0.0
        %1993 = vmatpush1.msra.mxu0 0.0
        %1994 = vmatprep.subr.mxu0 0.0
        %1995 = vmatpush1.msra.mxu0 0.0
        %1996 = vmatprep.subr.mxu0 0.0
        %1997 = vmatpush1.msra.mxu0 0.0
        %1998 = vmatprep.subr.mxu0 0.0
        %1999 = vmatpush1.msra.mxu0 0.0
        %2000 = vmatprep.subr.mxu0 0.0
        %2001 = vmatpush1.msra.mxu0 0.0
        %2002 = vmatprep.subr.mxu0 0.0
        %2003 = vmatpush1.msra.mxu0 0.0
        %2004 = vmatprep.subr.mxu0 0.0
        %2005 = vmatpush1.msra.mxu0 0.0
        %2006 = vmatprep.subr.mxu0 0.0
        %2007 = vmatpush1.msra.mxu0 0.0
        %2008 = vmatprep.mubr.f32.mxu0 0.0
        %2009 = vmatmul.mubr.f32.gmra.mrb[0].mxu0 %v1377
        %v2010 = vpop.f32.mrb[0].mxu0
        %v2011 = vadd.f32 0.0, %v2010
        %v2012 = vpop.f32.mrb[0].mxu0
        %v2013 = vadd.f32 0.0, %v2012
        %2014 = vmatprep.mubr.f32.mxu0 0.0
        %2015 = vmatmul.mubr.f32.gmra.mrb[0].mxu0 %v1378
        %v2016 = vpop.f32.mrb[0].mxu0
        %v2017 = vadd.f32 0.0, %v2016
        %v2018 = vpop.f32.mrb[0].mxu0
        %v2019 = vadd.f32 0.0, %v2018
        %2020 = vmatprep.mubr.f32.mxu0 0.0
        %2021 = vmatmul.mubr.f32.gmra.mrb[0].mxu0 %v1379
        %v2022 = vpop.f32.mrb[0].mxu0
        %v2023 = vadd.f32 0.0, %v2022
        %v2024 = vpop.f32.mrb[0].mxu0
        %v2025 = vadd.f32 0.0, %v2024
        %2026 = vmatprep.mubr.f32.mxu0 0.0
        %2027 = vmatmul.mubr.f32.gmra.mrb[0].mxu0 %v1380
        %v2028 = vpop.f32.mrb[0].mxu0
        %v2029 = vadd.f32 0.0, %v2028
        %v2030 = vpop.f32.mrb[0].mxu0
        %v2031 = vadd.f32 0.0, %v2030
        %2032 = vdwg.mxu0
        %2033 = vmatprep.subr.mxu0 %v1883
        %2034 = vmatpush1.msra.mxu0 %v1882
        %2035 = vmatprep.subr.mxu0 %v1887
        %2036 = vmatpush1.msra.mxu0 %v1886
        %2037 = vmatprep.subr.mxu0 %v1891
        %2038 = vmatpush1.msra.mxu0 %v1890
        %2039 = vmatprep.subr.mxu0 %v1895
        %2040 = vmatpush1.msra.mxu0 %v1894
        %2041 = vmatprep.subr.mxu0 %v1899
        %2042 = vmatpush1.msra.mxu0 %v1898
        %2043 = vmatprep.subr.mxu0 %v1903
        %2044 = vmatpush1.msra.mxu0 %v1902
        %2045 = vmatprep.subr.mxu0 %v1907
        %2046 = vmatpush1.msra.mxu0 %v1906
        %2047 = vmatprep.subr.mxu0 %v1911
        %2048 = vmatpush1.msra.mxu0 %v1910
        %2049 = vmatprep.subr.mxu0 %v1915
        %2050 = vmatpush1.msra.mxu0 %v1914
        %2051 = vmatprep.subr.mxu0 %v1919
        %2052 = vmatpush1.msra.mxu0 %v1918
        %2053 = vmatprep.subr.mxu0 %v1923
        %2054 = vmatpush1.msra.mxu0 %v1922
        %2055 = vmatprep.subr.mxu0 %v1927
        %2056 = vmatpush1.msra.mxu0 %v1926
        %2057 = vmatprep.subr.mxu0 %v1931
        %2058 = vmatpush1.msra.mxu0 %v1930
        %2059 = vmatprep.subr.mxu0 %v1935
        %2060 = vmatpush1.msra.mxu0 %v1934
        %2061 = vmatprep.subr.mxu0 %v1939
        %2062 = vmatpush1.msra.mxu0 %v1938
        %2063 = vmatprep.subr.mxu0 %v1943
        %2064 = vmatpush1.msra.mxu0 %v1942
        %2065 = vmatprep.subr.mxu0 0.0
        %2066 = vmatpush1.msra.mxu0 0.0
        %2067 = vmatprep.subr.mxu0 0.0
        %2068 = vmatpush1.msra.mxu0 0.0
        %2069 = vmatprep.subr.mxu0 0.0
        %2070 = vmatpush1.msra.mxu0 0.0
        %2071 = vmatprep.subr.mxu0 0.0
        %2072 = vmatpush1.msra.mxu0 0.0
        %2073 = vmatprep.subr.mxu0 0.0
        %2074 = vmatpush1.msra.mxu0 0.0
        %2075 = vmatprep.subr.mxu0 0.0
        %2076 = vmatpush1.msra.mxu0 0.0
        %2077 = vmatprep.subr.mxu0 0.0
        %2078 = vmatpush1.msra.mxu0 0.0
        %2079 = vmatprep.subr.mxu0 0.0
        %2080 = vmatpush1.msra.mxu0 0.0
        %2081 = vmatprep.subr.mxu0 0.0
        %2082 = vmatpush1.msra.mxu0 0.0
        %2083 = vmatprep.subr.mxu0 0.0
        %2084 = vmatpush1.msra.mxu0 0.0
        %2085 = vmatprep.subr.mxu0 0.0
        %2086 = vmatpush1.msra.mxu0 0.0
        %2087 = vmatprep.subr.mxu0 0.0
        %2088 = vmatpush1.msra.mxu0 0.0
        %2089 = vmatprep.subr.mxu0 0.0
        %2090 = vmatpush1.msra.mxu0 0.0
        %2091 = vmatprep.subr.mxu0 0.0
        %2092 = vmatpush1.msra.mxu0 0.0
        %2093 = vmatprep.subr.mxu0 0.0
        %2094 = vmatpush1.msra.mxu0 0.0
        %2095 = vmatprep.subr.mxu0 0.0
        %2096 = vmatpush1.msra.mxu0 0.0
        %2097 = vmatprep.mubr.f32.mxu0 0.0
        %2098 = vmatmul.mubr.f32.gmra.mrb[0].mxu0 %v1377
        %v2099 = vpop.f32.mrb[0].mxu0
        %v2100 = vadd.f32 0.0, %v2099
        %v2101 = vpop.f32.mrb[0].mxu0
        %v2102 = vadd.f32 0.0, %v2101
        %2103 = vmatprep.mubr.f32.mxu0 0.0
        %2104 = vmatmul.mubr.f32.gmra.mrb[0].mxu0 %v1378
        %v2105 = vpop.f32.mrb[0].mxu0
        %v2106 = vadd.f32 0.0, %v2105
        %v2107 = vpop.f32.mrb[0].mxu0
        %v2108 = vadd.f32 0.0, %v2107
        %2109 = vmatprep.mubr.f32.mxu0 0.0
        %2110 = vmatmul.mubr.f32.gmra.mrb[0].mxu0 %v1379
        %v2111 = vpop.f32.mrb[0].mxu0
        %v2112 = vadd.f32 0.0, %v2111
        %v2113 = vpop.f32.mrb[0].mxu0
        %v2114 = vadd.f32 0.0, %v2113
        %2115 = vmatprep.mubr.f32.mxu0 0.0
        %2116 = vmatmul.mubr.f32.gmra.mrb[0].mxu0 %v1380
        %v2117 = vpop.f32.mrb[0].mxu0
        %v2118 = vadd.f32 0.0, %v2117
        %v2119 = vpop.f32.mrb[0].mxu0
        %v2120 = vadd.f32 0.0, %v2119
        %2121 = vdwg.mxu0
        %v2122 = vld [vmem:[#allocation10] sm:$0xff]
        %v2123 = vld [vmem:[#allocation10 + $0x8] sm:$0xff]
        %v2124 = vld [vmem:[#allocation10 + $0x10] sm:$0xff]
        %v2125 = vld [vmem:[#allocation10 + $0x18] sm:$0xff]
        %v2126 = vld [vmem:[#allocation10 + $0x20] sm:$0xff]
        %v2127 = vld [vmem:[#allocation10 + $0x28] sm:$0xff]
        %v2128 = vld [vmem:[#allocation10 + $0x30] sm:$0xff]
        %v2129 = vld [vmem:[#allocation10 + $0x38] sm:$0xff]
        %v2130 = vld [vmem:[#allocation10 + $0x40] sm:$0xff]
        %v2131 = vld [vmem:[#allocation10 + $0x48] sm:$0xff]
        %v2132 = vld [vmem:[#allocation10 + $0x50] sm:$0xff]
        %v2133 = vld [vmem:[#allocation10 + $0x58] sm:$0xff]
        %v2134 = vld [vmem:[#allocation10 + $0x60] sm:$0xff]
        %v2135 = vld [vmem:[#allocation10 + $0x68] sm:$0xff]
        %v2136 = vld [vmem:[#allocation10 + $0x70] sm:$0xff]
        %v2137 = vld [vmem:[#allocation10 + $0x78] sm:$0xff]
        %v2138 = vld [vmem:[#allocation10 + $0x80] sm:$0xff]
        %v2139 = vld [vmem:[#allocation10 + $0x88] sm:$0xff]
        %v2140 = vld [vmem:[#allocation10 + $0x90] sm:$0xff]
        %v2141 = vld [vmem:[#allocation10 + $0x98] sm:$0xff]
        %v2142 = vld [vmem:[#allocation10 + $0xa0] sm:$0xff]
        %v2143 = vld [vmem:[#allocation10 + $0xa8] sm:$0xff]
        %v2144 = vld [vmem:[#allocation10 + $0xb0] sm:$0xff]
        %v2145 = vld [vmem:[#allocation10 + $0xb8] sm:$0xff]
        %v2146 = vld [vmem:[#allocation10 + $0xc0] sm:$0xff]
        %v2147 = vld [vmem:[#allocation10 + $0xc8] sm:$0xff]
        %v2148 = vld [vmem:[#allocation10 + $0xd0] sm:$0xff]
        %v2149 = vld [vmem:[#allocation10 + $0xd8] sm:$0xff]
        %v2150 = vld [vmem:[#allocation10 + $0xe0] sm:$0xff]
        %v2151 = vld [vmem:[#allocation10 + $0xe8] sm:$0xff]
        %v2152 = vld [vmem:[#allocation10 + $0xf0] sm:$0xff]
        %v2153 = vld [vmem:[#allocation10 + $0xf8] sm:$0xff]
        %v2154 = vld [vmem:[#allocation10 + $0x100] sm:$0xff]
        %v2155 = vld [vmem:[#allocation10 + $0x108] sm:$0xff]
        %v2156 = vld [vmem:[#allocation10 + $0x110] sm:$0xff]
        %v2157 = vld [vmem:[#allocation10 + $0x118] sm:$0xff]
        %v2158 = vld [vmem:[#allocation10 + $0x120] sm:$0xff]
        %v2159 = vld [vmem:[#allocation10 + $0x128] sm:$0xff]
        %v2160 = vld [vmem:[#allocation10 + $0x130] sm:$0xff]
        %v2161 = vld [vmem:[#allocation10 + $0x138] sm:$0xff]
        %v2162 = vld [vmem:[#allocation10 + $0x140] sm:$0xff]
        %v2163 = vld [vmem:[#allocation10 + $0x148] sm:$0xff]
        %v2164 = vld [vmem:[#allocation10 + $0x150] sm:$0xff]
        %v2165 = vld [vmem:[#allocation10 + $0x158] sm:$0xff]
        %v2166 = vld [vmem:[#allocation10 + $0x160] sm:$0xff]
        %v2167 = vld [vmem:[#allocation10 + $0x168] sm:$0xff]
        %v2168 = vld [vmem:[#allocation10 + $0x170] sm:$0xff]
        %v2169 = vld [vmem:[#allocation10 + $0x178] sm:$0xff]
        %v2170 = vld [vmem:[#allocation10 + $0x180] sm:$0xff]
        %v2171 = vld [vmem:[#allocation10 + $0x188] sm:$0xff]
        %v2172 = vld [vmem:[#allocation10 + $0x190] sm:$0xff]
        %v2173 = vld [vmem:[#allocation10 + $0x198] sm:$0xff]
        %v2174 = vld [vmem:[#allocation10 + $0x1a0] sm:$0xff]
        %v2175 = vld [vmem:[#allocation10 + $0x1a8] sm:$0xff]
        %v2176 = vld [vmem:[#allocation10 + $0x1b0] sm:$0xff]
        %v2177 = vld [vmem:[#allocation10 + $0x1b8] sm:$0xff]
        %v2178 = vld [vmem:[#allocation10 + $0x1c0] sm:$0xff]
        %v2179 = vld [vmem:[#allocation10 + $0x1c8] sm:$0xff]
        %v2180 = vld [vmem:[#allocation10 + $0x1d0] sm:$0xff]
        %v2181 = vld [vmem:[#allocation10 + $0x1d8] sm:$0xff]
        %v2182 = vld [vmem:[#allocation10 + $0x1e0] sm:$0xff]
        %v2183 = vld [vmem:[#allocation10 + $0x1e8] sm:$0xff]
        %v2184 = vld [vmem:[#allocation10 + $0x1f0] sm:$0xff]
        %v2185 = vld [vmem:[#allocation10 + $0x1f8] sm:$0xff]
        %2186 = vmatprep.subr.mxu0 %v2123
        %2187 = vmatpush1.msra.mxu0 %v2122
        %2188 = vmatprep.subr.mxu0 %v2127
        %2189 = vmatpush1.msra.mxu0 %v2126
        %2190 = vmatprep.subr.mxu0 %v2131
        %2191 = vmatpush1.msra.mxu0 %v2130
        %2192 = vmatprep.subr.mxu0 %v2135
        %2193 = vmatpush1.msra.mxu0 %v2134
        %2194 = vmatprep.subr.mxu0 %v2139
        %2195 = vmatpush1.msra.mxu0 %v2138
        %2196 = vmatprep.subr.mxu0 %v2143
        %2197 = vmatpush1.msra.mxu0 %v2142
        %2198 = vmatprep.subr.mxu0 %v2147
        %2199 = vmatpush1.msra.mxu0 %v2146
        %2200 = vmatprep.subr.mxu0 %v2151
        %2201 = vmatpush1.msra.mxu0 %v2150
        %2202 = vmatprep.subr.mxu0 %v2155
        %2203 = vmatpush1.msra.mxu0 %v2154
        %2204 = vmatprep.subr.mxu0 %v2159
        %2205 = vmatpush1.msra.mxu0 %v2158
        %2206 = vmatprep.subr.mxu0 %v2163
        %2207 = vmatpush1.msra.mxu0 %v2162
        %2208 = vmatprep.subr.mxu0 %v2167
        %2209 = vmatpush1.msra.mxu0 %v2166
        %2210 = vmatprep.subr.mxu0 %v2171
        %2211 = vmatpush1.msra.mxu0 %v2170
        %2212 = vmatprep.subr.mxu0 %v2175
        %2213 = vmatpush1.msra.mxu0 %v2174
        %2214 = vmatprep.subr.mxu0 %v2179
        %2215 = vmatpush1.msra.mxu0 %v2178
        %2216 = vmatprep.subr.mxu0 %v2183
        %2217 = vmatpush1.msra.mxu0 %v2182
        %2218 = vmatprep.subr.mxu0 0.0
        %2219 = vmatpush1.msra.mxu0 0.0
        %2220 = vmatprep.subr.mxu0 0.0
        %2221 = vmatpush1.msra.mxu0 0.0
        %2222 = vmatprep.subr.mxu0 0.0
        %2223 = vmatpush1.msra.mxu0 0.0
        %2224 = vmatprep.subr.mxu0 0.0
        %2225 = vmatpush1.msra.mxu0 0.0
        %2226 = vmatprep.subr.mxu0 0.0
        %2227 = vmatpush1.msra.mxu0 0.0
        %2228 = vmatprep.subr.mxu0 0.0
        %2229 = vmatpush1.msra.mxu0 0.0
        %2230 = vmatprep.subr.mxu0 0.0
        %2231 = vmatpush1.msra.mxu0 0.0
        %2232 = vmatprep.subr.mxu0 0.0
        %2233 = vmatpush1.msra.mxu0 0.0
        %2234 = vmatprep.subr.mxu0 0.0
        %2235 = vmatpush1.msra.mxu0 0.0
        %2236 = vmatprep.subr.mxu0 0.0
        %2237 = vmatpush1.msra.mxu0 0.0
        %2238 = vmatprep.subr.mxu0 0.0
        %2239 = vmatpush1.msra.mxu0 0.0
        %2240 = vmatprep.subr.mxu0 0.0
        %2241 = vmatpush1.msra.mxu0 0.0
        %2242 = vmatprep.subr.mxu0 0.0
        %2243 = vmatpush1.msra.mxu0 0.0
        %2244 = vmatprep.subr.mxu0 0.0
        %2245 = vmatpush1.msra.mxu0 0.0
        %2246 = vmatprep.subr.mxu0 0.0
        %2247 = vmatpush1.msra.mxu0 0.0
        %2248 = vmatprep.subr.mxu0 0.0
        %2249 = vmatpush1.msra.mxu0 0.0
        %2250 = vmatprep.mubr.f32.mxu0 0.0
        %2251 = vmatmul.mubr.f32.gmra.mrb[0].mxu0 %v1377
        %v2252 = vpop.f32.mrb[0].mxu0
        %v2253 = vadd.f32 0.0, %v2252
        %v2254 = vpop.f32.mrb[0].mxu0
        %v2255 = vadd.f32 0.0, %v2254
        %2256 = vmatprep.mubr.f32.mxu0 0.0
        %2257 = vmatmul.mubr.f32.gmra.mrb[0].mxu0 %v1378
        %v2258 = vpop.f32.mrb[0].mxu0
        %v2259 = vadd.f32 0.0, %v2258
        %v2260 = vpop.f32.mrb[0].mxu0
        %v2261 = vadd.f32 0.0, %v2260
        %2262 = vmatprep.mubr.f32.mxu0 0.0
        %2263 = vmatmul.mubr.f32.gmra.mrb[0].mxu0 %v1379
        %v2264 = vpop.f32.mrb[0].mxu0
        %v2265 = vadd.f32 0.0, %v2264
        %v2266 = vpop.f32.mrb[0].mxu0
        %v2267 = vadd.f32 0.0, %v2266
        %2268 = vmatprep.mubr.f32.mxu0 0.0
        %2269 = vmatmul.mubr.f32.gmra.mrb[0].mxu0 %v1380
        %v2270 = vpop.f32.mrb[0].mxu0
        %v2271 = vadd.f32 0.0, %v2270
        %v2272 = vpop.f32.mrb[0].mxu0
        %v2273 = vadd.f32 0.0, %v2272
        %2274 = vdwg.mxu0
        %2275 = vmatprep.subr.mxu0 %v2125
        %2276 = vmatpush1.msra.mxu0 %v2124
        %2277 = vmatprep.subr.mxu0 %v2129
        %2278 = vmatpush1.msra.mxu0 %v2128
        %2279 = vmatprep.subr.mxu0 %v2133
        %2280 = vmatpush1.msra.mxu0 %v2132
        %2281 = vmatprep.subr.mxu0 %v2137
        %2282 = vmatpush1.msra.mxu0 %v2136
        %2283 = vmatprep.subr.mxu0 %v2141
        %2284 = vmatpush1.msra.mxu0 %v2140
        %2285 = vmatprep.subr.mxu0 %v2145
        %2286 = vmatpush1.msra.mxu0 %v2144
        %2287 = vmatprep.subr.mxu0 %v2149
        %2288 = vmatpush1.msra.mxu0 %v2148
        %2289 = vmatprep.subr.mxu0 %v2153
        %2290 = vmatpush1.msra.mxu0 %v2152
        %2291 = vmatprep.subr.mxu0 %v2157
        %2292 = vmatpush1.msra.mxu0 %v2156
        %2293 = vmatprep.subr.mxu0 %v2161
        %2294 = vmatpush1.msra.mxu0 %v2160
        %2295 = vmatprep.subr.mxu0 %v2165
        %2296 = vmatpush1.msra.mxu0 %v2164
        %2297 = vmatprep.subr.mxu0 %v2169
        %2298 = vmatpush1.msra.mxu0 %v2168
        %2299 = vmatprep.subr.mxu0 %v2173
        %2300 = vmatpush1.msra.mxu0 %v2172
        %2301 = vmatprep.subr.mxu0 %v2177
        %2302 = vmatpush1.msra.mxu0 %v2176
        %2303 = vmatprep.subr.mxu0 %v2181
        %2304 = vmatpush1.msra.mxu0 %v2180
        %2305 = vmatprep.subr.mxu0 %v2185
        %2306 = vmatpush1.msra.mxu0 %v2184
        %2307 = vmatprep.subr.mxu0 0.0
        %2308 = vmatpush1.msra.mxu0 0.0
        %2309 = vmatprep.subr.mxu0 0.0
        %2310 = vmatpush1.msra.mxu0 0.0
        %2311 = vmatprep.subr.mxu0 0.0
        %2312 = vmatpush1.msra.mxu0 0.0
        %2313 = vmatprep.subr.mxu0 0.0
        %2314 = vmatpush1.msra.mxu0 0.0
        %2315 = vmatprep.subr.mxu0 0.0
        %2316 = vmatpush1.msra.mxu0 0.0
        %2317 = vmatprep.subr.mxu0 0.0
        %2318 = vmatpush1.msra.mxu0 0.0
        %2319 = vmatprep.subr.mxu0 0.0
        %2320 = vmatpush1.msra.mxu0 0.0
        %2321 = vmatprep.subr.mxu0 0.0
        %2322 = vmatpush1.msra.mxu0 0.0
        %2323 = vmatprep.subr.mxu0 0.0
        %2324 = vmatpush1.msra.mxu0 0.0
        %2325 = vmatprep.subr.mxu0 0.0
        %2326 = vmatpush1.msra.mxu0 0.0
        %2327 = vmatprep.subr.mxu0 0.0
        %2328 = vmatpush1.msra.mxu0 0.0
        %2329 = vmatprep.subr.mxu0 0.0
        %2330 = vmatpush1.msra.mxu0 0.0
        %2331 = vmatprep.subr.mxu0 0.0
        %2332 = vmatpush1.msra.mxu0 0.0
        %2333 = vmatprep.subr.mxu0 0.0
        %2334 = vmatpush1.msra.mxu0 0.0
        %2335 = vmatprep.subr.mxu0 0.0
        %2336 = vmatpush1.msra.mxu0 0.0
        %2337 = vmatprep.subr.mxu0 0.0
        %2338 = vmatpush1.msra.mxu0 0.0
        %2339 = vmatprep.mubr.f32.mxu0 0.0
        %2340 = vmatmul.mubr.f32.gmra.mrb[0].mxu0 %v1377
        %v2341 = vpop.f32.mrb[0].mxu0
        %v2342 = vadd.f32 0.0, %v2341
        %v2343 = vpop.f32.mrb[0].mxu0
        %v2344 = vadd.f32 0.0, %v2343
        %2345 = vmatprep.mubr.f32.mxu0 0.0
        %2346 = vmatmul.mubr.f32.gmra.mrb[0].mxu0 %v1378
        %v2347 = vpop.f32.mrb[0].mxu0
        %v2348 = vadd.f32 0.0, %v2347
        %v2349 = vpop.f32.mrb[0].mxu0
        %v2350 = vadd.f32 0.0, %v2349
        %2351 = vmatprep.mubr.f32.mxu0 0.0
        %2352 = vmatmul.mubr.f32.gmra.mrb[0].mxu0 %v1379
        %v2353 = vpop.f32.mrb[0].mxu0
        %v2354 = vadd.f32 0.0, %v2353
        %v2355 = vpop.f32.mrb[0].mxu0
        %v2356 = vadd.f32 0.0, %v2355
        %2357 = vmatprep.mubr.f32.mxu0 0.0
        %2358 = vmatmul.mubr.f32.gmra.mrb[0].mxu0 %v1380
        %v2359 = vpop.f32.mrb[0].mxu0
        %v2360 = vadd.f32 0.0, %v2359
        %v2361 = vpop.f32.mrb[0].mxu0
        %v2362 = vadd.f32 0.0, %v2361
        %2363 = vdwg.mxu0
        %v2364 = vld [vmem:[%s1114] sm:$0x7]
        %v2365 = vld [vmem:[%s1114 + $0x4] sm:$0x7]
        %v2366 = vld [vmem:[%s1114 + $0x8] sm:$0x7]
        %v2367 = vld [vmem:[%s1114 + $0xc] sm:$0x7]
        %vm2368 = vcmp.gt.f32.partialorder %v2364, 0.0
        %vm2369 = vcmp.gt.f32.partialorder %v2365, 0.0
        %vm2370 = vcmp.gt.f32.partialorder %v2366, 0.0
        %vm2371 = vcmp.gt.f32.partialorder %v2367, 0.0
        %vm2372 = vcmask 59392
        %v2373 = vsel %vm2372, %v2364, inf
        %2374 = vmin.xlane.f32.xlu0 %v2373
        %v2375 = vpop.xlane.xlu0 %2374
        %v2376 = vsel %vm2372, %v2365, inf
        %2377 = vmin.xlane.f32.xlu0 %v2376
        %v2378 = vpop.xlane.xlu0 %2377
        %v2379 = vsel %vm2372, %v2366, inf
        %2380 = vmin.xlane.f32.xlu0 %v2379
        %v2381 = vpop.xlane.xlu0 %2380
        %v2382 = vsel %vm2372, %v2367, inf
        %2383 = vmin.xlane.f32.xlu0 %v2382
        %v2384 = vpop.xlane.xlu0 %2383
        %vm2385 = vcmp.gt.f32.partialorder %v2375, 0.0
        %vm2386 = vcmp.gt.f32.partialorder %v2378, 0.0
        %vm2387 = vcmp.gt.f32.partialorder %v2381, 0.0
        %vm2388 = vcmp.gt.f32.partialorder %v2384, 0.0
        %v2389 = vcombine.low %v1820, %v1834
        %v2391 = vunpack.c.l.s4 1966171168
        %v2392 = vunpack.c.0.s8 %v2391
        %v2393 = vlaneseq
        %v2394 = vshrl.u32 %v2393, 7
        %v2395 = vsub.s32 %v2392, %v2394
        %v2396 = vrot.slane %v2389, %v2395
        %v2398 = vunpack.c.l.s4 1966171168
        %v2399 = vunpack.c.0.s8 %v2398
        %v2400 = vlaneseq
        %v2401 = vshrl.u32 %v2400, 7
        %v2402 = vsub.s32 %v2399, %v2401
        %v2403 = vrot.slane %v1842, %v2402
        %v2404 = vcombine.low %v2396, %v2403
        %v2406 = vunpack.c.l.s4 1966171168
        %v2407 = vunpack.c.0.s8 %v2406
        %v2408 = vlaneseq
        %v2409 = vshrl.u32 %v2408, 7
        %v2410 = vsub.s32 %v2407, %v2409
        %v2411 = vrot.slane %v2404, %v2410
        %2413 = vmatprep.subr.mxu0 0.0
        %2414 = vmatpush1.xpose.msra.mxu0 %v2011
        %2415 = vmatprep.subr.mxu0 0.0
        %2416 = vmatpush1.xpose.msra.mxu0 0.0
        %2417 = vmatprep.subr.mxu0 0.0
        %2418 = vmatpush1.xpose.msra.mxu0 0.0
        %2419 = vmatprep.subr.mxu0 0.0
        %2420 = vmatpush1.xpose.msra.mxu0 0.0
        %2421 = vmatprep.subr.mxu0 0.0
        %2422 = vmatpush1.xpose.msra.mxu0 0.0
        %2423 = vmatprep.subr.mxu0 0.0
        %2424 = vmatpush1.xpose.msra.mxu0 0.0
        %2425 = vmatprep.subr.mxu0 0.0
        %2426 = vmatpush1.xpose.msra.mxu0 0.0
        %2427 = vmatprep.subr.mxu0 0.0
        %2428 = vmatpush1.xpose.msra.mxu0 0.0
        %2429 = vmatprep.subr.mxu0 0.0
        %2430 = vmatpush1.xpose.msra.mxu0 0.0
        %2431 = vmatprep.subr.mxu0 0.0
        %2432 = vmatpush1.xpose.msra.mxu0 0.0
        %2433 = vmatprep.subr.mxu0 0.0
        %2434 = vmatpush1.xpose.msra.mxu0 0.0
        %2435 = vmatprep.subr.mxu0 0.0
        %2436 = vmatpush1.xpose.msra.mxu0 0.0
        %2437 = vmatprep.subr.mxu0 0.0
        %2438 = vmatpush1.xpose.msra.mxu0 0.0
        %2439 = vmatprep.subr.mxu0 0.0
        %2440 = vmatpush1.xpose.msra.mxu0 0.0
        %2441 = vmatprep.subr.mxu0 0.0
        %2442 = vmatpush1.xpose.msra.mxu0 0.0
        %2443 = vmatprep.subr.mxu0 0.0
        %2444 = vmatpush1.xpose.msra.mxu0 0.0
        %2445 = vmatprep.subr.mxu0 0.0
        %2446 = vmatpush1.xpose.msra.mxu0 0.0
        %2447 = vmatprep.subr.mxu0 0.0
        %2448 = vmatpush1.xpose.msra.mxu0 0.0
        %2449 = vmatprep.subr.mxu0 0.0
        %2450 = vmatpush1.xpose.msra.mxu0 0.0
        %2451 = vmatprep.subr.mxu0 0.0
        %2452 = vmatpush1.xpose.msra.mxu0 0.0
        %2453 = vmatprep.subr.mxu0 0.0
        %2454 = vmatpush1.xpose.msra.mxu0 0.0
        %2455 = vmatprep.subr.mxu0 0.0
        %2456 = vmatpush1.xpose.msra.mxu0 0.0
        %2457 = vmatprep.subr.mxu0 0.0
        %2458 = vmatpush1.xpose.msra.mxu0 0.0
        %2459 = vmatprep.subr.mxu0 0.0
        %2460 = vmatpush1.xpose.msra.mxu0 0.0
        %2461 = vmatprep.subr.mxu0 0.0
        %2462 = vmatpush1.xpose.msra.mxu0 0.0
        %2463 = vmatprep.subr.mxu0 0.0
        %2464 = vmatpush1.xpose.msra.mxu0 0.0
        %2465 = vmatprep.subr.mxu0 0.0
        %2466 = vmatpush1.xpose.msra.mxu0 0.0
        %2467 = vmatprep.subr.mxu0 0.0
        %2468 = vmatpush1.xpose.msra.mxu0 0.0
        %2469 = vmatprep.subr.mxu0 0.0
        %2470 = vmatpush1.xpose.msra.mxu0 0.0
        %2471 = vmatprep.subr.mxu0 0.0
        %2472 = vmatpush1.xpose.msra.mxu0 0.0
        %2473 = vmatprep.subr.mxu0 0.0
        %2474 = vmatpush1.xpose.msra.mxu0 0.0
        %2475 = vmatprep.subr.mxu0 0.0
        %2476 = vmatpush1.xpose.msra.mxu0 0.0
        %2477 = vmatprep.mubr.f32.mxu0 0.0
        %2478 = vmatmul.mubr.f32.gmra.mrb[0].mxu0 %v2411
        %v2479 = vpop.f32.mrb[0].mxu0
        %v2480 = vadd.f32 0.0, %v2479
        %v2481 = vpop.f32.mrb[0].mxu0
        %2482 = vdwg.mxu0
        %v2483 = vcombine.low %v1844, %v1827
        %v2485 = vunpack.c.l.s4 1966171168
        %v2486 = vunpack.c.0.s8 %v2485
        %v2487 = vlaneseq
        %v2488 = vshrl.u32 %v2487, 7
        %v2489 = vsub.s32 %v2486, %v2488
        %v2490 = vrot.slane %v2483, %v2489
        %v2492 = vunpack.c.l.s4 1966171168
        %v2493 = vunpack.c.0.s8 %v2492
        %v2494 = vlaneseq
        %v2495 = vshrl.u32 %v2494, 7
        %v2496 = vsub.s32 %v2493, %v2495
        %v2497 = vrot.slane %v1841, %v2496
        %v2498 = vcombine.low %v2490, %v2497
        %v2500 = vunpack.c.l.s4 1966171168
        %v2501 = vunpack.c.0.s8 %v2500
        %v2502 = vlaneseq
        %v2503 = vshrl.u32 %v2502, 7
        %v2504 = vsub.s32 %v2501, %v2503
        %v2505 = vrot.slane %v2498, %v2504
        %2507 = vmatprep.subr.mxu0 0.0
        %2508 = vmatpush1.xpose.msra.mxu0 %v2017
        %2509 = vmatprep.subr.mxu0 0.0
        %2510 = vmatpush1.xpose.msra.mxu0 0.0
        %2511 = vmatprep.subr.mxu0 0.0
        %2512 = vmatpush1.xpose.msra.mxu0 0.0
        %2513 = vmatprep.subr.mxu0 0.0
        %2514 = vmatpush1.xpose.msra.mxu0 0.0
        %2515 = vmatprep.subr.mxu0 0.0
        %2516 = vmatpush1.xpose.msra.mxu0 0.0
        %2517 = vmatprep.subr.mxu0 0.0
        %2518 = vmatpush1.xpose.msra.mxu0 0.0
        %2519 = vmatprep.subr.mxu0 0.0
        %2520 = vmatpush1.xpose.msra.mxu0 0.0
        %2521 = vmatprep.subr.mxu0 0.0
        %2522 = vmatpush1.xpose.msra.mxu0 0.0
        %2523 = vmatprep.subr.mxu0 0.0
        %2524 = vmatpush1.xpose.msra.mxu0 0.0
        %2525 = vmatprep.subr.mxu0 0.0
        %2526 = vmatpush1.xpose.msra.mxu0 0.0
        %2527 = vmatprep.subr.mxu0 0.0
        %2528 = vmatpush1.xpose.msra.mxu0 0.0
        %2529 = vmatprep.subr.mxu0 0.0
        %2530 = vmatpush1.xpose.msra.mxu0 0.0
        %2531 = vmatprep.subr.mxu0 0.0
        %2532 = vmatpush1.xpose.msra.mxu0 0.0
        %2533 = vmatprep.subr.mxu0 0.0
        %2534 = vmatpush1.xpose.msra.mxu0 0.0
        %2535 = vmatprep.subr.mxu0 0.0
        %2536 = vmatpush1.xpose.msra.mxu0 0.0
        %2537 = vmatprep.subr.mxu0 0.0
        %2538 = vmatpush1.xpose.msra.mxu0 0.0
        %2539 = vmatprep.subr.mxu0 0.0
        %2540 = vmatpush1.xpose.msra.mxu0 0.0
        %2541 = vmatprep.subr.mxu0 0.0
        %2542 = vmatpush1.xpose.msra.mxu0 0.0
        %2543 = vmatprep.subr.mxu0 0.0
        %2544 = vmatpush1.xpose.msra.mxu0 0.0
        %2545 = vmatprep.subr.mxu0 0.0
        %2546 = vmatpush1.xpose.msra.mxu0 0.0
        %2547 = vmatprep.subr.mxu0 0.0
        %2548 = vmatpush1.xpose.msra.mxu0 0.0
        %2549 = vmatprep.subr.mxu0 0.0
        %2550 = vmatpush1.xpose.msra.mxu0 0.0
        %2551 = vmatprep.subr.mxu0 0.0
        %2552 = vmatpush1.xpose.msra.mxu0 0.0
        %2553 = vmatprep.subr.mxu0 0.0
        %2554 = vmatpush1.xpose.msra.mxu0 0.0
        %2555 = vmatprep.subr.mxu0 0.0
        %2556 = vmatpush1.xpose.msra.mxu0 0.0
        %2557 = vmatprep.subr.mxu0 0.0
        %2558 = vmatpush1.xpose.msra.mxu0 0.0
        %2559 = vmatprep.subr.mxu0 0.0
        %2560 = vmatpush1.xpose.msra.mxu0 0.0
        %2561 = vmatprep.subr.mxu0 0.0
        %2562 = vmatpush1.xpose.msra.mxu0 0.0
        %2563 = vmatprep.subr.mxu0 0.0
        %2564 = vmatpush1.xpose.msra.mxu0 0.0
        %2565 = vmatprep.subr.mxu0 0.0
        %2566 = vmatpush1.xpose.msra.mxu0 0.0
        %2567 = vmatprep.subr.mxu0 0.0
        %2568 = vmatpush1.xpose.msra.mxu0 0.0
        %2569 = vmatprep.subr.mxu0 0.0
        %2570 = vmatpush1.xpose.msra.mxu0 0.0
        %2571 = vmatprep.mubr.f32.mxu0 0.0
        %2572 = vmatmul.mubr.f32.gmra.mrb[0].mxu0 %v2505
        %v2573 = vpop.f32.mrb[0].mxu0
        %v2574 = vadd.f32 0.0, %v2573
        %v2575 = vpop.f32.mrb[0].mxu0
        %2576 = vdwg.mxu0
        %v2577 = vcombine.low %v1843, %v1845
        %v2579 = vunpack.c.l.s4 1966171168
        %v2580 = vunpack.c.0.s8 %v2579
        %v2581 = vlaneseq
        %v2582 = vshrl.u32 %v2581, 7
        %v2583 = vsub.s32 %v2580, %v2582
        %v2584 = vrot.slane %v2577, %v2583
        %v2586 = vunpack.c.l.s4 1966171168
        %v2587 = vunpack.c.0.s8 %v2586
        %v2588 = vlaneseq
        %v2589 = vshrl.u32 %v2588, 7
        %v2590 = vsub.s32 %v2587, %v2589
        %v2591 = vrot.slane %v1870, %v2590
        %v2592 = vcombine.low %v2584, %v2591
        %v2594 = vunpack.c.l.s4 1966171168
        %v2595 = vunpack.c.0.s8 %v2594
        %v2596 = vlaneseq
        %v2597 = vshrl.u32 %v2596, 7
        %v2598 = vsub.s32 %v2595, %v2597
        %v2599 = vrot.slane %v2592, %v2598
        %2601 = vmatprep.subr.mxu0 0.0
        %2602 = vmatpush1.xpose.msra.mxu0 %v2023
        %2603 = vmatprep.subr.mxu0 0.0
        %2604 = vmatpush1.xpose.msra.mxu0 0.0
        %2605 = vmatprep.subr.mxu0 0.0
        %2606 = vmatpush1.xpose.msra.mxu0 0.0
        %2607 = vmatprep.subr.mxu0 0.0
        %2608 = vmatpush1.xpose.msra.mxu0 0.0
        %2609 = vmatprep.subr.mxu0 0.0
        %2610 = vmatpush1.xpose.msra.mxu0 0.0
        %2611 = vmatprep.subr.mxu0 0.0
        %2612 = vmatpush1.xpose.msra.mxu0 0.0
        %2613 = vmatprep.subr.mxu0 0.0
        %2614 = vmatpush1.xpose.msra.mxu0 0.0
        %2615 = vmatprep.subr.mxu0 0.0
        %2616 = vmatpush1.xpose.msra.mxu0 0.0
        %2617 = vmatprep.subr.mxu0 0.0
        %2618 = vmatpush1.xpose.msra.mxu0 0.0
        %2619 = vmatprep.subr.mxu0 0.0
        %2620 = vmatpush1.xpose.msra.mxu0 0.0
        %2621 = vmatprep.subr.mxu0 0.0
        %2622 = vmatpush1.xpose.msra.mxu0 0.0
        %2623 = vmatprep.subr.mxu0 0.0
        %2624 = vmatpush1.xpose.msra.mxu0 0.0
        %2625 = vmatprep.subr.mxu0 0.0
        %2626 = vmatpush1.xpose.msra.mxu0 0.0
        %2627 = vmatprep.subr.mxu0 0.0
        %2628 = vmatpush1.xpose.msra.mxu0 0.0
        %2629 = vmatprep.subr.mxu0 0.0
        %2630 = vmatpush1.xpose.msra.mxu0 0.0
        %2631 = vmatprep.subr.mxu0 0.0
        %2632 = vmatpush1.xpose.msra.mxu0 0.0
        %2633 = vmatprep.subr.mxu0 0.0
        %2634 = vmatpush1.xpose.msra.mxu0 0.0
        %2635 = vmatprep.subr.mxu0 0.0
        %2636 = vmatpush1.xpose.msra.mxu0 0.0
        %2637 = vmatprep.subr.mxu0 0.0
        %2638 = vmatpush1.xpose.msra.mxu0 0.0
        %2639 = vmatprep.subr.mxu0 0.0
        %2640 = vmatpush1.xpose.msra.mxu0 0.0
        %2641 = vmatprep.subr.mxu0 0.0
        %2642 = vmatpush1.xpose.msra.mxu0 0.0
        %2643 = vmatprep.subr.mxu0 0.0
        %2644 = vmatpush1.xpose.msra.mxu0 0.0
        %2645 = vmatprep.subr.mxu0 0.0
        %2646 = vmatpush1.xpose.msra.mxu0 0.0
        %2647 = vmatprep.subr.mxu0 0.0
        %2648 = vmatpush1.xpose.msra.mxu0 0.0
        %2649 = vmatprep.subr.mxu0 0.0
        %2650 = vmatpush1.xpose.msra.mxu0 0.0
        %2651 = vmatprep.subr.mxu0 0.0
        %2652 = vmatpush1.xpose.msra.mxu0 0.0
        %2653 = vmatprep.subr.mxu0 0.0
        %2654 = vmatpush1.xpose.msra.mxu0 0.0
        %2655 = vmatprep.subr.mxu0 0.0
        %2656 = vmatpush1.xpose.msra.mxu0 0.0
        %2657 = vmatprep.subr.mxu0 0.0
        %2658 = vmatpush1.xpose.msra.mxu0 0.0
        %2659 = vmatprep.subr.mxu0 0.0
        %2660 = vmatpush1.xpose.msra.mxu0 0.0
        %2661 = vmatprep.subr.mxu0 0.0
        %2662 = vmatpush1.xpose.msra.mxu0 0.0
        %2663 = vmatprep.subr.mxu0 0.0
        %2664 = vmatpush1.xpose.msra.mxu0 0.0
        %2665 = vmatprep.mubr.f32.mxu0 0.0
        %2666 = vmatmul.mubr.f32.gmra.mrb[0].mxu0 %v2599
        %v2667 = vpop.f32.mrb[0].mxu0
        %v2668 = vadd.f32 0.0, %v2667
        %v2669 = vpop.f32.mrb[0].mxu0
        %2670 = vdwg.mxu0
        %v2671 = vcombine.low %v1877, %v1878
        %v2673 = vunpack.c.l.s4 1966171168
        %v2674 = vunpack.c.0.s8 %v2673
        %v2675 = vlaneseq
        %v2676 = vshrl.u32 %v2675, 7
        %v2677 = vsub.s32 %v2674, %v2676
        %v2678 = vrot.slane %v2671, %v2677
        %v2680 = vunpack.c.l.s4 1966171168
        %v2681 = vunpack.c.0.s8 %v2680
        %v2682 = vlaneseq
        %v2683 = vshrl.u32 %v2682, 7
        %v2684 = vsub.s32 %v2681, %v2683
        %v2685 = vrot.slane %v1879, %v2684
        %v2686 = vcombine.low %v2678, %v2685
        %v2688 = vunpack.c.l.s4 1966171168
        %v2689 = vunpack.c.0.s8 %v2688
        %v2690 = vlaneseq
        %v2691 = vshrl.u32 %v2690, 7
        %v2692 = vsub.s32 %v2689, %v2691
        %v2693 = vrot.slane %v2686, %v2692
        %2695 = vmatprep.subr.mxu0 0.0
        %2696 = vmatpush1.xpose.msra.mxu0 %v2029
        %2697 = vmatprep.subr.mxu0 0.0
        %2698 = vmatpush1.xpose.msra.mxu0 0.0
        %2699 = vmatprep.subr.mxu0 0.0
        %2700 = vmatpush1.xpose.msra.mxu0 0.0
        %2701 = vmatprep.subr.mxu0 0.0
        %2702 = vmatpush1.xpose.msra.mxu0 0.0
        %2703 = vmatprep.subr.mxu0 0.0
        %2704 = vmatpush1.xpose.msra.mxu0 0.0
        %2705 = vmatprep.subr.mxu0 0.0
        %2706 = vmatpush1.xpose.msra.mxu0 0.0
        %2707 = vmatprep.subr.mxu0 0.0
        %2708 = vmatpush1.xpose.msra.mxu0 0.0
        %2709 = vmatprep.subr.mxu0 0.0
        %2710 = vmatpush1.xpose.msra.mxu0 0.0
        %2711 = vmatprep.subr.mxu0 0.0
        %2712 = vmatpush1.xpose.msra.mxu0 0.0
        %2713 = vmatprep.subr.mxu0 0.0
        %2714 = vmatpush1.xpose.msra.mxu0 0.0
        %2715 = vmatprep.subr.mxu0 0.0
        %2716 = vmatpush1.xpose.msra.mxu0 0.0
        %2717 = vmatprep.subr.mxu0 0.0
        %2718 = vmatpush1.xpose.msra.mxu0 0.0
        %2719 = vmatprep.subr.mxu0 0.0
        %2720 = vmatpush1.xpose.msra.mxu0 0.0
        %2721 = vmatprep.subr.mxu0 0.0
        %2722 = vmatpush1.xpose.msra.mxu0 0.0
        %2723 = vmatprep.subr.mxu0 0.0
        %2724 = vmatpush1.xpose.msra.mxu0 0.0
        %2725 = vmatprep.subr.mxu0 0.0
        %2726 = vmatpush1.xpose.msra.mxu0 0.0
        %2727 = vmatprep.subr.mxu0 0.0
        %2728 = vmatpush1.xpose.msra.mxu0 0.0
        %2729 = vmatprep.subr.mxu0 0.0
        %2730 = vmatpush1.xpose.msra.mxu0 0.0
        %2731 = vmatprep.subr.mxu0 0.0
        %2732 = vmatpush1.xpose.msra.mxu0 0.0
        %2733 = vmatprep.subr.mxu0 0.0
        %2734 = vmatpush1.xpose.msra.mxu0 0.0
        %2735 = vmatprep.subr.mxu0 0.0
        %2736 = vmatpush1.xpose.msra.mxu0 0.0
        %2737 = vmatprep.subr.mxu0 0.0
        %2738 = vmatpush1.xpose.msra.mxu0 0.0
        %2739 = vmatprep.subr.mxu0 0.0
        %2740 = vmatpush1.xpose.msra.mxu0 0.0
        %2741 = vmatprep.subr.mxu0 0.0
        %2742 = vmatpush1.xpose.msra.mxu0 0.0
        %2743 = vmatprep.subr.mxu0 0.0
        %2744 = vmatpush1.xpose.msra.mxu0 0.0
        %2745 = vmatprep.subr.mxu0 0.0
        %2746 = vmatpush1.xpose.msra.mxu0 0.0
        %2747 = vmatprep.subr.mxu0 0.0
        %2748 = vmatpush1.xpose.msra.mxu0 0.0
        %2749 = vmatprep.subr.mxu0 0.0
        %2750 = vmatpush1.xpose.msra.mxu0 0.0
        %2751 = vmatprep.subr.mxu0 0.0
        %2752 = vmatpush1.xpose.msra.mxu0 0.0
        %2753 = vmatprep.subr.mxu0 0.0
        %2754 = vmatpush1.xpose.msra.mxu0 0.0
        %2755 = vmatprep.subr.mxu0 0.0
        %2756 = vmatpush1.xpose.msra.mxu0 0.0
        %2757 = vmatprep.subr.mxu0 0.0
        %2758 = vmatpush1.xpose.msra.mxu0 0.0
        %2759 = vmatprep.mubr.f32.mxu0 0.0
        %2760 = vmatmul.mubr.f32.gmra.mrb[0].mxu0 %v2693
        %v2761 = vpop.f32.mrb[0].mxu0
        %v2762 = vadd.f32 0.0, %v2761
        %v2763 = vpop.f32.mrb[0].mxu0
        %2764 = vdwg.mxu0
        %v2765 = vsel %vm2368, -1e+30, %v2480
        %v2766 = vsel %vm2369, -1e+30, %v2574
        %v2767 = vsel %vm2370, -1e+30, %v2668
        %v2768 = vsel %vm2371, -1e+30, %v2762
        %v2769 = vsel %vm2372, %v2765, -inf
        %2770 = vmax.xlane.f32.xlu0 %v2769
        %v2771 = vpop.xlane.xlu0 %2770
        %v2772 = vsel %vm2372, %v2766, -inf
        %2773 = vmax.xlane.f32.xlu0 %v2772
        %v2774 = vpop.xlane.xlu0 %2773
        %v2775 = vsel %vm2372, %v2767, -inf
        %2776 = vmax.xlane.f32.xlu0 %v2775
        %v2777 = vpop.xlane.xlu0 %2776
        %v2778 = vsel %vm2372, %v2768, -inf
        %2779 = vmax.xlane.f32.xlu0 %v2778
        %v2780 = vpop.xlane.xlu0 %2779
        %v2781 = vsub.f32 %v2765, %v2771
        %v2782 = vsub.f32 %v2766, %v2774
        %v2783 = vsub.f32 %v2767, %v2777
        %v2784 = vsub.f32 %v2768, %v2780
        %v2785 = vmul.f32 %v2781, 1.442695
        %v2786 = vpow.pop %v2785
        %v2787 = vmul.f32 %v2782, 1.442695
        %v2788 = vpow.pop %v2787
        %v2789 = vmul.f32 %v2783, 1.442695
        %v2790 = vpow.pop %v2789
        %v2791 = vmul.f32 %v2784, 1.442695
        %v2792 = vpow.pop %v2791
        %v2793 = vsel %vm2372, %v2786, 0.0
        %2794 = vadd.xlane.f32.xlu0 %v2793
        %v2795 = vpop.xlane.xlu0 %2794
        %v2796 = vsel %vm2372, %v2788, 0.0
        %2797 = vadd.xlane.f32.xlu0 %v2796
        %v2798 = vpop.xlane.xlu0 %2797
        %v2799 = vsel %vm2372, %v2790, 0.0
        %2800 = vadd.xlane.f32.xlu0 %v2799
        %v2801 = vpop.xlane.xlu0 %2800
        %v2802 = vsel %vm2372, %v2792, 0.0
        %2803 = vadd.xlane.f32.xlu0 %v2802
        %v2804 = vpop.xlane.xlu0 %2803
        %v2805 = vrcp.pop %v2795
        %v2806 = vrcp.pop %v2798
        %v2807 = vrcp.pop %v2801
        %v2808 = vrcp.pop %v2804
        %v2809 = vmul.f32 %v2786, %v2805
        %v2810 = vmul.f32 %v2788, %v2806
        %v2811 = vmul.f32 %v2790, %v2807
        %v2812 = vmul.f32 %v2792, %v2808
        %v2813 = vsel %vm2385, 1, 0
        %v2814 = vsel %vm2386, 1, 0
        %v2815 = vsel %vm2387, 1, 0
        %v2816 = vsel %vm2388, 1, 0
        %vm2817 = vcmp.eq.s32.totalorder %v2813, 1
        %vm2818 = vcmp.eq.s32.totalorder %v2814, 1
        %vm2819 = vcmp.eq.s32.totalorder %v2815, 1
        %vm2820 = vcmp.eq.s32.totalorder %v2816, 1
        %v2821 = vsel %vm2817, 0.0, %v2809
        %v2822 = vsel %vm2818, 0.0, %v2810
        %v2823 = vsel %vm2819, 0.0, %v2811
        %v2824 = vsel %vm2820, 0.0, %v2812
        %vm2825 = vcmask 64512
        %v2827 = vsel %vm2825, %v2821, 0
        %2829 = vmatprep.subr.mxu0 0.0
        %2830 = vmatpush1.msra.mxu0 %v2253
        %2831 = vmatprep.subr.mxu0 0.0
        %2832 = vmatpush1.msra.mxu0 0.0
        %2833 = vmatprep.subr.mxu0 0.0
        %2834 = vmatpush1.msra.mxu0 0.0
        %2835 = vmatprep.subr.mxu0 0.0
        %2836 = vmatpush1.msra.mxu0 0.0
        %2837 = vmatprep.subr.mxu0 0.0
        %2838 = vmatpush1.msra.mxu0 0.0
        %2839 = vmatprep.subr.mxu0 0.0
        %2840 = vmatpush1.msra.mxu0 0.0
        %2841 = vmatprep.subr.mxu0 0.0
        %2842 = vmatpush1.msra.mxu0 0.0
        %2843 = vmatprep.subr.mxu0 0.0
        %2844 = vmatpush1.msra.mxu0 0.0
        %2845 = vmatprep.subr.mxu0 0.0
        %2846 = vmatpush1.msra.mxu0 0.0
        %2847 = vmatprep.subr.mxu0 0.0
        %2848 = vmatpush1.msra.mxu0 0.0
        %2849 = vmatprep.subr.mxu0 0.0
        %2850 = vmatpush1.msra.mxu0 0.0
        %2851 = vmatprep.subr.mxu0 0.0
        %2852 = vmatpush1.msra.mxu0 0.0
        %2853 = vmatprep.subr.mxu0 0.0
        %2854 = vmatpush1.msra.mxu0 0.0
        %2855 = vmatprep.subr.mxu0 0.0
        %2856 = vmatpush1.msra.mxu0 0.0
        %2857 = vmatprep.subr.mxu0 0.0
        %2858 = vmatpush1.msra.mxu0 0.0
        %2859 = vmatprep.subr.mxu0 0.0
        %2860 = vmatpush1.msra.mxu0 0.0
        %2861 = vmatprep.subr.mxu0 0.0
        %2862 = vmatpush1.msra.mxu0 0.0
        %2863 = vmatprep.subr.mxu0 0.0
        %2864 = vmatpush1.msra.mxu0 0.0
        %2865 = vmatprep.subr.mxu0 0.0
        %2866 = vmatpush1.msra.mxu0 0.0
        %2867 = vmatprep.subr.mxu0 0.0
        %2868 = vmatpush1.msra.mxu0 0.0
        %2869 = vmatprep.subr.mxu0 0.0
        %2870 = vmatpush1.msra.mxu0 0.0
        %2871 = vmatprep.subr.mxu0 0.0
        %2872 = vmatpush1.msra.mxu0 0.0
        %2873 = vmatprep.subr.mxu0 0.0
        %2874 = vmatpush1.msra.mxu0 0.0
        %2875 = vmatprep.subr.mxu0 0.0
        %2876 = vmatpush1.msra.mxu0 0.0
        %2877 = vmatprep.subr.mxu0 0.0
        %2878 = vmatpush1.msra.mxu0 0.0
        %2879 = vmatprep.subr.mxu0 0.0
        %2880 = vmatpush1.msra.mxu0 0.0
        %2881 = vmatprep.subr.mxu0 0.0
        %2882 = vmatpush1.msra.mxu0 0.0
        %2883 = vmatprep.subr.mxu0 0.0
        %2884 = vmatpush1.msra.mxu0 0.0
        %2885 = vmatprep.subr.mxu0 0.0
        %2886 = vmatpush1.msra.mxu0 0.0
        %2887 = vmatprep.subr.mxu0 0.0
        %2888 = vmatpush1.msra.mxu0 0.0
        %2889 = vmatprep.subr.mxu0 0.0
        %2890 = vmatpush1.msra.mxu0 0.0
        %2891 = vmatprep.subr.mxu0 0.0
        %2892 = vmatpush1.msra.mxu0 0.0
        %2893 = vmatprep.mubr.f32.mxu0 0.0
        %2894 = vmatmul.mubr.f32.gmra.mrb[0].mxu0 %v2827
        %v2895 = vpop.f32.mrb[0].mxu0
        %v2896 = vadd.f32 0.0, %v2895
        %v2897 = vpop.f32.mrb[0].mxu0
        %2898 = vdwg.mxu0
        %v2900 = vsel %vm2825, %v2822, 0
        %2902 = vmatprep.subr.mxu0 0.0
        %2903 = vmatpush1.msra.mxu0 %v2259
        %2904 = vmatprep.subr.mxu0 0.0
        %2905 = vmatpush1.msra.mxu0 0.0
        %2906 = vmatprep.subr.mxu0 0.0
        %2907 = vmatpush1.msra.mxu0 0.0
        %2908 = vmatprep.subr.mxu0 0.0
        %2909 = vmatpush1.msra.mxu0 0.0
        %2910 = vmatprep.subr.mxu0 0.0
        %2911 = vmatpush1.msra.mxu0 0.0
        %2912 = vmatprep.subr.mxu0 0.0
        %2913 = vmatpush1.msra.mxu0 0.0
        %2914 = vmatprep.subr.mxu0 0.0
        %2915 = vmatpush1.msra.mxu0 0.0
        %2916 = vmatprep.subr.mxu0 0.0
        %2917 = vmatpush1.msra.mxu0 0.0
        %2918 = vmatprep.subr.mxu0 0.0
        %2919 = vmatpush1.msra.mxu0 0.0
        %2920 = vmatprep.subr.mxu0 0.0
        %2921 = vmatpush1.msra.mxu0 0.0
        %2922 = vmatprep.subr.mxu0 0.0
        %2923 = vmatpush1.msra.mxu0 0.0
        %2924 = vmatprep.subr.mxu0 0.0
        %2925 = vmatpush1.msra.mxu0 0.0
        %2926 = vmatprep.subr.mxu0 0.0
        %2927 = vmatpush1.msra.mxu0 0.0
        %2928 = vmatprep.subr.mxu0 0.0
        %2929 = vmatpush1.msra.mxu0 0.0
        %2930 = vmatprep.subr.mxu0 0.0
        %2931 = vmatpush1.msra.mxu0 0.0
        %2932 = vmatprep.subr.mxu0 0.0
        %2933 = vmatpush1.msra.mxu0 0.0
        %2934 = vmatprep.subr.mxu0 0.0
        %2935 = vmatpush1.msra.mxu0 0.0
        %2936 = vmatprep.subr.mxu0 0.0
        %2937 = vmatpush1.msra.mxu0 0.0
        %2938 = vmatprep.subr.mxu0 0.0
        %2939 = vmatpush1.msra.mxu0 0.0
        %2940 = vmatprep.subr.mxu0 0.0
        %2941 = vmatpush1.msra.mxu0 0.0
        %2942 = vmatprep.subr.mxu0 0.0
        %2943 = vmatpush1.msra.mxu0 0.0
        %2944 = vmatprep.subr.mxu0 0.0
        %2945 = vmatpush1.msra.mxu0 0.0
        %2946 = vmatprep.subr.mxu0 0.0
        %2947 = vmatpush1.msra.mxu0 0.0
        %2948 = vmatprep.subr.mxu0 0.0
        %2949 = vmatpush1.msra.mxu0 0.0
        %2950 = vmatprep.subr.mxu0 0.0
        %2951 = vmatpush1.msra.mxu0 0.0
        %2952 = vmatprep.subr.mxu0 0.0
        %2953 = vmatpush1.msra.mxu0 0.0
        %2954 = vmatprep.subr.mxu0 0.0
        %2955 = vmatpush1.msra.mxu0 0.0
        %2956 = vmatprep.subr.mxu0 0.0
        %2957 = vmatpush1.msra.mxu0 0.0
        %2958 = vmatprep.subr.mxu0 0.0
        %2959 = vmatpush1.msra.mxu0 0.0
        %2960 = vmatprep.subr.mxu0 0.0
        %2961 = vmatpush1.msra.mxu0 0.0
        %2962 = vmatprep.subr.mxu0 0.0
        %2963 = vmatpush1.msra.mxu0 0.0
        %2964 = vmatprep.subr.mxu0 0.0
        %2965 = vmatpush1.msra.mxu0 0.0
        %2966 = vmatprep.mubr.f32.mxu0 0.0
        %2967 = vmatmul.mubr.f32.gmra.mrb[0].mxu0 %v2900
        %v2968 = vpop.f32.mrb[0].mxu0
        %v2969 = vadd.f32 0.0, %v2968
        %v2970 = vpop.f32.mrb[0].mxu0
        %2971 = vdwg.mxu0
        %v2973 = vsel %vm2825, %v2823, 0
        %2975 = vmatprep.subr.mxu0 0.0
        %2976 = vmatpush1.msra.mxu0 %v2265
        %2977 = vmatprep.subr.mxu0 0.0
        %2978 = vmatpush1.msra.mxu0 0.0
        %2979 = vmatprep.subr.mxu0 0.0
        %2980 = vmatpush1.msra.mxu0 0.0
        %2981 = vmatprep.subr.mxu0 0.0
        %2982 = vmatpush1.msra.mxu0 0.0
        %2983 = vmatprep.subr.mxu0 0.0
        %2984 = vmatpush1.msra.mxu0 0.0
        %2985 = vmatprep.subr.mxu0 0.0
        %2986 = vmatpush1.msra.mxu0 0.0
        %2987 = vmatprep.subr.mxu0 0.0
        %2988 = vmatpush1.msra.mxu0 0.0
        %2989 = vmatprep.subr.mxu0 0.0
        %2990 = vmatpush1.msra.mxu0 0.0
        %2991 = vmatprep.subr.mxu0 0.0
        %2992 = vmatpush1.msra.mxu0 0.0
        %2993 = vmatprep.subr.mxu0 0.0
        %2994 = vmatpush1.msra.mxu0 0.0
        %2995 = vmatprep.subr.mxu0 0.0
        %2996 = vmatpush1.msra.mxu0 0.0
        %2997 = vmatprep.subr.mxu0 0.0
        %2998 = vmatpush1.msra.mxu0 0.0
        %2999 = vmatprep.subr.mxu0 0.0
        %3000 = vmatpush1.msra.mxu0 0.0
        %3001 = vmatprep.subr.mxu0 0.0
        %3002 = vmatpush1.msra.mxu0 0.0
        %3003 = vmatprep.subr.mxu0 0.0
        %3004 = vmatpush1.msra.mxu0 0.0
        %3005 = vmatprep.subr.mxu0 0.0
        %3006 = vmatpush1.msra.mxu0 0.0
        %3007 = vmatprep.subr.mxu0 0.0
        %3008 = vmatpush1.msra.mxu0 0.0
        %3009 = vmatprep.subr.mxu0 0.0
        %3010 = vmatpush1.msra.mxu0 0.0
        %3011 = vmatprep.subr.mxu0 0.0
        %3012 = vmatpush1.msra.mxu0 0.0
        %3013 = vmatprep.subr.mxu0 0.0
        %3014 = vmatpush1.msra.mxu0 0.0
        %3015 = vmatprep.subr.mxu0 0.0
        %3016 = vmatpush1.msra.mxu0 0.0
        %3017 = vmatprep.subr.mxu0 0.0
        %3018 = vmatpush1.msra.mxu0 0.0
        %3019 = vmatprep.subr.mxu0 0.0
        %3020 = vmatpush1.msra.mxu0 0.0
        %3021 = vmatprep.subr.mxu0 0.0
        %3022 = vmatpush1.msra.mxu0 0.0
        %3023 = vmatprep.subr.mxu0 0.0
        %3024 = vmatpush1.msra.mxu0 0.0
        %3025 = vmatprep.subr.mxu0 0.0
        %3026 = vmatpush1.msra.mxu0 0.0
        %3027 = vmatprep.subr.mxu0 0.0
        %3028 = vmatpush1.msra.mxu0 0.0
        %3029 = vmatprep.subr.mxu0 0.0
        %3030 = vmatpush1.msra.mxu0 0.0
        %3031 = vmatprep.subr.mxu0 0.0
        %3032 = vmatpush1.msra.mxu0 0.0
        %3033 = vmatprep.subr.mxu0 0.0
        %3034 = vmatpush1.msra.mxu0 0.0
        %3035 = vmatprep.subr.mxu0 0.0
        %3036 = vmatpush1.msra.mxu0 0.0
        %3037 = vmatprep.subr.mxu0 0.0
        %3038 = vmatpush1.msra.mxu0 0.0
        %3039 = vmatprep.mubr.f32.mxu0 0.0
        %3040 = vmatmul.mubr.f32.gmra.mrb[0].mxu0 %v2973
        %v3041 = vpop.f32.mrb[0].mxu0
        %v3042 = vadd.f32 0.0, %v3041
        %v3043 = vpop.f32.mrb[0].mxu0
        %3044 = vdwg.mxu0
        %v3046 = vsel %vm2825, %v2824, 0
        %3048 = vmatprep.subr.mxu0 0.0
        %3049 = vmatpush1.msra.mxu0 %v2271
        %3050 = vmatprep.subr.mxu0 0.0
        %3051 = vmatpush1.msra.mxu0 0.0
        %3052 = vmatprep.subr.mxu0 0.0
        %3053 = vmatpush1.msra.mxu0 0.0
        %3054 = vmatprep.subr.mxu0 0.0
        %3055 = vmatpush1.msra.mxu0 0.0
        %3056 = vmatprep.subr.mxu0 0.0
        %3057 = vmatpush1.msra.mxu0 0.0
        %3058 = vmatprep.subr.mxu0 0.0
        %3059 = vmatpush1.msra.mxu0 0.0
        %3060 = vmatprep.subr.mxu0 0.0
        %3061 = vmatpush1.msra.mxu0 0.0
        %3062 = vmatprep.subr.mxu0 0.0
        %3063 = vmatpush1.msra.mxu0 0.0
        %3064 = vmatprep.subr.mxu0 0.0
        %3065 = vmatpush1.msra.mxu0 0.0
        %3066 = vmatprep.subr.mxu0 0.0
        %3067 = vmatpush1.msra.mxu0 0.0
        %3068 = vmatprep.subr.mxu0 0.0
        %3069 = vmatpush1.msra.mxu0 0.0
        %3070 = vmatprep.subr.mxu0 0.0
        %3071 = vmatpush1.msra.mxu0 0.0
        %3072 = vmatprep.subr.mxu0 0.0
        %3073 = vmatpush1.msra.mxu0 0.0
        %3074 = vmatprep.subr.mxu0 0.0
        %3075 = vmatpush1.msra.mxu0 0.0
        %3076 = vmatprep.subr.mxu0 0.0
        %3077 = vmatpush1.msra.mxu0 0.0
        %3078 = vmatprep.subr.mxu0 0.0
        %3079 = vmatpush1.msra.mxu0 0.0
        %3080 = vmatprep.subr.mxu0 0.0
        %3081 = vmatpush1.msra.mxu0 0.0
        %3082 = vmatprep.subr.mxu0 0.0
        %3083 = vmatpush1.msra.mxu0 0.0
        %3084 = vmatprep.subr.mxu0 0.0
        %3085 = vmatpush1.msra.mxu0 0.0
        %3086 = vmatprep.subr.mxu0 0.0
        %3087 = vmatpush1.msra.mxu0 0.0
        %3088 = vmatprep.subr.mxu0 0.0
        %3089 = vmatpush1.msra.mxu0 0.0
        %3090 = vmatprep.subr.mxu0 0.0
        %3091 = vmatpush1.msra.mxu0 0.0
        %3092 = vmatprep.subr.mxu0 0.0
        %3093 = vmatpush1.msra.mxu0 0.0
        %3094 = vmatprep.subr.mxu0 0.0
        %3095 = vmatpush1.msra.mxu0 0.0
        %3096 = vmatprep.subr.mxu0 0.0
        %3097 = vmatpush1.msra.mxu0 0.0
        %3098 = vmatprep.subr.mxu0 0.0
        %3099 = vmatpush1.msra.mxu0 0.0
        %3100 = vmatprep.subr.mxu0 0.0
        %3101 = vmatpush1.msra.mxu0 0.0
        %3102 = vmatprep.subr.mxu0 0.0
        %3103 = vmatpush1.msra.mxu0 0.0
        %3104 = vmatprep.subr.mxu0 0.0
        %3105 = vmatpush1.msra.mxu0 0.0
        %3106 = vmatprep.subr.mxu0 0.0
        %3107 = vmatpush1.msra.mxu0 0.0
        %3108 = vmatprep.subr.mxu0 0.0
        %3109 = vmatpush1.msra.mxu0 0.0
        %3110 = vmatprep.subr.mxu0 0.0
        %3111 = vmatpush1.msra.mxu0 0.0
        %3112 = vmatprep.mubr.f32.mxu0 0.0
        %3113 = vmatmul.mubr.f32.gmra.mrb[0].mxu0 %v3046
        %v3114 = vpop.f32.mrb[0].mxu0
        %v3115 = vadd.f32 0.0, %v3114
        %v3116 = vpop.f32.mrb[0].mxu0
        %3117 = vdwg.mxu0
        %v3118 = vrot.slane %v1820, 1
        %v3119 = vrot.slane %v1834, 1
        %v3120 = vrot.slane %v1842, 1
        %v3121 = vcombine.low %v3118, %v3119
        %v3123 = vunpack.c.l.s4 1966171168
        %v3124 = vunpack.c.0.s8 %v3123
        %v3125 = vlaneseq
        %v3126 = vshrl.u32 %v3125, 7
        %v3127 = vsub.s32 %v3124, %v3126
        %v3128 = vrot.slane %v3121, %v3127
        %v3130 = vunpack.c.l.s4 1966171168
        %v3131 = vunpack.c.0.s8 %v3130
        %v3132 = vlaneseq
        %v3133 = vshrl.u32 %v3132, 7
        %v3134 = vsub.s32 %v3131, %v3133
        %v3135 = vrot.slane %v3120, %v3134
        %v3136 = vcombine.low %v3128, %v3135
        %v3138 = vunpack.c.l.s4 1966171168
        %v3139 = vunpack.c.0.s8 %v3138
        %v3140 = vlaneseq
        %v3141 = vshrl.u32 %v3140, 7
        %v3142 = vsub.s32 %v3139, %v3141
        %v3143 = vrot.slane %v3136, %v3142
        %3145 = vmatprep.subr.mxu0 0.0
        %3146 = vmatpush1.xpose.msra.mxu0 %v2013
        %3147 = vmatprep.subr.mxu0 0.0
        %3148 = vmatpush1.xpose.msra.mxu0 0.0
        %3149 = vmatprep.subr.mxu0 0.0
        %3150 = vmatpush1.xpose.msra.mxu0 0.0
        %3151 = vmatprep.subr.mxu0 0.0
        %3152 = vmatpush1.xpose.msra.mxu0 0.0
        %3153 = vmatprep.subr.mxu0 0.0
        %3154 = vmatpush1.xpose.msra.mxu0 0.0
        %3155 = vmatprep.subr.mxu0 0.0
        %3156 = vmatpush1.xpose.msra.mxu0 0.0
        %3157 = vmatprep.subr.mxu0 0.0
        %3158 = vmatpush1.xpose.msra.mxu0 0.0
        %3159 = vmatprep.subr.mxu0 0.0
        %3160 = vmatpush1.xpose.msra.mxu0 0.0
        %3161 = vmatprep.subr.mxu0 0.0
        %3162 = vmatpush1.xpose.msra.mxu0 0.0
        %3163 = vmatprep.subr.mxu0 0.0
        %3164 = vmatpush1.xpose.msra.mxu0 0.0
        %3165 = vmatprep.subr.mxu0 0.0
        %3166 = vmatpush1.xpose.msra.mxu0 0.0
        %3167 = vmatprep.subr.mxu0 0.0
        %3168 = vmatpush1.xpose.msra.mxu0 0.0
        %3169 = vmatprep.subr.mxu0 0.0
        %3170 = vmatpush1.xpose.msra.mxu0 0.0
        %3171 = vmatprep.subr.mxu0 0.0
        %3172 = vmatpush1.xpose.msra.mxu0 0.0
        %3173 = vmatprep.subr.mxu0 0.0
        %3174 = vmatpush1.xpose.msra.mxu0 0.0
        %3175 = vmatprep.subr.mxu0 0.0
        %3176 = vmatpush1.xpose.msra.mxu0 0.0
        %3177 = vmatprep.subr.mxu0 0.0
        %3178 = vmatpush1.xpose.msra.mxu0 0.0
        %3179 = vmatprep.subr.mxu0 0.0
        %3180 = vmatpush1.xpose.msra.mxu0 0.0
        %3181 = vmatprep.subr.mxu0 0.0
        %3182 = vmatpush1.xpose.msra.mxu0 0.0
        %3183 = vmatprep.subr.mxu0 0.0
        %3184 = vmatpush1.xpose.msra.mxu0 0.0
        %3185 = vmatprep.subr.mxu0 0.0
        %3186 = vmatpush1.xpose.msra.mxu0 0.0
        %3187 = vmatprep.subr.mxu0 0.0
        %3188 = vmatpush1.xpose.msra.mxu0 0.0
        %3189 = vmatprep.subr.mxu0 0.0
        %3190 = vmatpush1.xpose.msra.mxu0 0.0
        %3191 = vmatprep.subr.mxu0 0.0
        %3192 = vmatpush1.xpose.msra.mxu0 0.0
        %3193 = vmatprep.subr.mxu0 0.0
        %3194 = vmatpush1.xpose.msra.mxu0 0.0
        %3195 = vmatprep.subr.mxu0 0.0
        %3196 = vmatpush1.xpose.msra.mxu0 0.0
        %3197 = vmatprep.subr.mxu0 0.0
        %3198 = vmatpush1.xpose.msra.mxu0 0.0
        %3199 = vmatprep.subr.mxu0 0.0
        %3200 = vmatpush1.xpose.msra.mxu0 0.0
        %3201 = vmatprep.subr.mxu0 0.0
        %3202 = vmatpush1.xpose.msra.mxu0 0.0
        %3203 = vmatprep.subr.mxu0 0.0
        %3204 = vmatpush1.xpose.msra.mxu0 0.0
        %3205 = vmatprep.subr.mxu0 0.0
        %3206 = vmatpush1.xpose.msra.mxu0 0.0
        %3207 = vmatprep.subr.mxu0 0.0
        %3208 = vmatpush1.xpose.msra.mxu0 0.0
        %3209 = vmatprep.mubr.f32.mxu0 0.0
        %3210 = vmatmul.mubr.f32.gmra.mrb[0].mxu0 %v3143
        %v3211 = vpop.f32.mrb[0].mxu0
        %v3212 = vadd.f32 0.0, %v3211
        %v3213 = vpop.f32.mrb[0].mxu0
        %3214 = vdwg.mxu0
        %v3215 = vrot.slane %v1844, 1
        %v3216 = vrot.slane %v1827, 1
        %v3217 = vrot.slane %v1841, 1
        %v3218 = vcombine.low %v3215, %v3216
        %v3220 = vunpack.c.l.s4 1966171168
        %v3221 = vunpack.c.0.s8 %v3220
        %v3222 = vlaneseq
        %v3223 = vshrl.u32 %v3222, 7
        %v3224 = vsub.s32 %v3221, %v3223
        %v3225 = vrot.slane %v3218, %v3224
        %v3227 = vunpack.c.l.s4 1966171168
        %v3228 = vunpack.c.0.s8 %v3227
        %v3229 = vlaneseq
        %v3230 = vshrl.u32 %v3229, 7
        %v3231 = vsub.s32 %v3228, %v3230
        %v3232 = vrot.slane %v3217, %v3231
        %v3233 = vcombine.low %v3225, %v3232
        %v3235 = vunpack.c.l.s4 1966171168
        %v3236 = vunpack.c.0.s8 %v3235
        %v3237 = vlaneseq
        %v3238 = vshrl.u32 %v3237, 7
        %v3239 = vsub.s32 %v3236, %v3238
        %v3240 = vrot.slane %v3233, %v3239
        %3242 = vmatprep.subr.mxu0 0.0
        %3243 = vmatpush1.xpose.msra.mxu0 %v2019
        %3244 = vmatprep.subr.mxu0 0.0
        %3245 = vmatpush1.xpose.msra.mxu0 0.0
        %3246 = vmatprep.subr.mxu0 0.0
        %3247 = vmatpush1.xpose.msra.mxu0 0.0
        %3248 = vmatprep.subr.mxu0 0.0
        %3249 = vmatpush1.xpose.msra.mxu0 0.0
        %3250 = vmatprep.subr.mxu0 0.0
        %3251 = vmatpush1.xpose.msra.mxu0 0.0
        %3252 = vmatprep.subr.mxu0 0.0
        %3253 = vmatpush1.xpose.msra.mxu0 0.0
        %3254 = vmatprep.subr.mxu0 0.0
        %3255 = vmatpush1.xpose.msra.mxu0 0.0
        %3256 = vmatprep.subr.mxu0 0.0
        %3257 = vmatpush1.xpose.msra.mxu0 0.0
        %3258 = vmatprep.subr.mxu0 0.0
        %3259 = vmatpush1.xpose.msra.mxu0 0.0
        %3260 = vmatprep.subr.mxu0 0.0
        %3261 = vmatpush1.xpose.msra.mxu0 0.0
        %3262 = vmatprep.subr.mxu0 0.0
        %3263 = vmatpush1.xpose.msra.mxu0 0.0
        %3264 = vmatprep.subr.mxu0 0.0
        %3265 = vmatpush1.xpose.msra.mxu0 0.0
        %3266 = vmatprep.subr.mxu0 0.0
        %3267 = vmatpush1.xpose.msra.mxu0 0.0
        %3268 = vmatprep.subr.mxu0 0.0
        %3269 = vmatpush1.xpose.msra.mxu0 0.0
        %3270 = vmatprep.subr.mxu0 0.0
        %3271 = vmatpush1.xpose.msra.mxu0 0.0
        %3272 = vmatprep.subr.mxu0 0.0
        %3273 = vmatpush1.xpose.msra.mxu0 0.0
        %3274 = vmatprep.subr.mxu0 0.0
        %3275 = vmatpush1.xpose.msra.mxu0 0.0
        %3276 = vmatprep.subr.mxu0 0.0
        %3277 = vmatpush1.xpose.msra.mxu0 0.0
        %3278 = vmatprep.subr.mxu0 0.0
        %3279 = vmatpush1.xpose.msra.mxu0 0.0
        %3280 = vmatprep.subr.mxu0 0.0
        %3281 = vmatpush1.xpose.msra.mxu0 0.0
        %3282 = vmatprep.subr.mxu0 0.0
        %3283 = vmatpush1.xpose.msra.mxu0 0.0
        %3284 = vmatprep.subr.mxu0 0.0
        %3285 = vmatpush1.xpose.msra.mxu0 0.0
        %3286 = vmatprep.subr.mxu0 0.0
        %3287 = vmatpush1.xpose.msra.mxu0 0.0
        %3288 = vmatprep.subr.mxu0 0.0
        %3289 = vmatpush1.xpose.msra.mxu0 0.0
        %3290 = vmatprep.subr.mxu0 0.0
        %3291 = vmatpush1.xpose.msra.mxu0 0.0
        %3292 = vmatprep.subr.mxu0 0.0
        %3293 = vmatpush1.xpose.msra.mxu0 0.0
        %3294 = vmatprep.subr.mxu0 0.0
        %3295 = vmatpush1.xpose.msra.mxu0 0.0
        %3296 = vmatprep.subr.mxu0 0.0
        %3297 = vmatpush1.xpose.msra.mxu0 0.0
        %3298 = vmatprep.subr.mxu0 0.0
        %3299 = vmatpush1.xpose.msra.mxu0 0.0
        %3300 = vmatprep.subr.mxu0 0.0
        %3301 = vmatpush1.xpose.msra.mxu0 0.0
        %3302 = vmatprep.subr.mxu0 0.0
        %3303 = vmatpush1.xpose.msra.mxu0 0.0
        %3304 = vmatprep.subr.mxu0 0.0
        %3305 = vmatpush1.xpose.msra.mxu0 0.0
        %3306 = vmatprep.mubr.f32.mxu0 0.0
        %3307 = vmatmul.mubr.f32.gmra.mrb[0].mxu0 %v3240
        %v3308 = vpop.f32.mrb[0].mxu0
        %v3309 = vadd.f32 0.0, %v3308
        %v3310 = vpop.f32.mrb[0].mxu0
        %3311 = vdwg.mxu0
        %v3312 = vrot.slane %v1843, 1
        %v3313 = vrot.slane %v1845, 1
        %v3314 = vrot.slane %v1870, 1
        %v3315 = vcombine.low %v3312, %v3313
        %v3317 = vunpack.c.l.s4 1966171168
        %v3318 = vunpack.c.0.s8 %v3317
        %v3319 = vlaneseq
        %v3320 = vshrl.u32 %v3319, 7
        %v3321 = vsub.s32 %v3318, %v3320
        %v3322 = vrot.slane %v3315, %v3321
        %v3324 = vunpack.c.l.s4 1966171168
        %v3325 = vunpack.c.0.s8 %v3324
        %v3326 = vlaneseq
        %v3327 = vshrl.u32 %v3326, 7
        %v3328 = vsub.s32 %v3325, %v3327
        %v3329 = vrot.slane %v3314, %v3328
        %v3330 = vcombine.low %v3322, %v3329
        %v3332 = vunpack.c.l.s4 1966171168
        %v3333 = vunpack.c.0.s8 %v3332
        %v3334 = vlaneseq
        %v3335 = vshrl.u32 %v3334, 7
        %v3336 = vsub.s32 %v3333, %v3335
        %v3337 = vrot.slane %v3330, %v3336
        %3339 = vmatprep.subr.mxu0 0.0
        %3340 = vmatpush1.xpose.msra.mxu0 %v2025
        %3341 = vmatprep.subr.mxu0 0.0
        %3342 = vmatpush1.xpose.msra.mxu0 0.0
        %3343 = vmatprep.subr.mxu0 0.0
        %3344 = vmatpush1.xpose.msra.mxu0 0.0
        %3345 = vmatprep.subr.mxu0 0.0
        %3346 = vmatpush1.xpose.msra.mxu0 0.0
        %3347 = vmatprep.subr.mxu0 0.0
        %3348 = vmatpush1.xpose.msra.mxu0 0.0
        %3349 = vmatprep.subr.mxu0 0.0
        %3350 = vmatpush1.xpose.msra.mxu0 0.0
        %3351 = vmatprep.subr.mxu0 0.0
        %3352 = vmatpush1.xpose.msra.mxu0 0.0
        %3353 = vmatprep.subr.mxu0 0.0
        %3354 = vmatpush1.xpose.msra.mxu0 0.0
        %3355 = vmatprep.subr.mxu0 0.0
        %3356 = vmatpush1.xpose.msra.mxu0 0.0
        %3357 = vmatprep.subr.mxu0 0.0
        %3358 = vmatpush1.xpose.msra.mxu0 0.0
        %3359 = vmatprep.subr.mxu0 0.0
        %3360 = vmatpush1.xpose.msra.mxu0 0.0
        %3361 = vmatprep.subr.mxu0 0.0
        %3362 = vmatpush1.xpose.msra.mxu0 0.0
        %3363 = vmatprep.subr.mxu0 0.0
        %3364 = vmatpush1.xpose.msra.mxu0 0.0
        %3365 = vmatprep.subr.mxu0 0.0
        %3366 = vmatpush1.xpose.msra.mxu0 0.0
        %3367 = vmatprep.subr.mxu0 0.0
        %3368 = vmatpush1.xpose.msra.mxu0 0.0
        %3369 = vmatprep.subr.mxu0 0.0
        %3370 = vmatpush1.xpose.msra.mxu0 0.0
        %3371 = vmatprep.subr.mxu0 0.0
        %3372 = vmatpush1.xpose.msra.mxu0 0.0
        %3373 = vmatprep.subr.mxu0 0.0
        %3374 = vmatpush1.xpose.msra.mxu0 0.0
        %3375 = vmatprep.subr.mxu0 0.0
        %3376 = vmatpush1.xpose.msra.mxu0 0.0
        %3377 = vmatprep.subr.mxu0 0.0
        %3378 = vmatpush1.xpose.msra.mxu0 0.0
        %3379 = vmatprep.subr.mxu0 0.0
        %3380 = vmatpush1.xpose.msra.mxu0 0.0
        %3381 = vmatprep.subr.mxu0 0.0
        %3382 = vmatpush1.xpose.msra.mxu0 0.0
        %3383 = vmatprep.subr.mxu0 0.0
        %3384 = vmatpush1.xpose.msra.mxu0 0.0
        %3385 = vmatprep.subr.mxu0 0.0
        %3386 = vmatpush1.xpose.msra.mxu0 0.0
        %3387 = vmatprep.subr.mxu0 0.0
        %3388 = vmatpush1.xpose.msra.mxu0 0.0
        %3389 = vmatprep.subr.mxu0 0.0
        %3390 = vmatpush1.xpose.msra.mxu0 0.0
        %3391 = vmatprep.subr.mxu0 0.0
        %3392 = vmatpush1.xpose.msra.mxu0 0.0
        %3393 = vmatprep.subr.mxu0 0.0
        %3394 = vmatpush1.xpose.msra.mxu0 0.0
        %3395 = vmatprep.subr.mxu0 0.0
        %3396 = vmatpush1.xpose.msra.mxu0 0.0
        %3397 = vmatprep.subr.mxu0 0.0
        %3398 = vmatpush1.xpose.msra.mxu0 0.0
        %3399 = vmatprep.subr.mxu0 0.0
        %3400 = vmatpush1.xpose.msra.mxu0 0.0
        %3401 = vmatprep.subr.mxu0 0.0
        %3402 = vmatpush1.xpose.msra.mxu0 0.0
        %3403 = vmatprep.mubr.f32.mxu0 0.0
        %3404 = vmatmul.mubr.f32.gmra.mrb[0].mxu0 %v3337
        %v3405 = vpop.f32.mrb[0].mxu0
        %v3406 = vadd.f32 0.0, %v3405
        %v3407 = vpop.f32.mrb[0].mxu0
        %3408 = vdwg.mxu0
        %v3409 = vrot.slane %v1877, 1
        %v3410 = vrot.slane %v1878, 1
        %v3411 = vrot.slane %v1879, 1
        %v3412 = vcombine.low %v3409, %v3410
        %v3414 = vunpack.c.l.s4 1966171168
        %v3415 = vunpack.c.0.s8 %v3414
        %v3416 = vlaneseq
        %v3417 = vshrl.u32 %v3416, 7
        %v3418 = vsub.s32 %v3415, %v3417
        %v3419 = vrot.slane %v3412, %v3418
        %v3421 = vunpack.c.l.s4 1966171168
        %v3422 = vunpack.c.0.s8 %v3421
        %v3423 = vlaneseq
        %v3424 = vshrl.u32 %v3423, 7
        %v3425 = vsub.s32 %v3422, %v3424
        %v3426 = vrot.slane %v3411, %v3425
        %v3427 = vcombine.low %v3419, %v3426
        %v3429 = vunpack.c.l.s4 1966171168
        %v3430 = vunpack.c.0.s8 %v3429
        %v3431 = vlaneseq
        %v3432 = vshrl.u32 %v3431, 7
        %v3433 = vsub.s32 %v3430, %v3432
        %v3434 = vrot.slane %v3427, %v3433
        %3436 = vmatprep.subr.mxu0 0.0
        %3437 = vmatpush1.xpose.msra.mxu0 %v2031
        %3438 = vmatprep.subr.mxu0 0.0
        %3439 = vmatpush1.xpose.msra.mxu0 0.0
        %3440 = vmatprep.subr.mxu0 0.0
        %3441 = vmatpush1.xpose.msra.mxu0 0.0
        %3442 = vmatprep.subr.mxu0 0.0
        %3443 = vmatpush1.xpose.msra.mxu0 0.0
        %3444 = vmatprep.subr.mxu0 0.0
        %3445 = vmatpush1.xpose.msra.mxu0 0.0
        %3446 = vmatprep.subr.mxu0 0.0
        %3447 = vmatpush1.xpose.msra.mxu0 0.0
        %3448 = vmatprep.subr.mxu0 0.0
        %3449 = vmatpush1.xpose.msra.mxu0 0.0
        %3450 = vmatprep.subr.mxu0 0.0
        %3451 = vmatpush1.xpose.msra.mxu0 0.0
        %3452 = vmatprep.subr.mxu0 0.0
        %3453 = vmatpush1.xpose.msra.mxu0 0.0
        %3454 = vmatprep.subr.mxu0 0.0
        %3455 = vmatpush1.xpose.msra.mxu0 0.0
        %3456 = vmatprep.subr.mxu0 0.0
        %3457 = vmatpush1.xpose.msra.mxu0 0.0
        %3458 = vmatprep.subr.mxu0 0.0
        %3459 = vmatpush1.xpose.msra.mxu0 0.0
        %3460 = vmatprep.subr.mxu0 0.0
        %3461 = vmatpush1.xpose.msra.mxu0 0.0
        %3462 = vmatprep.subr.mxu0 0.0
        %3463 = vmatpush1.xpose.msra.mxu0 0.0
        %3464 = vmatprep.subr.mxu0 0.0
        %3465 = vmatpush1.xpose.msra.mxu0 0.0
        %3466 = vmatprep.subr.mxu0 0.0
        %3467 = vmatpush1.xpose.msra.mxu0 0.0
        %3468 = vmatprep.subr.mxu0 0.0
        %3469 = vmatpush1.xpose.msra.mxu0 0.0
        %3470 = vmatprep.subr.mxu0 0.0
        %3471 = vmatpush1.xpose.msra.mxu0 0.0
        %3472 = vmatprep.subr.mxu0 0.0
        %3473 = vmatpush1.xpose.msra.mxu0 0.0
        %3474 = vmatprep.subr.mxu0 0.0
        %3475 = vmatpush1.xpose.msra.mxu0 0.0
        %3476 = vmatprep.subr.mxu0 0.0
        %3477 = vmatpush1.xpose.msra.mxu0 0.0
        %3478 = vmatprep.subr.mxu0 0.0
        %3479 = vmatpush1.xpose.msra.mxu0 0.0
        %3480 = vmatprep.subr.mxu0 0.0
        %3481 = vmatpush1.xpose.msra.mxu0 0.0
        %3482 = vmatprep.subr.mxu0 0.0
        %3483 = vmatpush1.xpose.msra.mxu0 0.0
        %3484 = vmatprep.subr.mxu0 0.0
        %3485 = vmatpush1.xpose.msra.mxu0 0.0
        %3486 = vmatprep.subr.mxu0 0.0
        %3487 = vmatpush1.xpose.msra.mxu0 0.0
        %3488 = vmatprep.subr.mxu0 0.0
        %3489 = vmatpush1.xpose.msra.mxu0 0.0
        %3490 = vmatprep.subr.mxu0 0.0
        %3491 = vmatpush1.xpose.msra.mxu0 0.0
        %3492 = vmatprep.subr.mxu0 0.0
        %3493 = vmatpush1.xpose.msra.mxu0 0.0
        %3494 = vmatprep.subr.mxu0 0.0
        %3495 = vmatpush1.xpose.msra.mxu0 0.0
        %3496 = vmatprep.subr.mxu0 0.0
        %3497 = vmatpush1.xpose.msra.mxu0 0.0
        %3498 = vmatprep.subr.mxu0 0.0
        %3499 = vmatpush1.xpose.msra.mxu0 0.0
        %3500 = vmatprep.mubr.f32.mxu0 0.0
        %3501 = vmatmul.mubr.f32.gmra.mrb[0].mxu0 %v3434
        %v3502 = vpop.f32.mrb[0].mxu0
        %v3503 = vadd.f32 0.0, %v3502
        %v3504 = vpop.f32.mrb[0].mxu0
        %3505 = vdwg.mxu0
        %v3506 = vsel %vm2368, -1e+30, %v3212
        %v3507 = vsel %vm2369, -1e+30, %v3309
        %v3508 = vsel %vm2370, -1e+30, %v3406
        %v3509 = vsel %vm2371, -1e+30, %v3503
        %v3510 = vsel %vm2372, %v3506, -inf
        %3511 = vmax.xlane.f32.xlu0 %v3510
        %v3512 = vpop.xlane.xlu0 %3511
        %v3513 = vsel %vm2372, %v3507, -inf
        %3514 = vmax.xlane.f32.xlu0 %v3513
        %v3515 = vpop.xlane.xlu0 %3514
        %v3516 = vsel %vm2372, %v3508, -inf
        %3517 = vmax.xlane.f32.xlu0 %v3516
        %v3518 = vpop.xlane.xlu0 %3517
        %v3519 = vsel %vm2372, %v3509, -inf
        %3520 = vmax.xlane.f32.xlu0 %v3519
        %v3521 = vpop.xlane.xlu0 %3520
        %v3522 = vsub.f32 %v3506, %v3512
        %v3523 = vsub.f32 %v3507, %v3515
        %v3524 = vsub.f32 %v3508, %v3518
        %v3525 = vsub.f32 %v3509, %v3521
        %v3526 = vmul.f32 %v3522, 1.442695
        %v3527 = vpow.pop %v3526
        %v3528 = vmul.f32 %v3523, 1.442695
        %v3529 = vpow.pop %v3528
        %v3530 = vmul.f32 %v3524, 1.442695
        %v3531 = vpow.pop %v3530
        %v3532 = vmul.f32 %v3525, 1.442695
        %v3533 = vpow.pop %v3532
        %v3534 = vsel %vm2372, %v3527, 0.0
        %3535 = vadd.xlane.f32.xlu0 %v3534
        %v3536 = vpop.xlane.xlu0 %3535
        %v3537 = vsel %vm2372, %v3529, 0.0
        %3538 = vadd.xlane.f32.xlu0 %v3537
        %v3539 = vpop.xlane.xlu0 %3538
        %v3540 = vsel %vm2372, %v3531, 0.0
        %3541 = vadd.xlane.f32.xlu0 %v3540
        %v3542 = vpop.xlane.xlu0 %3541
        %v3543 = vsel %vm2372, %v3533, 0.0
        %3544 = vadd.xlane.f32.xlu0 %v3543
        %v3545 = vpop.xlane.xlu0 %3544
        %v3546 = vrcp.pop %v3536
        %v3547 = vrcp.pop %v3539
        %v3548 = vrcp.pop %v3542
        %v3549 = vrcp.pop %v3545
        %v3550 = vmul.f32 %v3527, %v3546
        %v3551 = vmul.f32 %v3529, %v3547
        %v3552 = vmul.f32 %v3531, %v3548
        %v3553 = vmul.f32 %v3533, %v3549
        %v3554 = vsel %vm2817, 0.0, %v3550
        %v3555 = vsel %vm2818, 0.0, %v3551
        %v3556 = vsel %vm2819, 0.0, %v3552
        %v3557 = vsel %vm2820, 0.0, %v3553
        %v3559 = vsel %vm2825, %v3554, 0
        %3561 = vmatprep.subr.mxu0 0.0
        %3562 = vmatpush1.msra.mxu0 %v2255
        %3563 = vmatprep.subr.mxu0 0.0
        %3564 = vmatpush1.msra.mxu0 0.0
        %3565 = vmatprep.subr.mxu0 0.0
        %3566 = vmatpush1.msra.mxu0 0.0
        %3567 = vmatprep.subr.mxu0 0.0
        %3568 = vmatpush1.msra.mxu0 0.0
        %3569 = vmatprep.subr.mxu0 0.0
        %3570 = vmatpush1.msra.mxu0 0.0
        %3571 = vmatprep.subr.mxu0 0.0
        %3572 = vmatpush1.msra.mxu0 0.0
        %3573 = vmatprep.subr.mxu0 0.0
        %3574 = vmatpush1.msra.mxu0 0.0
        %3575 = vmatprep.subr.mxu0 0.0
        %3576 = vmatpush1.msra.mxu0 0.0
        %3577 = vmatprep.subr.mxu0 0.0
        %3578 = vmatpush1.msra.mxu0 0.0
        %3579 = vmatprep.subr.mxu0 0.0
        %3580 = vmatpush1.msra.mxu0 0.0
        %3581 = vmatprep.subr.mxu0 0.0
        %3582 = vmatpush1.msra.mxu0 0.0
        %3583 = vmatprep.subr.mxu0 0.0
        %3584 = vmatpush1.msra.mxu0 0.0
        %3585 = vmatprep.subr.mxu0 0.0
        %3586 = vmatpush1.msra.mxu0 0.0
        %3587 = vmatprep.subr.mxu0 0.0
        %3588 = vmatpush1.msra.mxu0 0.0
        %3589 = vmatprep.subr.mxu0 0.0
        %3590 = vmatpush1.msra.mxu0 0.0
        %3591 = vmatprep.subr.mxu0 0.0
        %3592 = vmatpush1.msra.mxu0 0.0
        %3593 = vmatprep.subr.mxu0 0.0
        %3594 = vmatpush1.msra.mxu0 0.0
        %3595 = vmatprep.subr.mxu0 0.0
        %3596 = vmatpush1.msra.mxu0 0.0
        %3597 = vmatprep.subr.mxu0 0.0
        %3598 = vmatpush1.msra.mxu0 0.0
        %3599 = vmatprep.subr.mxu0 0.0
        %3600 = vmatpush1.msra.mxu0 0.0
        %3601 = vmatprep.subr.mxu0 0.0
        %3602 = vmatpush1.msra.mxu0 0.0
        %3603 = vmatprep.subr.mxu0 0.0
        %3604 = vmatpush1.msra.mxu0 0.0
        %3605 = vmatprep.subr.mxu0 0.0
        %3606 = vmatpush1.msra.mxu0 0.0
        %3607 = vmatprep.subr.mxu0 0.0
        %3608 = vmatpush1.msra.mxu0 0.0
        %3609 = vmatprep.subr.mxu0 0.0
        %3610 = vmatpush1.msra.mxu0 0.0
        %3611 = vmatprep.subr.mxu0 0.0
        %3612 = vmatpush1.msra.mxu0 0.0
        %3613 = vmatprep.subr.mxu0 0.0
        %3614 = vmatpush1.msra.mxu0 0.0
        %3615 = vmatprep.subr.mxu0 0.0
        %3616 = vmatpush1.msra.mxu0 0.0
        %3617 = vmatprep.subr.mxu0 0.0
        %3618 = vmatpush1.msra.mxu0 0.0
        %3619 = vmatprep.subr.mxu0 0.0
        %3620 = vmatpush1.msra.mxu0 0.0
        %3621 = vmatprep.subr.mxu0 0.0
        %3622 = vmatpush1.msra.mxu0 0.0
        %3623 = vmatprep.subr.mxu0 0.0
        %3624 = vmatpush1.msra.mxu0 0.0
        %3625 = vmatprep.mubr.f32.mxu0 0.0
        %3626 = vmatmul.mubr.f32.gmra.mrb[0].mxu0 %v3559
        %v3627 = vpop.f32.mrb[0].mxu0
        %v3628 = vadd.f32 0.0, %v3627
        %v3629 = vpop.f32.mrb[0].mxu0
        %3630 = vdwg.mxu0
        %v3632 = vsel %vm2825, %v3555, 0
        %3634 = vmatprep.subr.mxu0 0.0
        %3635 = vmatpush1.msra.mxu0 %v2261
        %3636 = vmatprep.subr.mxu0 0.0
        %3637 = vmatpush1.msra.mxu0 0.0
        %3638 = vmatprep.subr.mxu0 0.0
        %3639 = vmatpush1.msra.mxu0 0.0
        %3640 = vmatprep.subr.mxu0 0.0
        %3641 = vmatpush1.msra.mxu0 0.0
        %3642 = vmatprep.subr.mxu0 0.0
        %3643 = vmatpush1.msra.mxu0 0.0
        %3644 = vmatprep.subr.mxu0 0.0
        %3645 = vmatpush1.msra.mxu0 0.0
        %3646 = vmatprep.subr.mxu0 0.0
        %3647 = vmatpush1.msra.mxu0 0.0
        %3648 = vmatprep.subr.mxu0 0.0
        %3649 = vmatpush1.msra.mxu0 0.0
        %3650 = vmatprep.subr.mxu0 0.0
        %3651 = vmatpush1.msra.mxu0 0.0
        %3652 = vmatprep.subr.mxu0 0.0
        %3653 = vmatpush1.msra.mxu0 0.0
        %3654 = vmatprep.subr.mxu0 0.0
        %3655 = vmatpush1.msra.mxu0 0.0
        %3656 = vmatprep.subr.mxu0 0.0
        %3657 = vmatpush1.msra.mxu0 0.0
        %3658 = vmatprep.subr.mxu0 0.0
        %3659 = vmatpush1.msra.mxu0 0.0
        %3660 = vmatprep.subr.mxu0 0.0
        %3661 = vmatpush1.msra.mxu0 0.0
        %3662 = vmatprep.subr.mxu0 0.0
        %3663 = vmatpush1.msra.mxu0 0.0
        %3664 = vmatprep.subr.mxu0 0.0
        %3665 = vmatpush1.msra.mxu0 0.0
        %3666 = vmatprep.subr.mxu0 0.0
        %3667 = vmatpush1.msra.mxu0 0.0
        %3668 = vmatprep.subr.mxu0 0.0
        %3669 = vmatpush1.msra.mxu0 0.0
        %3670 = vmatprep.subr.mxu0 0.0
        %3671 = vmatpush1.msra.mxu0 0.0
        %3672 = vmatprep.subr.mxu0 0.0
        %3673 = vmatpush1.msra.mxu0 0.0
        %3674 = vmatprep.subr.mxu0 0.0
        %3675 = vmatpush1.msra.mxu0 0.0
        %3676 = vmatprep.subr.mxu0 0.0
        %3677 = vmatpush1.msra.mxu0 0.0
        %3678 = vmatprep.subr.mxu0 0.0
        %3679 = vmatpush1.msra.mxu0 0.0
        %3680 = vmatprep.subr.mxu0 0.0
        %3681 = vmatpush1.msra.mxu0 0.0
        %3682 = vmatprep.subr.mxu0 0.0
        %3683 = vmatpush1.msra.mxu0 0.0
        %3684 = vmatprep.subr.mxu0 0.0
        %3685 = vmatpush1.msra.mxu0 0.0
        %3686 = vmatprep.subr.mxu0 0.0
        %3687 = vmatpush1.msra.mxu0 0.0
        %3688 = vmatprep.subr.mxu0 0.0
        %3689 = vmatpush1.msra.mxu0 0.0
        %3690 = vmatprep.subr.mxu0 0.0
        %3691 = vmatpush1.msra.mxu0 0.0
        %3692 = vmatprep.subr.mxu0 0.0
        %3693 = vmatpush1.msra.mxu0 0.0
        %3694 = vmatprep.subr.mxu0 0.0
        %3695 = vmatpush1.msra.mxu0 0.0
        %3696 = vmatprep.subr.mxu0 0.0
        %3697 = vmatpush1.msra.mxu0 0.0
        %3698 = vmatprep.mubr.f32.mxu0 0.0
        %3699 = vmatmul.mubr.f32.gmra.mrb[0].mxu0 %v3632
        %v3700 = vpop.f32.mrb[0].mxu0
        %v3701 = vadd.f32 0.0, %v3700
        %v3702 = vpop.f32.mrb[0].mxu0
        %3703 = vdwg.mxu0
        %v3705 = vsel %vm2825, %v3556, 0
        %3707 = vmatprep.subr.mxu0 0.0
        %3708 = vmatpush1.msra.mxu0 %v2267
        %3709 = vmatprep.subr.mxu0 0.0
        %3710 = vmatpush1.msra.mxu0 0.0
        %3711 = vmatprep.subr.mxu0 0.0
        %3712 = vmatpush1.msra.mxu0 0.0
        %3713 = vmatprep.subr.mxu0 0.0
        %3714 = vmatpush1.msra.mxu0 0.0
        %3715 = vmatprep.subr.mxu0 0.0
        %3716 = vmatpush1.msra.mxu0 0.0
        %3717 = vmatprep.subr.mxu0 0.0
        %3718 = vmatpush1.msra.mxu0 0.0
        %3719 = vmatprep.subr.mxu0 0.0
        %3720 = vmatpush1.msra.mxu0 0.0
        %3721 = vmatprep.subr.mxu0 0.0
        %3722 = vmatpush1.msra.mxu0 0.0
        %3723 = vmatprep.subr.mxu0 0.0
        %3724 = vmatpush1.msra.mxu0 0.0
        %3725 = vmatprep.subr.mxu0 0.0
        %3726 = vmatpush1.msra.mxu0 0.0
        %3727 = vmatprep.subr.mxu0 0.0
        %3728 = vmatpush1.msra.mxu0 0.0
        %3729 = vmatprep.subr.mxu0 0.0
        %3730 = vmatpush1.msra.mxu0 0.0
        %3731 = vmatprep.subr.mxu0 0.0
        %3732 = vmatpush1.msra.mxu0 0.0
        %3733 = vmatprep.subr.mxu0 0.0
        %3734 = vmatpush1.msra.mxu0 0.0
        %3735 = vmatprep.subr.mxu0 0.0
        %3736 = vmatpush1.msra.mxu0 0.0
        %3737 = vmatprep.subr.mxu0 0.0
        %3738 = vmatpush1.msra.mxu0 0.0
        %3739 = vmatprep.subr.mxu0 0.0
        %3740 = vmatpush1.msra.mxu0 0.0
        %3741 = vmatprep.subr.mxu0 0.0
        %3742 = vmatpush1.msra.mxu0 0.0
        %3743 = vmatprep.subr.mxu0 0.0
        %3744 = vmatpush1.msra.mxu0 0.0
        %3745 = vmatprep.subr.mxu0 0.0
        %3746 = vmatpush1.msra.mxu0 0.0
        %3747 = vmatprep.subr.mxu0 0.0
        %3748 = vmatpush1.msra.mxu0 0.0
        %3749 = vmatprep.subr.mxu0 0.0
        %3750 = vmatpush1.msra.mxu0 0.0
        %3751 = vmatprep.subr.mxu0 0.0
        %3752 = vmatpush1.msra.mxu0 0.0
        %3753 = vmatprep.subr.mxu0 0.0
        %3754 = vmatpush1.msra.mxu0 0.0
        %3755 = vmatprep.subr.mxu0 0.0
        %3756 = vmatpush1.msra.mxu0 0.0
        %3757 = vmatprep.subr.mxu0 0.0
        %3758 = vmatpush1.msra.mxu0 0.0
        %3759 = vmatprep.subr.mxu0 0.0
        %3760 = vmatpush1.msra.mxu0 0.0
        %3761 = vmatprep.subr.mxu0 0.0
        %3762 = vmatpush1.msra.mxu0 0.0
        %3763 = vmatprep.subr.mxu0 0.0
        %3764 = vmatpush1.msra.mxu0 0.0
        %3765 = vmatprep.subr.mxu0 0.0
        %3766 = vmatpush1.msra.mxu0 0.0
        %3767 = vmatprep.subr.mxu0 0.0
        %3768 = vmatpush1.msra.mxu0 0.0
        %3769 = vmatprep.subr.mxu0 0.0
        %3770 = vmatpush1.msra.mxu0 0.0
        %3771 = vmatprep.mubr.f32.mxu0 0.0
        %3772 = vmatmul.mubr.f32.gmra.mrb[0].mxu0 %v3705
        %v3773 = vpop.f32.mrb[0].mxu0
        %v3774 = vadd.f32 0.0, %v3773
        %v3775 = vpop.f32.mrb[0].mxu0
        %3776 = vdwg.mxu0
        %v3778 = vsel %vm2825, %v3557, 0
        %3780 = vmatprep.subr.mxu0 0.0
        %3781 = vmatpush1.msra.mxu0 %v2273
        %3782 = vmatprep.subr.mxu0 0.0
        %3783 = vmatpush1.msra.mxu0 0.0
        %3784 = vmatprep.subr.mxu0 0.0
        %3785 = vmatpush1.msra.mxu0 0.0
        %3786 = vmatprep.subr.mxu0 0.0
        %3787 = vmatpush1.msra.mxu0 0.0
        %3788 = vmatprep.subr.mxu0 0.0
        %3789 = vmatpush1.msra.mxu0 0.0
        %3790 = vmatprep.subr.mxu0 0.0
        %3791 = vmatpush1.msra.mxu0 0.0
        %3792 = vmatprep.subr.mxu0 0.0
        %3793 = vmatpush1.msra.mxu0 0.0
        %3794 = vmatprep.subr.mxu0 0.0
        %3795 = vmatpush1.msra.mxu0 0.0
        %3796 = vmatprep.subr.mxu0 0.0
        %3797 = vmatpush1.msra.mxu0 0.0
        %3798 = vmatprep.subr.mxu0 0.0
        %3799 = vmatpush1.msra.mxu0 0.0
        %3800 = vmatprep.subr.mxu0 0.0
        %3801 = vmatpush1.msra.mxu0 0.0
        %3802 = vmatprep.subr.mxu0 0.0
        %3803 = vmatpush1.msra.mxu0 0.0
        %3804 = vmatprep.subr.mxu0 0.0
        %3805 = vmatpush1.msra.mxu0 0.0
        %3806 = vmatprep.subr.mxu0 0.0
        %3807 = vmatpush1.msra.mxu0 0.0
        %3808 = vmatprep.subr.mxu0 0.0
        %3809 = vmatpush1.msra.mxu0 0.0
        %3810 = vmatprep.subr.mxu0 0.0
        %3811 = vmatpush1.msra.mxu0 0.0
        %3812 = vmatprep.subr.mxu0 0.0
        %3813 = vmatpush1.msra.mxu0 0.0
        %3814 = vmatprep.subr.mxu0 0.0
        %3815 = vmatpush1.msra.mxu0 0.0
        %3816 = vmatprep.subr.mxu0 0.0
        %3817 = vmatpush1.msra.mxu0 0.0
        %3818 = vmatprep.subr.mxu0 0.0
        %3819 = vmatpush1.msra.mxu0 0.0
        %3820 = vmatprep.subr.mxu0 0.0
        %3821 = vmatpush1.msra.mxu0 0.0
        %3822 = vmatprep.subr.mxu0 0.0
        %3823 = vmatpush1.msra.mxu0 0.0
        %3824 = vmatprep.subr.mxu0 0.0
        %3825 = vmatpush1.msra.mxu0 0.0
        %3826 = vmatprep.subr.mxu0 0.0
        %3827 = vmatpush1.msra.mxu0 0.0
        %3828 = vmatprep.subr.mxu0 0.0
        %3829 = vmatpush1.msra.mxu0 0.0
        %3830 = vmatprep.subr.mxu0 0.0
        %3831 = vmatpush1.msra.mxu0 0.0
        %3832 = vmatprep.subr.mxu0 0.0
        %3833 = vmatpush1.msra.mxu0 0.0
        %3834 = vmatprep.subr.mxu0 0.0
        %3835 = vmatpush1.msra.mxu0 0.0
        %3836 = vmatprep.subr.mxu0 0.0
        %3837 = vmatpush1.msra.mxu0 0.0
        %3838 = vmatprep.subr.mxu0 0.0
        %3839 = vmatpush1.msra.mxu0 0.0
        %3840 = vmatprep.subr.mxu0 0.0
        %3841 = vmatpush1.msra.mxu0 0.0
        %3842 = vmatprep.subr.mxu0 0.0
        %3843 = vmatpush1.msra.mxu0 0.0
        %3844 = vmatprep.mubr.f32.mxu0 0.0
        %3845 = vmatmul.mubr.f32.gmra.mrb[0].mxu0 %v3778
        %v3846 = vpop.f32.mrb[0].mxu0
        %v3847 = vadd.f32 0.0, %v3846
        %v3848 = vpop.f32.mrb[0].mxu0
        %3849 = vdwg.mxu0
        %v3850 = vrot.slane %v1820, 2
        %v3851 = vrot.slane %v1834, 2
        %v3852 = vrot.slane %v1842, 2
        %v3853 = vcombine.low %v3850, %v3851
        %v3855 = vunpack.c.l.s4 1966171168
        %v3856 = vunpack.c.0.s8 %v3855
        %v3857 = vlaneseq
        %v3858 = vshrl.u32 %v3857, 7
        %v3859 = vsub.s32 %v3856, %v3858
        %v3860 = vrot.slane %v3853, %v3859
        %v3862 = vunpack.c.l.s4 1966171168
        %v3863 = vunpack.c.0.s8 %v3862
        %v3864 = vlaneseq
        %v3865 = vshrl.u32 %v3864, 7
        %v3866 = vsub.s32 %v3863, %v3865
        %v3867 = vrot.slane %v3852, %v3866
        %v3868 = vcombine.low %v3860, %v3867
        %v3870 = vunpack.c.l.s4 1966171168
        %v3871 = vunpack.c.0.s8 %v3870
        %v3872 = vlaneseq
        %v3873 = vshrl.u32 %v3872, 7
        %v3874 = vsub.s32 %v3871, %v3873
        %v3875 = vrot.slane %v3868, %v3874
        %3877 = vmatprep.subr.mxu0 0.0
        %3878 = vmatpush1.xpose.msra.mxu0 %v2100
        %3879 = vmatprep.subr.mxu0 0.0
        %3880 = vmatpush1.xpose.msra.mxu0 0.0
        %3881 = vmatprep.subr.mxu0 0.0
        %3882 = vmatpush1.xpose.msra.mxu0 0.0
        %3883 = vmatprep.subr.mxu0 0.0
        %3884 = vmatpush1.xpose.msra.mxu0 0.0
        %3885 = vmatprep.subr.mxu0 0.0
        %3886 = vmatpush1.xpose.msra.mxu0 0.0
        %3887 = vmatprep.subr.mxu0 0.0
        %3888 = vmatpush1.xpose.msra.mxu0 0.0
        %3889 = vmatprep.subr.mxu0 0.0
        %3890 = vmatpush1.xpose.msra.mxu0 0.0
        %3891 = vmatprep.subr.mxu0 0.0
        %3892 = vmatpush1.xpose.msra.mxu0 0.0
        %3893 = vmatprep.subr.mxu0 0.0
        %3894 = vmatpush1.xpose.msra.mxu0 0.0
        %3895 = vmatprep.subr.mxu0 0.0
        %3896 = vmatpush1.xpose.msra.mxu0 0.0
        %3897 = vmatprep.subr.mxu0 0.0
        %3898 = vmatpush1.xpose.msra.mxu0 0.0
        %3899 = vmatprep.subr.mxu0 0.0
        %3900 = vmatpush1.xpose.msra.mxu0 0.0
        %3901 = vmatprep.subr.mxu0 0.0
        %3902 = vmatpush1.xpose.msra.mxu0 0.0
        %3903 = vmatprep.subr.mxu0 0.0
        %3904 = vmatpush1.xpose.msra.mxu0 0.0
        %3905 = vmatprep.subr.mxu0 0.0
        %3906 = vmatpush1.xpose.msra.mxu0 0.0
        %3907 = vmatprep.subr.mxu0 0.0
        %3908 = vmatpush1.xpose.msra.mxu0 0.0
        %3909 = vmatprep.subr.mxu0 0.0
        %3910 = vmatpush1.xpose.msra.mxu0 0.0
        %3911 = vmatprep.subr.mxu0 0.0
        %3912 = vmatpush1.xpose.msra.mxu0 0.0
        %3913 = vmatprep.subr.mxu0 0.0
        %3914 = vmatpush1.xpose.msra.mxu0 0.0
        %3915 = vmatprep.subr.mxu0 0.0
        %3916 = vmatpush1.xpose.msra.mxu0 0.0
        %3917 = vmatprep.subr.mxu0 0.0
        %3918 = vmatpush1.xpose.msra.mxu0 0.0
        %3919 = vmatprep.subr.mxu0 0.0
        %3920 = vmatpush1.xpose.msra.mxu0 0.0
        %3921 = vmatprep.subr.mxu0 0.0
        %3922 = vmatpush1.xpose.msra.mxu0 0.0
        %3923 = vmatprep.subr.mxu0 0.0
        %3924 = vmatpush1.xpose.msra.mxu0 0.0
        %3925 = vmatprep.subr.mxu0 0.0
        %3926 = vmatpush1.xpose.msra.mxu0 0.0
        %3927 = vmatprep.subr.mxu0 0.0
        %3928 = vmatpush1.xpose.msra.mxu0 0.0
        %3929 = vmatprep.subr.mxu0 0.0
        %3930 = vmatpush1.xpose.msra.mxu0 0.0
        %3931 = vmatprep.subr.mxu0 0.0
        %3932 = vmatpush1.xpose.msra.mxu0 0.0
        %3933 = vmatprep.subr.mxu0 0.0
        %3934 = vmatpush1.xpose.msra.mxu0 0.0
        %3935 = vmatprep.subr.mxu0 0.0
        %3936 = vmatpush1.xpose.msra.mxu0 0.0
        %3937 = vmatprep.subr.mxu0 0.0
        %3938 = vmatpush1.xpose.msra.mxu0 0.0
        %3939 = vmatprep.subr.mxu0 0.0
        %3940 = vmatpush1.xpose.msra.mxu0 0.0
        %3941 = vmatprep.mubr.f32.mxu0 0.0
        %3942 = vmatmul.mubr.f32.gmra.mrb[0].mxu0 %v3875
        %v3943 = vpop.f32.mrb[0].mxu0
        %v3944 = vadd.f32 0.0, %v3943
        %v3945 = vpop.f32.mrb[0].mxu0
        %3946 = vdwg.mxu0
        %v3947 = vrot.slane %v1844, 2
        %v3948 = vrot.slane %v1827, 2
        %v3949 = vrot.slane %v1841, 2
        %v3950 = vcombine.low %v3947, %v3948
        %v3952 = vunpack.c.l.s4 1966171168
        %v3953 = vunpack.c.0.s8 %v3952
        %v3954 = vlaneseq
        %v3955 = vshrl.u32 %v3954, 7
        %v3956 = vsub.s32 %v3953, %v3955
        %v3957 = vrot.slane %v3950, %v3956
        %v3959 = vunpack.c.l.s4 1966171168
        %v3960 = vunpack.c.0.s8 %v3959
        %v3961 = vlaneseq
        %v3962 = vshrl.u32 %v3961, 7
        %v3963 = vsub.s32 %v3960, %v3962
        %v3964 = vrot.slane %v3949, %v3963
        %v3965 = vcombine.low %v3957, %v3964
        %v3967 = vunpack.c.l.s4 1966171168
        %v3968 = vunpack.c.0.s8 %v3967
        %v3969 = vlaneseq
        %v3970 = vshrl.u32 %v3969, 7
        %v3971 = vsub.s32 %v3968, %v3970
        %v3972 = vrot.slane %v3965, %v3971
        %3974 = vmatprep.subr.mxu0 0.0
        %3975 = vmatpush1.xpose.msra.mxu0 %v2106
        %3976 = vmatprep.subr.mxu0 0.0
        %3977 = vmatpush1.xpose.msra.mxu0 0.0
        %3978 = vmatprep.subr.mxu0 0.0
        %3979 = vmatpush1.xpose.msra.mxu0 0.0
        %3980 = vmatprep.subr.mxu0 0.0
        %3981 = vmatpush1.xpose.msra.mxu0 0.0
        %3982 = vmatprep.subr.mxu0 0.0
        %3983 = vmatpush1.xpose.msra.mxu0 0.0
        %3984 = vmatprep.subr.mxu0 0.0
        %3985 = vmatpush1.xpose.msra.mxu0 0.0
        %3986 = vmatprep.subr.mxu0 0.0
        %3987 = vmatpush1.xpose.msra.mxu0 0.0
        %3988 = vmatprep.subr.mxu0 0.0
        %3989 = vmatpush1.xpose.msra.mxu0 0.0
        %3990 = vmatprep.subr.mxu0 0.0
        %3991 = vmatpush1.xpose.msra.mxu0 0.0
        %3992 = vmatprep.subr.mxu0 0.0
        %3993 = vmatpush1.xpose.msra.mxu0 0.0
        %3994 = vmatprep.subr.mxu0 0.0
        %3995 = vmatpush1.xpose.msra.mxu0 0.0
        %3996 = vmatprep.subr.mxu0 0.0
        %3997 = vmatpush1.xpose.msra.mxu0 0.0
        %3998 = vmatprep.subr.mxu0 0.0
        %3999 = vmatpush1.xpose.msra.mxu0 0.0
        %4000 = vmatprep.subr.mxu0 0.0
        %4001 = vmatpush1.xpose.msra.mxu0 0.0
        %4002 = vmatprep.subr.mxu0 0.0
        %4003 = vmatpush1.xpose.msra.mxu0 0.0
        %4004 = vmatprep.subr.mxu0 0.0
        %4005 = vmatpush1.xpose.msra.mxu0 0.0
        %4006 = vmatprep.subr.mxu0 0.0
        %4007 = vmatpush1.xpose.msra.mxu0 0.0
        %4008 = vmatprep.subr.mxu0 0.0
        %4009 = vmatpush1.xpose.msra.mxu0 0.0
        %4010 = vmatprep.subr.mxu0 0.0
        %4011 = vmatpush1.xpose.msra.mxu0 0.0
        %4012 = vmatprep.subr.mxu0 0.0
        %4013 = vmatpush1.xpose.msra.mxu0 0.0
        %4014 = vmatprep.subr.mxu0 0.0
        %4015 = vmatpush1.xpose.msra.mxu0 0.0
        %4016 = vmatprep.subr.mxu0 0.0
        %4017 = vmatpush1.xpose.msra.mxu0 0.0
        %4018 = vmatprep.subr.mxu0 0.0
        %4019 = vmatpush1.xpose.msra.mxu0 0.0
        %4020 = vmatprep.subr.mxu0 0.0
        %4021 = vmatpush1.xpose.msra.mxu0 0.0
        %4022 = vmatprep.subr.mxu0 0.0
        %4023 = vmatpush1.xpose.msra.mxu0 0.0
        %4024 = vmatprep.subr.mxu0 0.0
        %4025 = vmatpush1.xpose.msra.mxu0 0.0
        %4026 = vmatprep.subr.mxu0 0.0
        %4027 = vmatpush1.xpose.msra.mxu0 0.0
        %4028 = vmatprep.subr.mxu0 0.0
        %4029 = vmatpush1.xpose.msra.mxu0 0.0
        %4030 = vmatprep.subr.mxu0 0.0
        %4031 = vmatpush1.xpose.msra.mxu0 0.0
        %4032 = vmatprep.subr.mxu0 0.0
        %4033 = vmatpush1.xpose.msra.mxu0 0.0
        %4034 = vmatprep.subr.mxu0 0.0
        %4035 = vmatpush1.xpose.msra.mxu0 0.0
        %4036 = vmatprep.subr.mxu0 0.0
        %4037 = vmatpush1.xpose.msra.mxu0 0.0
        %4038 = vmatprep.mubr.f32.mxu0 0.0
        %4039 = vmatmul.mubr.f32.gmra.mrb[0].mxu0 %v3972
        %v4040 = vpop.f32.mrb[0].mxu0
        %v4041 = vadd.f32 0.0, %v4040
        %v4042 = vpop.f32.mrb[0].mxu0
        %4043 = vdwg.mxu0
        %v4044 = vrot.slane %v1843, 2
        %v4045 = vrot.slane %v1845, 2
        %v4046 = vrot.slane %v1870, 2
        %v4047 = vcombine.low %v4044, %v4045
        %v4049 = vunpack.c.l.s4 1966171168
        %v4050 = vunpack.c.0.s8 %v4049
        %v4051 = vlaneseq
        %v4052 = vshrl.u32 %v4051, 7
        %v4053 = vsub.s32 %v4050, %v4052
        %v4054 = vrot.slane %v4047, %v4053
        %v4056 = vunpack.c.l.s4 1966171168
        %v4057 = vunpack.c.0.s8 %v4056
        %v4058 = vlaneseq
        %v4059 = vshrl.u32 %v4058, 7
        %v4060 = vsub.s32 %v4057, %v4059
        %v4061 = vrot.slane %v4046, %v4060
        %v4062 = vcombine.low %v4054, %v4061
        %v4064 = vunpack.c.l.s4 1966171168
        %v4065 = vunpack.c.0.s8 %v4064
        %v4066 = vlaneseq
        %v4067 = vshrl.u32 %v4066, 7
        %v4068 = vsub.s32 %v4065, %v4067
        %v4069 = vrot.slane %v4062, %v4068
        %4071 = vmatprep.subr.mxu0 0.0
        %4072 = vmatpush1.xpose.msra.mxu0 %v2112
        %4073 = vmatprep.subr.mxu0 0.0
        %4074 = vmatpush1.xpose.msra.mxu0 0.0
        %4075 = vmatprep.subr.mxu0 0.0
        %4076 = vmatpush1.xpose.msra.mxu0 0.0
        %4077 = vmatprep.subr.mxu0 0.0
        %4078 = vmatpush1.xpose.msra.mxu0 0.0
        %4079 = vmatprep.subr.mxu0 0.0
        %4080 = vmatpush1.xpose.msra.mxu0 0.0
        %4081 = vmatprep.subr.mxu0 0.0
        %4082 = vmatpush1.xpose.msra.mxu0 0.0
        %4083 = vmatprep.subr.mxu0 0.0
        %4084 = vmatpush1.xpose.msra.mxu0 0.0
        %4085 = vmatprep.subr.mxu0 0.0
        %4086 = vmatpush1.xpose.msra.mxu0 0.0
        %4087 = vmatprep.subr.mxu0 0.0
        %4088 = vmatpush1.xpose.msra.mxu0 0.0
        %4089 = vmatprep.subr.mxu0 0.0
        %4090 = vmatpush1.xpose.msra.mxu0 0.0
        %4091 = vmatprep.subr.mxu0 0.0
        %4092 = vmatpush1.xpose.msra.mxu0 0.0
        %4093 = vmatprep.subr.mxu0 0.0
        %4094 = vmatpush1.xpose.msra.mxu0 0.0
        %4095 = vmatprep.subr.mxu0 0.0
        %4096 = vmatpush1.xpose.msra.mxu0 0.0
        %4097 = vmatprep.subr.mxu0 0.0
        %4098 = vmatpush1.xpose.msra.mxu0 0.0
        %4099 = vmatprep.subr.mxu0 0.0
        %4100 = vmatpush1.xpose.msra.mxu0 0.0
        %4101 = vmatprep.subr.mxu0 0.0
        %4102 = vmatpush1.xpose.msra.mxu0 0.0
        %4103 = vmatprep.subr.mxu0 0.0
        %4104 = vmatpush1.xpose.msra.mxu0 0.0
        %4105 = vmatprep.subr.mxu0 0.0
        %4106 = vmatpush1.xpose.msra.mxu0 0.0
        %4107 = vmatprep.subr.mxu0 0.0
        %4108 = vmatpush1.xpose.msra.mxu0 0.0
        %4109 = vmatprep.subr.mxu0 0.0
        %4110 = vmatpush1.xpose.msra.mxu0 0.0
        %4111 = vmatprep.subr.mxu0 0.0
        %4112 = vmatpush1.xpose.msra.mxu0 0.0
        %4113 = vmatprep.subr.mxu0 0.0
        %4114 = vmatpush1.xpose.msra.mxu0 0.0
        %4115 = vmatprep.subr.mxu0 0.0
        %4116 = vmatpush1.xpose.msra.mxu0 0.0
        %4117 = vmatprep.subr.mxu0 0.0
        %4118 = vmatpush1.xpose.msra.mxu0 0.0
        %4119 = vmatprep.subr.mxu0 0.0
        %4120 = vmatpush1.xpose.msra.mxu0 0.0
        %4121 = vmatprep.subr.mxu0 0.0
        %4122 = vmatpush1.xpose.msra.mxu0 0.0
        %4123 = vmatprep.subr.mxu0 0.0
        %4124 = vmatpush1.xpose.msra.mxu0 0.0
        %4125 = vmatprep.subr.mxu0 0.0
        %4126 = vmatpush1.xpose.msra.mxu0 0.0
        %4127 = vmatprep.subr.mxu0 0.0
        %4128 = vmatpush1.xpose.msra.mxu0 0.0
        %4129 = vmatprep.subr.mxu0 0.0
        %4130 = vmatpush1.xpose.msra.mxu0 0.0
        %4131 = vmatprep.subr.mxu0 0.0
        %4132 = vmatpush1.xpose.msra.mxu0 0.0
        %4133 = vmatprep.subr.mxu0 0.0
        %4134 = vmatpush1.xpose.msra.mxu0 0.0
        %4135 = vmatprep.mubr.f32.mxu0 0.0
        %4136 = vmatmul.mubr.f32.gmra.mrb[0].mxu0 %v4069
        %v4137 = vpop.f32.mrb[0].mxu0
        %v4138 = vadd.f32 0.0, %v4137
        %v4139 = vpop.f32.mrb[0].mxu0
        %4140 = vdwg.mxu0
        %v4141 = vrot.slane %v1877, 2
        %v4142 = vrot.slane %v1878, 2
        %v4143 = vrot.slane %v1879, 2
        %v4144 = vcombine.low %v4141, %v4142
        %v4146 = vunpack.c.l.s4 1966171168
        %v4147 = vunpack.c.0.s8 %v4146
        %v4148 = vlaneseq
        %v4149 = vshrl.u32 %v4148, 7
        %v4150 = vsub.s32 %v4147, %v4149
        %v4151 = vrot.slane %v4144, %v4150
        %v4153 = vunpack.c.l.s4 1966171168
        %v4154 = vunpack.c.0.s8 %v4153
        %v4155 = vlaneseq
        %v4156 = vshrl.u32 %v4155, 7
        %v4157 = vsub.s32 %v4154, %v4156
        %v4158 = vrot.slane %v4143, %v4157
        %v4159 = vcombine.low %v4151, %v4158
        %v4161 = vunpack.c.l.s4 1966171168
        %v4162 = vunpack.c.0.s8 %v4161
        %v4163 = vlaneseq
        %v4164 = vshrl.u32 %v4163, 7
        %v4165 = vsub.s32 %v4162, %v4164
        %v4166 = vrot.slane %v4159, %v4165
        %4168 = vmatprep.subr.mxu0 0.0
        %4169 = vmatpush1.xpose.msra.mxu0 %v2118
        %4170 = vmatprep.subr.mxu0 0.0
        %4171 = vmatpush1.xpose.msra.mxu0 0.0
        %4172 = vmatprep.subr.mxu0 0.0
        %4173 = vmatpush1.xpose.msra.mxu0 0.0
        %4174 = vmatprep.subr.mxu0 0.0
        %4175 = vmatpush1.xpose.msra.mxu0 0.0
        %4176 = vmatprep.subr.mxu0 0.0
        %4177 = vmatpush1.xpose.msra.mxu0 0.0
        %4178 = vmatprep.subr.mxu0 0.0
        %4179 = vmatpush1.xpose.msra.mxu0 0.0
        %4180 = vmatprep.subr.mxu0 0.0
        %4181 = vmatpush1.xpose.msra.mxu0 0.0
        %4182 = vmatprep.subr.mxu0 0.0
        %4183 = vmatpush1.xpose.msra.mxu0 0.0
        %4184 = vmatprep.subr.mxu0 0.0
        %4185 = vmatpush1.xpose.msra.mxu0 0.0
        %4186 = vmatprep.subr.mxu0 0.0
        %4187 = vmatpush1.xpose.msra.mxu0 0.0
        %4188 = vmatprep.subr.mxu0 0.0
        %4189 = vmatpush1.xpose.msra.mxu0 0.0
        %4190 = vmatprep.subr.mxu0 0.0
        %4191 = vmatpush1.xpose.msra.mxu0 0.0
        %4192 = vmatprep.subr.mxu0 0.0
        %4193 = vmatpush1.xpose.msra.mxu0 0.0
        %4194 = vmatprep.subr.mxu0 0.0
        %4195 = vmatpush1.xpose.msra.mxu0 0.0
        %4196 = vmatprep.subr.mxu0 0.0
        %4197 = vmatpush1.xpose.msra.mxu0 0.0
        %4198 = vmatprep.subr.mxu0 0.0
        %4199 = vmatpush1.xpose.msra.mxu0 0.0
        %4200 = vmatprep.subr.mxu0 0.0
        %4201 = vmatpush1.xpose.msra.mxu0 0.0
        %4202 = vmatprep.subr.mxu0 0.0
        %4203 = vmatpush1.xpose.msra.mxu0 0.0
        %4204 = vmatprep.subr.mxu0 0.0
        %4205 = vmatpush1.xpose.msra.mxu0 0.0
        %4206 = vmatprep.subr.mxu0 0.0
        %4207 = vmatpush1.xpose.msra.mxu0 0.0
        %4208 = vmatprep.subr.mxu0 0.0
        %4209 = vmatpush1.xpose.msra.mxu0 0.0
        %4210 = vmatprep.subr.mxu0 0.0
        %4211 = vmatpush1.xpose.msra.mxu0 0.0
        %4212 = vmatprep.subr.mxu0 0.0
        %4213 = vmatpush1.xpose.msra.mxu0 0.0
        %4214 = vmatprep.subr.mxu0 0.0
        %4215 = vmatpush1.xpose.msra.mxu0 0.0
        %4216 = vmatprep.subr.mxu0 0.0
        %4217 = vmatpush1.xpose.msra.mxu0 0.0
        %4218 = vmatprep.subr.mxu0 0.0
        %4219 = vmatpush1.xpose.msra.mxu0 0.0
        %4220 = vmatprep.subr.mxu0 0.0
        %4221 = vmatpush1.xpose.msra.mxu0 0.0
        %4222 = vmatprep.subr.mxu0 0.0
        %4223 = vmatpush1.xpose.msra.mxu0 0.0
        %4224 = vmatprep.subr.mxu0 0.0
        %4225 = vmatpush1.xpose.msra.mxu0 0.0
        %4226 = vmatprep.subr.mxu0 0.0
        %4227 = vmatpush1.xpose.msra.mxu0 0.0
        %4228 = vmatprep.subr.mxu0 0.0
        %4229 = vmatpush1.xpose.msra.mxu0 0.0
        %4230 = vmatprep.subr.mxu0 0.0
        %4231 = vmatpush1.xpose.msra.mxu0 0.0
        %4232 = vmatprep.mubr.f32.mxu0 0.0
        %4233 = vmatmul.mubr.f32.gmra.mrb[0].mxu0 %v4166
        %v4234 = vpop.f32.mrb[0].mxu0
        %v4235 = vadd.f32 0.0, %v4234
        %v4236 = vpop.f32.mrb[0].mxu0
        %4237 = vdwg.mxu0
        %v4238 = vsel %vm2368, -1e+30, %v3944
        %v4239 = vsel %vm2369, -1e+30, %v4041
        %v4240 = vsel %vm2370, -1e+30, %v4138
        %v4241 = vsel %vm2371, -1e+30, %v4235
        %v4242 = vsel %vm2372, %v4238, -inf
        %4243 = vmax.xlane.f32.xlu0 %v4242
        %v4244 = vpop.xlane.xlu0 %4243
        %v4245 = vsel %vm2372, %v4239, -inf
        %4246 = vmax.xlane.f32.xlu0 %v4245
        %v4247 = vpop.xlane.xlu0 %4246
        %v4248 = vsel %vm2372, %v4240, -inf
        %4249 = vmax.xlane.f32.xlu0 %v4248
        %v4250 = vpop.xlane.xlu0 %4249
        %v4251 = vsel %vm2372, %v4241, -inf
        %4252 = vmax.xlane.f32.xlu0 %v4251
        %v4253 = vpop.xlane.xlu0 %4252
        %v4254 = vsub.f32 %v4238, %v4244
        %v4255 = vsub.f32 %v4239, %v4247
        %v4256 = vsub.f32 %v4240, %v4250
        %v4257 = vsub.f32 %v4241, %v4253
        %v4258 = vmul.f32 %v4254, 1.442695
        %v4259 = vpow.pop %v4258
        %v4260 = vmul.f32 %v4255, 1.442695
        %v4261 = vpow.pop %v4260
        %v4262 = vmul.f32 %v4256, 1.442695
        %v4263 = vpow.pop %v4262
        %v4264 = vmul.f32 %v4257, 1.442695
        %v4265 = vpow.pop %v4264
        %v4266 = vsel %vm2372, %v4259, 0.0
        %4267 = vadd.xlane.f32.xlu0 %v4266
        %v4268 = vpop.xlane.xlu0 %4267
        %v4269 = vsel %vm2372, %v4261, 0.0
        %4270 = vadd.xlane.f32.xlu0 %v4269
        %v4271 = vpop.xlane.xlu0 %4270
        %v4272 = vsel %vm2372, %v4263, 0.0
        %4273 = vadd.xlane.f32.xlu0 %v4272
        %v4274 = vpop.xlane.xlu0 %4273
        %v4275 = vsel %vm2372, %v4265, 0.0
        %4276 = vadd.xlane.f32.xlu0 %v4275
        %v4277 = vpop.xlane.xlu0 %4276
        %v4278 = vrcp.pop %v4268
        %v4279 = vrcp.pop %v4271
        %v4280 = vrcp.pop %v4274
        %v4281 = vrcp.pop %v4277
        %v4282 = vmul.f32 %v4259, %v4278
        %v4283 = vmul.f32 %v4261, %v4279
        %v4284 = vmul.f32 %v4263, %v4280
        %v4285 = vmul.f32 %v4265, %v4281
        %v4286 = vsel %vm2817, 0.0, %v4282
        %v4287 = vsel %vm2818, 0.0, %v4283
        %v4288 = vsel %vm2819, 0.0, %v4284
        %v4289 = vsel %vm2820, 0.0, %v4285
        %v4291 = vsel %vm2825, %v4286, 0
        %4293 = vmatprep.subr.mxu0 0.0
        %4294 = vmatpush1.msra.mxu0 %v2342
        %4295 = vmatprep.subr.mxu0 0.0
        %4296 = vmatpush1.msra.mxu0 0.0
        %4297 = vmatprep.subr.mxu0 0.0
        %4298 = vmatpush1.msra.mxu0 0.0
        %4299 = vmatprep.subr.mxu0 0.0
        %4300 = vmatpush1.msra.mxu0 0.0
        %4301 = vmatprep.subr.mxu0 0.0
        %4302 = vmatpush1.msra.mxu0 0.0
        %4303 = vmatprep.subr.mxu0 0.0
        %4304 = vmatpush1.msra.mxu0 0.0
        %4305 = vmatprep.subr.mxu0 0.0
        %4306 = vmatpush1.msra.mxu0 0.0
        %4307 = vmatprep.subr.mxu0 0.0
        %4308 = vmatpush1.msra.mxu0 0.0
        %4309 = vmatprep.subr.mxu0 0.0
        %4310 = vmatpush1.msra.mxu0 0.0
        %4311 = vmatprep.subr.mxu0 0.0
        %4312 = vmatpush1.msra.mxu0 0.0
        %4313 = vmatprep.subr.mxu0 0.0
        %4314 = vmatpush1.msra.mxu0 0.0
        %4315 = vmatprep.subr.mxu0 0.0
        %4316 = vmatpush1.msra.mxu0 0.0
        %4317 = vmatprep.subr.mxu0 0.0
        %4318 = vmatpush1.msra.mxu0 0.0
        %4319 = vmatprep.subr.mxu0 0.0
        %4320 = vmatpush1.msra.mxu0 0.0
        %4321 = vmatprep.subr.mxu0 0.0
        %4322 = vmatpush1.msra.mxu0 0.0
        %4323 = vmatprep.subr.mxu0 0.0
        %4324 = vmatpush1.msra.mxu0 0.0
        %4325 = vmatprep.subr.mxu0 0.0
        %4326 = vmatpush1.msra.mxu0 0.0
        %4327 = vmatprep.subr.mxu0 0.0
        %4328 = vmatpush1.msra.mxu0 0.0
        %4329 = vmatprep.subr.mxu0 0.0
        %4330 = vmatpush1.msra.mxu0 0.0
        %4331 = vmatprep.subr.mxu0 0.0
        %4332 = vmatpush1.msra.mxu0 0.0
        %4333 = vmatprep.subr.mxu0 0.0
        %4334 = vmatpush1.msra.mxu0 0.0
        %4335 = vmatprep.subr.mxu0 0.0
        %4336 = vmatpush1.msra.mxu0 0.0
        %4337 = vmatprep.subr.mxu0 0.0
        %4338 = vmatpush1.msra.mxu0 0.0
        %4339 = vmatprep.subr.mxu0 0.0
        %4340 = vmatpush1.msra.mxu0 0.0
        %4341 = vmatprep.subr.mxu0 0.0
        %4342 = vmatpush1.msra.mxu0 0.0
        %4343 = vmatprep.subr.mxu0 0.0
        %4344 = vmatpush1.msra.mxu0 0.0
        %4345 = vmatprep.subr.mxu0 0.0
        %4346 = vmatpush1.msra.mxu0 0.0
        %4347 = vmatprep.subr.mxu0 0.0
        %4348 = vmatpush1.msra.mxu0 0.0
        %4349 = vmatprep.subr.mxu0 0.0
        %4350 = vmatpush1.msra.mxu0 0.0
        %4351 = vmatprep.subr.mxu0 0.0
        %4352 = vmatpush1.msra.mxu0 0.0
        %4353 = vmatprep.subr.mxu0 0.0
        %4354 = vmatpush1.msra.mxu0 0.0
        %4355 = vmatprep.subr.mxu0 0.0
        %4356 = vmatpush1.msra.mxu0 0.0
        %4357 = vmatprep.mubr.f32.mxu0 0.0
        %4358 = vmatmul.mubr.f32.gmra.mrb[0].mxu0 %v4291
        %v4359 = vpop.f32.mrb[0].mxu0
        %v4360 = vadd.f32 0.0, %v4359
        %v4361 = vpop.f32.mrb[0].mxu0
        %4362 = vdwg.mxu0
        %v4364 = vsel %vm2825, %v4287, 0
        %4366 = vmatprep.subr.mxu0 0.0
        %4367 = vmatpush1.msra.mxu0 %v2348
        %4368 = vmatprep.subr.mxu0 0.0
        %4369 = vmatpush1.msra.mxu0 0.0
        %4370 = vmatprep.subr.mxu0 0.0
        %4371 = vmatpush1.msra.mxu0 0.0
        %4372 = vmatprep.subr.mxu0 0.0
        %4373 = vmatpush1.msra.mxu0 0.0
        %4374 = vmatprep.subr.mxu0 0.0
        %4375 = vmatpush1.msra.mxu0 0.0
        %4376 = vmatprep.subr.mxu0 0.0
        %4377 = vmatpush1.msra.mxu0 0.0
        %4378 = vmatprep.subr.mxu0 0.0
        %4379 = vmatpush1.msra.mxu0 0.0
        %4380 = vmatprep.subr.mxu0 0.0
        %4381 = vmatpush1.msra.mxu0 0.0
        %4382 = vmatprep.subr.mxu0 0.0
        %4383 = vmatpush1.msra.mxu0 0.0
        %4384 = vmatprep.subr.mxu0 0.0
        %4385 = vmatpush1.msra.mxu0 0.0
        %4386 = vmatprep.subr.mxu0 0.0
        %4387 = vmatpush1.msra.mxu0 0.0
        %4388 = vmatprep.subr.mxu0 0.0
        %4389 = vmatpush1.msra.mxu0 0.0
        %4390 = vmatprep.subr.mxu0 0.0
        %4391 = vmatpush1.msra.mxu0 0.0
        %4392 = vmatprep.subr.mxu0 0.0
        %4393 = vmatpush1.msra.mxu0 0.0
        %4394 = vmatprep.subr.mxu0 0.0
        %4395 = vmatpush1.msra.mxu0 0.0
        %4396 = vmatprep.subr.mxu0 0.0
        %4397 = vmatpush1.msra.mxu0 0.0
        %4398 = vmatprep.subr.mxu0 0.0
        %4399 = vmatpush1.msra.mxu0 0.0
        %4400 = vmatprep.subr.mxu0 0.0
        %4401 = vmatpush1.msra.mxu0 0.0
        %4402 = vmatprep.subr.mxu0 0.0
        %4403 = vmatpush1.msra.mxu0 0.0
        %4404 = vmatprep.subr.mxu0 0.0
        %4405 = vmatpush1.msra.mxu0 0.0
        %4406 = vmatprep.subr.mxu0 0.0
        %4407 = vmatpush1.msra.mxu0 0.0
        %4408 = vmatprep.subr.mxu0 0.0
        %4409 = vmatpush1.msra.mxu0 0.0
        %4410 = vmatprep.subr.mxu0 0.0
        %4411 = vmatpush1.msra.mxu0 0.0
        %4412 = vmatprep.subr.mxu0 0.0
        %4413 = vmatpush1.msra.mxu0 0.0
        %4414 = vmatprep.subr.mxu0 0.0
        %4415 = vmatpush1.msra.mxu0 0.0
        %4416 = vmatprep.subr.mxu0 0.0
        %4417 = vmatpush1.msra.mxu0 0.0
        %4418 = vmatprep.subr.mxu0 0.0
        %4419 = vmatpush1.msra.mxu0 0.0
        %4420 = vmatprep.subr.mxu0 0.0
        %4421 = vmatpush1.msra.mxu0 0.0
        %4422 = vmatprep.subr.mxu0 0.0
        %4423 = vmatpush1.msra.mxu0 0.0
        %4424 = vmatprep.subr.mxu0 0.0
        %4425 = vmatpush1.msra.mxu0 0.0
        %4426 = vmatprep.subr.mxu0 0.0
        %4427 = vmatpush1.msra.mxu0 0.0
        %4428 = vmatprep.subr.mxu0 0.0
        %4429 = vmatpush1.msra.mxu0 0.0
        %4430 = vmatprep.mubr.f32.mxu0 0.0
        %4431 = vmatmul.mubr.f32.gmra.mrb[0].mxu0 %v4364
        %v4432 = vpop.f32.mrb[0].mxu0
        %v4433 = vadd.f32 0.0, %v4432
        %v4434 = vpop.f32.mrb[0].mxu0
        %4435 = vdwg.mxu0
        %v4437 = vsel %vm2825, %v4288, 0
        %4439 = vmatprep.subr.mxu0 0.0
        %4440 = vmatpush1.msra.mxu0 %v2354
        %4441 = vmatprep.subr.mxu0 0.0
        %4442 = vmatpush1.msra.mxu0 0.0
        %4443 = vmatprep.subr.mxu0 0.0
        %4444 = vmatpush1.msra.mxu0 0.0
        %4445 = vmatprep.subr.mxu0 0.0
        %4446 = vmatpush1.msra.mxu0 0.0
        %4447 = vmatprep.subr.mxu0 0.0
        %4448 = vmatpush1.msra.mxu0 0.0
        %4449 = vmatprep.subr.mxu0 0.0
        %4450 = vmatpush1.msra.mxu0 0.0
        %4451 = vmatprep.subr.mxu0 0.0
        %4452 = vmatpush1.msra.mxu0 0.0
        %4453 = vmatprep.subr.mxu0 0.0
        %4454 = vmatpush1.msra.mxu0 0.0
        %4455 = vmatprep.subr.mxu0 0.0
        %4456 = vmatpush1.msra.mxu0 0.0
        %4457 = vmatprep.subr.mxu0 0.0
        %4458 = vmatpush1.msra.mxu0 0.0
        %4459 = vmatprep.subr.mxu0 0.0
        %4460 = vmatpush1.msra.mxu0 0.0
        %4461 = vmatprep.subr.mxu0 0.0
        %4462 = vmatpush1.msra.mxu0 0.0
        %4463 = vmatprep.subr.mxu0 0.0
        %4464 = vmatpush1.msra.mxu0 0.0
        %4465 = vmatprep.subr.mxu0 0.0
        %4466 = vmatpush1.msra.mxu0 0.0
        %4467 = vmatprep.subr.mxu0 0.0
        %4468 = vmatpush1.msra.mxu0 0.0
        %4469 = vmatprep.subr.mxu0 0.0
        %4470 = vmatpush1.msra.mxu0 0.0
        %4471 = vmatprep.subr.mxu0 0.0
        %4472 = vmatpush1.msra.mxu0 0.0
        %4473 = vmatprep.subr.mxu0 0.0
        %4474 = vmatpush1.msra.mxu0 0.0
        %4475 = vmatprep.subr.mxu0 0.0
        %4476 = vmatpush1.msra.mxu0 0.0
        %4477 = vmatprep.subr.mxu0 0.0
        %4478 = vmatpush1.msra.mxu0 0.0
        %4479 = vmatprep.subr.mxu0 0.0
        %4480 = vmatpush1.msra.mxu0 0.0
        %4481 = vmatprep.subr.mxu0 0.0
        %4482 = vmatpush1.msra.mxu0 0.0
        %4483 = vmatprep.subr.mxu0 0.0
        %4484 = vmatpush1.msra.mxu0 0.0
        %4485 = vmatprep.subr.mxu0 0.0
        %4486 = vmatpush1.msra.mxu0 0.0
        %4487 = vmatprep.subr.mxu0 0.0
        %4488 = vmatpush1.msra.mxu0 0.0
        %4489 = vmatprep.subr.mxu0 0.0
        %4490 = vmatpush1.msra.mxu0 0.0
        %4491 = vmatprep.subr.mxu0 0.0
        %4492 = vmatpush1.msra.mxu0 0.0
        %4493 = vmatprep.subr.mxu0 0.0
        %4494 = vmatpush1.msra.mxu0 0.0
        %4495 = vmatprep.subr.mxu0 0.0
        %4496 = vmatpush1.msra.mxu0 0.0
        %4497 = vmatprep.subr.mxu0 0.0
        %4498 = vmatpush1.msra.mxu0 0.0
        %4499 = vmatprep.subr.mxu0 0.0
        %4500 = vmatpush1.msra.mxu0 0.0
        %4501 = vmatprep.subr.mxu0 0.0
        %4502 = vmatpush1.msra.mxu0 0.0
        %4503 = vmatprep.mubr.f32.mxu0 0.0
        %4504 = vmatmul.mubr.f32.gmra.mrb[0].mxu0 %v4437
        %v4505 = vpop.f32.mrb[0].mxu0
        %v4506 = vadd.f32 0.0, %v4505
        %v4507 = vpop.f32.mrb[0].mxu0
        %4508 = vdwg.mxu0
        %v4510 = vsel %vm2825, %v4289, 0
        %4512 = vmatprep.subr.mxu0 0.0
        %4513 = vmatpush1.msra.mxu0 %v2360
        %4514 = vmatprep.subr.mxu0 0.0
        %4515 = vmatpush1.msra.mxu0 0.0
        %4516 = vmatprep.subr.mxu0 0.0
        %4517 = vmatpush1.msra.mxu0 0.0
        %4518 = vmatprep.subr.mxu0 0.0
        %4519 = vmatpush1.msra.mxu0 0.0
        %4520 = vmatprep.subr.mxu0 0.0
        %4521 = vmatpush1.msra.mxu0 0.0
        %4522 = vmatprep.subr.mxu0 0.0
        %4523 = vmatpush1.msra.mxu0 0.0
        %4524 = vmatprep.subr.mxu0 0.0
        %4525 = vmatpush1.msra.mxu0 0.0
        %4526 = vmatprep.subr.mxu0 0.0
        %4527 = vmatpush1.msra.mxu0 0.0
        %4528 = vmatprep.subr.mxu0 0.0
        %4529 = vmatpush1.msra.mxu0 0.0
        %4530 = vmatprep.subr.mxu0 0.0
        %4531 = vmatpush1.msra.mxu0 0.0
        %4532 = vmatprep.subr.mxu0 0.0
        %4533 = vmatpush1.msra.mxu0 0.0
        %4534 = vmatprep.subr.mxu0 0.0
        %4535 = vmatpush1.msra.mxu0 0.0
        %4536 = vmatprep.subr.mxu0 0.0
        %4537 = vmatpush1.msra.mxu0 0.0
        %4538 = vmatprep.subr.mxu0 0.0
        %4539 = vmatpush1.msra.mxu0 0.0
        %4540 = vmatprep.subr.mxu0 0.0
        %4541 = vmatpush1.msra.mxu0 0.0
        %4542 = vmatprep.subr.mxu0 0.0
        %4543 = vmatpush1.msra.mxu0 0.0
        %4544 = vmatprep.subr.mxu0 0.0
        %4545 = vmatpush1.msra.mxu0 0.0
        %4546 = vmatprep.subr.mxu0 0.0
        %4547 = vmatpush1.msra.mxu0 0.0
        %4548 = vmatprep.subr.mxu0 0.0
        %4549 = vmatpush1.msra.mxu0 0.0
        %4550 = vmatprep.subr.mxu0 0.0
        %4551 = vmatpush1.msra.mxu0 0.0
        %4552 = vmatprep.subr.mxu0 0.0
        %4553 = vmatpush1.msra.mxu0 0.0
        %4554 = vmatprep.subr.mxu0 0.0
        %4555 = vmatpush1.msra.mxu0 0.0
        %4556 = vmatprep.subr.mxu0 0.0
        %4557 = vmatpush1.msra.mxu0 0.0
        %4558 = vmatprep.subr.mxu0 0.0
        %4559 = vmatpush1.msra.mxu0 0.0
        %4560 = vmatprep.subr.mxu0 0.0
        %4561 = vmatpush1.msra.mxu0 0.0
        %4562 = vmatprep.subr.mxu0 0.0
        %4563 = vmatpush1.msra.mxu0 0.0
        %4564 = vmatprep.subr.mxu0 0.0
        %4565 = vmatpush1.msra.mxu0 0.0
        %4566 = vmatprep.subr.mxu0 0.0
        %4567 = vmatpush1.msra.mxu0 0.0
        %4568 = vmatprep.subr.mxu0 0.0
        %4569 = vmatpush1.msra.mxu0 0.0
        %4570 = vmatprep.subr.mxu0 0.0
        %4571 = vmatpush1.msra.mxu0 0.0
        %4572 = vmatprep.subr.mxu0 0.0
        %4573 = vmatpush1.msra.mxu0 0.0
        %4574 = vmatprep.subr.mxu0 0.0
        %4575 = vmatpush1.msra.mxu0 0.0
        %4576 = vmatprep.mubr.f32.mxu0 0.0
        %4577 = vmatmul.mubr.f32.gmra.mrb[0].mxu0 %v4510
        %v4578 = vpop.f32.mrb[0].mxu0
        %v4579 = vadd.f32 0.0, %v4578
        %v4580 = vpop.f32.mrb[0].mxu0
        %4581 = vdwg.mxu0
        %v4582 = vrot.slane %v1820, 3
        %v4583 = vrot.slane %v1834, 3
        %v4584 = vrot.slane %v1842, 3
        %v4585 = vcombine.low %v4582, %v4583
        %v4587 = vunpack.c.l.s4 1966171168
        %v4588 = vunpack.c.0.s8 %v4587
        %v4589 = vlaneseq
        %v4590 = vshrl.u32 %v4589, 7
        %v4591 = vsub.s32 %v4588, %v4590
        %v4592 = vrot.slane %v4585, %v4591
        %v4594 = vunpack.c.l.s4 1966171168
        %v4595 = vunpack.c.0.s8 %v4594
        %v4596 = vlaneseq
        %v4597 = vshrl.u32 %v4596, 7
        %v4598 = vsub.s32 %v4595, %v4597
        %v4599 = vrot.slane %v4584, %v4598
        %v4600 = vcombine.low %v4592, %v4599
        %v4602 = vunpack.c.l.s4 1966171168
        %v4603 = vunpack.c.0.s8 %v4602
        %v4604 = vlaneseq
        %v4605 = vshrl.u32 %v4604, 7
        %v4606 = vsub.s32 %v4603, %v4605
        %v4607 = vrot.slane %v4600, %v4606
        %4609 = vmatprep.subr.mxu0 0.0
        %4610 = vmatpush1.xpose.msra.mxu0 %v2102
        %4611 = vmatprep.subr.mxu0 0.0
        %4612 = vmatpush1.xpose.msra.mxu0 0.0
        %4613 = vmatprep.subr.mxu0 0.0
        %4614 = vmatpush1.xpose.msra.mxu0 0.0
        %4615 = vmatprep.subr.mxu0 0.0
        %4616 = vmatpush1.xpose.msra.mxu0 0.0
        %4617 = vmatprep.subr.mxu0 0.0
        %4618 = vmatpush1.xpose.msra.mxu0 0.0
        %4619 = vmatprep.subr.mxu0 0.0
        %4620 = vmatpush1.xpose.msra.mxu0 0.0
        %4621 = vmatprep.subr.mxu0 0.0
        %4622 = vmatpush1.xpose.msra.mxu0 0.0
        %4623 = vmatprep.subr.mxu0 0.0
        %4624 = vmatpush1.xpose.msra.mxu0 0.0
        %4625 = vmatprep.subr.mxu0 0.0
        %4626 = vmatpush1.xpose.msra.mxu0 0.0
        %4627 = vmatprep.subr.mxu0 0.0
        %4628 = vmatpush1.xpose.msra.mxu0 0.0
        %4629 = vmatprep.subr.mxu0 0.0
        %4630 = vmatpush1.xpose.msra.mxu0 0.0
        %4631 = vmatprep.subr.mxu0 0.0
        %4632 = vmatpush1.xpose.msra.mxu0 0.0
        %4633 = vmatprep.subr.mxu0 0.0
        %4634 = vmatpush1.xpose.msra.mxu0 0.0
        %4635 = vmatprep.subr.mxu0 0.0
        %4636 = vmatpush1.xpose.msra.mxu0 0.0
        %4637 = vmatprep.subr.mxu0 0.0
        %4638 = vmatpush1.xpose.msra.mxu0 0.0
        %4639 = vmatprep.subr.mxu0 0.0
        %4640 = vmatpush1.xpose.msra.mxu0 0.0
        %4641 = vmatprep.subr.mxu0 0.0
        %4642 = vmatpush1.xpose.msra.mxu0 0.0
        %4643 = vmatprep.subr.mxu0 0.0
        %4644 = vmatpush1.xpose.msra.mxu0 0.0
        %4645 = vmatprep.subr.mxu0 0.0
        %4646 = vmatpush1.xpose.msra.mxu0 0.0
        %4647 = vmatprep.subr.mxu0 0.0
        %4648 = vmatpush1.xpose.msra.mxu0 0.0
        %4649 = vmatprep.subr.mxu0 0.0
        %4650 = vmatpush1.xpose.msra.mxu0 0.0
        %4651 = vmatprep.subr.mxu0 0.0
        %4652 = vmatpush1.xpose.msra.mxu0 0.0
        %4653 = vmatprep.subr.mxu0 0.0
        %4654 = vmatpush1.xpose.msra.mxu0 0.0
        %4655 = vmatprep.subr.mxu0 0.0
        %4656 = vmatpush1.xpose.msra.mxu0 0.0
        %4657 = vmatprep.subr.mxu0 0.0
        %4658 = vmatpush1.xpose.msra.mxu0 0.0
        %4659 = vmatprep.subr.mxu0 0.0
        %4660 = vmatpush1.xpose.msra.mxu0 0.0
        %4661 = vmatprep.subr.mxu0 0.0
        %4662 = vmatpush1.xpose.msra.mxu0 0.0
        %4663 = vmatprep.subr.mxu0 0.0
        %4664 = vmatpush1.xpose.msra.mxu0 0.0
        %4665 = vmatprep.subr.mxu0 0.0
        %4666 = vmatpush1.xpose.msra.mxu0 0.0
        %4667 = vmatprep.subr.mxu0 0.0
        %4668 = vmatpush1.xpose.msra.mxu0 0.0
        %4669 = vmatprep.subr.mxu0 0.0
        %4670 = vmatpush1.xpose.msra.mxu0 0.0
        %4671 = vmatprep.subr.mxu0 0.0
        %4672 = vmatpush1.xpose.msra.mxu0 0.0
        %4673 = vmatprep.mubr.f32.mxu0 0.0
        %4674 = vmatmul.mubr.f32.gmra.mrb[0].mxu0 %v4607
        %v4675 = vpop.f32.mrb[0].mxu0
        %v4676 = vadd.f32 0.0, %v4675
        %v4677 = vpop.f32.mrb[0].mxu0
        %4678 = vdwg.mxu0
        %v4679 = vrot.slane %v1844, 3
        %v4680 = vrot.slane %v1827, 3
        %v4681 = vrot.slane %v1841, 3
        %v4682 = vcombine.low %v4679, %v4680
        %v4684 = vunpack.c.l.s4 1966171168
        %v4685 = vunpack.c.0.s8 %v4684
        %v4686 = vlaneseq
        %v4687 = vshrl.u32 %v4686, 7
        %v4688 = vsub.s32 %v4685, %v4687
        %v4689 = vrot.slane %v4682, %v4688
        %v4691 = vunpack.c.l.s4 1966171168
        %v4692 = vunpack.c.0.s8 %v4691
        %v4693 = vlaneseq
        %v4694 = vshrl.u32 %v4693, 7
        %v4695 = vsub.s32 %v4692, %v4694
        %v4696 = vrot.slane %v4681, %v4695
        %v4697 = vcombine.low %v4689, %v4696
        %v4699 = vunpack.c.l.s4 1966171168
        %v4700 = vunpack.c.0.s8 %v4699
        %v4701 = vlaneseq
        %v4702 = vshrl.u32 %v4701, 7
        %v4703 = vsub.s32 %v4700, %v4702
        %v4704 = vrot.slane %v4697, %v4703
        %4706 = vmatprep.subr.mxu0 0.0
        %4707 = vmatpush1.xpose.msra.mxu0 %v2108
        %4708 = vmatprep.subr.mxu0 0.0
        %4709 = vmatpush1.xpose.msra.mxu0 0.0
        %4710 = vmatprep.subr.mxu0 0.0
        %4711 = vmatpush1.xpose.msra.mxu0 0.0
        %4712 = vmatprep.subr.mxu0 0.0
        %4713 = vmatpush1.xpose.msra.mxu0 0.0
        %4714 = vmatprep.subr.mxu0 0.0
        %4715 = vmatpush1.xpose.msra.mxu0 0.0
        %4716 = vmatprep.subr.mxu0 0.0
        %4717 = vmatpush1.xpose.msra.mxu0 0.0
        %4718 = vmatprep.subr.mxu0 0.0
        %4719 = vmatpush1.xpose.msra.mxu0 0.0
        %4720 = vmatprep.subr.mxu0 0.0
        %4721 = vmatpush1.xpose.msra.mxu0 0.0
        %4722 = vmatprep.subr.mxu0 0.0
        %4723 = vmatpush1.xpose.msra.mxu0 0.0
        %4724 = vmatprep.subr.mxu0 0.0
        %4725 = vmatpush1.xpose.msra.mxu0 0.0
        %4726 = vmatprep.subr.mxu0 0.0
        %4727 = vmatpush1.xpose.msra.mxu0 0.0
        %4728 = vmatprep.subr.mxu0 0.0
        %4729 = vmatpush1.xpose.msra.mxu0 0.0
        %4730 = vmatprep.subr.mxu0 0.0
        %4731 = vmatpush1.xpose.msra.mxu0 0.0
        %4732 = vmatprep.subr.mxu0 0.0
        %4733 = vmatpush1.xpose.msra.mxu0 0.0
        %4734 = vmatprep.subr.mxu0 0.0
        %4735 = vmatpush1.xpose.msra.mxu0 0.0
        %4736 = vmatprep.subr.mxu0 0.0
        %4737 = vmatpush1.xpose.msra.mxu0 0.0
        %4738 = vmatprep.subr.mxu0 0.0
        %4739 = vmatpush1.xpose.msra.mxu0 0.0
        %4740 = vmatprep.subr.mxu0 0.0
        %4741 = vmatpush1.xpose.msra.mxu0 0.0
        %4742 = vmatprep.subr.mxu0 0.0
        %4743 = vmatpush1.xpose.msra.mxu0 0.0
        %4744 = vmatprep.subr.mxu0 0.0
        %4745 = vmatpush1.xpose.msra.mxu0 0.0
        %4746 = vmatprep.subr.mxu0 0.0
        %4747 = vmatpush1.xpose.msra.mxu0 0.0
        %4748 = vmatprep.subr.mxu0 0.0
        %4749 = vmatpush1.xpose.msra.mxu0 0.0
        %4750 = vmatprep.subr.mxu0 0.0
        %4751 = vmatpush1.xpose.msra.mxu0 0.0
        %4752 = vmatprep.subr.mxu0 0.0
        %4753 = vmatpush1.xpose.msra.mxu0 0.0
        %4754 = vmatprep.subr.mxu0 0.0
        %4755 = vmatpush1.xpose.msra.mxu0 0.0
        %4756 = vmatprep.subr.mxu0 0.0
        %4757 = vmatpush1.xpose.msra.mxu0 0.0
        %4758 = vmatprep.subr.mxu0 0.0
        %4759 = vmatpush1.xpose.msra.mxu0 0.0
        %4760 = vmatprep.subr.mxu0 0.0
        %4761 = vmatpush1.xpose.msra.mxu0 0.0
        %4762 = vmatprep.subr.mxu0 0.0
        %4763 = vmatpush1.xpose.msra.mxu0 0.0
        %4764 = vmatprep.subr.mxu0 0.0
        %4765 = vmatpush1.xpose.msra.mxu0 0.0
        %4766 = vmatprep.subr.mxu0 0.0
        %4767 = vmatpush1.xpose.msra.mxu0 0.0
        %4768 = vmatprep.subr.mxu0 0.0
        %4769 = vmatpush1.xpose.msra.mxu0 0.0
        %4770 = vmatprep.mubr.f32.mxu0 0.0
        %4771 = vmatmul.mubr.f32.gmra.mrb[0].mxu0 %v4704
        %v4772 = vpop.f32.mrb[0].mxu0
        %v4773 = vadd.f32 0.0, %v4772
        %v4774 = vpop.f32.mrb[0].mxu0
        %4775 = vdwg.mxu0
        %v4776 = vrot.slane %v1843, 3
        %v4777 = vrot.slane %v1845, 3
        %v4778 = vrot.slane %v1870, 3
        %v4779 = vcombine.low %v4776, %v4777
        %v4781 = vunpack.c.l.s4 1966171168
        %v4782 = vunpack.c.0.s8 %v4781
        %v4783 = vlaneseq
        %v4784 = vshrl.u32 %v4783, 7
        %v4785 = vsub.s32 %v4782, %v4784
        %v4786 = vrot.slane %v4779, %v4785
        %v4788 = vunpack.c.l.s4 1966171168
        %v4789 = vunpack.c.0.s8 %v4788
        %v4790 = vlaneseq
        %v4791 = vshrl.u32 %v4790, 7
        %v4792 = vsub.s32 %v4789, %v4791
        %v4793 = vrot.slane %v4778, %v4792
        %v4794 = vcombine.low %v4786, %v4793
        %v4796 = vunpack.c.l.s4 1966171168
        %v4797 = vunpack.c.0.s8 %v4796
        %v4798 = vlaneseq
        %v4799 = vshrl.u32 %v4798, 7
        %v4800 = vsub.s32 %v4797, %v4799
        %v4801 = vrot.slane %v4794, %v4800
        %4803 = vmatprep.subr.mxu0 0.0
        %4804 = vmatpush1.xpose.msra.mxu0 %v2114
        %4805 = vmatprep.subr.mxu0 0.0
        %4806 = vmatpush1.xpose.msra.mxu0 0.0
        %4807 = vmatprep.subr.mxu0 0.0
        %4808 = vmatpush1.xpose.msra.mxu0 0.0
        %4809 = vmatprep.subr.mxu0 0.0
        %4810 = vmatpush1.xpose.msra.mxu0 0.0
        %4811 = vmatprep.subr.mxu0 0.0
        %4812 = vmatpush1.xpose.msra.mxu0 0.0
        %4813 = vmatprep.subr.mxu0 0.0
        %4814 = vmatpush1.xpose.msra.mxu0 0.0
        %4815 = vmatprep.subr.mxu0 0.0
        %4816 = vmatpush1.xpose.msra.mxu0 0.0
        %4817 = vmatprep.subr.mxu0 0.0
        %4818 = vmatpush1.xpose.msra.mxu0 0.0
        %4819 = vmatprep.subr.mxu0 0.0
        %4820 = vmatpush1.xpose.msra.mxu0 0.0
        %4821 = vmatprep.subr.mxu0 0.0
        %4822 = vmatpush1.xpose.msra.mxu0 0.0
        %4823 = vmatprep.subr.mxu0 0.0
        %4824 = vmatpush1.xpose.msra.mxu0 0.0
        %4825 = vmatprep.subr.mxu0 0.0
        %4826 = vmatpush1.xpose.msra.mxu0 0.0
        %4827 = vmatprep.subr.mxu0 0.0
        %4828 = vmatpush1.xpose.msra.mxu0 0.0
        %4829 = vmatprep.subr.mxu0 0.0
        %4830 = vmatpush1.xpose.msra.mxu0 0.0
        %4831 = vmatprep.subr.mxu0 0.0
        %4832 = vmatpush1.xpose.msra.mxu0 0.0
        %4833 = vmatprep.subr.mxu0 0.0
        %4834 = vmatpush1.xpose.msra.mxu0 0.0
        %4835 = vmatprep.subr.mxu0 0.0
        %4836 = vmatpush1.xpose.msra.mxu0 0.0
        %4837 = vmatprep.subr.mxu0 0.0
        %4838 = vmatpush1.xpose.msra.mxu0 0.0
        %4839 = vmatprep.subr.mxu0 0.0
        %4840 = vmatpush1.xpose.msra.mxu0 0.0
        %4841 = vmatprep.subr.mxu0 0.0
        %4842 = vmatpush1.xpose.msra.mxu0 0.0
        %4843 = vmatprep.subr.mxu0 0.0
        %4844 = vmatpush1.xpose.msra.mxu0 0.0
        %4845 = vmatprep.subr.mxu0 0.0
        %4846 = vmatpush1.xpose.msra.mxu0 0.0
        %4847 = vmatprep.subr.mxu0 0.0
        %4848 = vmatpush1.xpose.msra.mxu0 0.0
        %4849 = vmatprep.subr.mxu0 0.0
        %4850 = vmatpush1.xpose.msra.mxu0 0.0
        %4851 = vmatprep.subr.mxu0 0.0
        %4852 = vmatpush1.xpose.msra.mxu0 0.0
        %4853 = vmatprep.subr.mxu0 0.0
        %4854 = vmatpush1.xpose.msra.mxu0 0.0
        %4855 = vmatprep.subr.mxu0 0.0
        %4856 = vmatpush1.xpose.msra.mxu0 0.0
        %4857 = vmatprep.subr.mxu0 0.0
        %4858 = vmatpush1.xpose.msra.mxu0 0.0
        %4859 = vmatprep.subr.mxu0 0.0
        %4860 = vmatpush1.xpose.msra.mxu0 0.0
        %4861 = vmatprep.subr.mxu0 0.0
        %4862 = vmatpush1.xpose.msra.mxu0 0.0
        %4863 = vmatprep.subr.mxu0 0.0
        %4864 = vmatpush1.xpose.msra.mxu0 0.0
        %4865 = vmatprep.subr.mxu0 0.0
        %4866 = vmatpush1.xpose.msra.mxu0 0.0
        %4867 = vmatprep.mubr.f32.mxu0 0.0
        %4868 = vmatmul.mubr.f32.gmra.mrb[0].mxu0 %v4801
        %v4869 = vpop.f32.mrb[0].mxu0
        %v4870 = vadd.f32 0.0, %v4869
        %v4871 = vpop.f32.mrb[0].mxu0
        %4872 = vdwg.mxu0
        %v4873 = vrot.slane %v1877, 3
        %v4874 = vrot.slane %v1878, 3
        %v4875 = vrot.slane %v1879, 3
        %v4876 = vcombine.low %v4873, %v4874
        %v4878 = vunpack.c.l.s4 1966171168
        %v4879 = vunpack.c.0.s8 %v4878
        %v4880 = vlaneseq
        %v4881 = vshrl.u32 %v4880, 7
        %v4882 = vsub.s32 %v4879, %v4881
        %v4883 = vrot.slane %v4876, %v4882
        %v4885 = vunpack.c.l.s4 1966171168
        %v4886 = vunpack.c.0.s8 %v4885
        %v4887 = vlaneseq
        %v4888 = vshrl.u32 %v4887, 7
        %v4889 = vsub.s32 %v4886, %v4888
        %v4890 = vrot.slane %v4875, %v4889
        %v4891 = vcombine.low %v4883, %v4890
        %v4893 = vunpack.c.l.s4 1966171168
        %v4894 = vunpack.c.0.s8 %v4893
        %v4895 = vlaneseq
        %v4896 = vshrl.u32 %v4895, 7
        %v4897 = vsub.s32 %v4894, %v4896
        %v4898 = vrot.slane %v4891, %v4897
        %4900 = vmatprep.subr.mxu0 0.0
        %4901 = vmatpush1.xpose.msra.mxu0 %v2120
        %4902 = vmatprep.subr.mxu0 0.0
        %4903 = vmatpush1.xpose.msra.mxu0 0.0
        %4904 = vmatprep.subr.mxu0 0.0
        %4905 = vmatpush1.xpose.msra.mxu0 0.0
        %4906 = vmatprep.subr.mxu0 0.0
        %4907 = vmatpush1.xpose.msra.mxu0 0.0
        %4908 = vmatprep.subr.mxu0 0.0
        %4909 = vmatpush1.xpose.msra.mxu0 0.0
        %4910 = vmatprep.subr.mxu0 0.0
        %4911 = vmatpush1.xpose.msra.mxu0 0.0
        %4912 = vmatprep.subr.mxu0 0.0
        %4913 = vmatpush1.xpose.msra.mxu0 0.0
        %4914 = vmatprep.subr.mxu0 0.0
        %4915 = vmatpush1.xpose.msra.mxu0 0.0
        %4916 = vmatprep.subr.mxu0 0.0
        %4917 = vmatpush1.xpose.msra.mxu0 0.0
        %4918 = vmatprep.subr.mxu0 0.0
        %4919 = vmatpush1.xpose.msra.mxu0 0.0
        %4920 = vmatprep.subr.mxu0 0.0
        %4921 = vmatpush1.xpose.msra.mxu0 0.0
        %4922 = vmatprep.subr.mxu0 0.0
        %4923 = vmatpush1.xpose.msra.mxu0 0.0
        %4924 = vmatprep.subr.mxu0 0.0
        %4925 = vmatpush1.xpose.msra.mxu0 0.0
        %4926 = vmatprep.subr.mxu0 0.0
        %4927 = vmatpush1.xpose.msra.mxu0 0.0
        %4928 = vmatprep.subr.mxu0 0.0
        %4929 = vmatpush1.xpose.msra.mxu0 0.0
        %4930 = vmatprep.subr.mxu0 0.0
        %4931 = vmatpush1.xpose.msra.mxu0 0.0
        %4932 = vmatprep.subr.mxu0 0.0
        %4933 = vmatpush1.xpose.msra.mxu0 0.0
        %4934 = vmatprep.subr.mxu0 0.0
        %4935 = vmatpush1.xpose.msra.mxu0 0.0
        %4936 = vmatprep.subr.mxu0 0.0
        %4937 = vmatpush1.xpose.msra.mxu0 0.0
        %4938 = vmatprep.subr.mxu0 0.0
        %4939 = vmatpush1.xpose.msra.mxu0 0.0
        %4940 = vmatprep.subr.mxu0 0.0
        %4941 = vmatpush1.xpose.msra.mxu0 0.0
        %4942 = vmatprep.subr.mxu0 0.0
        %4943 = vmatpush1.xpose.msra.mxu0 0.0
        %4944 = vmatprep.subr.mxu0 0.0
        %4945 = vmatpush1.xpose.msra.mxu0 0.0
        %4946 = vmatprep.subr.mxu0 0.0
        %4947 = vmatpush1.xpose.msra.mxu0 0.0
        %4948 = vmatprep.subr.mxu0 0.0
        %4949 = vmatpush1.xpose.msra.mxu0 0.0
        %4950 = vmatprep.subr.mxu0 0.0
        %4951 = vmatpush1.xpose.msra.mxu0 0.0
        %4952 = vmatprep.subr.mxu0 0.0
        %4953 = vmatpush1.xpose.msra.mxu0 0.0
        %4954 = vmatprep.subr.mxu0 0.0
        %4955 = vmatpush1.xpose.msra.mxu0 0.0
        %4956 = vmatprep.subr.mxu0 0.0
        %4957 = vmatpush1.xpose.msra.mxu0 0.0
        %4958 = vmatprep.subr.mxu0 0.0
        %4959 = vmatpush1.xpose.msra.mxu0 0.0
        %4960 = vmatprep.subr.mxu0 0.0
        %4961 = vmatpush1.xpose.msra.mxu0 0.0
        %4962 = vmatprep.subr.mxu0 0.0
        %4963 = vmatpush1.xpose.msra.mxu0 0.0
        %4964 = vmatprep.mubr.f32.mxu0 0.0
        %4965 = vmatmul.mubr.f32.gmra.mrb[0].mxu0 %v4898
        %v4966 = vpop.f32.mrb[0].mxu0
        %v4967 = vadd.f32 0.0, %v4966
        %v4968 = vpop.f32.mrb[0].mxu0
        %4969 = vdwg.mxu0
        %v4970 = vsel %vm2368, -1e+30, %v4676
        %v4971 = vsel %vm2369, -1e+30, %v4773
        %v4972 = vsel %vm2370, -1e+30, %v4870
        %v4973 = vsel %vm2371, -1e+30, %v4967
        %v4974 = vsel %vm2372, %v4970, -inf
        %4975 = vmax.xlane.f32.xlu0 %v4974
        %v4976 = vpop.xlane.xlu0 %4975
        %v4977 = vsel %vm2372, %v4971, -inf
        %4978 = vmax.xlane.f32.xlu0 %v4977
        %v4979 = vpop.xlane.xlu0 %4978
        %v4980 = vsel %vm2372, %v4972, -inf
        %4981 = vmax.xlane.f32.xlu0 %v4980
        %v4982 = vpop.xlane.xlu0 %4981
        %v4983 = vsel %vm2372, %v4973, -inf
        %4984 = vmax.xlane.f32.xlu0 %v4983
        %v4985 = vpop.xlane.xlu0 %4984
        %v4986 = vsub.f32 %v4970, %v4976
        %v4987 = vsub.f32 %v4971, %v4979
        %v4988 = vsub.f32 %v4972, %v4982
        %v4989 = vsub.f32 %v4973, %v4985
        %v4990 = vmul.f32 %v4986, 1.442695
        %v4991 = vpow.pop %v4990
        %v4992 = vmul.f32 %v4987, 1.442695
        %v4993 = vpow.pop %v4992
        %v4994 = vmul.f32 %v4988, 1.442695
        %v4995 = vpow.pop %v4994
        %v4996 = vmul.f32 %v4989, 1.442695
        %v4997 = vpow.pop %v4996
        %v4998 = vsel %vm2372, %v4991, 0.0
        %4999 = vadd.xlane.f32.xlu0 %v4998
        %v5000 = vpop.xlane.xlu0 %4999
        %v5001 = vsel %vm2372, %v4993, 0.0
        %5002 = vadd.xlane.f32.xlu0 %v5001
        %v5003 = vpop.xlane.xlu0 %5002
        %v5004 = vsel %vm2372, %v4995, 0.0
        %5005 = vadd.xlane.f32.xlu0 %v5004
        %v5006 = vpop.xlane.xlu0 %5005
        %v5007 = vsel %vm2372, %v4997, 0.0
        %5008 = vadd.xlane.f32.xlu0 %v5007
        %v5009 = vpop.xlane.xlu0 %5008
        %v5010 = vrcp.pop %v5000
        %v5011 = vrcp.pop %v5003
        %v5012 = vrcp.pop %v5006
        %v5013 = vrcp.pop %v5009
        %v5014 = vmul.f32 %v4991, %v5010
        %v5015 = vmul.f32 %v4993, %v5011
        %v5016 = vmul.f32 %v4995, %v5012
        %v5017 = vmul.f32 %v4997, %v5013
        %v5018 = vsel %vm2817, 0.0, %v5014
        %v5019 = vsel %vm2818, 0.0, %v5015
        %v5020 = vsel %vm2819, 0.0, %v5016
        %v5021 = vsel %vm2820, 0.0, %v5017
        %v5023 = vsel %vm2825, %v5018, 0
        %5025 = vmatprep.subr.mxu0 0.0
        %5026 = vmatpush1.msra.mxu0 %v2344
        %5027 = vmatprep.subr.mxu0 0.0
        %5028 = vmatpush1.msra.mxu0 0.0
        %5029 = vmatprep.subr.mxu0 0.0
        %5030 = vmatpush1.msra.mxu0 0.0
        %5031 = vmatprep.subr.mxu0 0.0
        %5032 = vmatpush1.msra.mxu0 0.0
        %5033 = vmatprep.subr.mxu0 0.0
        %5034 = vmatpush1.msra.mxu0 0.0
        %5035 = vmatprep.subr.mxu0 0.0
        %5036 = vmatpush1.msra.mxu0 0.0
        %5037 = vmatprep.subr.mxu0 0.0
        %5038 = vmatpush1.msra.mxu0 0.0
        %5039 = vmatprep.subr.mxu0 0.0
        %5040 = vmatpush1.msra.mxu0 0.0
        %5041 = vmatprep.subr.mxu0 0.0
        %5042 = vmatpush1.msra.mxu0 0.0
        %5043 = vmatprep.subr.mxu0 0.0
        %5044 = vmatpush1.msra.mxu0 0.0
        %5045 = vmatprep.subr.mxu0 0.0
        %5046 = vmatpush1.msra.mxu0 0.0
        %5047 = vmatprep.subr.mxu0 0.0
        %5048 = vmatpush1.msra.mxu0 0.0
        %5049 = vmatprep.subr.mxu0 0.0
        %5050 = vmatpush1.msra.mxu0 0.0
        %5051 = vmatprep.subr.mxu0 0.0
        %5052 = vmatpush1.msra.mxu0 0.0
        %5053 = vmatprep.subr.mxu0 0.0
        %5054 = vmatpush1.msra.mxu0 0.0
        %5055 = vmatprep.subr.mxu0 0.0
        %5056 = vmatpush1.msra.mxu0 0.0
        %5057 = vmatprep.subr.mxu0 0.0
        %5058 = vmatpush1.msra.mxu0 0.0
        %5059 = vmatprep.subr.mxu0 0.0
        %5060 = vmatpush1.msra.mxu0 0.0
        %5061 = vmatprep.subr.mxu0 0.0
        %5062 = vmatpush1.msra.mxu0 0.0
        %5063 = vmatprep.subr.mxu0 0.0
        %5064 = vmatpush1.msra.mxu0 0.0
        %5065 = vmatprep.subr.mxu0 0.0
        %5066 = vmatpush1.msra.mxu0 0.0
        %5067 = vmatprep.subr.mxu0 0.0
        %5068 = vmatpush1.msra.mxu0 0.0
        %5069 = vmatprep.subr.mxu0 0.0
        %5070 = vmatpush1.msra.mxu0 0.0
        %5071 = vmatprep.subr.mxu0 0.0
        %5072 = vmatpush1.msra.mxu0 0.0
        %5073 = vmatprep.subr.mxu0 0.0
        %5074 = vmatpush1.msra.mxu0 0.0
        %5075 = vmatprep.subr.mxu0 0.0
        %5076 = vmatpush1.msra.mxu0 0.0
        %5077 = vmatprep.subr.mxu0 0.0
        %5078 = vmatpush1.msra.mxu0 0.0
        %5079 = vmatprep.subr.mxu0 0.0
        %5080 = vmatpush1.msra.mxu0 0.0
        %5081 = vmatprep.subr.mxu0 0.0
        %5082 = vmatpush1.msra.mxu0 0.0
        %5083 = vmatprep.subr.mxu0 0.0
        %5084 = vmatpush1.msra.mxu0 0.0
        %5085 = vmatprep.subr.mxu0 0.0
        %5086 = vmatpush1.msra.mxu0 0.0
        %5087 = vmatprep.subr.mxu0 0.0
        %5088 = vmatpush1.msra.mxu0 0.0
        %5089 = vmatprep.mubr.f32.mxu0 0.0
        %5090 = vmatmul.mubr.f32.gmra.mrb[0].mxu0 %v5023
        %v5091 = vpop.f32.mrb[0].mxu0
        %v5092 = vadd.f32 0.0, %v5091
        %v5093 = vpop.f32.mrb[0].mxu0
        %5094 = vdwg.mxu0
        %v5096 = vsel %vm2825, %v5019, 0
        %5098 = vmatprep.subr.mxu0 0.0
        %5099 = vmatpush1.msra.mxu0 %v2350
        %5100 = vmatprep.subr.mxu0 0.0
        %5101 = vmatpush1.msra.mxu0 0.0
        %5102 = vmatprep.subr.mxu0 0.0
        %5103 = vmatpush1.msra.mxu0 0.0
        %5104 = vmatprep.subr.mxu0 0.0
        %5105 = vmatpush1.msra.mxu0 0.0
        %5106 = vmatprep.subr.mxu0 0.0
        %5107 = vmatpush1.msra.mxu0 0.0
        %5108 = vmatprep.subr.mxu0 0.0
        %5109 = vmatpush1.msra.mxu0 0.0
        %5110 = vmatprep.subr.mxu0 0.0
        %5111 = vmatpush1.msra.mxu0 0.0
        %5112 = vmatprep.subr.mxu0 0.0
        %5113 = vmatpush1.msra.mxu0 0.0
        %5114 = vmatprep.subr.mxu0 0.0
        %5115 = vmatpush1.msra.mxu0 0.0
        %5116 = vmatprep.subr.mxu0 0.0
        %5117 = vmatpush1.msra.mxu0 0.0
        %5118 = vmatprep.subr.mxu0 0.0
        %5119 = vmatpush1.msra.mxu0 0.0
        %5120 = vmatprep.subr.mxu0 0.0
        %5121 = vmatpush1.msra.mxu0 0.0
        %5122 = vmatprep.subr.mxu0 0.0
        %5123 = vmatpush1.msra.mxu0 0.0
        %5124 = vmatprep.subr.mxu0 0.0
        %5125 = vmatpush1.msra.mxu0 0.0
        %5126 = vmatprep.subr.mxu0 0.0
        %5127 = vmatpush1.msra.mxu0 0.0
        %5128 = vmatprep.subr.mxu0 0.0
        %5129 = vmatpush1.msra.mxu0 0.0
        %5130 = vmatprep.subr.mxu0 0.0
        %5131 = vmatpush1.msra.mxu0 0.0
        %5132 = vmatprep.subr.mxu0 0.0
        %5133 = vmatpush1.msra.mxu0 0.0
        %5134 = vmatprep.subr.mxu0 0.0
        %5135 = vmatpush1.msra.mxu0 0.0
        %5136 = vmatprep.subr.mxu0 0.0
        %5137 = vmatpush1.msra.mxu0 0.0
        %5138 = vmatprep.subr.mxu0 0.0
        %5139 = vmatpush1.msra.mxu0 0.0
        %5140 = vmatprep.subr.mxu0 0.0
        %5141 = vmatpush1.msra.mxu0 0.0
        %5142 = vmatprep.subr.mxu0 0.0
        %5143 = vmatpush1.msra.mxu0 0.0
        %5144 = vmatprep.subr.mxu0 0.0
        %5145 = vmatpush1.msra.mxu0 0.0
        %5146 = vmatprep.subr.mxu0 0.0
        %5147 = vmatpush1.msra.mxu0 0.0
        %5148 = vmatprep.subr.mxu0 0.0
        %5149 = vmatpush1.msra.mxu0 0.0
        %5150 = vmatprep.subr.mxu0 0.0
        %5151 = vmatpush1.msra.mxu0 0.0
        %5152 = vmatprep.subr.mxu0 0.0
        %5153 = vmatpush1.msra.mxu0 0.0
        %5154 = vmatprep.subr.mxu0 0.0
        %5155 = vmatpush1.msra.mxu0 0.0
        %5156 = vmatprep.subr.mxu0 0.0
        %5157 = vmatpush1.msra.mxu0 0.0
        %5158 = vmatprep.subr.mxu0 0.0
        %5159 = vmatpush1.msra.mxu0 0.0
        %5160 = vmatprep.subr.mxu0 0.0
        %5161 = vmatpush1.msra.mxu0 0.0
        %5162 = vmatprep.mubr.f32.mxu0 0.0
        %5163 = vmatmul.mubr.f32.gmra.mrb[0].mxu0 %v5096
        %v5164 = vpop.f32.mrb[0].mxu0
        %v5165 = vadd.f32 0.0, %v5164
        %v5166 = vpop.f32.mrb[0].mxu0
        %5167 = vdwg.mxu0
        %v5169 = vsel %vm2825, %v5020, 0
        %5171 = vmatprep.subr.mxu0 0.0
        %5172 = vmatpush1.msra.mxu0 %v2356
        %5173 = vmatprep.subr.mxu0 0.0
        %5174 = vmatpush1.msra.mxu0 0.0
        %5175 = vmatprep.subr.mxu0 0.0
        %5176 = vmatpush1.msra.mxu0 0.0
        %5177 = vmatprep.subr.mxu0 0.0
        %5178 = vmatpush1.msra.mxu0 0.0
        %5179 = vmatprep.subr.mxu0 0.0
        %5180 = vmatpush1.msra.mxu0 0.0
        %5181 = vmatprep.subr.mxu0 0.0
        %5182 = vmatpush1.msra.mxu0 0.0
        %5183 = vmatprep.subr.mxu0 0.0
        %5184 = vmatpush1.msra.mxu0 0.0
        %5185 = vmatprep.subr.mxu0 0.0
        %5186 = vmatpush1.msra.mxu0 0.0
        %5187 = vmatprep.subr.mxu0 0.0
        %5188 = vmatpush1.msra.mxu0 0.0
        %5189 = vmatprep.subr.mxu0 0.0
        %5190 = vmatpush1.msra.mxu0 0.0
        %5191 = vmatprep.subr.mxu0 0.0
        %5192 = vmatpush1.msra.mxu0 0.0
        %5193 = vmatprep.subr.mxu0 0.0
        %5194 = vmatpush1.msra.mxu0 0.0
        %5195 = vmatprep.subr.mxu0 0.0
        %5196 = vmatpush1.msra.mxu0 0.0
        %5197 = vmatprep.subr.mxu0 0.0
        %5198 = vmatpush1.msra.mxu0 0.0
        %5199 = vmatprep.subr.mxu0 0.0
        %5200 = vmatpush1.msra.mxu0 0.0
        %5201 = vmatprep.subr.mxu0 0.0
        %5202 = vmatpush1.msra.mxu0 0.0
        %5203 = vmatprep.subr.mxu0 0.0
        %5204 = vmatpush1.msra.mxu0 0.0
        %5205 = vmatprep.subr.mxu0 0.0
        %5206 = vmatpush1.msra.mxu0 0.0
        %5207 = vmatprep.subr.mxu0 0.0
        %5208 = vmatpush1.msra.mxu0 0.0
        %5209 = vmatprep.subr.mxu0 0.0
        %5210 = vmatpush1.msra.mxu0 0.0
        %5211 = vmatprep.subr.mxu0 0.0
        %5212 = vmatpush1.msra.mxu0 0.0
        %5213 = vmatprep.subr.mxu0 0.0
        %5214 = vmatpush1.msra.mxu0 0.0
        %5215 = vmatprep.subr.mxu0 0.0
        %5216 = vmatpush1.msra.mxu0 0.0
        %5217 = vmatprep.subr.mxu0 0.0
        %5218 = vmatpush1.msra.mxu0 0.0
        %5219 = vmatprep.subr.mxu0 0.0
        %5220 = vmatpush1.msra.mxu0 0.0
        %5221 = vmatprep.subr.mxu0 0.0
        %5222 = vmatpush1.msra.mxu0 0.0
        %5223 = vmatprep.subr.mxu0 0.0
        %5224 = vmatpush1.msra.mxu0 0.0
        %5225 = vmatprep.subr.mxu0 0.0
        %5226 = vmatpush1.msra.mxu0 0.0
        %5227 = vmatprep.subr.mxu0 0.0
        %5228 = vmatpush1.msra.mxu0 0.0
        %5229 = vmatprep.subr.mxu0 0.0
        %5230 = vmatpush1.msra.mxu0 0.0
        %5231 = vmatprep.subr.mxu0 0.0
        %5232 = vmatpush1.msra.mxu0 0.0
        %5233 = vmatprep.subr.mxu0 0.0
        %5234 = vmatpush1.msra.mxu0 0.0
        %5235 = vmatprep.mubr.f32.mxu0 0.0
        %5236 = vmatmul.mubr.f32.gmra.mrb[0].mxu0 %v5169
        %v5237 = vpop.f32.mrb[0].mxu0
        %v5238 = vadd.f32 0.0, %v5237
        %v5239 = vpop.f32.mrb[0].mxu0
        %5240 = vdwg.mxu0
        %v5242 = vsel %vm2825, %v5021, 0
        %5244 = vmatprep.subr.mxu0 0.0
        %5245 = vmatpush1.msra.mxu0 %v2362
        %5246 = vmatprep.subr.mxu0 0.0
        %5247 = vmatpush1.msra.mxu0 0.0
        %5248 = vmatprep.subr.mxu0 0.0
        %5249 = vmatpush1.msra.mxu0 0.0
        %5250 = vmatprep.subr.mxu0 0.0
        %5251 = vmatpush1.msra.mxu0 0.0
        %5252 = vmatprep.subr.mxu0 0.0
        %5253 = vmatpush1.msra.mxu0 0.0
        %5254 = vmatprep.subr.mxu0 0.0
        %5255 = vmatpush1.msra.mxu0 0.0
        %5256 = vmatprep.subr.mxu0 0.0
        %5257 = vmatpush1.msra.mxu0 0.0
        %5258 = vmatprep.subr.mxu0 0.0
        %5259 = vmatpush1.msra.mxu0 0.0
        %5260 = vmatprep.subr.mxu0 0.0
        %5261 = vmatpush1.msra.mxu0 0.0
        %5262 = vmatprep.subr.mxu0 0.0
        %5263 = vmatpush1.msra.mxu0 0.0
        %5264 = vmatprep.subr.mxu0 0.0
        %5265 = vmatpush1.msra.mxu0 0.0
        %5266 = vmatprep.subr.mxu0 0.0
        %5267 = vmatpush1.msra.mxu0 0.0
        %5268 = vmatprep.subr.mxu0 0.0
        %5269 = vmatpush1.msra.mxu0 0.0
        %5270 = vmatprep.subr.mxu0 0.0
        %5271 = vmatpush1.msra.mxu0 0.0
        %5272 = vmatprep.subr.mxu0 0.0
        %5273 = vmatpush1.msra.mxu0 0.0
        %5274 = vmatprep.subr.mxu0 0.0
        %5275 = vmatpush1.msra.mxu0 0.0
        %5276 = vmatprep.subr.mxu0 0.0
        %5277 = vmatpush1.msra.mxu0 0.0
        %5278 = vmatprep.subr.mxu0 0.0
        %5279 = vmatpush1.msra.mxu0 0.0
        %5280 = vmatprep.subr.mxu0 0.0
        %5281 = vmatpush1.msra.mxu0 0.0
        %5282 = vmatprep.subr.mxu0 0.0
        %5283 = vmatpush1.msra.mxu0 0.0
        %5284 = vmatprep.subr.mxu0 0.0
        %5285 = vmatpush1.msra.mxu0 0.0
        %5286 = vmatprep.subr.mxu0 0.0
        %5287 = vmatpush1.msra.mxu0 0.0
        %5288 = vmatprep.subr.mxu0 0.0
        %5289 = vmatpush1.msra.mxu0 0.0
        %5290 = vmatprep.subr.mxu0 0.0
        %5291 = vmatpush1.msra.mxu0 0.0
        %5292 = vmatprep.subr.mxu0 0.0
        %5293 = vmatpush1.msra.mxu0 0.0
        %5294 = vmatprep.subr.mxu0 0.0
        %5295 = vmatpush1.msra.mxu0 0.0
        %5296 = vmatprep.subr.mxu0 0.0
        %5297 = vmatpush1.msra.mxu0 0.0
        %5298 = vmatprep.subr.mxu0 0.0
        %5299 = vmatpush1.msra.mxu0 0.0
        %5300 = vmatprep.subr.mxu0 0.0
        %5301 = vmatpush1.msra.mxu0 0.0
        %5302 = vmatprep.subr.mxu0 0.0
        %5303 = vmatpush1.msra.mxu0 0.0
        %5304 = vmatprep.subr.mxu0 0.0
        %5305 = vmatpush1.msra.mxu0 0.0
        %5306 = vmatprep.subr.mxu0 0.0
        %5307 = vmatpush1.msra.mxu0 0.0
        %5308 = vmatprep.mubr.f32.mxu0 0.0
        %5309 = vmatmul.mubr.f32.gmra.mrb[0].mxu0 %v5242
        %v5310 = vpop.f32.mrb[0].mxu0
        %v5311 = vadd.f32 0.0, %v5310
        %v5312 = vpop.f32.mrb[0].mxu0
        %5313 = vdwg.mxu0
        %v5330 = vcombine.low %v2896, %v3628
        %v5331 = vcombine.low %v4360, %v5092
        %v5333 = vunpack.c.l.s4 1966171168
        %v5334 = vunpack.c.0.s8 %v5333
        %v5335 = vlaneseq
        %v5336 = vshrl.u32 %v5335, 7
        %v5337 = vsub.s32 %v5334, %v5336
        %v5338 = vrot.slane %v5330, %v5337
        %v5340 = vunpack.c.l.s4 1966171168
        %v5341 = vunpack.c.0.s8 %v5340
        %v5342 = vlaneseq
        %v5343 = vshrl.u32 %v5342, 7
        %v5344 = vsub.s32 %v5341, %v5343
        %v5345 = vrot.slane %v5331, %v5344
        %v5346 = vcombine.low %v5338, %v5345
        %v5347 = vcombine.high %v5338, %v5345
        %v5349 = vunpack.c.l.s4 1966171168
        %v5350 = vunpack.c.0.s8 %v5349
        %v5351 = vlaneseq
        %v5352 = vshrl.u32 %v5351, 7
        %v5353 = vsub.s32 %v5350, %v5352
        %v5354 = vrot.slane %v5346, %v5353
        %v5356 = vunpack.c.l.s4 1966171168
        %v5357 = vunpack.c.0.s8 %v5356
        %v5358 = vlaneseq
        %v5359 = vshrl.u32 %v5358, 7
        %v5360 = vsub.s32 %v5357, %v5359
        %v5361 = vrot.slane %v5347, %v5360
        %v5362 = vcombine.high %v5354, %v5354
        %v5363 = vcombine.low %v2969, %v3701
        %v5364 = vcombine.low %v4433, %v5165
        %v5366 = vunpack.c.l.s4 1966171168
        %v5367 = vunpack.c.0.s8 %v5366
        %v5368 = vlaneseq
        %v5369 = vshrl.u32 %v5368, 7
        %v5370 = vsub.s32 %v5367, %v5369
        %v5371 = vrot.slane %v5363, %v5370
        %v5373 = vunpack.c.l.s4 1966171168
        %v5374 = vunpack.c.0.s8 %v5373
        %v5375 = vlaneseq
        %v5376 = vshrl.u32 %v5375, 7
        %v5377 = vsub.s32 %v5374, %v5376
        %v5378 = vrot.slane %v5364, %v5377
        %v5379 = vcombine.low %v5371, %v5378
        %v5380 = vcombine.high %v5371, %v5378
        %v5382 = vunpack.c.l.s4 1966171168
        %v5383 = vunpack.c.0.s8 %v5382
        %v5384 = vlaneseq
        %v5385 = vshrl.u32 %v5384, 7
        %v5386 = vsub.s32 %v5383, %v5385
        %v5387 = vrot.slane %v5379, %v5386
        %v5389 = vunpack.c.l.s4 1966171168
        %v5390 = vunpack.c.0.s8 %v5389
        %v5391 = vlaneseq
        %v5392 = vshrl.u32 %v5391, 7
        %v5393 = vsub.s32 %v5390, %v5392
        %v5394 = vrot.slane %v5380, %v5393
        %v5395 = vcombine.high %v5387, %v5387
        %v5396 = vcombine.low %v3042, %v3774
        %v5397 = vcombine.low %v4506, %v5238
        %v5399 = vunpack.c.l.s4 1966171168
        %v5400 = vunpack.c.0.s8 %v5399
        %v5401 = vlaneseq
        %v5402 = vshrl.u32 %v5401, 7
        %v5403 = vsub.s32 %v5400, %v5402
        %v5404 = vrot.slane %v5396, %v5403
        %v5406 = vunpack.c.l.s4 1966171168
        %v5407 = vunpack.c.0.s8 %v5406
        %v5408 = vlaneseq
        %v5409 = vshrl.u32 %v5408, 7
        %v5410 = vsub.s32 %v5407, %v5409
        %v5411 = vrot.slane %v5397, %v5410
        %v5412 = vcombine.low %v5404, %v5411
        %v5413 = vcombine.high %v5404, %v5411
        %v5415 = vunpack.c.l.s4 1966171168
        %v5416 = vunpack.c.0.s8 %v5415
        %v5417 = vlaneseq
        %v5418 = vshrl.u32 %v5417, 7
        %v5419 = vsub.s32 %v5416, %v5418
        %v5420 = vrot.slane %v5412, %v5419
        %v5422 = vunpack.c.l.s4 1966171168
        %v5423 = vunpack.c.0.s8 %v5422
        %v5424 = vlaneseq
        %v5425 = vshrl.u32 %v5424, 7
        %v5426 = vsub.s32 %v5423, %v5425
        %v5427 = vrot.slane %v5413, %v5426
        %v5428 = vcombine.high %v5420, %v5420
        %v5429 = vcombine.low %v3115, %v3847
        %v5430 = vcombine.low %v4579, %v5311
        %v5432 = vunpack.c.l.s4 1966171168
        %v5433 = vunpack.c.0.s8 %v5432
        %v5434 = vlaneseq
        %v5435 = vshrl.u32 %v5434, 7
        %v5436 = vsub.s32 %v5433, %v5435
        %v5437 = vrot.slane %v5429, %v5436
        %v5439 = vunpack.c.l.s4 1966171168
        %v5440 = vunpack.c.0.s8 %v5439
        %v5441 = vlaneseq
        %v5442 = vshrl.u32 %v5441, 7
        %v5443 = vsub.s32 %v5440, %v5442
        %v5444 = vrot.slane %v5430, %v5443
        %v5445 = vcombine.low %v5437, %v5444
        %v5446 = vcombine.high %v5437, %v5444
        %v5448 = vunpack.c.l.s4 1966171168
        %v5449 = vunpack.c.0.s8 %v5448
        %v5450 = vlaneseq
        %v5451 = vshrl.u32 %v5450, 7
        %v5452 = vsub.s32 %v5449, %v5451
        %v5453 = vrot.slane %v5445, %v5452
        %v5455 = vunpack.c.l.s4 1966171168
        %v5456 = vunpack.c.0.s8 %v5455
        %v5457 = vlaneseq
        %v5458 = vshrl.u32 %v5457, 7
        %v5459 = vsub.s32 %v5456, %v5458
        %v5460 = vrot.slane %v5446, %v5459
        %v5461 = vcombine.high %v5453, %v5453
        %v5462 = vld [vmem:[#allocation12] sm:$0xff]
        %v5463 = vld [vmem:[#allocation12 + $0x8] sm:$0xff]
        %v5464 = vld [vmem:[#allocation12 + $0x10] sm:$0xff]
        %v5465 = vld [vmem:[#allocation12 + $0x18] sm:$0xff]
        %v5466 = vld [vmem:[#allocation12 + $0x20] sm:$0xff]
        %v5467 = vld [vmem:[#allocation12 + $0x28] sm:$0xff]
        %v5468 = vld [vmem:[#allocation12 + $0x30] sm:$0xff]
        %v5469 = vld [vmem:[#allocation12 + $0x38] sm:$0xff]
        %v5470 = vld [vmem:[#allocation12 + $0x40] sm:$0xff]
        %v5471 = vld [vmem:[#allocation12 + $0x48] sm:$0xff]
        %v5472 = vld [vmem:[#allocation12 + $0x50] sm:$0xff]
        %v5473 = vld [vmem:[#allocation12 + $0x58] sm:$0xff]
        %v5474 = vld [vmem:[#allocation12 + $0x60] sm:$0xff]
        %v5475 = vld [vmem:[#allocation12 + $0x68] sm:$0xff]
        %v5476 = vld [vmem:[#allocation12 + $0x70] sm:$0xff]
        %v5477 = vld [vmem:[#allocation12 + $0x78] sm:$0xff]
        %v5478 = vld [vmem:[#allocation12 + $0x80] sm:$0xff]
        %v5479 = vld [vmem:[#allocation12 + $0x88] sm:$0xff]
        %v5480 = vld [vmem:[#allocation12 + $0x90] sm:$0xff]
        %v5481 = vld [vmem:[#allocation12 + $0x98] sm:$0xff]
        %v5482 = vld [vmem:[#allocation12 + $0xa0] sm:$0xff]
        %v5483 = vld [vmem:[#allocation12 + $0xa8] sm:$0xff]
        %v5484 = vld [vmem:[#allocation12 + $0xb0] sm:$0xff]
        %v5485 = vld [vmem:[#allocation12 + $0xb8] sm:$0xff]
        %v5486 = vld [vmem:[#allocation12 + $0xc0] sm:$0xff]
        %v5487 = vld [vmem:[#allocation12 + $0xc8] sm:$0xff]
        %v5488 = vld [vmem:[#allocation12 + $0xd0] sm:$0xff]
        %v5489 = vld [vmem:[#allocation12 + $0xd8] sm:$0xff]
        %v5490 = vld [vmem:[#allocation12 + $0xe0] sm:$0xff]
        %v5491 = vld [vmem:[#allocation12 + $0xe8] sm:$0xff]
        %v5492 = vld [vmem:[#allocation12 + $0xf0] sm:$0xff]
        %v5493 = vld [vmem:[#allocation12 + $0xf8] sm:$0xff]
        %v5494 = vld [vmem:[#allocation12 + $0x100] sm:$0xff]
        %v5495 = vld [vmem:[#allocation12 + $0x108] sm:$0xff]
        %v5496 = vld [vmem:[#allocation12 + $0x110] sm:$0xff]
        %v5497 = vld [vmem:[#allocation12 + $0x118] sm:$0xff]
        %v5498 = vld [vmem:[#allocation12 + $0x120] sm:$0xff]
        %v5499 = vld [vmem:[#allocation12 + $0x128] sm:$0xff]
        %v5500 = vld [vmem:[#allocation12 + $0x130] sm:$0xff]
        %v5501 = vld [vmem:[#allocation12 + $0x138] sm:$0xff]
        %v5502 = vld [vmem:[#allocation12 + $0x140] sm:$0xff]
        %v5503 = vld [vmem:[#allocation12 + $0x148] sm:$0xff]
        %v5504 = vld [vmem:[#allocation12 + $0x150] sm:$0xff]
        %v5505 = vld [vmem:[#allocation12 + $0x158] sm:$0xff]
        %v5506 = vld [vmem:[#allocation12 + $0x160] sm:$0xff]
        %v5507 = vld [vmem:[#allocation12 + $0x168] sm:$0xff]
        %v5508 = vld [vmem:[#allocation12 + $0x170] sm:$0xff]
        %v5509 = vld [vmem:[#allocation12 + $0x178] sm:$0xff]
        %v5510 = vld [vmem:[#allocation12 + $0x180] sm:$0xff]
        %v5511 = vld [vmem:[#allocation12 + $0x188] sm:$0xff]
        %v5512 = vld [vmem:[#allocation12 + $0x190] sm:$0xff]
        %v5513 = vld [vmem:[#allocation12 + $0x198] sm:$0xff]
        %v5514 = vld [vmem:[#allocation12 + $0x1a0] sm:$0xff]
        %v5515 = vld [vmem:[#allocation12 + $0x1a8] sm:$0xff]
        %v5516 = vld [vmem:[#allocation12 + $0x1b0] sm:$0xff]
        %v5517 = vld [vmem:[#allocation12 + $0x1b8] sm:$0xff]
        %v5518 = vld [vmem:[#allocation12 + $0x1c0] sm:$0xff]
        %v5519 = vld [vmem:[#allocation12 + $0x1c8] sm:$0xff]
        %v5520 = vld [vmem:[#allocation12 + $0x1d0] sm:$0xff]
        %v5521 = vld [vmem:[#allocation12 + $0x1d8] sm:$0xff]
        %v5522 = vld [vmem:[#allocation12 + $0x1e0] sm:$0xff]
        %v5523 = vld [vmem:[#allocation12 + $0x1e8] sm:$0xff]
        %v5524 = vld [vmem:[#allocation12 + $0x1f0] sm:$0xff]
        %v5525 = vld [vmem:[#allocation12 + $0x1f8] sm:$0xff]
        %v5526 = vld [vmem:[%s21] sm:$0x1]
        %v5528 = vlaneseq
        %v5529 = vshrl.u32 %v5528, 7
        %v5530 = vsub.s32 0, %v5529
        %v5531 = vrot.slane %v5526, %v5530
        %v5533 = vcombine.low %v5354, %v5361
        %v5534 = vcombine.low %v5362, %v5387
        %v5535 = vcombine.low %v5394, %v5395
        %v5536 = vcombine.low %v5420, %v5427
        %v5538 = vunpack.c.l.s4 1966171168
        %v5539 = vunpack.c.0.s8 %v5538
        %v5540 = vlaneseq
        %v5541 = vshrl.u32 %v5540, 7
        %v5542 = vsub.s32 %v5539, %v5541
        %v5543 = vrot.slane %v5533, %v5542
        %v5545 = vunpack.c.l.s4 1966171168
        %v5546 = vunpack.c.0.s8 %v5545
        %v5547 = vlaneseq
        %v5548 = vshrl.u32 %v5547, 7
        %v5549 = vsub.s32 %v5546, %v5548
        %v5550 = vrot.slane %v5534, %v5549
        %v5552 = vunpack.c.l.s4 1966171168
        %v5553 = vunpack.c.0.s8 %v5552
        %v5554 = vlaneseq
        %v5555 = vshrl.u32 %v5554, 7
        %v5556 = vsub.s32 %v5553, %v5555
        %v5557 = vrot.slane %v5535, %v5556
        %v5559 = vunpack.c.l.s4 1966171168
        %v5560 = vunpack.c.0.s8 %v5559
        %v5561 = vlaneseq
        %v5562 = vshrl.u32 %v5561, 7
        %v5563 = vsub.s32 %v5560, %v5562
        %v5564 = vrot.slane %v5536, %v5563
        %v5565 = vcombine.low %v5543, %v5550
        %v5566 = vcombine.high %v5543, %v5550
        %v5567 = vcombine.low %v5557, %v5564
        %v5568 = vcombine.high %v5557, %v5564
        %v5570 = vunpack.c.l.s4 1966171168
        %v5571 = vunpack.c.0.s8 %v5570
        %v5572 = vlaneseq
        %v5573 = vshrl.u32 %v5572, 7
        %v5574 = vsub.s32 %v5571, %v5573
        %v5575 = vrot.slane %v5565, %v5574
        %v5577 = vunpack.c.l.s4 1966171168
        %v5578 = vunpack.c.0.s8 %v5577
        %v5579 = vlaneseq
        %v5580 = vshrl.u32 %v5579, 7
        %v5581 = vsub.s32 %v5578, %v5580
        %v5582 = vrot.slane %v5566, %v5581
        %v5584 = vunpack.c.l.s4 1966171168
        %v5585 = vunpack.c.0.s8 %v5584
        %v5586 = vlaneseq
        %v5587 = vshrl.u32 %v5586, 7
        %v5588 = vsub.s32 %v5585, %v5587
        %v5589 = vrot.slane %v5567, %v5588
        %v5591 = vunpack.c.l.s4 1966171168
        %v5592 = vunpack.c.0.s8 %v5591
        %v5593 = vlaneseq
        %v5594 = vshrl.u32 %v5593, 7
        %v5595 = vsub.s32 %v5592, %v5594
        %v5596 = vrot.slane %v5568, %v5595
        %v5597 = vcombine.low %v5575, %v5589
        %v5598 = vcombine.high %v5575, %v5589
        %v5599 = vcombine.low %v5582, %v5596
        %v5600 = vcombine.high %v5582, %v5596
        %v5601 = vcombine.low %v5428, %v5453
        %v5602 = vcombine.low %v5460, %v5461
        %v5604 = vunpack.c.l.s4 1966171168
        %v5605 = vunpack.c.0.s8 %v5604
        %v5606 = vlaneseq
        %v5607 = vshrl.u32 %v5606, 7
        %v5608 = vsub.s32 %v5605, %v5607
        %v5609 = vrot.slane %v5601, %v5608
        %v5611 = vunpack.c.l.s4 1966171168
        %v5612 = vunpack.c.0.s8 %v5611
        %v5613 = vlaneseq
        %v5614 = vshrl.u32 %v5613, 7
        %v5615 = vsub.s32 %v5612, %v5614
        %v5616 = vrot.slane %v5602, %v5615
        %v5617 = vcombine.low %v5609, %v5616
        %v5618 = vcombine.high %v5609, %v5616
        %v5620 = vunpack.c.l.s4 1966171168
        %v5621 = vunpack.c.0.s8 %v5620
        %v5622 = vlaneseq
        %v5623 = vshrl.u32 %v5622, 7
        %v5624 = vsub.s32 %v5621, %v5623
        %v5625 = vrot.slane %v5617, %v5624
        %v5627 = vunpack.c.l.s4 1966171168
        %v5628 = vunpack.c.0.s8 %v5627
        %v5629 = vlaneseq
        %v5630 = vshrl.u32 %v5629, 7
        %v5631 = vsub.s32 %v5628, %v5630
        %v5632 = vrot.slane %v5618, %v5631
        %v5633 = vcombine.high %v5625, %v5625
        %v5634 = vcombine.high %v5632, %v5632
        %5643 = vmatprep.subr.mxu0 0.0
        %5644 = vmatpush1.msra.mxu0 %v5462
        %5645 = vmatprep.subr.mxu0 0.0
        %5646 = vmatpush1.msra.mxu0 %v5463
        %5647 = vmatprep.subr.mxu0 0.0
        %5648 = vmatpush1.msra.mxu0 %v5464
        %5649 = vmatprep.subr.mxu0 0.0
        %5650 = vmatpush1.msra.mxu0 %v5465
        %5651 = vmatprep.subr.mxu0 0.0
        %5652 = vmatpush1.msra.mxu0 %v5466
        %5653 = vmatprep.subr.mxu0 0.0
        %5654 = vmatpush1.msra.mxu0 %v5467
        %5655 = vmatprep.subr.mxu0 0.0
        %5656 = vmatpush1.msra.mxu0 %v5468
        %5657 = vmatprep.subr.mxu0 0.0
        %5658 = vmatpush1.msra.mxu0 %v5469
        %5659 = vmatprep.subr.mxu0 0.0
        %5660 = vmatpush1.msra.mxu0 %v5470
        %5661 = vmatprep.subr.mxu0 0.0
        %5662 = vmatpush1.msra.mxu0 %v5471
        %5663 = vmatprep.subr.mxu0 0.0
        %5664 = vmatpush1.msra.mxu0 %v5472
        %5665 = vmatprep.subr.mxu0 0.0
        %5666 = vmatpush1.msra.mxu0 %v5473
        %5667 = vmatprep.subr.mxu0 0.0
        %5668 = vmatpush1.msra.mxu0 %v5474
        %5669 = vmatprep.subr.mxu0 0.0
        %5670 = vmatpush1.msra.mxu0 %v5475
        %5671 = vmatprep.subr.mxu0 0.0
        %5672 = vmatpush1.msra.mxu0 %v5476
        %5673 = vmatprep.subr.mxu0 0.0
        %5674 = vmatpush1.msra.mxu0 %v5477
        %5675 = vmatprep.subr.mxu0 0.0
        %5676 = vmatpush1.msra.mxu0 %v5478
        %5677 = vmatprep.subr.mxu0 0.0
        %5678 = vmatpush1.msra.mxu0 %v5479
        %5679 = vmatprep.subr.mxu0 0.0
        %5680 = vmatpush1.msra.mxu0 %v5480
        %5681 = vmatprep.subr.mxu0 0.0
        %5682 = vmatpush1.msra.mxu0 %v5481
        %5683 = vmatprep.subr.mxu0 0.0
        %5684 = vmatpush1.msra.mxu0 %v5482
        %5685 = vmatprep.subr.mxu0 0.0
        %5686 = vmatpush1.msra.mxu0 %v5483
        %5687 = vmatprep.subr.mxu0 0.0
        %5688 = vmatpush1.msra.mxu0 %v5484
        %5689 = vmatprep.subr.mxu0 0.0
        %5690 = vmatpush1.msra.mxu0 %v5485
        %5691 = vmatprep.subr.mxu0 0.0
        %5692 = vmatpush1.msra.mxu0 %v5486
        %5693 = vmatprep.subr.mxu0 0.0
        %5694 = vmatpush1.msra.mxu0 %v5487
        %5695 = vmatprep.subr.mxu0 0.0
        %5696 = vmatpush1.msra.mxu0 %v5488
        %5697 = vmatprep.subr.mxu0 0.0
        %5698 = vmatpush1.msra.mxu0 %v5489
        %5699 = vmatprep.subr.mxu0 0.0
        %5700 = vmatpush1.msra.mxu0 %v5490
        %5701 = vmatprep.subr.mxu0 0.0
        %5702 = vmatpush1.msra.mxu0 %v5491
        %5703 = vmatprep.subr.mxu0 0.0
        %5704 = vmatpush1.msra.mxu0 %v5492
        %5705 = vmatprep.subr.mxu0 0.0
        %5706 = vmatpush1.msra.mxu0 %v5493
        %5707 = vmatprep.mubr.f32.mxu0 %v5599
        %5708 = vmatmul.mubr.f32.gmra.mrb[0].mxu0 %v5597
        %v5709 = vpop.f32.mrb[0].mxu0
        %v5710 = vadd.f32 %v5531, %v5709
        %v5711 = vpop.f32.mrb[0].mxu0
        %5712 = vmatprep.mubr.f32.mxu0 %v5632
        %5713 = vmatmul.mubr.f32.gmra.mrb[0].mxu0 %v5625
        %v5714 = vpop.f32.mrb[0].mxu0
        %v5715 = vadd.f32 %v5531, %v5714
        %v5716 = vpop.f32.mrb[0].mxu0
        %5717 = vdwg.mxu0
        %5718 = vmatprep.subr.mxu0 0.0
        %5719 = vmatpush1.msra.mxu0 %v5494
        %5720 = vmatprep.subr.mxu0 0.0
        %5721 = vmatpush1.msra.mxu0 %v5495
        %5722 = vmatprep.subr.mxu0 0.0
        %5723 = vmatpush1.msra.mxu0 %v5496
        %5724 = vmatprep.subr.mxu0 0.0
        %5725 = vmatpush1.msra.mxu0 %v5497
        %5726 = vmatprep.subr.mxu0 0.0
        %5727 = vmatpush1.msra.mxu0 %v5498
        %5728 = vmatprep.subr.mxu0 0.0
        %5729 = vmatpush1.msra.mxu0 %v5499
        %5730 = vmatprep.subr.mxu0 0.0
        %5731 = vmatpush1.msra.mxu0 %v5500
        %5732 = vmatprep.subr.mxu0 0.0
        %5733 = vmatpush1.msra.mxu0 %v5501
        %5734 = vmatprep.subr.mxu0 0.0
        %5735 = vmatpush1.msra.mxu0 %v5502
        %5736 = vmatprep.subr.mxu0 0.0
        %5737 = vmatpush1.msra.mxu0 %v5503
        %5738 = vmatprep.subr.mxu0 0.0
        %5739 = vmatpush1.msra.mxu0 %v5504
        %5740 = vmatprep.subr.mxu0 0.0
        %5741 = vmatpush1.msra.mxu0 %v5505
        %5742 = vmatprep.subr.mxu0 0.0
        %5743 = vmatpush1.msra.mxu0 %v5506
        %5744 = vmatprep.subr.mxu0 0.0
        %5745 = vmatpush1.msra.mxu0 %v5507
        %5746 = vmatprep.subr.mxu0 0.0
        %5747 = vmatpush1.msra.mxu0 %v5508
        %5748 = vmatprep.subr.mxu0 0.0
        %5749 = vmatpush1.msra.mxu0 %v5509
        %5750 = vmatprep.subr.mxu0 0.0
        %5751 = vmatpush1.msra.mxu0 %v5510
        %5752 = vmatprep.subr.mxu0 0.0
        %5753 = vmatpush1.msra.mxu0 %v5511
        %5754 = vmatprep.subr.mxu0 0.0
        %5755 = vmatpush1.msra.mxu0 %v5512
        %5756 = vmatprep.subr.mxu0 0.0
        %5757 = vmatpush1.msra.mxu0 %v5513
        %5758 = vmatprep.subr.mxu0 0.0
        %5759 = vmatpush1.msra.mxu0 %v5514
        %5760 = vmatprep.subr.mxu0 0.0
        %5761 = vmatpush1.msra.mxu0 %v5515
        %5762 = vmatprep.subr.mxu0 0.0
        %5763 = vmatpush1.msra.mxu0 %v5516
        %5764 = vmatprep.subr.mxu0 0.0
        %5765 = vmatpush1.msra.mxu0 %v5517
        %5766 = vmatprep.subr.mxu0 0.0
        %5767 = vmatpush1.msra.mxu0 %v5518
        %5768 = vmatprep.subr.mxu0 0.0
        %5769 = vmatpush1.msra.mxu0 %v5519
        %5770 = vmatprep.subr.mxu0 0.0
        %5771 = vmatpush1.msra.mxu0 %v5520
        %5772 = vmatprep.subr.mxu0 0.0
        %5773 = vmatpush1.msra.mxu0 %v5521
        %5774 = vmatprep.subr.mxu0 0.0
        %5775 = vmatpush1.msra.mxu0 %v5522
        %5776 = vmatprep.subr.mxu0 0.0
        %5777 = vmatpush1.msra.mxu0 %v5523
        %5778 = vmatprep.subr.mxu0 0.0
        %5779 = vmatpush1.msra.mxu0 %v5524
        %5780 = vmatprep.subr.mxu0 0.0
        %5781 = vmatpush1.msra.mxu0 %v5525
        %5782 = vmatprep.mubr.f32.mxu0 %v5600
        %5783 = vmatmul.mubr.f32.gmra.mrb[0].mxu0 %v5598
        %v5784 = vpop.f32.mrb[0].mxu0
        %v5785 = vadd.f32 %v5710, %v5784
        %v5786 = vpop.f32.mrb[0].mxu0
        %5787 = vmatprep.mubr.f32.mxu0 %v5634
        %5788 = vmatmul.mubr.f32.gmra.mrb[0].mxu0 %v5633
        %v5789 = vpop.f32.mrb[0].mxu0
        %v5790 = vadd.f32 %v5715, %v5789
        %v5791 = vpop.f32.mrb[0].mxu0
        %5792 = vdwg.mxu0
        %v5795 = vcombine.high %v5785, %v5785
        %v5797 = vunpack.c.l.s4 1966171168
        %v5798 = vunpack.c.0.s8 %v5797
        %v5799 = vlaneseq
        %v5800 = vshrl.u32 %v5799, 7
        %v5801 = vsub.s32 %v5798, %v5800
        %v5802 = vrot.slane %v5785, %v5801
        %v5804 = vunpack.c.l.s4 1966171168
        %v5805 = vunpack.c.0.s8 %v5804
        %v5806 = vlaneseq
        %v5807 = vshrl.u32 %v5806, 7
        %v5808 = vsub.s32 %v5805, %v5807
        %v5809 = vrot.slane %v5795, %v5808
        %v5810 = vcombine.high %v5802, %v5802
        %v5811 = vcombine.high %v5809, %v5809
        %v5813 = vunpack.c.l.s4 1966171168
        %v5814 = vunpack.c.0.s8 %v5813
        %v5815 = vlaneseq
        %v5816 = vshrl.u32 %v5815, 7
        %v5817 = vsub.s32 %v5814, %v5816
        %v5818 = vrot.slane %v5802, %v5817
        %v5820 = vunpack.c.l.s4 1966171168
        %v5821 = vunpack.c.0.s8 %v5820
        %v5822 = vlaneseq
        %v5823 = vshrl.u32 %v5822, 7
        %v5824 = vsub.s32 %v5821, %v5823
        %v5825 = vrot.slane %v5809, %v5824
        %v5827 = vunpack.c.l.s4 1966171168
        %v5828 = vunpack.c.0.s8 %v5827
        %v5829 = vlaneseq
        %v5830 = vshrl.u32 %v5829, 7
        %v5831 = vsub.s32 %v5828, %v5830
        %v5832 = vrot.slane %v5810, %v5831
        %v5834 = vunpack.c.l.s4 1966171168
        %v5835 = vunpack.c.0.s8 %v5834
        %v5836 = vlaneseq
        %v5837 = vshrl.u32 %v5836, 7
        %v5838 = vsub.s32 %v5835, %v5837
        %v5839 = vrot.slane %v5811, %v5838
        %v5840 = vcombine.high %v5818, %v5818
        %v5841 = vcombine.high %v5825, %v5825
        %v5842 = vcombine.high %v5832, %v5832
        %v5843 = vcombine.high %v5839, %v5839
        %v5845 = vunpack.c.l.s4 1966171168
        %v5846 = vunpack.c.0.s8 %v5845
        %v5847 = vlaneseq
        %v5848 = vshrl.u32 %v5847, 7
        %v5849 = vsub.s32 %v5846, %v5848
        %v5850 = vrot.slane %v5790, %v5849
        %v5851 = vcombine.high %v5850, %v5850
        %v5853 = vunpack.c.l.s4 1966171168
        %v5854 = vunpack.c.0.s8 %v5853
        %v5855 = vlaneseq
        %v5856 = vshrl.u32 %v5855, 7
        %v5857 = vsub.s32 %v5854, %v5856
        %v5858 = vrot.slane %v5850, %v5857
        %v5860 = vunpack.c.l.s4 1966171168
        %v5861 = vunpack.c.0.s8 %v5860
        %v5862 = vlaneseq
        %v5863 = vshrl.u32 %v5862, 7
        %v5864 = vsub.s32 %v5861, %v5863
        %v5865 = vrot.slane %v5851, %v5864
        %v5866 = vcombine.high %v5858, %v5858
        %v5867 = vcombine.high %v5865, %v5865
        %v5868 = vld [vmem:[%s1121] sm:$0x7]
        %v5869 = vld [vmem:[%s1121 + $0x4] sm:$0x7]
        %v5870 = vld [vmem:[%s1121 + $0x8] sm:$0x7]
        %v5871 = vld [vmem:[%s1121 + $0xc] sm:$0x7]
        %vm5872 = vcmp.gt.f32.partialorder %v5868, 0.0
        %vm5873 = vcmp.gt.f32.partialorder %v5869, 0.0
        %vm5874 = vcmp.gt.f32.partialorder %v5870, 0.0
        %vm5875 = vcmp.gt.f32.partialorder %v5871, 0.0
        %v5876 = vsel %vm5872, 1, 0
        %v5877 = vsel %vm5873, 1, 0
        %v5878 = vsel %vm5874, 1, 0
        %v5879 = vsel %vm5875, 1, 0
        %5880 = vset.pattern.permute.xlu0 0
        %5881 = vperm.xlu0 %5880, %v5876
        %v5882 = vpop.permute.xlu0 %5881
        %5883 = vset.pattern.permute.xlu0 0
        %5884 = vperm.xlu0 %5883, %v5877
        %v5885 = vpop.permute.xlu0 %5884
        %5886 = vset.pattern.permute.xlu0 0
        %5887 = vperm.xlu0 %5886, %v5878
        %v5888 = vpop.permute.xlu0 %5887
        %5889 = vset.pattern.permute.xlu0 0
        %5890 = vperm.xlu0 %5889, %v5879
        %v5891 = vpop.permute.xlu0 %5890
        %vm5892 = vcmp.eq.s32.totalorder %v5882, 1
        %vm5893 = vcmp.eq.s32.totalorder %v5885, 1
        %vm5894 = vcmp.eq.s32.totalorder %v5888, 1
        %vm5895 = vcmp.eq.s32.totalorder %v5891, 1
        %v5896 = vcombine.low %v5818, %v5832
        %v5898 = vunpack.c.l.s4 1966171168
        %v5899 = vunpack.c.0.s8 %v5898
        %v5900 = vlaneseq
        %v5901 = vshrl.u32 %v5900, 7
        %v5902 = vsub.s32 %v5899, %v5901
        %v5903 = vrot.slane %v5896, %v5902
        %v5905 = vunpack.c.l.s4 1966171168
        %v5906 = vunpack.c.0.s8 %v5905
        %v5907 = vlaneseq
        %v5908 = vshrl.u32 %v5907, 7
        %v5909 = vsub.s32 %v5906, %v5908
        %v5910 = vrot.slane %v5840, %v5909
        %v5911 = vcombine.low %v5903, %v5910
        %v5913 = vunpack.c.l.s4 1966171168
        %v5914 = vunpack.c.0.s8 %v5913
        %v5915 = vlaneseq
        %v5916 = vshrl.u32 %v5915, 7
        %v5917 = vsub.s32 %v5914, %v5916
        %v5918 = vrot.slane %v5911, %v5917
        %v5919 = vcombine.low %v5842, %v5825
        %v5921 = vunpack.c.l.s4 1966171168
        %v5922 = vunpack.c.0.s8 %v5921
        %v5923 = vlaneseq
        %v5924 = vshrl.u32 %v5923, 7
        %v5925 = vsub.s32 %v5922, %v5924
        %v5926 = vrot.slane %v5919, %v5925
        %v5928 = vunpack.c.l.s4 1966171168
        %v5929 = vunpack.c.0.s8 %v5928
        %v5930 = vlaneseq
        %v5931 = vshrl.u32 %v5930, 7
        %v5932 = vsub.s32 %v5929, %v5931
        %v5933 = vrot.slane %v5839, %v5932
        %v5934 = vcombine.low %v5926, %v5933
        %v5936 = vunpack.c.l.s4 1966171168
        %v5937 = vunpack.c.0.s8 %v5936
        %v5938 = vlaneseq
        %v5939 = vshrl.u32 %v5938, 7
        %v5940 = vsub.s32 %v5937, %v5939
        %v5941 = vrot.slane %v5934, %v5940
        %v5942 = vcombine.low %v5841, %v5843
        %v5944 = vunpack.c.l.s4 1966171168
        %v5945 = vunpack.c.0.s8 %v5944
        %v5946 = vlaneseq
        %v5947 = vshrl.u32 %v5946, 7
        %v5948 = vsub.s32 %v5945, %v5947
        %v5949 = vrot.slane %v5942, %v5948
        %v5951 = vunpack.c.l.s4 1966171168
        %v5952 = vunpack.c.0.s8 %v5951
        %v5953 = vlaneseq
        %v5954 = vshrl.u32 %v5953, 7
        %v5955 = vsub.s32 %v5952, %v5954
        %v5956 = vrot.slane %v5858, %v5955
        %v5957 = vcombine.low %v5949, %v5956
        %v5959 = vunpack.c.l.s4 1966171168
        %v5960 = vunpack.c.0.s8 %v5959
        %v5961 = vlaneseq
        %v5962 = vshrl.u32 %v5961, 7
        %v5963 = vsub.s32 %v5960, %v5962
        %v5964 = vrot.slane %v5957, %v5963
        %v5965 = vcombine.low %v5865, %v5866
        %v5967 = vunpack.c.l.s4 1966171168
        %v5968 = vunpack.c.0.s8 %v5967
        %v5969 = vlaneseq
        %v5970 = vshrl.u32 %v5969, 7
        %v5971 = vsub.s32 %v5968, %v5970
        %v5972 = vrot.slane %v5965, %v5971
        %v5974 = vunpack.c.l.s4 1966171168
        %v5975 = vunpack.c.0.s8 %v5974
        %v5976 = vlaneseq
        %v5977 = vshrl.u32 %v5976, 7
        %v5978 = vsub.s32 %v5975, %v5977
        %v5979 = vrot.slane %v5867, %v5978
        %v5980 = vcombine.low %v5972, %v5979
        %v5982 = vunpack.c.l.s4 1966171168
        %v5983 = vunpack.c.0.s8 %v5982
        %v5984 = vlaneseq
        %v5985 = vshrl.u32 %v5984, 7
        %v5986 = vsub.s32 %v5983, %v5985
        %v5987 = vrot.slane %v5980, %v5986
        %v5992 = vsel %vm5892, 0.0, %v5918
        %v5993 = vsel %vm5893, 0.0, %v5941
        %v5994 = vsel %vm5894, 0.0, %v5964
        %v5995 = vsel %vm5895, 0.0, %v5987
        %v6001 = vunpack.c.l.s4 1966171168
        %v6002 = vunpack.c.0.s8 %v6001
        %v6003 = vlaneseq
        %v6004 = vshrl.u32 %v6003, 7
        %v6005 = vsub.s32 %v6002, %v6004
        %v6006 = vrot.slane %v5992, %v6005
        %v6007 = vcombine.high %v6006, %v6006
        %v6009 = vunpack.c.l.s4 1966171168
        %v6010 = vunpack.c.0.s8 %v6009
        %v6011 = vlaneseq
        %v6012 = vshrl.u32 %v6011, 7
        %v6013 = vsub.s32 %v6010, %v6012
        %v6014 = vrot.slane %v6006, %v6013
        %v6016 = vunpack.c.l.s4 1966171168
        %v6017 = vunpack.c.0.s8 %v6016
        %v6018 = vlaneseq
        %v6019 = vshrl.u32 %v6018, 7
        %v6020 = vsub.s32 %v6017, %v6019
        %v6021 = vrot.slane %v6007, %v6020
        %v6022 = vcombine.high %v6014, %v6014
        %v6024 = vunpack.c.l.s4 1966171168
        %v6025 = vunpack.c.0.s8 %v6024
        %v6026 = vlaneseq
        %v6027 = vshrl.u32 %v6026, 7
        %v6028 = vsub.s32 %v6025, %v6027
        %v6029 = vrot.slane %v5993, %v6028
        %v6030 = vcombine.high %v6029, %v6029
        %v6032 = vunpack.c.l.s4 1966171168
        %v6033 = vunpack.c.0.s8 %v6032
        %v6034 = vlaneseq
        %v6035 = vshrl.u32 %v6034, 7
        %v6036 = vsub.s32 %v6033, %v6035
        %v6037 = vrot.slane %v6029, %v6036
        %v6039 = vunpack.c.l.s4 1966171168
        %v6040 = vunpack.c.0.s8 %v6039
        %v6041 = vlaneseq
        %v6042 = vshrl.u32 %v6041, 7
        %v6043 = vsub.s32 %v6040, %v6042
        %v6044 = vrot.slane %v6030, %v6043
        %v6045 = vcombine.high %v6037, %v6037
        %v6047 = vunpack.c.l.s4 1966171168
        %v6048 = vunpack.c.0.s8 %v6047
        %v6049 = vlaneseq
        %v6050 = vshrl.u32 %v6049, 7
        %v6051 = vsub.s32 %v6048, %v6050
        %v6052 = vrot.slane %v5994, %v6051
        %v6053 = vcombine.high %v6052, %v6052
        %v6055 = vunpack.c.l.s4 1966171168
        %v6056 = vunpack.c.0.s8 %v6055
        %v6057 = vlaneseq
        %v6058 = vshrl.u32 %v6057, 7
        %v6059 = vsub.s32 %v6056, %v6058
        %v6060 = vrot.slane %v6052, %v6059
        %v6062 = vunpack.c.l.s4 1966171168
        %v6063 = vunpack.c.0.s8 %v6062
        %v6064 = vlaneseq
        %v6065 = vshrl.u32 %v6064, 7
        %v6066 = vsub.s32 %v6063, %v6065
        %v6067 = vrot.slane %v6053, %v6066
        %v6068 = vcombine.high %v6060, %v6060
        %v6070 = vunpack.c.l.s4 1966171168
        %v6071 = vunpack.c.0.s8 %v6070
        %v6072 = vlaneseq
        %v6073 = vshrl.u32 %v6072, 7
        %v6074 = vsub.s32 %v6071, %v6073
        %v6075 = vrot.slane %v5995, %v6074
        %v6076 = vcombine.high %v6075, %v6075
        %v6078 = vunpack.c.l.s4 1966171168
        %v6079 = vunpack.c.0.s8 %v6078
        %v6080 = vlaneseq
        %v6081 = vshrl.u32 %v6080, 7
        %v6082 = vsub.s32 %v6079, %v6081
        %v6083 = vrot.slane %v6075, %v6082
        %v6085 = vunpack.c.l.s4 1966171168
        %v6086 = vunpack.c.0.s8 %v6085
        %v6087 = vlaneseq
        %v6088 = vshrl.u32 %v6087, 7
        %v6089 = vsub.s32 %v6086, %v6088
        %v6090 = vrot.slane %v6076, %v6089
        %v6091 = vcombine.high %v6083, %v6083
        %v6092 = vld [vmem:[%s23] sm:$0xff]
        %v6093 = vld [vmem:[%s23 + $0x8] sm:$0xff]
        %v6094 = vld [vmem:[%s23 + $0x10] sm:$0xff]
        %v6095 = vld [vmem:[%s23 + $0x18] sm:$0xff]
        %v6096 = vld [vmem:[%s23 + $0x20] sm:$0xff]
        %v6097 = vld [vmem:[%s23 + $0x28] sm:$0xff]
        %v6098 = vld [vmem:[%s23 + $0x30] sm:$0xff]
        %v6099 = vld [vmem:[%s23 + $0x38] sm:$0xff]
        %v6100 = vld [vmem:[%s23 + $0x40] sm:$0xff]
        %v6101 = vld [vmem:[%s23 + $0x48] sm:$0xff]
        %v6102 = vld [vmem:[%s23 + $0x50] sm:$0xff]
        %v6103 = vld [vmem:[%s23 + $0x58] sm:$0xff]
        %v6104 = vld [vmem:[%s23 + $0x60] sm:$0xff]
        %v6105 = vld [vmem:[%s23 + $0x68] sm:$0xff]
        %v6106 = vld [vmem:[%s23 + $0x70] sm:$0xff]
        %v6107 = vld [vmem:[%s23 + $0x78] sm:$0xff]
        %v6108 = vld [vmem:[%s25] sm:$0x1]
        %v6110 = vlaneseq
        %v6111 = vshrl.u32 %v6110, 7
        %v6112 = vsub.s32 0, %v6111
        %v6113 = vrot.slane %v6108, %v6112
        %v6115 = vcombine.low %v6014, %v6021
        %v6116 = vcombine.low %v6022, %v6037
        %v6117 = vcombine.low %v6044, %v6045
        %v6118 = vcombine.low %v6060, %v6067
        %v6120 = vunpack.c.l.s4 1966171168
        %v6121 = vunpack.c.0.s8 %v6120
        %v6122 = vlaneseq
        %v6123 = vshrl.u32 %v6122, 7
        %v6124 = vsub.s32 %v6121, %v6123
        %v6125 = vrot.slane %v6115, %v6124
        %v6127 = vunpack.c.l.s4 1966171168
        %v6128 = vunpack.c.0.s8 %v6127
        %v6129 = vlaneseq
        %v6130 = vshrl.u32 %v6129, 7
        %v6131 = vsub.s32 %v6128, %v6130
        %v6132 = vrot.slane %v6116, %v6131
        %v6134 = vunpack.c.l.s4 1966171168
        %v6135 = vunpack.c.0.s8 %v6134
        %v6136 = vlaneseq
        %v6137 = vshrl.u32 %v6136, 7
        %v6138 = vsub.s32 %v6135, %v6137
        %v6139 = vrot.slane %v6117, %v6138
        %v6141 = vunpack.c.l.s4 1966171168
        %v6142 = vunpack.c.0.s8 %v6141
        %v6143 = vlaneseq
        %v6144 = vshrl.u32 %v6143, 7
        %v6145 = vsub.s32 %v6142, %v6144
        %v6146 = vrot.slane %v6118, %v6145
        %v6147 = vcombine.low %v6125, %v6132
        %v6148 = vcombine.low %v6139, %v6146
        %v6150 = vunpack.c.l.s4 1966171168
        %v6151 = vunpack.c.0.s8 %v6150
        %v6152 = vlaneseq
        %v6153 = vshrl.u32 %v6152, 7
        %v6154 = vsub.s32 %v6151, %v6153
        %v6155 = vrot.slane %v6147, %v6154
        %v6157 = vunpack.c.l.s4 1966171168
        %v6158 = vunpack.c.0.s8 %v6157
        %v6159 = vlaneseq
        %v6160 = vshrl.u32 %v6159, 7
        %v6161 = vsub.s32 %v6158, %v6160
        %v6162 = vrot.slane %v6148, %v6161
        %v6163 = vcombine.low %v6155, %v6162
        %v6164 = vcombine.low %v6068, %v6083
        %v6165 = vcombine.low %v6090, %v6091
        %v6167 = vunpack.c.l.s4 1966171168
        %v6168 = vunpack.c.0.s8 %v6167
        %v6169 = vlaneseq
        %v6170 = vshrl.u32 %v6169, 7
        %v6171 = vsub.s32 %v6168, %v6170
        %v6172 = vrot.slane %v6164, %v6171
        %v6174 = vunpack.c.l.s4 1966171168
        %v6175 = vunpack.c.0.s8 %v6174
        %v6176 = vlaneseq
        %v6177 = vshrl.u32 %v6176, 7
        %v6178 = vsub.s32 %v6175, %v6177
        %v6179 = vrot.slane %v6165, %v6178
        %v6180 = vcombine.low %v6172, %v6179
        %v6182 = vunpack.c.l.s4 1966171168
        %v6183 = vunpack.c.0.s8 %v6182
        %v6184 = vlaneseq
        %v6185 = vshrl.u32 %v6184, 7
        %v6186 = vsub.s32 %v6183, %v6185
        %v6187 = vrot.slane %v6180, %v6186
        %6190 = vmatprep.subr.mxu0 0.0
        %6191 = vmatpush1.msra.mxu0 %v6092
        %6192 = vmatprep.subr.mxu0 0.0
        %6193 = vmatpush1.msra.mxu0 %v6093
        %6194 = vmatprep.subr.mxu0 0.0
        %6195 = vmatpush1.msra.mxu0 %v6094
        %6196 = vmatprep.subr.mxu0 0.0
        %6197 = vmatpush1.msra.mxu0 %v6095
        %6198 = vmatprep.subr.mxu0 0.0
        %6199 = vmatpush1.msra.mxu0 %v6096
        %6200 = vmatprep.subr.mxu0 0.0
        %6201 = vmatpush1.msra.mxu0 %v6097
        %6202 = vmatprep.subr.mxu0 0.0
        %6203 = vmatpush1.msra.mxu0 %v6098
        %6204 = vmatprep.subr.mxu0 0.0
        %6205 = vmatpush1.msra.mxu0 %v6099
        %6206 = vmatprep.subr.mxu0 0.0
        %6207 = vmatpush1.msra.mxu0 %v6100
        %6208 = vmatprep.subr.mxu0 0.0
        %6209 = vmatpush1.msra.mxu0 %v6101
        %6210 = vmatprep.subr.mxu0 0.0
        %6211 = vmatpush1.msra.mxu0 %v6102
        %6212 = vmatprep.subr.mxu0 0.0
        %6213 = vmatpush1.msra.mxu0 %v6103
        %6214 = vmatprep.subr.mxu0 0.0
        %6215 = vmatpush1.msra.mxu0 %v6104
        %6216 = vmatprep.subr.mxu0 0.0
        %6217 = vmatpush1.msra.mxu0 %v6105
        %6218 = vmatprep.subr.mxu0 0.0
        %6219 = vmatpush1.msra.mxu0 %v6106
        %6220 = vmatprep.subr.mxu0 0.0
        %6221 = vmatpush1.msra.mxu0 %v6107
        %6222 = vmatprep.subr.mxu0 0.0
        %6223 = vmatpush1.msra.mxu0 0.0
        %6224 = vmatprep.subr.mxu0 0.0
        %6225 = vmatpush1.msra.mxu0 0.0
        %6226 = vmatprep.subr.mxu0 0.0
        %6227 = vmatpush1.msra.mxu0 0.0
        %6228 = vmatprep.subr.mxu0 0.0
        %6229 = vmatpush1.msra.mxu0 0.0
        %6230 = vmatprep.subr.mxu0 0.0
        %6231 = vmatpush1.msra.mxu0 0.0
        %6232 = vmatprep.subr.mxu0 0.0
        %6233 = vmatpush1.msra.mxu0 0.0
        %6234 = vmatprep.subr.mxu0 0.0
        %6235 = vmatpush1.msra.mxu0 0.0
        %6236 = vmatprep.subr.mxu0 0.0
        %6237 = vmatpush1.msra.mxu0 0.0
        %6238 = vmatprep.subr.mxu0 0.0
        %6239 = vmatpush1.msra.mxu0 0.0
        %6240 = vmatprep.subr.mxu0 0.0
        %6241 = vmatpush1.msra.mxu0 0.0
        %6242 = vmatprep.subr.mxu0 0.0
        %6243 = vmatpush1.msra.mxu0 0.0
        %6244 = vmatprep.subr.mxu0 0.0
        %6245 = vmatpush1.msra.mxu0 0.0
        %6246 = vmatprep.subr.mxu0 0.0
        %6247 = vmatpush1.msra.mxu0 0.0
        %6248 = vmatprep.subr.mxu0 0.0
        %6249 = vmatpush1.msra.mxu0 0.0
        %6250 = vmatprep.subr.mxu0 0.0
        %6251 = vmatpush1.msra.mxu0 0.0
        %6252 = vmatprep.subr.mxu0 0.0
        %6253 = vmatpush1.msra.mxu0 0.0
        %6254 = vmatprep.mubr.f32.mxu0 0.0
        %6255 = vmatmul.mubr.f32.gmra.mrb[0].mxu0 %v6163
        %v6256 = vpop.f32.mrb[0].mxu0
        %v6257 = vadd.f32 %v6113, %v6256
        %v6258 = vpop.f32.mrb[0].mxu0
        %6259 = vmatprep.mubr.f32.mxu0 0.0
        %6260 = vmatmul.mubr.f32.gmra.mrb[0].mxu0 %v6187
        %v6261 = vpop.f32.mrb[0].mxu0
        %v6262 = vadd.f32 %v6113, %v6261
        %v6263 = vpop.f32.mrb[0].mxu0
        %6264 = vdwg.mxu0
        %v6265 = vmax.f32 %v6257, 0.0
        %v6266 = vmax.f32 %v6262, 0.0
        %v6269 = vcombine.high %v6265, %v6265
        %v6271 = vunpack.c.l.s4 1966171168
        %v6272 = vunpack.c.0.s8 %v6271
        %v6273 = vlaneseq
        %v6274 = vshrl.u32 %v6273, 7
        %v6275 = vsub.s32 %v6272, %v6274
        %v6276 = vrot.slane %v6265, %v6275
        %v6278 = vunpack.c.l.s4 1966171168
        %v6279 = vunpack.c.0.s8 %v6278
        %v6280 = vlaneseq
        %v6281 = vshrl.u32 %v6280, 7
        %v6282 = vsub.s32 %v6279, %v6281
        %v6283 = vrot.slane %v6269, %v6282
        %v6284 = vcombine.high %v6276, %v6276
        %v6285 = vcombine.high %v6283, %v6283
        %v6287 = vunpack.c.l.s4 1966171168
        %v6288 = vunpack.c.0.s8 %v6287
        %v6289 = vlaneseq
        %v6290 = vshrl.u32 %v6289, 7
        %v6291 = vsub.s32 %v6288, %v6290
        %v6292 = vrot.slane %v6276, %v6291
        %v6294 = vunpack.c.l.s4 1966171168
        %v6295 = vunpack.c.0.s8 %v6294
        %v6296 = vlaneseq
        %v6297 = vshrl.u32 %v6296, 7
        %v6298 = vsub.s32 %v6295, %v6297
        %v6299 = vrot.slane %v6283, %v6298
        %v6301 = vunpack.c.l.s4 1966171168
        %v6302 = vunpack.c.0.s8 %v6301
        %v6303 = vlaneseq
        %v6304 = vshrl.u32 %v6303, 7
        %v6305 = vsub.s32 %v6302, %v6304
        %v6306 = vrot.slane %v6284, %v6305
        %v6308 = vunpack.c.l.s4 1966171168
        %v6309 = vunpack.c.0.s8 %v6308
        %v6310 = vlaneseq
        %v6311 = vshrl.u32 %v6310, 7
        %v6312 = vsub.s32 %v6309, %v6311
        %v6313 = vrot.slane %v6285, %v6312
        %v6314 = vcombine.high %v6292, %v6292
        %v6315 = vcombine.high %v6299, %v6299
        %v6316 = vcombine.high %v6306, %v6306
        %v6317 = vcombine.high %v6313, %v6313
        %v6319 = vunpack.c.l.s4 1966171168
        %v6320 = vunpack.c.0.s8 %v6319
        %v6321 = vlaneseq
        %v6322 = vshrl.u32 %v6321, 7
        %v6323 = vsub.s32 %v6320, %v6322
        %v6324 = vrot.slane %v6266, %v6323
        %v6325 = vcombine.high %v6324, %v6324
        %v6327 = vunpack.c.l.s4 1966171168
        %v6328 = vunpack.c.0.s8 %v6327
        %v6329 = vlaneseq
        %v6330 = vshrl.u32 %v6329, 7
        %v6331 = vsub.s32 %v6328, %v6330
        %v6332 = vrot.slane %v6324, %v6331
        %v6334 = vunpack.c.l.s4 1966171168
        %v6335 = vunpack.c.0.s8 %v6334
        %v6336 = vlaneseq
        %v6337 = vshrl.u32 %v6336, 7
        %v6338 = vsub.s32 %v6335, %v6337
        %v6339 = vrot.slane %v6325, %v6338
        %v6340 = vcombine.high %v6332, %v6332
        %v6341 = vcombine.high %v6339, %v6339
        %v6342 = vcombine.low %v6292, %v6306
        %v6344 = vunpack.c.l.s4 1966171168
        %v6345 = vunpack.c.0.s8 %v6344
        %v6346 = vlaneseq
        %v6347 = vshrl.u32 %v6346, 7
        %v6348 = vsub.s32 %v6345, %v6347
        %v6349 = vrot.slane %v6342, %v6348
        %v6351 = vunpack.c.l.s4 1966171168
        %v6352 = vunpack.c.0.s8 %v6351
        %v6353 = vlaneseq
        %v6354 = vshrl.u32 %v6353, 7
        %v6355 = vsub.s32 %v6352, %v6354
        %v6356 = vrot.slane %v6314, %v6355
        %v6357 = vcombine.low %v6349, %v6356
        %v6359 = vunpack.c.l.s4 1966171168
        %v6360 = vunpack.c.0.s8 %v6359
        %v6361 = vlaneseq
        %v6362 = vshrl.u32 %v6361, 7
        %v6363 = vsub.s32 %v6360, %v6362
        %v6364 = vrot.slane %v6357, %v6363
        %v6365 = vcombine.low %v6316, %v6299
        %v6367 = vunpack.c.l.s4 1966171168
        %v6368 = vunpack.c.0.s8 %v6367
        %v6369 = vlaneseq
        %v6370 = vshrl.u32 %v6369, 7
        %v6371 = vsub.s32 %v6368, %v6370
        %v6372 = vrot.slane %v6365, %v6371
        %v6374 = vunpack.c.l.s4 1966171168
        %v6375 = vunpack.c.0.s8 %v6374
        %v6376 = vlaneseq
        %v6377 = vshrl.u32 %v6376, 7
        %v6378 = vsub.s32 %v6375, %v6377
        %v6379 = vrot.slane %v6313, %v6378
        %v6380 = vcombine.low %v6372, %v6379
        %v6382 = vunpack.c.l.s4 1966171168
        %v6383 = vunpack.c.0.s8 %v6382
        %v6384 = vlaneseq
        %v6385 = vshrl.u32 %v6384, 7
        %v6386 = vsub.s32 %v6383, %v6385
        %v6387 = vrot.slane %v6380, %v6386
        %v6388 = vcombine.low %v6315, %v6317
        %v6390 = vunpack.c.l.s4 1966171168
        %v6391 = vunpack.c.0.s8 %v6390
        %v6392 = vlaneseq
        %v6393 = vshrl.u32 %v6392, 7
        %v6394 = vsub.s32 %v6391, %v6393
        %v6395 = vrot.slane %v6388, %v6394
        %v6397 = vunpack.c.l.s4 1966171168
        %v6398 = vunpack.c.0.s8 %v6397
        %v6399 = vlaneseq
        %v6400 = vshrl.u32 %v6399, 7
        %v6401 = vsub.s32 %v6398, %v6400
        %v6402 = vrot.slane %v6332, %v6401
        %v6403 = vcombine.low %v6395, %v6402
        %v6405 = vunpack.c.l.s4 1966171168
        %v6406 = vunpack.c.0.s8 %v6405
        %v6407 = vlaneseq
        %v6408 = vshrl.u32 %v6407, 7
        %v6409 = vsub.s32 %v6406, %v6408
        %v6410 = vrot.slane %v6403, %v6409
        %v6411 = vcombine.low %v6339, %v6340
        %v6413 = vunpack.c.l.s4 1966171168
        %v6414 = vunpack.c.0.s8 %v6413
        %v6415 = vlaneseq
        %v6416 = vshrl.u32 %v6415, 7
        %v6417 = vsub.s32 %v6414, %v6416
        %v6418 = vrot.slane %v6411, %v6417
        %v6420 = vunpack.c.l.s4 1966171168
        %v6421 = vunpack.c.0.s8 %v6420
        %v6422 = vlaneseq
        %v6423 = vshrl.u32 %v6422, 7
        %v6424 = vsub.s32 %v6421, %v6423
        %v6425 = vrot.slane %v6341, %v6424
        %v6426 = vcombine.low %v6418, %v6425
        %v6428 = vunpack.c.l.s4 1966171168
        %v6429 = vunpack.c.0.s8 %v6428
        %v6430 = vlaneseq
        %v6431 = vshrl.u32 %v6430, 7
        %v6432 = vsub.s32 %v6429, %v6431
        %v6433 = vrot.slane %v6426, %v6432
        %6438 = vst [vmem:[#allocation2] sm:$0x7] %v6364
        %6439 = vst [vmem:[#allocation2 + $0x4] sm:$0x7] %v6387
        %6440 = vst [vmem:[#allocation2 + $0x8] sm:$0x7] %v6410
        %6441 = vst [vmem:[#allocation2 + $0xc] sm:$0x7] %v6433
        %v6442 = vld [vmem:[#allocation13] sm:$0xff]
        %v6443 = vld [vmem:[#allocation13 + $0x8] sm:$0xff]
        %v6444 = vld [vmem:[#allocation13 + $0x10] sm:$0xff]
        %v6445 = vld [vmem:[#allocation13 + $0x18] sm:$0xff]
        %v6446 = vld [vmem:[#allocation13 + $0x20] sm:$0xff]
        %v6447 = vld [vmem:[#allocation13 + $0x28] sm:$0xff]
        %v6448 = vld [vmem:[#allocation13 + $0x30] sm:$0xff]
        %v6449 = vld [vmem:[#allocation13 + $0x38] sm:$0xff]
        %v6450 = vld [vmem:[#allocation13 + $0x40] sm:$0xff]
        %v6451 = vld [vmem:[#allocation13 + $0x48] sm:$0xff]
        %v6452 = vld [vmem:[#allocation13 + $0x50] sm:$0xff]
        %v6453 = vld [vmem:[#allocation13 + $0x58] sm:$0xff]
        %v6454 = vld [vmem:[#allocation13 + $0x60] sm:$0xff]
        %v6455 = vld [vmem:[#allocation13 + $0x68] sm:$0xff]
        %v6456 = vld [vmem:[#allocation13 + $0x70] sm:$0xff]
        %v6457 = vld [vmem:[#allocation13 + $0x78] sm:$0xff]
        %v6458 = vld [vmem:[#allocation15] sm:$0xff]
        %v6459 = vld [vmem:[#allocation15 + $0x8] sm:$0xff]
        %v6460 = vld [vmem:[#allocation15 + $0x10] sm:$0xff]
        %v6461 = vld [vmem:[#allocation15 + $0x18] sm:$0xff]
        %v6462 = vld [vmem:[#allocation15 + $0x20] sm:$0xff]
        %v6463 = vld [vmem:[#allocation15 + $0x28] sm:$0xff]
        %v6464 = vld [vmem:[#allocation15 + $0x30] sm:$0xff]
        %v6465 = vld [vmem:[#allocation15 + $0x38] sm:$0xff]
        %v6466 = vld [vmem:[#allocation15 + $0x40] sm:$0xff]
        %v6467 = vld [vmem:[#allocation15 + $0x48] sm:$0xff]
        %v6468 = vld [vmem:[#allocation15 + $0x50] sm:$0xff]
        %v6469 = vld [vmem:[#allocation15 + $0x58] sm:$0xff]
        %v6470 = vld [vmem:[#allocation15 + $0x60] sm:$0xff]
        %v6471 = vld [vmem:[#allocation15 + $0x68] sm:$0xff]
        %v6472 = vld [vmem:[#allocation15 + $0x70] sm:$0xff]
        %v6473 = vld [vmem:[#allocation15 + $0x78] sm:$0xff]
        %v6474 = vld [vmem:[#allocation16] sm:$0xff]
        %v6475 = vld [vmem:[#allocation16 + $0x8] sm:$0xff]
        %v6476 = vld [vmem:[#allocation16 + $0x10] sm:$0xff]
        %v6477 = vld [vmem:[#allocation16 + $0x18] sm:$0xff]
        %v6478 = vld [vmem:[#allocation16 + $0x20] sm:$0xff]
        %v6479 = vld [vmem:[#allocation16 + $0x28] sm:$0xff]
        %v6480 = vld [vmem:[#allocation16 + $0x30] sm:$0xff]
        %v6481 = vld [vmem:[#allocation16 + $0x38] sm:$0xff]
        %v6482 = vld [vmem:[#allocation16 + $0x40] sm:$0xff]
        %v6483 = vld [vmem:[#allocation16 + $0x48] sm:$0xff]
        %v6484 = vld [vmem:[#allocation16 + $0x50] sm:$0xff]
        %v6485 = vld [vmem:[#allocation16 + $0x58] sm:$0xff]
        %v6486 = vld [vmem:[#allocation16 + $0x60] sm:$0xff]
        %v6487 = vld [vmem:[#allocation16 + $0x68] sm:$0xff]
        %v6488 = vld [vmem:[#allocation16 + $0x70] sm:$0xff]
        %v6489 = vld [vmem:[#allocation16 + $0x78] sm:$0xff]
        %v6490 = vld [vmem:[#allocation18] sm:$0xff]
        %v6491 = vld [vmem:[#allocation18 + $0x8] sm:$0xff]
        %v6492 = vld [vmem:[#allocation18 + $0x10] sm:$0xff]
        %v6493 = vld [vmem:[#allocation18 + $0x18] sm:$0xff]
        %v6494 = vld [vmem:[#allocation18 + $0x20] sm:$0xff]
        %v6495 = vld [vmem:[#allocation18 + $0x28] sm:$0xff]
        %v6496 = vld [vmem:[#allocation18 + $0x30] sm:$0xff]
        %v6497 = vld [vmem:[#allocation18 + $0x38] sm:$0xff]
        %v6498 = vld [vmem:[#allocation18 + $0x40] sm:$0xff]
        %v6499 = vld [vmem:[#allocation18 + $0x48] sm:$0xff]
        %v6500 = vld [vmem:[#allocation18 + $0x50] sm:$0xff]
        %v6501 = vld [vmem:[#allocation18 + $0x58] sm:$0xff]
        %v6502 = vld [vmem:[#allocation18 + $0x60] sm:$0xff]
        %v6503 = vld [vmem:[#allocation18 + $0x68] sm:$0xff]
        %v6504 = vld [vmem:[#allocation18 + $0x70] sm:$0xff]
        %v6505 = vld [vmem:[#allocation18 + $0x78] sm:$0xff]
        %v6506 = vld [vmem:[#allocation19] sm:$0xff]
        %v6507 = vld [vmem:[#allocation19 + $0x8] sm:$0xff]
        %v6508 = vld [vmem:[#allocation19 + $0x10] sm:$0xff]
        %v6509 = vld [vmem:[#allocation19 + $0x18] sm:$0xff]
        %v6510 = vld [vmem:[#allocation19 + $0x20] sm:$0xff]
        %v6511 = vld [vmem:[#allocation19 + $0x28] sm:$0xff]
        %v6512 = vld [vmem:[#allocation19 + $0x30] sm:$0xff]
        %v6513 = vld [vmem:[#allocation19 + $0x38] sm:$0xff]
        %v6514 = vld [vmem:[#allocation19 + $0x40] sm:$0xff]
        %v6515 = vld [vmem:[#allocation19 + $0x48] sm:$0xff]
        %v6516 = vld [vmem:[#allocation19 + $0x50] sm:$0xff]
        %v6517 = vld [vmem:[#allocation19 + $0x58] sm:$0xff]
        %v6518 = vld [vmem:[#allocation19 + $0x60] sm:$0xff]
        %v6519 = vld [vmem:[#allocation19 + $0x68] sm:$0xff]
        %v6520 = vld [vmem:[#allocation19 + $0x70] sm:$0xff]
        %v6521 = vld [vmem:[#allocation19 + $0x78] sm:$0xff]
        %v6522 = vld [vmem:[#allocation21] sm:$0xff]
        %v6523 = vld [vmem:[#allocation21 + $0x8] sm:$0xff]
        %v6524 = vld [vmem:[#allocation21 + $0x10] sm:$0xff]
        %v6525 = vld [vmem:[#allocation21 + $0x18] sm:$0xff]
        %v6526 = vld [vmem:[#allocation21 + $0x20] sm:$0xff]
        %v6527 = vld [vmem:[#allocation21 + $0x28] sm:$0xff]
        %v6528 = vld [vmem:[#allocation21 + $0x30] sm:$0xff]
        %v6529 = vld [vmem:[#allocation21 + $0x38] sm:$0xff]
        %v6530 = vld [vmem:[#allocation21 + $0x40] sm:$0xff]
        %v6531 = vld [vmem:[#allocation21 + $0x48] sm:$0xff]
        %v6532 = vld [vmem:[#allocation21 + $0x50] sm:$0xff]
        %v6533 = vld [vmem:[#allocation21 + $0x58] sm:$0xff]
        %v6534 = vld [vmem:[#allocation21 + $0x60] sm:$0xff]
        %v6535 = vld [vmem:[#allocation21 + $0x68] sm:$0xff]
        %v6536 = vld [vmem:[#allocation21 + $0x70] sm:$0xff]
        %v6537 = vld [vmem:[#allocation21 + $0x78] sm:$0xff]
        %v6538 = vld [vmem:[%s39] sm:$0x1]
        %v6539 = vld [vmem:[%s41] sm:$0x1]
        %v6540 = vld [vmem:[%s43] sm:$0x1]
        %v6541 = vld [vmem:[%s45] sm:$0x1]
        %v6542 = vld [vmem:[%s1265] sm:$0x7]
        loop: start=0, step=1, limit=4
        $region263: #{tpu_custom_call.1} parent=201 // loop_pre_header
          _
        $region264: #{tpu_custom_call.1} parent=201 // loop_header
          %s6544 = sphi 0, %s6548
          %p6545 = scmp.ge.s32.totalorder %s6544, 4
          %v6549 = vphi %v6542, %v7017
        $region265: #{tpu_custom_call.1} parent=201 // loop_header_branch
          %6547 = sbr.rel (%p6545) target = $region269
        $region266: #{tpu_custom_call.1} parent=201 // loop_body
          %s6550 = smul.u32 %s6544, 4
          %s6551 = scalar_lea.vmem [#allocation2], %s6550
          %v6552 = vld [vmem:[%s6551] sm:$0x7]
          %6553 = vmatprep.subr.mxu0 0.0
          %6554 = vmatpush1.msra.mxu0 %v6490
          %6555 = vmatprep.subr.mxu0 0.0
          %6556 = vmatpush1.msra.mxu0 %v6491
          %6557 = vmatprep.subr.mxu0 0.0
          %6558 = vmatpush1.msra.mxu0 %v6492
          %6559 = vmatprep.subr.mxu0 0.0
          %6560 = vmatpush1.msra.mxu0 %v6493
          %6561 = vmatprep.subr.mxu0 0.0
          %6562 = vmatpush1.msra.mxu0 %v6494
          %6563 = vmatprep.subr.mxu0 0.0
          %6564 = vmatpush1.msra.mxu0 %v6495
          %6565 = vmatprep.subr.mxu0 0.0
          %6566 = vmatpush1.msra.mxu0 %v6496
          %6567 = vmatprep.subr.mxu0 0.0
          %6568 = vmatpush1.msra.mxu0 %v6497
          %6569 = vmatprep.subr.mxu0 0.0
          %6570 = vmatpush1.msra.mxu0 %v6498
          %6571 = vmatprep.subr.mxu0 0.0
          %6572 = vmatpush1.msra.mxu0 %v6499
          %6573 = vmatprep.subr.mxu0 0.0
          %6574 = vmatpush1.msra.mxu0 %v6500
          %6575 = vmatprep.subr.mxu0 0.0
          %6576 = vmatpush1.msra.mxu0 %v6501
          %6577 = vmatprep.subr.mxu0 0.0
          %6578 = vmatpush1.msra.mxu0 %v6502
          %6579 = vmatprep.subr.mxu0 0.0
          %6580 = vmatpush1.msra.mxu0 %v6503
          %6581 = vmatprep.subr.mxu0 0.0
          %6582 = vmatpush1.msra.mxu0 %v6504
          %6583 = vmatprep.subr.mxu0 0.0
          %6584 = vmatpush1.msra.mxu0 %v6505
          %6585 = vmatprep.subr.mxu0 0.0
          %6586 = vmatpush1.msra.mxu0 0.0
          %6587 = vmatprep.subr.mxu0 0.0
          %6588 = vmatpush1.msra.mxu0 0.0
          %6589 = vmatprep.subr.mxu0 0.0
          %6590 = vmatpush1.msra.mxu0 0.0
          %6591 = vmatprep.subr.mxu0 0.0
          %6592 = vmatpush1.msra.mxu0 0.0
          %6593 = vmatprep.subr.mxu0 0.0
          %6594 = vmatpush1.msra.mxu0 0.0
          %6595 = vmatprep.subr.mxu0 0.0
          %6596 = vmatpush1.msra.mxu0 0.0
          %6597 = vmatprep.subr.mxu0 0.0
          %6598 = vmatpush1.msra.mxu0 0.0
          %6599 = vmatprep.subr.mxu0 0.0
          %6600 = vmatpush1.msra.mxu0 0.0
          %6601 = vmatprep.subr.mxu0 0.0
          %6602 = vmatpush1.msra.mxu0 0.0
          %6603 = vmatprep.subr.mxu0 0.0
          %6604 = vmatpush1.msra.mxu0 0.0
          %6605 = vmatprep.subr.mxu0 0.0
          %6606 = vmatpush1.msra.mxu0 0.0
          %6607 = vmatprep.subr.mxu0 0.0
          %6608 = vmatpush1.msra.mxu0 0.0
          %6609 = vmatprep.subr.mxu0 0.0
          %6610 = vmatpush1.msra.mxu0 0.0
          %6611 = vmatprep.subr.mxu0 0.0
          %6612 = vmatpush1.msra.mxu0 0.0
          %6613 = vmatprep.subr.mxu0 0.0
          %6614 = vmatpush1.msra.mxu0 0.0
          %6615 = vmatprep.subr.mxu0 0.0
          %6616 = vmatpush1.msra.mxu0 0.0
          %6617 = vmatprep.mubr.f32.mxu0 0.0
          %6618 = vmatmul.mubr.f32.gmra.mrb[0].mxu0 %v6549
          %v6619 = vpop.f32.mrb[0].mxu0
          %v6620 = vadd.f32 0.0, %v6619
          %v6621 = vpop.f32.mrb[0].mxu0
          %6622 = vdwg.mxu0
          %6623 = vmatprep.subr.mxu0 0.0
          %6624 = vmatpush1.msra.mxu0 %v6442
          %6625 = vmatprep.subr.mxu0 0.0
          %6626 = vmatpush1.msra.mxu0 %v6443
          %6627 = vmatprep.subr.mxu0 0.0
          %6628 = vmatpush1.msra.mxu0 %v6444
          %6629 = vmatprep.subr.mxu0 0.0
          %6630 = vmatpush1.msra.mxu0 %v6445
          %6631 = vmatprep.subr.mxu0 0.0
          %6632 = vmatpush1.msra.mxu0 %v6446
          %6633 = vmatprep.subr.mxu0 0.0
          %6634 = vmatpush1.msra.mxu0 %v6447
          %6635 = vmatprep.subr.mxu0 0.0
          %6636 = vmatpush1.msra.mxu0 %v6448
          %6637 = vmatprep.subr.mxu0 0.0
          %6638 = vmatpush1.msra.mxu0 %v6449
          %6639 = vmatprep.subr.mxu0 0.0
          %6640 = vmatpush1.msra.mxu0 %v6450
          %6641 = vmatprep.subr.mxu0 0.0
          %6642 = vmatpush1.msra.mxu0 %v6451
          %6643 = vmatprep.subr.mxu0 0.0
          %6644 = vmatpush1.msra.mxu0 %v6452
          %6645 = vmatprep.subr.mxu0 0.0
          %6646 = vmatpush1.msra.mxu0 %v6453
          %6647 = vmatprep.subr.mxu0 0.0
          %6648 = vmatpush1.msra.mxu0 %v6454
          %6649 = vmatprep.subr.mxu0 0.0
          %6650 = vmatpush1.msra.mxu0 %v6455
          %6651 = vmatprep.subr.mxu0 0.0
          %6652 = vmatpush1.msra.mxu0 %v6456
          %6653 = vmatprep.subr.mxu0 0.0
          %6654 = vmatpush1.msra.mxu0 %v6457
          %6655 = vmatprep.subr.mxu0 0.0
          %6656 = vmatpush1.msra.mxu0 0.0
          %6657 = vmatprep.subr.mxu0 0.0
          %6658 = vmatpush1.msra.mxu0 0.0
          %6659 = vmatprep.subr.mxu0 0.0
          %6660 = vmatpush1.msra.mxu0 0.0
          %6661 = vmatprep.subr.mxu0 0.0
          %6662 = vmatpush1.msra.mxu0 0.0
          %6663 = vmatprep.subr.mxu0 0.0
          %6664 = vmatpush1.msra.mxu0 0.0
          %6665 = vmatprep.subr.mxu0 0.0
          %6666 = vmatpush1.msra.mxu0 0.0
          %6667 = vmatprep.subr.mxu0 0.0
          %6668 = vmatpush1.msra.mxu0 0.0
          %6669 = vmatprep.subr.mxu0 0.0
          %6670 = vmatpush1.msra.mxu0 0.0
          %6671 = vmatprep.subr.mxu0 0.0
          %6672 = vmatpush1.msra.mxu0 0.0
          %6673 = vmatprep.subr.mxu0 0.0
          %6674 = vmatpush1.msra.mxu0 0.0
          %6675 = vmatprep.subr.mxu0 0.0
          %6676 = vmatpush1.msra.mxu0 0.0
          %6677 = vmatprep.subr.mxu0 0.0
          %6678 = vmatpush1.msra.mxu0 0.0
          %6679 = vmatprep.subr.mxu0 0.0
          %6680 = vmatpush1.msra.mxu0 0.0
          %6681 = vmatprep.subr.mxu0 0.0
          %6682 = vmatpush1.msra.mxu0 0.0
          %6683 = vmatprep.subr.mxu0 0.0
          %6684 = vmatpush1.msra.mxu0 0.0
          %6685 = vmatprep.subr.mxu0 0.0
          %6686 = vmatpush1.msra.mxu0 0.0
          %6687 = vmatprep.mubr.f32.mxu0 0.0
          %6688 = vmatmul.mubr.f32.gmra.mrb[0].mxu0 %v6552
          %v6689 = vpop.f32.mrb[0].mxu0
          %v6690 = vadd.f32 %v6620, %v6689
          %v6691 = vpop.f32.mrb[0].mxu0
          %6692 = vdwg.mxu0
          %v6694 = vlaneseq
          %v6695 = vshrl.u32 %v6694, 7
          %v6696 = vsub.s32 0, %v6695
          %v6697 = vrot.slane %v6538, %v6696
          %v6699 = vadd.f32 %v6690, %v6697
          %v6700 = vxor.u32 %v6699, 2147483648
          %v6701 = vmul.f32 %v6700, 1.442695
          %v6702 = vpow.pop %v6701
          %v6703 = vadd.f32 %v6702, 1.0
          %v6704 = vrcp.pop %v6703
          %v6705 = vmul.f32 1.0, %v6704
          %6706 = vmatprep.subr.mxu0 0.0
          %6707 = vmatpush1.msra.mxu0 %v6506
          %6708 = vmatprep.subr.mxu0 0.0
          %6709 = vmatpush1.msra.mxu0 %v6507
          %6710 = vmatprep.subr.mxu0 0.0
          %6711 = vmatpush1.msra.mxu0 %v6508
          %6712 = vmatprep.subr.mxu0 0.0
          %6713 = vmatpush1.msra.mxu0 %v6509
          %6714 = vmatprep.subr.mxu0 0.0
          %6715 = vmatpush1.msra.mxu0 %v6510
          %6716 = vmatprep.subr.mxu0 0.0
          %6717 = vmatpush1.msra.mxu0 %v6511
          %6718 = vmatprep.subr.mxu0 0.0
          %6719 = vmatpush1.msra.mxu0 %v6512
          %6720 = vmatprep.subr.mxu0 0.0
          %6721 = vmatpush1.msra.mxu0 %v6513
          %6722 = vmatprep.subr.mxu0 0.0
          %6723 = vmatpush1.msra.mxu0 %v6514
          %6724 = vmatprep.subr.mxu0 0.0
          %6725 = vmatpush1.msra.mxu0 %v6515
          %6726 = vmatprep.subr.mxu0 0.0
          %6727 = vmatpush1.msra.mxu0 %v6516
          %6728 = vmatprep.subr.mxu0 0.0
          %6729 = vmatpush1.msra.mxu0 %v6517
          %6730 = vmatprep.subr.mxu0 0.0
          %6731 = vmatpush1.msra.mxu0 %v6518
          %6732 = vmatprep.subr.mxu0 0.0
          %6733 = vmatpush1.msra.mxu0 %v6519
          %6734 = vmatprep.subr.mxu0 0.0
          %6735 = vmatpush1.msra.mxu0 %v6520
          %6736 = vmatprep.subr.mxu0 0.0
          %6737 = vmatpush1.msra.mxu0 %v6521
          %6738 = vmatprep.subr.mxu0 0.0
          %6739 = vmatpush1.msra.mxu0 0.0
          %6740 = vmatprep.subr.mxu0 0.0
          %6741 = vmatpush1.msra.mxu0 0.0
          %6742 = vmatprep.subr.mxu0 0.0
          %6743 = vmatpush1.msra.mxu0 0.0
          %6744 = vmatprep.subr.mxu0 0.0
          %6745 = vmatpush1.msra.mxu0 0.0
          %6746 = vmatprep.subr.mxu0 0.0
          %6747 = vmatpush1.msra.mxu0 0.0
          %6748 = vmatprep.subr.mxu0 0.0
          %6749 = vmatpush1.msra.mxu0 0.0
          %6750 = vmatprep.subr.mxu0 0.0
          %6751 = vmatpush1.msra.mxu0 0.0
          %6752 = vmatprep.subr.mxu0 0.0
          %6753 = vmatpush1.msra.mxu0 0.0
          %6754 = vmatprep.subr.mxu0 0.0
          %6755 = vmatpush1.msra.mxu0 0.0
          %6756 = vmatprep.subr.mxu0 0.0
          %6757 = vmatpush1.msra.mxu0 0.0
          %6758 = vmatprep.subr.mxu0 0.0
          %6759 = vmatpush1.msra.mxu0 0.0
          %6760 = vmatprep.subr.mxu0 0.0
          %6761 = vmatpush1.msra.mxu0 0.0
          %6762 = vmatprep.subr.mxu0 0.0
          %6763 = vmatpush1.msra.mxu0 0.0
          %6764 = vmatprep.subr.mxu0 0.0
          %6765 = vmatpush1.msra.mxu0 0.0
          %6766 = vmatprep.subr.mxu0 0.0
          %6767 = vmatpush1.msra.mxu0 0.0
          %6768 = vmatprep.subr.mxu0 0.0
          %6769 = vmatpush1.msra.mxu0 0.0
          %6770 = vmatprep.mubr.f32.mxu0 0.0
          %6771 = vmatmul.mubr.f32.gmra.mrb[0].mxu0 %v6549
          %v6772 = vpop.f32.mrb[0].mxu0
          %v6773 = vadd.f32 0.0, %v6772
          %v6774 = vpop.f32.mrb[0].mxu0
          %6775 = vdwg.mxu0
          %6776 = vmatprep.subr.mxu0 0.0
          %6777 = vmatpush1.msra.mxu0 %v6458
          %6778 = vmatprep.subr.mxu0 0.0
          %6779 = vmatpush1.msra.mxu0 %v6459
          %6780 = vmatprep.subr.mxu0 0.0
          %6781 = vmatpush1.msra.mxu0 %v6460
          %6782 = vmatprep.subr.mxu0 0.0
          %6783 = vmatpush1.msra.mxu0 %v6461
          %6784 = vmatprep.subr.mxu0 0.0
          %6785 = vmatpush1.msra.mxu0 %v6462
          %6786 = vmatprep.subr.mxu0 0.0
          %6787 = vmatpush1.msra.mxu0 %v6463
          %6788 = vmatprep.subr.mxu0 0.0
          %6789 = vmatpush1.msra.mxu0 %v6464
          %6790 = vmatprep.subr.mxu0 0.0
          %6791 = vmatpush1.msra.mxu0 %v6465
          %6792 = vmatprep.subr.mxu0 0.0
          %6793 = vmatpush1.msra.mxu0 %v6466
          %6794 = vmatprep.subr.mxu0 0.0
          %6795 = vmatpush1.msra.mxu0 %v6467
          %6796 = vmatprep.subr.mxu0 0.0
          %6797 = vmatpush1.msra.mxu0 %v6468
          %6798 = vmatprep.subr.mxu0 0.0
          %6799 = vmatpush1.msra.mxu0 %v6469
          %6800 = vmatprep.subr.mxu0 0.0
          %6801 = vmatpush1.msra.mxu0 %v6470
          %6802 = vmatprep.subr.mxu0 0.0
          %6803 = vmatpush1.msra.mxu0 %v6471
          %6804 = vmatprep.subr.mxu0 0.0
          %6805 = vmatpush1.msra.mxu0 %v6472
          %6806 = vmatprep.subr.mxu0 0.0
          %6807 = vmatpush1.msra.mxu0 %v6473
          %6808 = vmatprep.subr.mxu0 0.0
          %6809 = vmatpush1.msra.mxu0 0.0
          %6810 = vmatprep.subr.mxu0 0.0
          %6811 = vmatpush1.msra.mxu0 0.0
          %6812 = vmatprep.subr.mxu0 0.0
          %6813 = vmatpush1.msra.mxu0 0.0
          %6814 = vmatprep.subr.mxu0 0.0
          %6815 = vmatpush1.msra.mxu0 0.0
          %6816 = vmatprep.subr.mxu0 0.0
          %6817 = vmatpush1.msra.mxu0 0.0
          %6818 = vmatprep.subr.mxu0 0.0
          %6819 = vmatpush1.msra.mxu0 0.0
          %6820 = vmatprep.subr.mxu0 0.0
          %6821 = vmatpush1.msra.mxu0 0.0
          %6822 = vmatprep.subr.mxu0 0.0
          %6823 = vmatpush1.msra.mxu0 0.0
          %6824 = vmatprep.subr.mxu0 0.0
          %6825 = vmatpush1.msra.mxu0 0.0
          %6826 = vmatprep.subr.mxu0 0.0
          %6827 = vmatpush1.msra.mxu0 0.0
          %6828 = vmatprep.subr.mxu0 0.0
          %6829 = vmatpush1.msra.mxu0 0.0
          %6830 = vmatprep.subr.mxu0 0.0
          %6831 = vmatpush1.msra.mxu0 0.0
          %6832 = vmatprep.subr.mxu0 0.0
          %6833 = vmatpush1.msra.mxu0 0.0
          %6834 = vmatprep.subr.mxu0 0.0
          %6835 = vmatpush1.msra.mxu0 0.0
          %6836 = vmatprep.subr.mxu0 0.0
          %6837 = vmatpush1.msra.mxu0 0.0
          %6838 = vmatprep.subr.mxu0 0.0
          %6839 = vmatpush1.msra.mxu0 0.0
          %6840 = vmatprep.mubr.f32.mxu0 0.0
          %6841 = vmatmul.mubr.f32.gmra.mrb[0].mxu0 %v6552
          %v6842 = vpop.f32.mrb[0].mxu0
          %v6843 = vadd.f32 %v6773, %v6842
          %v6844 = vpop.f32.mrb[0].mxu0
          %6845 = vdwg.mxu0
          %v6847 = vlaneseq
          %v6848 = vshrl.u32 %v6847, 7
          %v6849 = vsub.s32 0, %v6848
          %v6850 = vrot.slane %v6539, %v6849
          %v6852 = vadd.f32 %v6843, %v6850
          %v6853 = vxor.u32 %v6852, 2147483648
          %v6854 = vmul.f32 %v6853, 1.442695
          %v6855 = vpow.pop %v6854
          %v6856 = vadd.f32 %v6855, 1.0
          %v6857 = vrcp.pop %v6856
          %v6858 = vmul.f32 1.0, %v6857
          %v6860 = vlaneseq
          %v6861 = vshrl.u32 %v6860, 7
          %v6862 = vsub.s32 0, %v6861
          %v6863 = vrot.slane %v6540, %v6862
          %6865 = vmatprep.subr.mxu0 0.0
          %6866 = vmatpush1.msra.mxu0 %v6474
          %6867 = vmatprep.subr.mxu0 0.0
          %6868 = vmatpush1.msra.mxu0 %v6475
          %6869 = vmatprep.subr.mxu0 0.0
          %6870 = vmatpush1.msra.mxu0 %v6476
          %6871 = vmatprep.subr.mxu0 0.0
          %6872 = vmatpush1.msra.mxu0 %v6477
          %6873 = vmatprep.subr.mxu0 0.0
          %6874 = vmatpush1.msra.mxu0 %v6478
          %6875 = vmatprep.subr.mxu0 0.0
          %6876 = vmatpush1.msra.mxu0 %v6479
          %6877 = vmatprep.subr.mxu0 0.0
          %6878 = vmatpush1.msra.mxu0 %v6480
          %6879 = vmatprep.subr.mxu0 0.0
          %6880 = vmatpush1.msra.mxu0 %v6481
          %6881 = vmatprep.subr.mxu0 0.0
          %6882 = vmatpush1.msra.mxu0 %v6482
          %6883 = vmatprep.subr.mxu0 0.0
          %6884 = vmatpush1.msra.mxu0 %v6483
          %6885 = vmatprep.subr.mxu0 0.0
          %6886 = vmatpush1.msra.mxu0 %v6484
          %6887 = vmatprep.subr.mxu0 0.0
          %6888 = vmatpush1.msra.mxu0 %v6485
          %6889 = vmatprep.subr.mxu0 0.0
          %6890 = vmatpush1.msra.mxu0 %v6486
          %6891 = vmatprep.subr.mxu0 0.0
          %6892 = vmatpush1.msra.mxu0 %v6487
          %6893 = vmatprep.subr.mxu0 0.0
          %6894 = vmatpush1.msra.mxu0 %v6488
          %6895 = vmatprep.subr.mxu0 0.0
          %6896 = vmatpush1.msra.mxu0 %v6489
          %6897 = vmatprep.subr.mxu0 0.0
          %6898 = vmatpush1.msra.mxu0 0.0
          %6899 = vmatprep.subr.mxu0 0.0
          %6900 = vmatpush1.msra.mxu0 0.0
          %6901 = vmatprep.subr.mxu0 0.0
          %6902 = vmatpush1.msra.mxu0 0.0
          %6903 = vmatprep.subr.mxu0 0.0
          %6904 = vmatpush1.msra.mxu0 0.0
          %6905 = vmatprep.subr.mxu0 0.0
          %6906 = vmatpush1.msra.mxu0 0.0
          %6907 = vmatprep.subr.mxu0 0.0
          %6908 = vmatpush1.msra.mxu0 0.0
          %6909 = vmatprep.subr.mxu0 0.0
          %6910 = vmatpush1.msra.mxu0 0.0
          %6911 = vmatprep.subr.mxu0 0.0
          %6912 = vmatpush1.msra.mxu0 0.0
          %6913 = vmatprep.subr.mxu0 0.0
          %6914 = vmatpush1.msra.mxu0 0.0
          %6915 = vmatprep.subr.mxu0 0.0
          %6916 = vmatpush1.msra.mxu0 0.0
          %6917 = vmatprep.subr.mxu0 0.0
          %6918 = vmatpush1.msra.mxu0 0.0
          %6919 = vmatprep.subr.mxu0 0.0
          %6920 = vmatpush1.msra.mxu0 0.0
          %6921 = vmatprep.subr.mxu0 0.0
          %6922 = vmatpush1.msra.mxu0 0.0
          %6923 = vmatprep.subr.mxu0 0.0
          %6924 = vmatpush1.msra.mxu0 0.0
          %6925 = vmatprep.subr.mxu0 0.0
          %6926 = vmatpush1.msra.mxu0 0.0
          %6927 = vmatprep.subr.mxu0 0.0
          %6928 = vmatpush1.msra.mxu0 0.0
          %6929 = vmatprep.mubr.f32.mxu0 0.0
          %6930 = vmatmul.mubr.f32.gmra.mrb[0].mxu0 %v6552
          %v6931 = vpop.f32.mrb[0].mxu0
          %v6932 = vadd.f32 %v6863, %v6931
          %v6933 = vpop.f32.mrb[0].mxu0
          %6934 = vdwg.mxu0
          %v6936 = vlaneseq
          %v6937 = vshrl.u32 %v6936, 7
          %v6938 = vsub.s32 0, %v6937
          %v6939 = vrot.slane %v6541, %v6938
          %6941 = vmatprep.subr.mxu0 0.0
          %6942 = vmatpush1.msra.mxu0 %v6522
          %6943 = vmatprep.subr.mxu0 0.0
          %6944 = vmatpush1.msra.mxu0 %v6523
          %6945 = vmatprep.subr.mxu0 0.0
          %6946 = vmatpush1.msra.mxu0 %v6524
          %6947 = vmatprep.subr.mxu0 0.0
          %6948 = vmatpush1.msra.mxu0 %v6525
          %6949 = vmatprep.subr.mxu0 0.0
          %6950 = vmatpush1.msra.mxu0 %v6526
          %6951 = vmatprep.subr.mxu0 0.0
          %6952 = vmatpush1.msra.mxu0 %v6527
          %6953 = vmatprep.subr.mxu0 0.0
          %6954 = vmatpush1.msra.mxu0 %v6528
          %6955 = vmatprep.subr.mxu0 0.0
          %6956 = vmatpush1.msra.mxu0 %v6529
          %6957 = vmatprep.subr.mxu0 0.0
          %6958 = vmatpush1.msra.mxu0 %v6530
          %6959 = vmatprep.subr.mxu0 0.0
          %6960 = vmatpush1.msra.mxu0 %v6531
          %6961 = vmatprep.subr.mxu0 0.0
          %6962 = vmatpush1.msra.mxu0 %v6532
          %6963 = vmatprep.subr.mxu0 0.0
          %6964 = vmatpush1.msra.mxu0 %v6533
          %6965 = vmatprep.subr.mxu0 0.0
          %6966 = vmatpush1.msra.mxu0 %v6534
          %6967 = vmatprep.subr.mxu0 0.0
          %6968 = vmatpush1.msra.mxu0 %v6535
          %6969 = vmatprep.subr.mxu0 0.0
          %6970 = vmatpush1.msra.mxu0 %v6536
          %6971 = vmatprep.subr.mxu0 0.0
          %6972 = vmatpush1.msra.mxu0 %v6537
          %6973 = vmatprep.subr.mxu0 0.0
          %6974 = vmatpush1.msra.mxu0 0.0
          %6975 = vmatprep.subr.mxu0 0.0
          %6976 = vmatpush1.msra.mxu0 0.0
          %6977 = vmatprep.subr.mxu0 0.0
          %6978 = vmatpush1.msra.mxu0 0.0
          %6979 = vmatprep.subr.mxu0 0.0
          %6980 = vmatpush1.msra.mxu0 0.0
          %6981 = vmatprep.subr.mxu0 0.0
          %6982 = vmatpush1.msra.mxu0 0.0
          %6983 = vmatprep.subr.mxu0 0.0
          %6984 = vmatpush1.msra.mxu0 0.0
          %6985 = vmatprep.subr.mxu0 0.0
          %6986 = vmatpush1.msra.mxu0 0.0
          %6987 = vmatprep.subr.mxu0 0.0
          %6988 = vmatpush1.msra.mxu0 0.0
          %6989 = vmatprep.subr.mxu0 0.0
          %6990 = vmatpush1.msra.mxu0 0.0
          %6991 = vmatprep.subr.mxu0 0.0
          %6992 = vmatpush1.msra.mxu0 0.0
          %6993 = vmatprep.subr.mxu0 0.0
          %6994 = vmatpush1.msra.mxu0 0.0
          %6995 = vmatprep.subr.mxu0 0.0
          %6996 = vmatpush1.msra.mxu0 0.0
          %6997 = vmatprep.subr.mxu0 0.0
          %6998 = vmatpush1.msra.mxu0 0.0
          %6999 = vmatprep.subr.mxu0 0.0
          %7000 = vmatpush1.msra.mxu0 0.0
          %7001 = vmatprep.subr.mxu0 0.0
          %7002 = vmatpush1.msra.mxu0 0.0
          %7003 = vmatprep.subr.mxu0 0.0
          %7004 = vmatpush1.msra.mxu0 0.0
          %7005 = vmatprep.mubr.f32.mxu0 0.0
          %7006 = vmatmul.mubr.f32.gmra.mrb[0].mxu0 %v6549
          %v7007 = vpop.f32.mrb[0].mxu0
          %v7008 = vadd.f32 %v6939, %v7007
          %v7009 = vpop.f32.mrb[0].mxu0
          %7010 = vdwg.mxu0
          %v7011 = vmul.f32 %v6705, %v7008
          %v7012 = vadd.f32 %v6932, %v7011
          %v7013 = vtanh.pop %v7012
          %v7014 = vsub.f32 1.0, %v6858
          %v7015 = vmul.f32 %v7014, %v7013
          %v7016 = vmul.f32 %v6858, %v6549
          %v7017 = vadd.f32 %v7015, %v7016
          %s7018 = scalar_lea.vmem %s1261, %s6550 [#allocation27]
          %7019 = vst [vmem:[%s7018] sm:$0x7] %v7017
        $region267: #{tpu_custom_call.1} parent=201 // loop_footer
          %s6548 = sadd.s32 1, %s6544
        $region268: #{tpu_custom_call.1} parent=201 // loop_footer_branch
          %6543 = sbr.rel target = $region264
        $region269: #{tpu_custom_call.1} parent=201 // loop_exit
          _
        %v7020 = vld [vmem:[%s1261] sm:$0x7]
        %v7021 = vld [vmem:[%s1261 + $0x4] sm:$0x7]
        %v7022 = vld [vmem:[%s1261 + $0x8] sm:$0x7]
        %v7023 = vld [vmem:[%s1261 + $0xc] sm:$0x7]
        %v7029 = vunpack.c.l.s4 1966171168
        %v7030 = vunpack.c.0.s8 %v7029
        %v7031 = vlaneseq
        %v7032 = vshrl.u32 %v7031, 7
        %v7033 = vsub.s32 %v7030, %v7032
        %v7034 = vrot.slane %v7020, %v7033
        %v7035 = vcombine.high %v7034, %v7034
        %v7037 = vunpack.c.l.s4 1966171168
        %v7038 = vunpack.c.0.s8 %v7037
        %v7039 = vlaneseq
        %v7040 = vshrl.u32 %v7039, 7
        %v7041 = vsub.s32 %v7038, %v7040
        %v7042 = vrot.slane %v7034, %v7041
        %v7044 = vunpack.c.l.s4 1966171168
        %v7045 = vunpack.c.0.s8 %v7044
        %v7046 = vlaneseq
        %v7047 = vshrl.u32 %v7046, 7
        %v7048 = vsub.s32 %v7045, %v7047
        %v7049 = vrot.slane %v7035, %v7048
        %v7050 = vcombine.high %v7042, %v7042
        %v7052 = vunpack.c.l.s4 1966171168
        %v7053 = vunpack.c.0.s8 %v7052
        %v7054 = vlaneseq
        %v7055 = vshrl.u32 %v7054, 7
        %v7056 = vsub.s32 %v7053, %v7055
        %v7057 = vrot.slane %v7021, %v7056
        %v7058 = vcombine.high %v7057, %v7057
        %v7060 = vunpack.c.l.s4 1966171168
        %v7061 = vunpack.c.0.s8 %v7060
        %v7062 = vlaneseq
        %v7063 = vshrl.u32 %v7062, 7
        %v7064 = vsub.s32 %v7061, %v7063
        %v7065 = vrot.slane %v7057, %v7064
        %v7067 = vunpack.c.l.s4 1966171168
        %v7068 = vunpack.c.0.s8 %v7067
        %v7069 = vlaneseq
        %v7070 = vshrl.u32 %v7069, 7
        %v7071 = vsub.s32 %v7068, %v7070
        %v7072 = vrot.slane %v7058, %v7071
        %v7073 = vcombine.high %v7065, %v7065
        %v7075 = vunpack.c.l.s4 1966171168
        %v7076 = vunpack.c.0.s8 %v7075
        %v7077 = vlaneseq
        %v7078 = vshrl.u32 %v7077, 7
        %v7079 = vsub.s32 %v7076, %v7078
        %v7080 = vrot.slane %v7022, %v7079
        %v7081 = vcombine.high %v7080, %v7080
        %v7083 = vunpack.c.l.s4 1966171168
        %v7084 = vunpack.c.0.s8 %v7083
        %v7085 = vlaneseq
        %v7086 = vshrl.u32 %v7085, 7
        %v7087 = vsub.s32 %v7084, %v7086
        %v7088 = vrot.slane %v7080, %v7087
        %v7090 = vunpack.c.l.s4 1966171168
        %v7091 = vunpack.c.0.s8 %v7090
        %v7092 = vlaneseq
        %v7093 = vshrl.u32 %v7092, 7
        %v7094 = vsub.s32 %v7091, %v7093
        %v7095 = vrot.slane %v7081, %v7094
        %v7096 = vcombine.high %v7088, %v7088
        %v7098 = vunpack.c.l.s4 1966171168
        %v7099 = vunpack.c.0.s8 %v7098
        %v7100 = vlaneseq
        %v7101 = vshrl.u32 %v7100, 7
        %v7102 = vsub.s32 %v7099, %v7101
        %v7103 = vrot.slane %v7023, %v7102
        %v7104 = vcombine.high %v7103, %v7103
        %v7106 = vunpack.c.l.s4 1966171168
        %v7107 = vunpack.c.0.s8 %v7106
        %v7108 = vlaneseq
        %v7109 = vshrl.u32 %v7108, 7
        %v7110 = vsub.s32 %v7107, %v7109
        %v7111 = vrot.slane %v7103, %v7110
        %v7113 = vunpack.c.l.s4 1966171168
        %v7114 = vunpack.c.0.s8 %v7113
        %v7115 = vlaneseq
        %v7116 = vshrl.u32 %v7115, 7
        %v7117 = vsub.s32 %v7114, %v7116
        %v7118 = vrot.slane %v7104, %v7117
        %v7119 = vcombine.high %v7111, %v7111
        %v7120 = vld [vmem:[#allocation22] sm:$0xff]
        %v7121 = vld [vmem:[#allocation22 + $0x8] sm:$0xff]
        %v7122 = vld [vmem:[#allocation22 + $0x10] sm:$0xff]
        %v7123 = vld [vmem:[#allocation22 + $0x18] sm:$0xff]
        %v7124 = vld [vmem:[#allocation22 + $0x20] sm:$0xff]
        %v7125 = vld [vmem:[#allocation22 + $0x28] sm:$0xff]
        %v7126 = vld [vmem:[#allocation22 + $0x30] sm:$0xff]
        %v7127 = vld [vmem:[#allocation22 + $0x38] sm:$0xff]
        %v7128 = vld [vmem:[#allocation22 + $0x40] sm:$0xff]
        %v7129 = vld [vmem:[#allocation22 + $0x48] sm:$0xff]
        %v7130 = vld [vmem:[#allocation22 + $0x50] sm:$0xff]
        %v7131 = vld [vmem:[#allocation22 + $0x58] sm:$0xff]
        %v7132 = vld [vmem:[#allocation22 + $0x60] sm:$0xff]
        %v7133 = vld [vmem:[#allocation22 + $0x68] sm:$0xff]
        %v7134 = vld [vmem:[#allocation22 + $0x70] sm:$0xff]
        %v7135 = vld [vmem:[#allocation22 + $0x78] sm:$0xff]
        %v7136 = vld [vmem:[%s49] sm:$0x1]
        %v7138 = vlaneseq
        %v7139 = vshrl.u32 %v7138, 7
        %v7140 = vsub.s32 0, %v7139
        %v7141 = vrot.slane %v7136, %v7140
        %v7143 = vcombine.low %v7042, %v7049
        %v7144 = vcombine.low %v7050, %v7065
        %v7145 = vcombine.low %v7072, %v7073
        %v7146 = vcombine.low %v7088, %v7095
        %v7148 = vunpack.c.l.s4 1966171168
        %v7149 = vunpack.c.0.s8 %v7148
        %v7150 = vlaneseq
        %v7151 = vshrl.u32 %v7150, 7
        %v7152 = vsub.s32 %v7149, %v7151
        %v7153 = vrot.slane %v7143, %v7152
        %v7155 = vunpack.c.l.s4 1966171168
        %v7156 = vunpack.c.0.s8 %v7155
        %v7157 = vlaneseq
        %v7158 = vshrl.u32 %v7157, 7
        %v7159 = vsub.s32 %v7156, %v7158
        %v7160 = vrot.slane %v7144, %v7159
        %v7162 = vunpack.c.l.s4 1966171168
        %v7163 = vunpack.c.0.s8 %v7162
        %v7164 = vlaneseq
        %v7165 = vshrl.u32 %v7164, 7
        %v7166 = vsub.s32 %v7163, %v7165
        %v7167 = vrot.slane %v7145, %v7166
        %v7169 = vunpack.c.l.s4 1966171168
        %v7170 = vunpack.c.0.s8 %v7169
        %v7171 = vlaneseq
        %v7172 = vshrl.u32 %v7171, 7
        %v7173 = vsub.s32 %v7170, %v7172
        %v7174 = vrot.slane %v7146, %v7173
        %v7175 = vcombine.low %v7153, %v7160
        %v7176 = vcombine.low %v7167, %v7174
        %v7178 = vunpack.c.l.s4 1966171168
        %v7179 = vunpack.c.0.s8 %v7178
        %v7180 = vlaneseq
        %v7181 = vshrl.u32 %v7180, 7
        %v7182 = vsub.s32 %v7179, %v7181
        %v7183 = vrot.slane %v7175, %v7182
        %v7185 = vunpack.c.l.s4 1966171168
        %v7186 = vunpack.c.0.s8 %v7185
        %v7187 = vlaneseq
        %v7188 = vshrl.u32 %v7187, 7
        %v7189 = vsub.s32 %v7186, %v7188
        %v7190 = vrot.slane %v7176, %v7189
        %v7191 = vcombine.low %v7183, %v7190
        %v7192 = vcombine.low %v7096, %v7111
        %v7193 = vcombine.low %v7118, %v7119
        %v7195 = vunpack.c.l.s4 1966171168
        %v7196 = vunpack.c.0.s8 %v7195
        %v7197 = vlaneseq
        %v7198 = vshrl.u32 %v7197, 7
        %v7199 = vsub.s32 %v7196, %v7198
        %v7200 = vrot.slane %v7192, %v7199
        %v7202 = vunpack.c.l.s4 1966171168
        %v7203 = vunpack.c.0.s8 %v7202
        %v7204 = vlaneseq
        %v7205 = vshrl.u32 %v7204, 7
        %v7206 = vsub.s32 %v7203, %v7205
        %v7207 = vrot.slane %v7193, %v7206
        %v7208 = vcombine.low %v7200, %v7207
        %v7210 = vunpack.c.l.s4 1966171168
        %v7211 = vunpack.c.0.s8 %v7210
        %v7212 = vlaneseq
        %v7213 = vshrl.u32 %v7212, 7
        %v7214 = vsub.s32 %v7211, %v7213
        %v7215 = vrot.slane %v7208, %v7214
        %7218 = vmatprep.subr.mxu0 0.0
        %7219 = vmatpush1.msra.mxu0 %v7120
        %7220 = vmatprep.subr.mxu0 0.0
        %7221 = vmatpush1.msra.mxu0 %v7121
        %7222 = vmatprep.subr.mxu0 0.0
        %7223 = vmatpush1.msra.mxu0 %v7122
        %7224 = vmatprep.subr.mxu0 0.0
        %7225 = vmatpush1.msra.mxu0 %v7123
        %7226 = vmatprep.subr.mxu0 0.0
        %7227 = vmatpush1.msra.mxu0 %v7124
        %7228 = vmatprep.subr.mxu0 0.0
        %7229 = vmatpush1.msra.mxu0 %v7125
        %7230 = vmatprep.subr.mxu0 0.0
        %7231 = vmatpush1.msra.mxu0 %v7126
        %7232 = vmatprep.subr.mxu0 0.0
        %7233 = vmatpush1.msra.mxu0 %v7127
        %7234 = vmatprep.subr.mxu0 0.0
        %7235 = vmatpush1.msra.mxu0 %v7128
        %7236 = vmatprep.subr.mxu0 0.0
        %7237 = vmatpush1.msra.mxu0 %v7129
        %7238 = vmatprep.subr.mxu0 0.0
        %7239 = vmatpush1.msra.mxu0 %v7130
        %7240 = vmatprep.subr.mxu0 0.0
        %7241 = vmatpush1.msra.mxu0 %v7131
        %7242 = vmatprep.subr.mxu0 0.0
        %7243 = vmatpush1.msra.mxu0 %v7132
        %7244 = vmatprep.subr.mxu0 0.0
        %7245 = vmatpush1.msra.mxu0 %v7133
        %7246 = vmatprep.subr.mxu0 0.0
        %7247 = vmatpush1.msra.mxu0 %v7134
        %7248 = vmatprep.subr.mxu0 0.0
        %7249 = vmatpush1.msra.mxu0 %v7135
        %7250 = vmatprep.subr.mxu0 0.0
        %7251 = vmatpush1.msra.mxu0 0.0
        %7252 = vmatprep.subr.mxu0 0.0
        %7253 = vmatpush1.msra.mxu0 0.0
        %7254 = vmatprep.subr.mxu0 0.0
        %7255 = vmatpush1.msra.mxu0 0.0
        %7256 = vmatprep.subr.mxu0 0.0
        %7257 = vmatpush1.msra.mxu0 0.0
        %7258 = vmatprep.subr.mxu0 0.0
        %7259 = vmatpush1.msra.mxu0 0.0
        %7260 = vmatprep.subr.mxu0 0.0
        %7261 = vmatpush1.msra.mxu0 0.0
        %7262 = vmatprep.subr.mxu0 0.0
        %7263 = vmatpush1.msra.mxu0 0.0
        %7264 = vmatprep.subr.mxu0 0.0
        %7265 = vmatpush1.msra.mxu0 0.0
        %7266 = vmatprep.subr.mxu0 0.0
        %7267 = vmatpush1.msra.mxu0 0.0
        %7268 = vmatprep.subr.mxu0 0.0
        %7269 = vmatpush1.msra.mxu0 0.0
        %7270 = vmatprep.subr.mxu0 0.0
        %7271 = vmatpush1.msra.mxu0 0.0
        %7272 = vmatprep.subr.mxu0 0.0
        %7273 = vmatpush1.msra.mxu0 0.0
        %7274 = vmatprep.subr.mxu0 0.0
        %7275 = vmatpush1.msra.mxu0 0.0
        %7276 = vmatprep.subr.mxu0 0.0
        %7277 = vmatpush1.msra.mxu0 0.0
        %7278 = vmatprep.subr.mxu0 0.0
        %7279 = vmatpush1.msra.mxu0 0.0
        %7280 = vmatprep.subr.mxu0 0.0
        %7281 = vmatpush1.msra.mxu0 0.0
        %7282 = vmatprep.mubr.f32.mxu0 0.0
        %7283 = vmatmul.mubr.f32.gmra.mrb[0].mxu0 %v7191
        %v7284 = vpop.f32.mrb[0].mxu0
        %v7285 = vadd.f32 %v7141, %v7284
        %v7286 = vpop.f32.mrb[0].mxu0
        %7287 = vmatprep.mubr.f32.mxu0 0.0
        %7288 = vmatmul.mubr.f32.gmra.mrb[0].mxu0 %v7215
        %v7289 = vpop.f32.mrb[0].mxu0
        %v7290 = vadd.f32 %v7141, %v7289
        %v7291 = vpop.f32.mrb[0].mxu0
        %7292 = vdwg.mxu0
        %v7295 = vcombine.high %v7285, %v7285
        %v7297 = vunpack.c.l.s4 1966171168
        %v7298 = vunpack.c.0.s8 %v7297
        %v7299 = vlaneseq
        %v7300 = vshrl.u32 %v7299, 7
        %v7301 = vsub.s32 %v7298, %v7300
        %v7302 = vrot.slane %v7285, %v7301
        %v7304 = vunpack.c.l.s4 1966171168
        %v7305 = vunpack.c.0.s8 %v7304
        %v7306 = vlaneseq
        %v7307 = vshrl.u32 %v7306, 7
        %v7308 = vsub.s32 %v7305, %v7307
        %v7309 = vrot.slane %v7295, %v7308
        %v7310 = vcombine.high %v7302, %v7302
        %v7311 = vcombine.high %v7309, %v7309
        %v7313 = vunpack.c.l.s4 1966171168
        %v7314 = vunpack.c.0.s8 %v7313
        %v7315 = vlaneseq
        %v7316 = vshrl.u32 %v7315, 7
        %v7317 = vsub.s32 %v7314, %v7316
        %v7318 = vrot.slane %v7302, %v7317
        %v7320 = vunpack.c.l.s4 1966171168
        %v7321 = vunpack.c.0.s8 %v7320
        %v7322 = vlaneseq
        %v7323 = vshrl.u32 %v7322, 7
        %v7324 = vsub.s32 %v7321, %v7323
        %v7325 = vrot.slane %v7309, %v7324
        %v7327 = vunpack.c.l.s4 1966171168
        %v7328 = vunpack.c.0.s8 %v7327
        %v7329 = vlaneseq
        %v7330 = vshrl.u32 %v7329, 7
        %v7331 = vsub.s32 %v7328, %v7330
        %v7332 = vrot.slane %v7310, %v7331
        %v7334 = vunpack.c.l.s4 1966171168
        %v7335 = vunpack.c.0.s8 %v7334
        %v7336 = vlaneseq
        %v7337 = vshrl.u32 %v7336, 7
        %v7338 = vsub.s32 %v7335, %v7337
        %v7339 = vrot.slane %v7311, %v7338
        %v7340 = vcombine.high %v7318, %v7318
        %v7341 = vcombine.high %v7325, %v7325
        %v7342 = vcombine.high %v7332, %v7332
        %v7343 = vcombine.high %v7339, %v7339
        %v7345 = vunpack.c.l.s4 1966171168
        %v7346 = vunpack.c.0.s8 %v7345
        %v7347 = vlaneseq
        %v7348 = vshrl.u32 %v7347, 7
        %v7349 = vsub.s32 %v7346, %v7348
        %v7350 = vrot.slane %v7290, %v7349
        %v7351 = vcombine.high %v7350, %v7350
        %v7353 = vunpack.c.l.s4 1966171168
        %v7354 = vunpack.c.0.s8 %v7353
        %v7355 = vlaneseq
        %v7356 = vshrl.u32 %v7355, 7
        %v7357 = vsub.s32 %v7354, %v7356
        %v7358 = vrot.slane %v7350, %v7357
        %v7360 = vunpack.c.l.s4 1966171168
        %v7361 = vunpack.c.0.s8 %v7360
        %v7362 = vlaneseq
        %v7363 = vshrl.u32 %v7362, 7
        %v7364 = vsub.s32 %v7361, %v7363
        %v7365 = vrot.slane %v7351, %v7364
        %v7366 = vcombine.high %v7358, %v7358
        %v7367 = vcombine.high %v7365, %v7365
        %v7368 = vld [vmem:[#allocation24] sm:$0xff]
        %v7369 = vld [vmem:[#allocation24 + $0x8] sm:$0xff]
        %v7370 = vld [vmem:[#allocation24 + $0x10] sm:$0xff]
        %v7371 = vld [vmem:[#allocation24 + $0x18] sm:$0xff]
        %v7372 = vld [vmem:[#allocation24 + $0x20] sm:$0xff]
        %v7373 = vld [vmem:[#allocation24 + $0x28] sm:$0xff]
        %v7374 = vld [vmem:[#allocation24 + $0x30] sm:$0xff]
        %v7375 = vld [vmem:[#allocation24 + $0x38] sm:$0xff]
        %v7376 = vld [vmem:[#allocation24 + $0x40] sm:$0xff]
        %v7377 = vld [vmem:[#allocation24 + $0x48] sm:$0xff]
        %v7378 = vld [vmem:[#allocation24 + $0x50] sm:$0xff]
        %v7379 = vld [vmem:[#allocation24 + $0x58] sm:$0xff]
        %v7380 = vld [vmem:[#allocation24 + $0x60] sm:$0xff]
        %v7381 = vld [vmem:[#allocation24 + $0x68] sm:$0xff]
        %v7382 = vld [vmem:[#allocation24 + $0x70] sm:$0xff]
        %v7383 = vld [vmem:[#allocation24 + $0x78] sm:$0xff]
        %v7384 = vld [vmem:[%s53] sm:$0x1]
        %v7386 = vlaneseq
        %v7387 = vshrl.u32 %v7386, 7
        %v7388 = vsub.s32 0, %v7387
        %v7389 = vrot.slane %v7384, %v7388
        %7391 = vmatprep.subr.mxu0 0.0
        %7392 = vmatpush1.msra.mxu0 %v7368
        %7393 = vmatprep.subr.mxu0 0.0
        %7394 = vmatpush1.msra.mxu0 %v7369
        %7395 = vmatprep.subr.mxu0 0.0
        %7396 = vmatpush1.msra.mxu0 %v7370
        %7397 = vmatprep.subr.mxu0 0.0
        %7398 = vmatpush1.msra.mxu0 %v7371
        %7399 = vmatprep.subr.mxu0 0.0
        %7400 = vmatpush1.msra.mxu0 %v7372
        %7401 = vmatprep.subr.mxu0 0.0
        %7402 = vmatpush1.msra.mxu0 %v7373
        %7403 = vmatprep.subr.mxu0 0.0
        %7404 = vmatpush1.msra.mxu0 %v7374
        %7405 = vmatprep.subr.mxu0 0.0
        %7406 = vmatpush1.msra.mxu0 %v7375
        %7407 = vmatprep.subr.mxu0 0.0
        %7408 = vmatpush1.msra.mxu0 %v7376
        %7409 = vmatprep.subr.mxu0 0.0
        %7410 = vmatpush1.msra.mxu0 %v7377
        %7411 = vmatprep.subr.mxu0 0.0
        %7412 = vmatpush1.msra.mxu0 %v7378
        %7413 = vmatprep.subr.mxu0 0.0
        %7414 = vmatpush1.msra.mxu0 %v7379
        %7415 = vmatprep.subr.mxu0 0.0
        %7416 = vmatpush1.msra.mxu0 %v7380
        %7417 = vmatprep.subr.mxu0 0.0
        %7418 = vmatpush1.msra.mxu0 %v7381
        %7419 = vmatprep.subr.mxu0 0.0
        %7420 = vmatpush1.msra.mxu0 %v7382
        %7421 = vmatprep.subr.mxu0 0.0
        %7422 = vmatpush1.msra.mxu0 %v7383
        %7423 = vmatprep.subr.mxu0 0.0
        %7424 = vmatpush1.msra.mxu0 0.0
        %7425 = vmatprep.subr.mxu0 0.0
        %7426 = vmatpush1.msra.mxu0 0.0
        %7427 = vmatprep.subr.mxu0 0.0
        %7428 = vmatpush1.msra.mxu0 0.0
        %7429 = vmatprep.subr.mxu0 0.0
        %7430 = vmatpush1.msra.mxu0 0.0
        %7431 = vmatprep.subr.mxu0 0.0
        %7432 = vmatpush1.msra.mxu0 0.0
        %7433 = vmatprep.subr.mxu0 0.0
        %7434 = vmatpush1.msra.mxu0 0.0
        %7435 = vmatprep.subr.mxu0 0.0
        %7436 = vmatpush1.msra.mxu0 0.0
        %7437 = vmatprep.subr.mxu0 0.0
        %7438 = vmatpush1.msra.mxu0 0.0
        %7439 = vmatprep.subr.mxu0 0.0
        %7440 = vmatpush1.msra.mxu0 0.0
        %7441 = vmatprep.subr.mxu0 0.0
        %7442 = vmatpush1.msra.mxu0 0.0
        %7443 = vmatprep.subr.mxu0 0.0
        %7444 = vmatpush1.msra.mxu0 0.0
        %7445 = vmatprep.subr.mxu0 0.0
        %7446 = vmatpush1.msra.mxu0 0.0
        %7447 = vmatprep.subr.mxu0 0.0
        %7448 = vmatpush1.msra.mxu0 0.0
        %7449 = vmatprep.subr.mxu0 0.0
        %7450 = vmatpush1.msra.mxu0 0.0
        %7451 = vmatprep.subr.mxu0 0.0
        %7452 = vmatpush1.msra.mxu0 0.0
        %7453 = vmatprep.subr.mxu0 0.0
        %7454 = vmatpush1.msra.mxu0 0.0
        %7455 = vmatprep.mubr.f32.mxu0 0.0
        %7456 = vmatmul.mubr.f32.gmra.mrb[0].mxu0 %v7191
        %v7457 = vpop.f32.mrb[0].mxu0
        %v7458 = vadd.f32 %v7389, %v7457
        %v7459 = vpop.f32.mrb[0].mxu0
        %7460 = vmatprep.mubr.f32.mxu0 0.0
        %7461 = vmatmul.mubr.f32.gmra.mrb[0].mxu0 %v7215
        %v7462 = vpop.f32.mrb[0].mxu0
        %v7463 = vadd.f32 %v7389, %v7462
        %v7464 = vpop.f32.mrb[0].mxu0
        %7465 = vdwg.mxu0
        %v7468 = vcombine.high %v7458, %v7458
        %v7470 = vunpack.c.l.s4 1966171168
        %v7471 = vunpack.c.0.s8 %v7470
        %v7472 = vlaneseq
        %v7473 = vshrl.u32 %v7472, 7
        %v7474 = vsub.s32 %v7471, %v7473
        %v7475 = vrot.slane %v7458, %v7474
        %v7477 = vunpack.c.l.s4 1966171168
        %v7478 = vunpack.c.0.s8 %v7477
        %v7479 = vlaneseq
        %v7480 = vshrl.u32 %v7479, 7
        %v7481 = vsub.s32 %v7478, %v7480
        %v7482 = vrot.slane %v7468, %v7481
        %v7483 = vcombine.high %v7475, %v7475
        %v7484 = vcombine.high %v7482, %v7482
        %v7486 = vunpack.c.l.s4 1966171168
        %v7487 = vunpack.c.0.s8 %v7486
        %v7488 = vlaneseq
        %v7489 = vshrl.u32 %v7488, 7
        %v7490 = vsub.s32 %v7487, %v7489
        %v7491 = vrot.slane %v7475, %v7490
        %v7493 = vunpack.c.l.s4 1966171168
        %v7494 = vunpack.c.0.s8 %v7493
        %v7495 = vlaneseq
        %v7496 = vshrl.u32 %v7495, 7
        %v7497 = vsub.s32 %v7494, %v7496
        %v7498 = vrot.slane %v7482, %v7497
        %v7500 = vunpack.c.l.s4 1966171168
        %v7501 = vunpack.c.0.s8 %v7500
        %v7502 = vlaneseq
        %v7503 = vshrl.u32 %v7502, 7
        %v7504 = vsub.s32 %v7501, %v7503
        %v7505 = vrot.slane %v7483, %v7504
        %v7507 = vunpack.c.l.s4 1966171168
        %v7508 = vunpack.c.0.s8 %v7507
        %v7509 = vlaneseq
        %v7510 = vshrl.u32 %v7509, 7
        %v7511 = vsub.s32 %v7508, %v7510
        %v7512 = vrot.slane %v7484, %v7511
        %v7513 = vcombine.high %v7491, %v7491
        %v7514 = vcombine.high %v7498, %v7498
        %v7515 = vcombine.high %v7505, %v7505
        %v7516 = vcombine.high %v7512, %v7512
        %v7518 = vunpack.c.l.s4 1966171168
        %v7519 = vunpack.c.0.s8 %v7518
        %v7520 = vlaneseq
        %v7521 = vshrl.u32 %v7520, 7
        %v7522 = vsub.s32 %v7519, %v7521
        %v7523 = vrot.slane %v7463, %v7522
        %v7524 = vcombine.high %v7523, %v7523
        %v7526 = vunpack.c.l.s4 1966171168
        %v7527 = vunpack.c.0.s8 %v7526
        %v7528 = vlaneseq
        %v7529 = vshrl.u32 %v7528, 7
        %v7530 = vsub.s32 %v7527, %v7529
        %v7531 = vrot.slane %v7523, %v7530
        %v7533 = vunpack.c.l.s4 1966171168
        %v7534 = vunpack.c.0.s8 %v7533
        %v7535 = vlaneseq
        %v7536 = vshrl.u32 %v7535, 7
        %v7537 = vsub.s32 %v7534, %v7536
        %v7538 = vrot.slane %v7524, %v7537
        %v7539 = vcombine.high %v7531, %v7531
        %v7540 = vcombine.high %v7538, %v7538
        %v7541 = vcombine.low %v7318, %v7332
        %v7543 = vunpack.c.l.s4 1966171168
        %v7544 = vunpack.c.0.s8 %v7543
        %v7545 = vlaneseq
        %v7546 = vshrl.u32 %v7545, 7
        %v7547 = vsub.s32 %v7544, %v7546
        %v7548 = vrot.slane %v7541, %v7547
        %v7550 = vunpack.c.l.s4 1966171168
        %v7551 = vunpack.c.0.s8 %v7550
        %v7552 = vlaneseq
        %v7553 = vshrl.u32 %v7552, 7
        %v7554 = vsub.s32 %v7551, %v7553
        %v7555 = vrot.slane %v7340, %v7554
        %v7556 = vcombine.low %v7548, %v7555
        %v7558 = vunpack.c.l.s4 1966171168
        %v7559 = vunpack.c.0.s8 %v7558
        %v7560 = vlaneseq
        %v7561 = vshrl.u32 %v7560, 7
        %v7562 = vsub.s32 %v7559, %v7561
        %v7563 = vrot.slane %v7556, %v7562
        %v7564 = vcombine.low %v7342, %v7325
        %v7566 = vunpack.c.l.s4 1966171168
        %v7567 = vunpack.c.0.s8 %v7566
        %v7568 = vlaneseq
        %v7569 = vshrl.u32 %v7568, 7
        %v7570 = vsub.s32 %v7567, %v7569
        %v7571 = vrot.slane %v7564, %v7570
        %v7573 = vunpack.c.l.s4 1966171168
        %v7574 = vunpack.c.0.s8 %v7573
        %v7575 = vlaneseq
        %v7576 = vshrl.u32 %v7575, 7
        %v7577 = vsub.s32 %v7574, %v7576
        %v7578 = vrot.slane %v7339, %v7577
        %v7579 = vcombine.low %v7571, %v7578
        %v7581 = vunpack.c.l.s4 1966171168
        %v7582 = vunpack.c.0.s8 %v7581
        %v7583 = vlaneseq
        %v7584 = vshrl.u32 %v7583, 7
        %v7585 = vsub.s32 %v7582, %v7584
        %v7586 = vrot.slane %v7579, %v7585
        %v7587 = vcombine.low %v7341, %v7343
        %v7589 = vunpack.c.l.s4 1966171168
        %v7590 = vunpack.c.0.s8 %v7589
        %v7591 = vlaneseq
        %v7592 = vshrl.u32 %v7591, 7
        %v7593 = vsub.s32 %v7590, %v7592
        %v7594 = vrot.slane %v7587, %v7593
        %v7596 = vunpack.c.l.s4 1966171168
        %v7597 = vunpack.c.0.s8 %v7596
        %v7598 = vlaneseq
        %v7599 = vshrl.u32 %v7598, 7
        %v7600 = vsub.s32 %v7597, %v7599
        %v7601 = vrot.slane %v7358, %v7600
        %v7602 = vcombine.low %v7594, %v7601
        %v7604 = vunpack.c.l.s4 1966171168
        %v7605 = vunpack.c.0.s8 %v7604
        %v7606 = vlaneseq
        %v7607 = vshrl.u32 %v7606, 7
        %v7608 = vsub.s32 %v7605, %v7607
        %v7609 = vrot.slane %v7602, %v7608
        %v7610 = vcombine.low %v7365, %v7366
        %v7612 = vunpack.c.l.s4 1966171168
        %v7613 = vunpack.c.0.s8 %v7612
        %v7614 = vlaneseq
        %v7615 = vshrl.u32 %v7614, 7
        %v7616 = vsub.s32 %v7613, %v7615
        %v7617 = vrot.slane %v7610, %v7616
        %v7619 = vunpack.c.l.s4 1966171168
        %v7620 = vunpack.c.0.s8 %v7619
        %v7621 = vlaneseq
        %v7622 = vshrl.u32 %v7621, 7
        %v7623 = vsub.s32 %v7620, %v7622
        %v7624 = vrot.slane %v7367, %v7623
        %v7625 = vcombine.low %v7617, %v7624
        %v7627 = vunpack.c.l.s4 1966171168
        %v7628 = vunpack.c.0.s8 %v7627
        %v7629 = vlaneseq
        %v7630 = vshrl.u32 %v7629, 7
        %v7631 = vsub.s32 %v7628, %v7630
        %v7632 = vrot.slane %v7625, %v7631
        %v7637 = vsel %vm5892, 0.0, %v7563
        %v7638 = vsel %vm5893, 0.0, %v7586
        %v7639 = vsel %vm5894, 0.0, %v7609
        %v7640 = vsel %vm5895, 0.0, %v7632
        %7641 = vst [vmem:[%s1249] sm:$0x7] %v7637
        %7642 = vst [vmem:[%s1249 + $0x4] sm:$0x7] %v7638
        %7643 = vst [vmem:[%s1249 + $0x8] sm:$0x7] %v7639
        %7644 = vst [vmem:[%s1249 + $0xc] sm:$0x7] %v7640
        %v7645 = vcombine.low %v7491, %v7505
        %v7647 = vunpack.c.l.s4 1966171168
        %v7648 = vunpack.c.0.s8 %v7647
        %v7649 = vlaneseq
        %v7650 = vshrl.u32 %v7649, 7
        %v7651 = vsub.s32 %v7648, %v7650
        %v7652 = vrot.slane %v7645, %v7651
        %v7654 = vunpack.c.l.s4 1966171168
        %v7655 = vunpack.c.0.s8 %v7654
        %v7656 = vlaneseq
        %v7657 = vshrl.u32 %v7656, 7
        %v7658 = vsub.s32 %v7655, %v7657
        %v7659 = vrot.slane %v7513, %v7658
        %v7660 = vcombine.low %v7652, %v7659
        %v7662 = vunpack.c.l.s4 1966171168
        %v7663 = vunpack.c.0.s8 %v7662
        %v7664 = vlaneseq
        %v7665 = vshrl.u32 %v7664, 7
        %v7666 = vsub.s32 %v7663, %v7665
        %v7667 = vrot.slane %v7660, %v7666
        %v7668 = vcombine.low %v7515, %v7498
        %v7670 = vunpack.c.l.s4 1966171168
        %v7671 = vunpack.c.0.s8 %v7670
        %v7672 = vlaneseq
        %v7673 = vshrl.u32 %v7672, 7
        %v7674 = vsub.s32 %v7671, %v7673
        %v7675 = vrot.slane %v7668, %v7674
        %v7677 = vunpack.c.l.s4 1966171168
        %v7678 = vunpack.c.0.s8 %v7677
        %v7679 = vlaneseq
        %v7680 = vshrl.u32 %v7679, 7
        %v7681 = vsub.s32 %v7678, %v7680
        %v7682 = vrot.slane %v7512, %v7681
        %v7683 = vcombine.low %v7675, %v7682
        %v7685 = vunpack.c.l.s4 1966171168
        %v7686 = vunpack.c.0.s8 %v7685
        %v7687 = vlaneseq
        %v7688 = vshrl.u32 %v7687, 7
        %v7689 = vsub.s32 %v7686, %v7688
        %v7690 = vrot.slane %v7683, %v7689
        %v7691 = vcombine.low %v7514, %v7516
        %v7693 = vunpack.c.l.s4 1966171168
        %v7694 = vunpack.c.0.s8 %v7693
        %v7695 = vlaneseq
        %v7696 = vshrl.u32 %v7695, 7
        %v7697 = vsub.s32 %v7694, %v7696
        %v7698 = vrot.slane %v7691, %v7697
        %v7700 = vunpack.c.l.s4 1966171168
        %v7701 = vunpack.c.0.s8 %v7700
        %v7702 = vlaneseq
        %v7703 = vshrl.u32 %v7702, 7
        %v7704 = vsub.s32 %v7701, %v7703
        %v7705 = vrot.slane %v7531, %v7704
        %v7706 = vcombine.low %v7698, %v7705
        %v7708 = vunpack.c.l.s4 1966171168
        %v7709 = vunpack.c.0.s8 %v7708
        %v7710 = vlaneseq
        %v7711 = vshrl.u32 %v7710, 7
        %v7712 = vsub.s32 %v7709, %v7711
        %v7713 = vrot.slane %v7706, %v7712
        %v7714 = vcombine.low %v7538, %v7539
        %v7716 = vunpack.c.l.s4 1966171168
        %v7717 = vunpack.c.0.s8 %v7716
        %v7718 = vlaneseq
        %v7719 = vshrl.u32 %v7718, 7
        %v7720 = vsub.s32 %v7717, %v7719
        %v7721 = vrot.slane %v7714, %v7720
        %v7723 = vunpack.c.l.s4 1966171168
        %v7724 = vunpack.c.0.s8 %v7723
        %v7725 = vlaneseq
        %v7726 = vshrl.u32 %v7725, 7
        %v7727 = vsub.s32 %v7724, %v7726
        %v7728 = vrot.slane %v7540, %v7727
        %v7729 = vcombine.low %v7721, %v7728
        %v7731 = vunpack.c.l.s4 1966171168
        %v7732 = vunpack.c.0.s8 %v7731
        %v7733 = vlaneseq
        %v7734 = vshrl.u32 %v7733, 7
        %v7735 = vsub.s32 %v7732, %v7734
        %v7736 = vrot.slane %v7729, %v7735
        %v7741 = vsel %vm5892, -1e+10, %v7667
        %v7742 = vsel %vm5893, -1e+10, %v7690
        %v7743 = vsel %vm5894, -1e+10, %v7713
        %v7744 = vsel %vm5895, -1e+10, %v7736
        %7745 = vst [vmem:[%s1255] sm:$0x7] %v7741
        %7746 = vst [vmem:[%s1255 + $0x4] sm:$0x7] %v7742
        %7747 = vst [vmem:[%s1255 + $0x8] sm:$0x7] %v7743
        %7748 = vst [vmem:[%s1255 + $0xc] sm:$0x7] %v7744
        %s7749 = sand.u32 %s675, 1
        %s7750 = sand.u32 %s675, 1
        %s7751 = smul.addr %s7750, 16
        %s7752 = scalar_lea.vmem [#allocation25], %s7751
        %s7753 = sand.u32 %s701, 1
        %s7754 = sand.u32 %s701, 1
        %s7755 = smul.addr %s7754, 16
        %s7756 = scalar_lea.vmem [#allocation26], %s7755
        %s7757 = sand.u32 %s727, 1
        %s7758 = sand.u32 %s727, 1
        %s7759 = smul.addr %s7758, 16
        %s7760 = scalar_lea.vmem [#allocation27], %s7759
        // Predicated region
        $region270: #{tpu_custom_call.1} parent=201 // pred_check
          %p7761 = pneg %p685
        $region271: #{tpu_custom_call.1} parent=201 // pred_check_branch
          %7763 = sbr.rel (%p7761) target = $region273
        $region272: #{tpu_custom_call.1} parent=201 // pred_region
          %s7764 = smul.addr %s80, 4
          %s7765 = scalar_lea.vmem %s55, %s7764
          // Predicated region
          $region274: #{tpu_custom_call.1} parent=272 // pred_check
            _
          $region275: #{tpu_custom_call.1} parent=272 // pred_check_branch
            %7767 = sbr.rel (0) target = $region277
          $region276: #{tpu_custom_call.1} parent=272 // pred_region
            // Predicated region
            $region278: #{tpu_custom_call.1} parent=276 // pred_check
              _
            $region279: #{tpu_custom_call.1} parent=276 // pred_check_branch
              %7769 = sbr.rel target = $region281
            $region280: #{tpu_custom_call.1} parent=276 // pred_region
              // Predicated region
              $region293: #{tpu_custom_call.1} parent=280 // pred_check
                _
              $region294: #{tpu_custom_call.1} parent=280 // pred_check_branch
                %7790 = sbr.rel (0) target = $region296
              $region295: #{tpu_custom_call.1} parent=280 // pred_region
                loop: start=0, step=1, limit=1
                $region297: #{tpu_custom_call.1} parent=295 // loop_pre_header
                  _
                $region298: #{tpu_custom_call.1} parent=295 // loop_header
                  %s7792 = sphi 0, %s7796
                  %p7793 = scmp.ge.s32.totalorder %s7792, 1
                  %s7797 = sphi %s7752, %s7752
                  %s7798 = sphi %s7765, %s7765
                $region299: #{tpu_custom_call.1} parent=295 // loop_header_branch
                  %7795 = sbr.rel (%p7793) target = $region303
                $region300: #{tpu_custom_call.1} parent=295 // loop_body
                  _
                $region301: #{tpu_custom_call.1} parent=295 // loop_footer
                  %s7796 = sadd.s32 1, %s7792
                $region302: #{tpu_custom_call.1} parent=295 // loop_footer_branch
                  %7791 = sbr.rel target = $region298
                $region303: #{tpu_custom_call.1} parent=295 // loop_exit
                  _
                loop: start=0, step=1, limit=1
                $region304: #{tpu_custom_call.1} parent=295 // loop_pre_header
                  _
                $region305: #{tpu_custom_call.1} parent=295 // loop_header
                  %s7801 = sphi 0, %s7805
                  %p7802 = scmp.ge.s32.totalorder %s7801, 1
                  %s7806 = sphi %s7752, %s7752
                  %s7807 = sphi %s7765, %s7765
                $region306: #{tpu_custom_call.1} parent=295 // loop_header_branch
                  %7804 = sbr.rel (%p7802) target = $region310
                $region307: #{tpu_custom_call.1} parent=295 // loop_body
                  %v7808 = vld [vmem:[%s7806] sm:$0xf]
                  %7809 = vst [vmem:[%s7807] sm:$0xf] %v7808
                  %v7810 = vld [vmem:[%s7806 + $0x4] sm:$0xf]
                  %7811 = vst [vmem:[%s7807 + $0x8] sm:$0xf] %v7810
                  %v7812 = vld [vmem:[%s7806 + $0x8] sm:$0xf]
                  %7813 = vst [vmem:[%s7807 + $0x10] sm:$0xf] %v7812
                  %v7814 = vld [vmem:[%s7806 + $0xc] sm:$0xf]
                  %7815 = vst [vmem:[%s7807 + $0x18] sm:$0xf] %v7814
                $region308: #{tpu_custom_call.1} parent=295 // loop_footer
                  %s7805 = sadd.s32 1, %s7801
                $region309: #{tpu_custom_call.1} parent=295 // loop_footer_branch
                  %7800 = sbr.rel target = $region305
                $region310: #{tpu_custom_call.1} parent=295 // loop_exit
                  _
              $region296: #{tpu_custom_call.1} parent=280 // pred_fallthru
                _
            $region281: #{tpu_custom_call.1} parent=276 // pred_fallthru
              _
            // Predicated region
            $region282: #{tpu_custom_call.1} parent=276 // pred_check
              _
            $region283: #{tpu_custom_call.1} parent=276 // pred_check_branch
              %7771 = sbr.rel (0) target = $region285
            $region284: #{tpu_custom_call.1} parent=276 // pred_region
              loop: start=0, step=1, limit=1
              $region286: #{tpu_custom_call.1} parent=284 // loop_pre_header
                _
              $region287: #{tpu_custom_call.1} parent=284 // loop_header
                %s7774 = sphi 0, %s7778
                %p7775 = scmp.ge.s32.totalorder %s7774, 1
                %s7779 = sphi %s7752, %s7752
                %s7780 = sphi %s7765, %s7765
              $region288: #{tpu_custom_call.1} parent=284 // loop_header_branch
                %7777 = sbr.rel (%p7775) target = $region292
              $region289: #{tpu_custom_call.1} parent=284 // loop_body
                %v7781 = vld [vmem:[%s7779] sm:$0xf]
                %7782 = vst [vmem:[%s7780] sm:$0xf] %v7781
                %v7783 = vld [vmem:[%s7779 + $0x4] sm:$0xf]
                %7784 = vst [vmem:[%s7780 + $0x8] sm:$0xf] %v7783
                %v7785 = vld [vmem:[%s7779 + $0x8] sm:$0xf]
                %7786 = vst [vmem:[%s7780 + $0x10] sm:$0xf] %v7785
                %v7787 = vld [vmem:[%s7779 + $0xc] sm:$0xf]
                %7788 = vst [vmem:[%s7780 + $0x18] sm:$0xf] %v7787
              $region290: #{tpu_custom_call.1} parent=284 // loop_footer
                %s7778 = sadd.s32 1, %s7774
              $region291: #{tpu_custom_call.1} parent=284 // loop_footer_branch
                %7773 = sbr.rel target = $region287
              $region292: #{tpu_custom_call.1} parent=284 // loop_exit
                _
            $region285: #{tpu_custom_call.1} parent=276 // pred_fallthru
              _
          $region277: #{tpu_custom_call.1} parent=272 // pred_fallthru
            _
          %7816 = vnop
        $region273: #{tpu_custom_call.1} parent=201 // pred_fallthru
          _
        // Predicated region
        $region311: #{tpu_custom_call.1} parent=201 // pred_check
          %p7817 = pneg %p711
        $region312: #{tpu_custom_call.1} parent=201 // pred_check_branch
          %7819 = sbr.rel (%p7817) target = $region314
        $region313: #{tpu_custom_call.1} parent=201 // pred_region
          %s7820 = smul.addr %s80, 4
          %s7821 = scalar_lea.vmem %s57, %s7820
          // Predicated region
          $region315: #{tpu_custom_call.1} parent=313 // pred_check
            _
          $region316: #{tpu_custom_call.1} parent=313 // pred_check_branch
            %7823 = sbr.rel (0) target = $region318
          $region317: #{tpu_custom_call.1} parent=313 // pred_region
            // Predicated region
            $region319: #{tpu_custom_call.1} parent=317 // pred_check
              _
            $region320: #{tpu_custom_call.1} parent=317 // pred_check_branch
              %7825 = sbr.rel target = $region322
            $region321: #{tpu_custom_call.1} parent=317 // pred_region
              // Predicated region
              $region334: #{tpu_custom_call.1} parent=321 // pred_check
                _
              $region335: #{tpu_custom_call.1} parent=321 // pred_check_branch
                %7846 = sbr.rel (0) target = $region337
              $region336: #{tpu_custom_call.1} parent=321 // pred_region
                loop: start=0, step=1, limit=1
                $region338: #{tpu_custom_call.1} parent=336 // loop_pre_header
                  _
                $region339: #{tpu_custom_call.1} parent=336 // loop_header
                  %s7848 = sphi 0, %s7852
                  %p7849 = scmp.ge.s32.totalorder %s7848, 1
                  %s7853 = sphi %s7756, %s7756
                  %s7854 = sphi %s7821, %s7821
                $region340: #{tpu_custom_call.1} parent=336 // loop_header_branch
                  %7851 = sbr.rel (%p7849) target = $region344
                $region341: #{tpu_custom_call.1} parent=336 // loop_body
                  _
                $region342: #{tpu_custom_call.1} parent=336 // loop_footer
                  %s7852 = sadd.s32 1, %s7848
                $region343: #{tpu_custom_call.1} parent=336 // loop_footer_branch
                  %7847 = sbr.rel target = $region339
                $region344: #{tpu_custom_call.1} parent=336 // loop_exit
                  _
                loop: start=0, step=1, limit=1
                $region345: #{tpu_custom_call.1} parent=336 // loop_pre_header
                  _
                $region346: #{tpu_custom_call.1} parent=336 // loop_header
                  %s7857 = sphi 0, %s7861
                  %p7858 = scmp.ge.s32.totalorder %s7857, 1
                  %s7862 = sphi %s7756, %s7756
                  %s7863 = sphi %s7821, %s7821
                $region347: #{tpu_custom_call.1} parent=336 // loop_header_branch
                  %7860 = sbr.rel (%p7858) target = $region351
                $region348: #{tpu_custom_call.1} parent=336 // loop_body
                  %v7864 = vld [vmem:[%s7862] sm:$0xf]
                  %7865 = vst [vmem:[%s7863] sm:$0xf] %v7864
                  %v7866 = vld [vmem:[%s7862 + $0x4] sm:$0xf]
                  %7867 = vst [vmem:[%s7863 + $0x8] sm:$0xf] %v7866
                  %v7868 = vld [vmem:[%s7862 + $0x8] sm:$0xf]
                  %7869 = vst [vmem:[%s7863 + $0x10] sm:$0xf] %v7868
                  %v7870 = vld [vmem:[%s7862 + $0xc] sm:$0xf]
                  %7871 = vst [vmem:[%s7863 + $0x18] sm:$0xf] %v7870
                $region349: #{tpu_custom_call.1} parent=336 // loop_footer
                  %s7861 = sadd.s32 1, %s7857
                $region350: #{tpu_custom_call.1} parent=336 // loop_footer_branch
                  %7856 = sbr.rel target = $region346
                $region351: #{tpu_custom_call.1} parent=336 // loop_exit
                  _
              $region337: #{tpu_custom_call.1} parent=321 // pred_fallthru
                _
            $region322: #{tpu_custom_call.1} parent=317 // pred_fallthru
              _
            // Predicated region
            $region323: #{tpu_custom_call.1} parent=317 // pred_check
              _
            $region324: #{tpu_custom_call.1} parent=317 // pred_check_branch
              %7827 = sbr.rel (0) target = $region326
            $region325: #{tpu_custom_call.1} parent=317 // pred_region
              loop: start=0, step=1, limit=1
              $region327: #{tpu_custom_call.1} parent=325 // loop_pre_header
                _
              $region328: #{tpu_custom_call.1} parent=325 // loop_header
                %s7830 = sphi 0, %s7834
                %p7831 = scmp.ge.s32.totalorder %s7830, 1
                %s7835 = sphi %s7756, %s7756
                %s7836 = sphi %s7821, %s7821
              $region329: #{tpu_custom_call.1} parent=325 // loop_header_branch
                %7833 = sbr.rel (%p7831) target = $region333
              $region330: #{tpu_custom_call.1} parent=325 // loop_body
                %v7837 = vld [vmem:[%s7835] sm:$0xf]
                %7838 = vst [vmem:[%s7836] sm:$0xf] %v7837
                %v7839 = vld [vmem:[%s7835 + $0x4] sm:$0xf]
                %7840 = vst [vmem:[%s7836 + $0x8] sm:$0xf] %v7839
                %v7841 = vld [vmem:[%s7835 + $0x8] sm:$0xf]
                %7842 = vst [vmem:[%s7836 + $0x10] sm:$0xf] %v7841
                %v7843 = vld [vmem:[%s7835 + $0xc] sm:$0xf]
                %7844 = vst [vmem:[%s7836 + $0x18] sm:$0xf] %v7843
              $region331: #{tpu_custom_call.1} parent=325 // loop_footer
                %s7834 = sadd.s32 1, %s7830
              $region332: #{tpu_custom_call.1} parent=325 // loop_footer_branch
                %7829 = sbr.rel target = $region328
              $region333: #{tpu_custom_call.1} parent=325 // loop_exit
                _
            $region326: #{tpu_custom_call.1} parent=317 // pred_fallthru
              _
          $region318: #{tpu_custom_call.1} parent=313 // pred_fallthru
            _
          %7872 = vnop
        $region314: #{tpu_custom_call.1} parent=201 // pred_fallthru
          _
        // Predicated region
        $region352: #{tpu_custom_call.1} parent=201 // pred_check
          %p7873 = pneg %p737
        $region353: #{tpu_custom_call.1} parent=201 // pred_check_branch
          %7875 = sbr.rel (%p7873) target = $region355
        $region354: #{tpu_custom_call.1} parent=201 // pred_region
          %s7876 = smul.addr %s80, 4
          %s7877 = scalar_lea.vmem %s59, %s7876
          // Predicated region
          $region356: #{tpu_custom_call.1} parent=354 // pred_check
            _
          $region357: #{tpu_custom_call.1} parent=354 // pred_check_branch
            %7879 = sbr.rel (0) target = $region359
          $region358: #{tpu_custom_call.1} parent=354 // pred_region
            // Predicated region
            $region360: #{tpu_custom_call.1} parent=358 // pred_check
              _
            $region361: #{tpu_custom_call.1} parent=358 // pred_check_branch
              %7881 = sbr.rel target = $region363
            $region362: #{tpu_custom_call.1} parent=358 // pred_region
              // Predicated region
              $region375: #{tpu_custom_call.1} parent=362 // pred_check
                _
              $region376: #{tpu_custom_call.1} parent=362 // pred_check_branch
                %7902 = sbr.rel (0) target = $region378
              $region377: #{tpu_custom_call.1} parent=362 // pred_region
                loop: start=0, step=1, limit=1
                $region379: #{tpu_custom_call.1} parent=377 // loop_pre_header
                  _
                $region380: #{tpu_custom_call.1} parent=377 // loop_header
                  %s7904 = sphi 0, %s7908
                  %p7905 = scmp.ge.s32.totalorder %s7904, 1
                  %s7909 = sphi %s7760, %s7760
                  %s7910 = sphi %s7877, %s7877
                $region381: #{tpu_custom_call.1} parent=377 // loop_header_branch
                  %7907 = sbr.rel (%p7905) target = $region385
                $region382: #{tpu_custom_call.1} parent=377 // loop_body
                  _
                $region383: #{tpu_custom_call.1} parent=377 // loop_footer
                  %s7908 = sadd.s32 1, %s7904
                $region384: #{tpu_custom_call.1} parent=377 // loop_footer_branch
                  %7903 = sbr.rel target = $region380
                $region385: #{tpu_custom_call.1} parent=377 // loop_exit
                  _
                loop: start=0, step=1, limit=1
                $region386: #{tpu_custom_call.1} parent=377 // loop_pre_header
                  _
                $region387: #{tpu_custom_call.1} parent=377 // loop_header
                  %s7913 = sphi 0, %s7917
                  %p7914 = scmp.ge.s32.totalorder %s7913, 1
                  %s7918 = sphi %s7760, %s7760
                  %s7919 = sphi %s7877, %s7877
                $region388: #{tpu_custom_call.1} parent=377 // loop_header_branch
                  %7916 = sbr.rel (%p7914) target = $region392
                $region389: #{tpu_custom_call.1} parent=377 // loop_body
                  %v7920 = vld [vmem:[%s7918] sm:$0xf]
                  %7921 = vst [vmem:[%s7919] sm:$0xf] %v7920
                  %v7922 = vld [vmem:[%s7918 + $0x4] sm:$0xf]
                  %7923 = vst [vmem:[%s7919 + $0x8] sm:$0xf] %v7922
                  %v7924 = vld [vmem:[%s7918 + $0x8] sm:$0xf]
                  %7925 = vst [vmem:[%s7919 + $0x10] sm:$0xf] %v7924
                  %v7926 = vld [vmem:[%s7918 + $0xc] sm:$0xf]
                  %7927 = vst [vmem:[%s7919 + $0x18] sm:$0xf] %v7926
                $region390: #{tpu_custom_call.1} parent=377 // loop_footer
                  %s7917 = sadd.s32 1, %s7913
                $region391: #{tpu_custom_call.1} parent=377 // loop_footer_branch
                  %7912 = sbr.rel target = $region387
                $region392: #{tpu_custom_call.1} parent=377 // loop_exit
                  _
              $region378: #{tpu_custom_call.1} parent=362 // pred_fallthru
                _
            $region363: #{tpu_custom_call.1} parent=358 // pred_fallthru
              _
            // Predicated region
            $region364: #{tpu_custom_call.1} parent=358 // pred_check
              _
            $region365: #{tpu_custom_call.1} parent=358 // pred_check_branch
              %7883 = sbr.rel (0) target = $region367
            $region366: #{tpu_custom_call.1} parent=358 // pred_region
              loop: start=0, step=1, limit=1
              $region368: #{tpu_custom_call.1} parent=366 // loop_pre_header
                _
              $region369: #{tpu_custom_call.1} parent=366 // loop_header
                %s7886 = sphi 0, %s7890
                %p7887 = scmp.ge.s32.totalorder %s7886, 1
                %s7891 = sphi %s7760, %s7760
                %s7892 = sphi %s7877, %s7877
              $region370: #{tpu_custom_call.1} parent=366 // loop_header_branch
                %7889 = sbr.rel (%p7887) target = $region374
              $region371: #{tpu_custom_call.1} parent=366 // loop_body
                %v7893 = vld [vmem:[%s7891] sm:$0xf]
                %7894 = vst [vmem:[%s7892] sm:$0xf] %v7893
                %v7895 = vld [vmem:[%s7891 + $0x4] sm:$0xf]
                %7896 = vst [vmem:[%s7892 + $0x8] sm:$0xf] %v7895
                %v7897 = vld [vmem:[%s7891 + $0x8] sm:$0xf]
                %7898 = vst [vmem:[%s7892 + $0x10] sm:$0xf] %v7897
                %v7899 = vld [vmem:[%s7891 + $0xc] sm:$0xf]
                %7900 = vst [vmem:[%s7892 + $0x18] sm:$0xf] %v7899
              $region372: #{tpu_custom_call.1} parent=366 // loop_footer
                %s7890 = sadd.s32 1, %s7886
              $region373: #{tpu_custom_call.1} parent=366 // loop_footer_branch
                %7885 = sbr.rel target = $region369
              $region374: #{tpu_custom_call.1} parent=366 // loop_exit
                _
            $region367: #{tpu_custom_call.1} parent=358 // pred_fallthru
              _
          $region359: #{tpu_custom_call.1} parent=354 // pred_fallthru
            _
          %7928 = vnop
        $region355: #{tpu_custom_call.1} parent=201 // pred_fallthru
          _
      $region202: #{tpu_custom_call.1} parent=5 // pred_fallthru
        _
      %p7929 = scmp.le.s32.totalorder 2, %s75
      // Predicated region
      $region393: #{tpu_custom_call.1} parent=5 // pred_check
        %p7930 = pneg %p7929
      $region394: #{tpu_custom_call.1} parent=5 // pred_check_branch
        %7932 = sbr.rel (%p7930) target = $region396
      $region395: #{tpu_custom_call.1} parent=5 // pred_region
        %s7933 = ssub.s32 %s75, 2
        // Predicated region
        $region397: #{tpu_custom_call.1} parent=395 // pred_check
          %p7934 = pneg %p691
        $region398: #{tpu_custom_call.1} parent=395 // pred_check_branch
          %7936 = sbr.rel (%p7934) target = $region400
        $region399: #{tpu_custom_call.1} parent=395 // pred_region
          %s7937 = sand.u32 %s676, 1
          %s7938 = sand.u32 %s676, 1
          %s7939 = smul.addr %s7938, 16
          %s7940 = scalar_lea.vmem [#allocation25], %s7939
        $region400: #{tpu_custom_call.1} parent=395 // pred_fallthru
          _
        // Predicated region
        $region401: #{tpu_custom_call.1} parent=395 // pred_check
          %p7941 = pneg %p717
        $region402: #{tpu_custom_call.1} parent=395 // pred_check_branch
          %7943 = sbr.rel (%p7941) target = $region404
        $region403: #{tpu_custom_call.1} parent=395 // pred_region
          %s7944 = sand.u32 %s702, 1
          %s7945 = sand.u32 %s702, 1
          %s7946 = smul.addr %s7945, 16
          %s7947 = scalar_lea.vmem [#allocation26], %s7946
        $region404: #{tpu_custom_call.1} parent=395 // pred_fallthru
          _
        // Predicated region
        $region405: #{tpu_custom_call.1} parent=395 // pred_check
          %p7948 = pneg %p743
        $region406: #{tpu_custom_call.1} parent=395 // pred_check_branch
          %7950 = sbr.rel (%p7948) target = $region408
        $region407: #{tpu_custom_call.1} parent=395 // pred_region
          %s7951 = sand.u32 %s728, 1
          %s7952 = sand.u32 %s728, 1
          %s7953 = smul.addr %s7952, 16
          %s7954 = scalar_lea.vmem [#allocation27], %s7953
        $region408: #{tpu_custom_call.1} parent=395 // pred_fallthru
          _
      $region396: #{tpu_custom_call.1} parent=5 // pred_fallthru
        _
    $region6: #{tpu_custom_call.1} parent=1 // loop_footer
      %s79 = sadd.s32 1, %s75
    $region7: #{tpu_custom_call.1} parent=1 // loop_footer_branch
      %74 = sbr.rel target = $region3
    $region8: #{tpu_custom_call.1} parent=1 // loop_exit
      _
    %7955 = vsyncpa [#allocation4], 1
    %s7956 = scalar_lea.sflag [#allocation4], 1
    %7957 = vsyncpa %s7956, 1
    %7958 = vsyncpa [#allocation8], 1
    %7959 = vsyncpa [#allocation11], 1
    %7960 = vsyncpa [#allocation14], 1
    %7961 = vsyncpa [#allocation17], 1
    %7962 = vsyncpa [#allocation20], 1
    %7963 = vsyncpa [#allocation23], 1

</llo_original>
